<compile_context>
chip_gen: v5e
topology: v5e:2x2
jax: 0.10.0
libtpu: 0.0.40
codegen_flags: <defaults>
</compile_context>

<pallas_src>
import math
import warnings

import jax
import jax.numpy as jnp
from jax import lax
from jax.experimental import pallas as pl
from jax.experimental.pallas import tpu as pltpu

# Module constants (from the PyTorch source).
D_K = D_V = 64
D_MODEL = 512
N_HEADS = 8
D_FF = 2048
LN_EPS = 1e-5  # nn.LayerNorm default; gamma=1 / beta=0 (fresh LayerNorm each fwd)


def _layernorm(x):
    mu = jnp.mean(x, axis=-1, keepdims=True)
    xc = x - mu
    var = jnp.mean(xc * xc, axis=-1, keepdims=True)
    return xc * lax.rsqrt(var + LN_EPS)  # rsqrt -> EUP slot, not a VALU divide


def encoder_layer_kernel(x_ref, mask_ref, wqkv_ref, wo_ref, w1_ref, w2_ref,
                         out_ref, attn_ref):
    """One block of Bt batch elements per grid step.

    x_ref:    (Bt, S, D_MODEL)       float32
    mask_ref: (Bt, S, S)             int8   (1 = masked)
    wqkv_ref: (D_MODEL, 3*D_MODEL)   bfloat16  ([W_Q/sqrt(d_k) | W_K | W_V])
    wo_ref:   (D_MODEL, D_MODEL)     bfloat16
    w1_ref:   (D_MODEL, D_FF)        bfloat16
    w2_ref:   (D_FF, D_MODEL)        bfloat16
    out_ref:  (Bt, S, D_MODEL)       float32
    attn_ref: (Bt, N_HEADS, S, S)    bf16 (default) or f32
    """
    Bt, S, _ = x_ref.shape

    x = x_ref[...]                                   # (Bt, S, D) f32 residual
    x2d = x.reshape(Bt * S, D_MODEL)                 # fold batch into MXU M dim

    # Fused QKV projection (bias=False): one (Bt*S,512)@(512,1536) bf16 matmul.
    # The 1/sqrt(d_k) scale is already folded into the Q columns of wqkv.
    qkv = jnp.dot(x2d.astype(jnp.bfloat16), wqkv_ref[...],
                  preferred_element_type=jnp.float32)       # (Bt*S, 1536) f32
    q_bf = qkv[:, 0 * D_MODEL:1 * D_MODEL].astype(jnp.bfloat16).reshape(Bt, S, D_MODEL)
    k_bf = qkv[:, 1 * D_MODEL:2 * D_MODEL].astype(jnp.bfloat16).reshape(Bt, S, D_MODEL)
    v_bf = qkv[:, 2 * D_MODEL:3 * D_MODEL].astype(jnp.bfloat16).reshape(Bt, S, D_MODEL)

    # Additive mask bias computed once for all heads (equivalent to
    # masked_fill(-1e9) whenever a query row has at least one unmasked key).
    bias = mask_ref[...].astype(jnp.float32) * (-1000000000.0)   # (Bt, S, S)

    # Per-head score matmuls (MXU), then one batched softmax over all heads.
    scores = jnp.stack(
        [jnp.einsum('bqd,bkd->bqk',
                    q_bf[:, :, h * D_K:(h + 1) * D_K],
                    k_bf[:, :, h * D_K:(h + 1) * D_K],
                    preferred_element_type=jnp.float32)
         for h in range(N_HEADS)], axis=1)                       # (Bt, H, S, S)
    scores = scores + bias[:, None, :, :]
    m = jnp.max(scores, axis=-1, keepdims=True)
    e = jnp.exp(scores - m)
    denom = jnp.sum(e, axis=-1, keepdims=True)
    attn = e * pl.reciprocal(denom, approx=True)                 # EUP reciprocal
    attn_ref[...] = attn.astype(attn_ref.dtype)                  # single store

    # Per-head context, lane-concatenated and fed straight to the output
    # projection (no VMEM scratch round trip).
    attn_bf = attn.astype(jnp.bfloat16)
    context = jnp.concatenate(
        [jnp.einsum('bqk,bkd->bqd',
                    attn_bf[:, h],
                    v_bf[:, :, h * D_V:(h + 1) * D_V],
                    preferred_element_type=jnp.float32)
         for h in range(N_HEADS)], axis=-1).reshape(Bt * S, D_MODEL)

    attn_out = jnp.dot(context.astype(jnp.bfloat16), wo_ref[...],
                       preferred_element_type=jnp.float32)

    # Add & Norm (attention sublayer).
    y1 = _layernorm(attn_out + x2d)

    # Position-wise FFN: Linear -> ReLU -> Linear (bias=False).
    h1 = jnp.maximum(
        jnp.dot(y1.astype(jnp.bfloat16), w1_ref[...],
                preferred_element_type=jnp.float32), 0.0)
    ffn = jnp.dot(h1.astype(jnp.bfloat16), w2_ref[...],
                  preferred_element_type=jnp.float32)

    # Add & Norm (FFN sublayer).
    out_ref[...] = _layernorm(ffn + y1).reshape(Bt, S, D_MODEL)


def _tpu_info():
    """Best-effort chip introspection: (VMEM bytes, MXU M target, #TensorCores)."""
    vmem_bytes, target_m, n_tc = 128 << 20, 256, 1   # v6e-style defaults
    try:
        kind = jax.devices()[0].device_kind.lower()
    except Exception:
        kind = ""
    if "v7" in kind:                                  # v7x: 64 MiB VMEM, 2 TCs
        vmem_bytes, n_tc = 64 << 20, 2
    elif "v5e" in kind or "v5 lite" in kind or "v5lite" in kind:
        target_m = 128                                # v5e MXU is 128 rows wide
    elif "v4" in kind or "v3" in kind or "v2" in kind:
        target_m, n_tc = 128, 2
    return vmem_bytes, target_m, n_tc


def _vmem_estimate_bytes(Bt, S, attn_itemsize, single_buffer_weights=True):
    f32 = 4
    wbytes = (D_MODEL * 3 * D_MODEL + D_MODEL * D_MODEL +
              D_MODEL * D_FF + D_FF * D_MODEL) * 2            # bf16 weights
    if not single_buffer_weights:
        wbytes *= 2
    io = 2 * (Bt * S * D_MODEL * f32                  # x block (double-buffered)
              + Bt * S * S                            # int8 mask block
              + Bt * S * D_MODEL * f32                # enc_out block
              + Bt * N_HEADS * S * S * attn_itemsize)  # attn-probs block
    live = (Bt * S * (3 * D_MODEL + D_FF + 2 * D_MODEL) * f32  # qkv/ffn temps
            + 3 * Bt * N_HEADS * S * S * f32)                  # scores/e/attn
    return int(1.4 * (wbytes + io + live)) + (4 << 20)


def _pick_batch_tile(B, S, target_m, n_tc, vmem_bytes, attn_itemsize):
    """Fold batch rows so matmul M = Bt*S targets the chip's MXU row count,
    keep >= n_tc grid steps only on multi-TC chips, and shrink Bt if the
    per-step VMEM footprint (dominated by the attn block at large S) would
    exceed the chip's budget."""
    bt = max(1, min(B, pl.cdiv(target_m, S)))
    while B % bt:
        bt -= 1
    if n_tc > 1:
        while bt > 1 and (B // bt) < n_tc:
            bt -= 1
        while B % bt:
            bt -= 1
    budget = (vmem_bytes * 3) // 4
    while bt > 1 and _vmem_estimate_bytes(bt, S, attn_itemsize) > budget:
        bt -= 1
        while B % bt:
            bt -= 1
    # TODO(synk): add a head (or query-tile) grid axis for the attention-prob
    # path so very large S still fits v7x's 64 MiB VMEM even at Bt=1.
    return bt


def _vmem_limit_bytes(Bt, S, attn_itemsize, vmem_bytes, single_buffer_weights):
    est = _vmem_estimate_bytes(Bt, S, attn_itemsize, single_buffer_weights)
    cap = (vmem_bytes * 3) // 4    # 96 MiB on 128-MiB parts, 48 MiB on v7x
    return max(32 << 20, min(est, cap))


def _build_and_run(x, mask_i8, wqkv, wo, w1, w2, Bt, attn_dtype, vmem_bytes,
                   single_buffer_weights):
    B, S, _ = x.shape

    def weight_spec(shape):
        if single_buffer_weights:
            # Block index is constant across the grid -> one VMEM copy suffices.
            return pl.BlockSpec(shape, lambda b: (0, 0),
                                pipeline_mode=pl.Buffered(1))
        return pl.BlockSpec(shape, lambda b: (0, 0))

    grid_spec = pltpu.PrefetchScalarGridSpec(
        num_scalar_prefetch=0,
        grid=(B // Bt,),
        in_specs=[
            pl.BlockSpec((Bt, S, D_MODEL), lambda b: (b, 0, 0)),
            pl.BlockSpec((Bt, S, S), lambda b: (b, 0, 0)),
            weight_spec((D_MODEL, 3 * D_MODEL)),   # fused [W_Q/sqrt(dk)|W_K|W_V]
            weight_spec((D_MODEL, D_MODEL)),       # fc (output proj)
            weight_spec((D_MODEL, D_FF)),          # FFN linear 1
            weight_spec((D_FF, D_MODEL)),          # FFN linear 2
        ],
        out_specs=[
            pl.BlockSpec((Bt, S, D_MODEL), lambda b: (b, 0, 0)),
            pl.BlockSpec((Bt, N_HEADS, S, S), lambda b: (b, 0, 0, 0)),
        ],
    )

    out, attn = pl.pallas_call(
        encoder_layer_kernel,
        out_shape=(jax.ShapeDtypeStruct((B, S, D_MODEL), jnp.float32),
                   jax.ShapeDtypeStruct((B, N_HEADS, S, S), attn_dtype)),
        grid_spec=grid_spec,
        compiler_params=pltpu.CompilerParams(
            dimension_semantics=("parallel",),
            vmem_limit_bytes=_vmem_limit_bytes(
                Bt, S, jnp.dtype(attn_dtype).itemsize, vmem_bytes,
                single_buffer_weights)),
    )(x, mask_i8, wqkv, wo, w1, w2)
    return jax.block_until_ready((out, attn))


def encoder_layer(x, attn_mask_bool, wq, wk, wv, wo, w1, w2,
                  attn_dtype=jnp.bfloat16):
    """x: [B, S, D_MODEL] f32; attn_mask_bool: [B, S, S] bool (True = masked).

    Returns (enc_outputs f32 [B,S,512], attn [B,8,S,S] in `attn_dtype`).
    attn defaults to bf16 (halves its HBM writeback); pass jnp.float32 to
    match the torch module's output dtype exactly.
    """
    B, S, _ = x.shape
    vmem_bytes, target_m, n_tc = _tpu_info()
    attn_itemsize = jnp.dtype(attn_dtype).itemsize
    Bt = _pick_batch_tile(B, S, target_m, n_tc, vmem_bytes, attn_itemsize)

    mask_i8 = attn_mask_bool.astype(jnp.int8)
    scale = 1.0 / math.sqrt(D_K)   # 1/8: exact power-of-two weight rescale
    wqkv = jnp.concatenate([wq * scale, wk, wv], axis=1).astype(jnp.bfloat16)
    wo_b, w1_b, w2_b = (w.astype(jnp.bfloat16) for w in (wo, w1, w2))

    single = hasattr(pl, "Buffered")
    try:
        return _build_and_run(x, mask_i8, wqkv, wo_b, w1_b, w2_b, Bt,
                              attn_dtype, vmem_bytes,
                              single_buffer_weights=single)
    except (TypeError, ValueError, NotImplementedError,
            pltpu.LoweringException) as e:
        if not single:
            raise
        warnings.warn("single-buffered weight specs (pl.Buffered(1)) were "
                      f"rejected ({e!r}); retrying with default double "
                      "buffering (~6 MiB extra VMEM).")
        return _build_and_run(x, mask_i8, wqkv, wo_b, w1_b, w2_b, Bt,
                              attn_dtype, vmem_bytes,
                              single_buffer_weights=False)


def _reference(x, mask_bool, wq, wk, wv, wo, w1, w2):
    """Pure-JAX f32 mirror of the PyTorch forward (correctness check)."""
    B, S, _ = x.shape

    def heads(t):  # [B,S,H*D] -> [B,H,S,D]
        return t.reshape(B, S, N_HEADS, -1).transpose(0, 2, 1, 3)

    Q, K, V = heads(x @ wq), heads(x @ wk), heads(x @ wv)
    scores = jnp.einsum('bhqd,bhkd->bhqk', Q, K) / math.sqrt(D_K)
    scores = jnp.where(mask_bool[:, None, :, :], -1000000000.0, scores)
    attn = jax.nn.softmax(scores, axis=-1)
    ctx = jnp.einsum('bhqk,bhkd->bhqd', attn, V)
    ctx = ctx.transpose(0, 2, 1, 3).reshape(B, S, N_HEADS * D_V)
    y1 = _layernorm(ctx @ wo + x)
    out = _layernorm(jnp.maximum(y1 @ w1, 0.0) @ w2 + y1)
    return out, attn


def _linear_weight(key, fan_in, fan_out):
    # nn.Linear default init: U(-1/sqrt(fan_in), 1/sqrt(fan_in)); stored as
    # (in, out) so forward is x @ W (equivalent to torch's x @ W.T).
    bound = 1.0 / math.sqrt(fan_in)
    return jax.random.uniform(key, (fan_in, fan_out), jnp.float32,
                              minval=-bound, maxval=bound)


if __name__ == "__main__":
    key = jax.random.PRNGKey(0)
    kx, kq, kk, kv, ko, k1, k2 = jax.random.split(key, 7)

    B, S = 2, 8
    x = jax.random.normal(kx, (B, S, D_MODEL), jnp.float32)

    # Padding-style self-attention mask: last 2 key positions of batch 1 masked.
    valid_len = jnp.array([S, S - 2])
    col = jnp.arange(S)
    attn_mask = (col[None, None, :] >= valid_len[:, None, None])  # [B,S,S] bool
    attn_mask = jnp.broadcast_to(attn_mask, (B, S, S))

    wq = _linear_weight(kq, D_MODEL, D_K * N_HEADS)
    wk = _linear_weight(kk, D_MODEL, D_K * N_HEADS)
    wv = _linear_weight(kv, D_MODEL, D_V * N_HEADS)
    wo = _linear_weight(ko, N_HEADS * D_V, D_MODEL)
    w1 = _linear_weight(k1, D_MODEL, D_FF)
    w2 = _linear_weight(k2, D_FF, D_MODEL)

    enc_out, attn = encoder_layer(x, attn_mask, wq, wk, wv, wo, w1, w2)
    jax.block_until_ready((enc_out, attn))

    ref_out, ref_attn = _reference(x, attn_mask, wq, wk, wv, wo, w1, w2)
    assert enc_out.shape == (B, S, D_MODEL)
    assert attn.shape == (B, N_HEADS, S, S)
    # Kernel uses bf16 MXU operands (f32 accumulation) and emits bf16 attention
    # probabilities, so tolerances are loosened vs the pure-f32 reference.
    assert jnp.allclose(enc_out, ref_out, atol=3e-2, rtol=3e-2)
    assert jnp.allclose(attn.astype(jnp.float32), ref_attn, atol=2e-2, rtol=2e-2)

    print("KERNEL_OK")
</pallas_src>

<mosaic_0001>
module attributes {stable_mosaic.version = 11 : i64} {
  func.func @encoder_layer_kernel(%arg0: i32, %arg1: memref<2x8x512xf32, #tpu.memory_space<vmem>>, %arg2: memref<2x8x8xi8, #tpu.memory_space<vmem>>, %arg3: memref<512x1536xbf16, #tpu.memory_space<vmem>>, %arg4: memref<512x512xbf16, #tpu.memory_space<vmem>>, %arg5: memref<512x2048xbf16, #tpu.memory_space<vmem>>, %arg6: memref<2048x512xbf16, #tpu.memory_space<vmem>>, %arg7: memref<2x8x512xf32, #tpu.memory_space<vmem>>, %arg8: memref<2x8x8x8xbf16, #tpu.memory_space<vmem>>) attributes {dimension_semantics = [#tpu.dimension_semantics<parallel>], iteration_bounds = array<i64: 1>, scalar_prefetch = 0 : i64, scratch_operands = 0 : i64, tpu.core_type = #tpu.core_type<tc>, window_params = [{transform_indices = @transform_0, window_bounds = array<i64: 2, 8, 512>}, {transform_indices = @transform_1, window_bounds = array<i64: 2, 8, 8>}, {pipeline_mode = #tpu.pipeline_mode<synchronous>, transform_indices = @transform_2, window_bounds = array<i64: 512, 1536>}, {pipeline_mode = #tpu.pipeline_mode<synchronous>, transform_indices = @transform_3, window_bounds = array<i64: 512, 512>}, {pipeline_mode = #tpu.pipeline_mode<synchronous>, transform_indices = @transform_4, window_bounds = array<i64: 512, 2048>}, {pipeline_mode = #tpu.pipeline_mode<synchronous>, transform_indices = @transform_5, window_bounds = array<i64: 2048, 512>}, {transform_indices = @transform_6, window_bounds = array<i64: 2, 8, 512>}, {transform_indices = @transform_7, window_bounds = array<i64: 2, 8, 8, 8>}]} {
    %c0 = arith.constant 0 : index
    %c0_0 = arith.constant 0 : index
    %c0_1 = arith.constant 0 : index
    %0 = vector.load %arg1[%c0, %c0_0, %c0_1] : memref<2x8x512xf32, #tpu.memory_space<vmem>>, vector<2x8x512xf32>
    %1 = vector.shape_cast %0 : vector<2x8x512xf32> to vector<16x512xf32>
    %2 = arith.truncf %1 : vector<16x512xf32> to vector<16x512xbf16>
    %c0_2 = arith.constant 0 : index
    %c0_3 = arith.constant 0 : index
    %3 = vector.load %arg3[%c0_2, %c0_3] : memref<512x1536xbf16, #tpu.memory_space<vmem>>, vector<512x1536xbf16>
    %cst = arith.constant dense<0.000000e+00> : vector<16x1536xf32>
    %4 = tpu.matmul %2, %3, %cst {dimension_numbers = #tpu.dot_dimension_numbers<[1], [0], [0], [1], [0, 0, 1, 1], [], []>} : vector<16x512xbf16>, vector<512x1536xbf16>, vector<16x1536xf32> -> vector<16x1536xf32>
    %5 = vector.extract_strided_slice %4 {offsets = [0, 0], sizes = [16, 512], strides = [1, 1]} : vector<16x1536xf32> to vector<16x512xf32>
    %6 = arith.truncf %5 : vector<16x512xf32> to vector<16x512xbf16>
    %7 = vector.shape_cast %6 : vector<16x512xbf16> to vector<2x8x512xbf16>
    %8 = vector.extract_strided_slice %4 {offsets = [0, 512], sizes = [16, 512], strides = [1, 1]} : vector<16x1536xf32> to vector<16x512xf32>
    %9 = arith.truncf %8 : vector<16x512xf32> to vector<16x512xbf16>
    %10 = vector.shape_cast %9 : vector<16x512xbf16> to vector<2x8x512xbf16>
    %11 = vector.extract_strided_slice %4 {offsets = [0, 1024], sizes = [16, 512], strides = [1, 1]} : vector<16x1536xf32> to vector<16x512xf32>
    %12 = arith.truncf %11 : vector<16x512xf32> to vector<16x512xbf16>
    %13 = vector.shape_cast %12 : vector<16x512xbf16> to vector<2x8x512xbf16>
    %c0_4 = arith.constant 0 : index
    %c0_5 = arith.constant 0 : index
    %c0_6 = arith.constant 0 : index
    %14 = vector.load %arg2[%c0_4, %c0_5, %c0_6] : memref<2x8x8xi8, #tpu.memory_space<vmem>>, vector<2x8x8xi8>
    %15 = arith.sitofp %14 : vector<2x8x8xi8> to vector<2x8x8xf32>
    %cst_7 = arith.constant -1.000000e+09 : f32
    %16 = vector.broadcast %cst_7 : f32 to vector<2x8x8xf32>
    %17 = arith.mulf %15, %16 : vector<2x8x8xf32>
    %18 = vector.extract_strided_slice %7 {offsets = [0, 0, 0], sizes = [2, 8, 64], strides = [1, 1, 1]} : vector<2x8x512xbf16> to vector<2x8x64xbf16>
    %19 = vector.extract_strided_slice %10 {offsets = [0, 0, 0], sizes = [2, 8, 64], strides = [1, 1, 1]} : vector<2x8x512xbf16> to vector<2x8x64xbf16>
    "tpu.trace_start"() <{level = 10 : i32, message = "bqd,bkd->bqk"}> : () -> ()
    %cst_8 = arith.constant dense<0.000000e+00> : vector<2x8x8xf32>
    %20 = tpu.matmul %18, %19, %cst_8 {dimension_numbers = #tpu.dot_dimension_numbers<[2], [2], [1], [1], [0, 0, 0, 1, 1, 1], [0], [0]>} : vector<2x8x64xbf16>, vector<2x8x64xbf16>, vector<2x8x8xf32> -> vector<2x8x8xf32>
    "tpu.trace_stop"() : () -> ()
    %21 = vector.extract_strided_slice %7 {offsets = [0, 0, 64], sizes = [2, 8, 64], strides = [1, 1, 1]} : vector<2x8x512xbf16> to vector<2x8x64xbf16>
    %22 = vector.extract_strided_slice %10 {offsets = [0, 0, 64], sizes = [2, 8, 64], strides = [1, 1, 1]} : vector<2x8x512xbf16> to vector<2x8x64xbf16>
    "tpu.trace_start"() <{level = 10 : i32, message = "bqd,bkd->bqk"}> : () -> ()
    %cst_9 = arith.constant dense<0.000000e+00> : vector<2x8x8xf32>
    %23 = tpu.matmul %21, %22, %cst_9 {dimension_numbers = #tpu.dot_dimension_numbers<[2], [2], [1], [1], [0, 0, 0, 1, 1, 1], [0], [0]>} : vector<2x8x64xbf16>, vector<2x8x64xbf16>, vector<2x8x8xf32> -> vector<2x8x8xf32>
    "tpu.trace_stop"() : () -> ()
    %24 = vector.extract_strided_slice %7 {offsets = [0, 0, 128], sizes = [2, 8, 64], strides = [1, 1, 1]} : vector<2x8x512xbf16> to vector<2x8x64xbf16>
    %25 = vector.extract_strided_slice %10 {offsets = [0, 0, 128], sizes = [2, 8, 64], strides = [1, 1, 1]} : vector<2x8x512xbf16> to vector<2x8x64xbf16>
    "tpu.trace_start"() <{level = 10 : i32, message = "bqd,bkd->bqk"}> : () -> ()
    %cst_10 = arith.constant dense<0.000000e+00> : vector<2x8x8xf32>
    %26 = tpu.matmul %24, %25, %cst_10 {dimension_numbers = #tpu.dot_dimension_numbers<[2], [2], [1], [1], [0, 0, 0, 1, 1, 1], [0], [0]>} : vector<2x8x64xbf16>, vector<2x8x64xbf16>, vector<2x8x8xf32> -> vector<2x8x8xf32>
    "tpu.trace_stop"() : () -> ()
    %27 = vector.extract_strided_slice %7 {offsets = [0, 0, 192], sizes = [2, 8, 64], strides = [1, 1, 1]} : vector<2x8x512xbf16> to vector<2x8x64xbf16>
    %28 = vector.extract_strided_slice %10 {offsets = [0, 0, 192], sizes = [2, 8, 64], strides = [1, 1, 1]} : vector<2x8x512xbf16> to vector<2x8x64xbf16>
    "tpu.trace_start"() <{level = 10 : i32, message = "bqd,bkd->bqk"}> : () -> ()
    %cst_11 = arith.constant dense<0.000000e+00> : vector<2x8x8xf32>
    %29 = tpu.matmul %27, %28, %cst_11 {dimension_numbers = #tpu.dot_dimension_numbers<[2], [2], [1], [1], [0, 0, 0, 1, 1, 1], [0], [0]>} : vector<2x8x64xbf16>, vector<2x8x64xbf16>, vector<2x8x8xf32> -> vector<2x8x8xf32>
    "tpu.trace_stop"() : () -> ()
    %30 = vector.extract_strided_slice %7 {offsets = [0, 0, 256], sizes = [2, 8, 64], strides = [1, 1, 1]} : vector<2x8x512xbf16> to vector<2x8x64xbf16>
    %31 = vector.extract_strided_slice %10 {offsets = [0, 0, 256], sizes = [2, 8, 64], strides = [1, 1, 1]} : vector<2x8x512xbf16> to vector<2x8x64xbf16>
    "tpu.trace_start"() <{level = 10 : i32, message = "bqd,bkd->bqk"}> : () -> ()
    %cst_12 = arith.constant dense<0.000000e+00> : vector<2x8x8xf32>
    %32 = tpu.matmul %30, %31, %cst_12 {dimension_numbers = #tpu.dot_dimension_numbers<[2], [2], [1], [1], [0, 0, 0, 1, 1, 1], [0], [0]>} : vector<2x8x64xbf16>, vector<2x8x64xbf16>, vector<2x8x8xf32> -> vector<2x8x8xf32>
    "tpu.trace_stop"() : () -> ()
    %33 = vector.extract_strided_slice %7 {offsets = [0, 0, 320], sizes = [2, 8, 64], strides = [1, 1, 1]} : vector<2x8x512xbf16> to vector<2x8x64xbf16>
    %34 = vector.extract_strided_slice %10 {offsets = [0, 0, 320], sizes = [2, 8, 64], strides = [1, 1, 1]} : vector<2x8x512xbf16> to vector<2x8x64xbf16>
    "tpu.trace_start"() <{level = 10 : i32, message = "bqd,bkd->bqk"}> : () -> ()
    %cst_13 = arith.constant dense<0.000000e+00> : vector<2x8x8xf32>
    %35 = tpu.matmul %33, %34, %cst_13 {dimension_numbers = #tpu.dot_dimension_numbers<[2], [2], [1], [1], [0, 0, 0, 1, 1, 1], [0], [0]>} : vector<2x8x64xbf16>, vector<2x8x64xbf16>, vector<2x8x8xf32> -> vector<2x8x8xf32>
    "tpu.trace_stop"() : () -> ()
    %36 = vector.extract_strided_slice %7 {offsets = [0, 0, 384], sizes = [2, 8, 64], strides = [1, 1, 1]} : vector<2x8x512xbf16> to vector<2x8x64xbf16>
    %37 = vector.extract_strided_slice %10 {offsets = [0, 0, 384], sizes = [2, 8, 64], strides = [1, 1, 1]} : vector<2x8x512xbf16> to vector<2x8x64xbf16>
    "tpu.trace_start"() <{level = 10 : i32, message = "bqd,bkd->bqk"}> : () -> ()
    %cst_14 = arith.constant dense<0.000000e+00> : vector<2x8x8xf32>
    %38 = tpu.matmul %36, %37, %cst_14 {dimension_numbers = #tpu.dot_dimension_numbers<[2], [2], [1], [1], [0, 0, 0, 1, 1, 1], [0], [0]>} : vector<2x8x64xbf16>, vector<2x8x64xbf16>, vector<2x8x8xf32> -> vector<2x8x8xf32>
    "tpu.trace_stop"() : () -> ()
    %39 = vector.extract_strided_slice %7 {offsets = [0, 0, 448], sizes = [2, 8, 64], strides = [1, 1, 1]} : vector<2x8x512xbf16> to vector<2x8x64xbf16>
    %40 = vector.extract_strided_slice %10 {offsets = [0, 0, 448], sizes = [2, 8, 64], strides = [1, 1, 1]} : vector<2x8x512xbf16> to vector<2x8x64xbf16>
    "tpu.trace_start"() <{level = 10 : i32, message = "bqd,bkd->bqk"}> : () -> ()
    %cst_15 = arith.constant dense<0.000000e+00> : vector<2x8x8xf32>
    %41 = tpu.matmul %39, %40, %cst_15 {dimension_numbers = #tpu.dot_dimension_numbers<[2], [2], [1], [1], [0, 0, 0, 1, 1, 1], [0], [0]>} : vector<2x8x64xbf16>, vector<2x8x64xbf16>, vector<2x8x8xf32> -> vector<2x8x8xf32>
    "tpu.trace_stop"() : () -> ()
    %42 = vector.shape_cast %20 : vector<2x8x8xf32> to vector<2x1x8x8xf32>
    %43 = vector.shape_cast %23 : vector<2x8x8xf32> to vector<2x1x8x8xf32>
    %44 = vector.shape_cast %26 : vector<2x8x8xf32> to vector<2x1x8x8xf32>
    %45 = vector.shape_cast %29 : vector<2x8x8xf32> to vector<2x1x8x8xf32>
    %46 = vector.shape_cast %32 : vector<2x8x8xf32> to vector<2x1x8x8xf32>
    %47 = vector.shape_cast %35 : vector<2x8x8xf32> to vector<2x1x8x8xf32>
    %48 = vector.shape_cast %38 : vector<2x8x8xf32> to vector<2x1x8x8xf32>
    %49 = vector.shape_cast %41 : vector<2x8x8xf32> to vector<2x1x8x8xf32>
    %50 = tpu.concatenate %42, %43, %44, %45, %46, %47, %48, %49 in 1 : vector<2x1x8x8xf32>, vector<2x1x8x8xf32>, vector<2x1x8x8xf32>, vector<2x1x8x8xf32>, vector<2x1x8x8xf32>, vector<2x1x8x8xf32>, vector<2x1x8x8xf32>, vector<2x1x8x8xf32> -> vector<2x8x8x8xf32>
    %51 = vector.shape_cast %17 : vector<2x8x8xf32> to vector<2x1x8x8xf32>
    %52 = vector.broadcast %51 : vector<2x1x8x8xf32> to vector<2x8x8x8xf32>
    %53 = arith.addf %50, %52 : vector<2x8x8x8xf32>
    %cst_16 = arith.constant dense<0xFF800000> : vector<2x8x8xf32>
    %54 = vector.multi_reduction <maximumf>, %53, %cst_16 [3] : vector<2x8x8x8xf32> to vector<2x8x8xf32>
    %55 = vector.shape_cast %54 : vector<2x8x8xf32> to vector<2x8x8x1xf32>
    %56 = vector.broadcast %55 : vector<2x8x8x1xf32> to vector<2x8x8x8xf32>
    %57 = arith.subf %53, %56 : vector<2x8x8x8xf32>
    %58 = math.exp %57 : vector<2x8x8x8xf32>
    %cst_17 = arith.constant dense<0.000000e+00> : vector<2x8x8xf32>
    %59 = vector.multi_reduction <add>, %58, %cst_17 [3] : vector<2x8x8x8xf32> to vector<2x8x8xf32>
    %60 = vector.shape_cast %59 : vector<2x8x8xf32> to vector<2x8x8x1xf32>
    %61 = tpu.reciprocal %60 {approx = true} : vector<2x8x8x1xf32> -> vector<2x8x8x1xf32>
    %62 = vector.broadcast %61 : vector<2x8x8x1xf32> to vector<2x8x8x8xf32>
    %63 = arith.mulf %58, %62 : vector<2x8x8x8xf32>
    %64 = arith.truncf %63 : vector<2x8x8x8xf32> to vector<2x8x8x8xbf16>
    %c0_18 = arith.constant 0 : index
    %c0_19 = arith.constant 0 : index
    %c0_20 = arith.constant 0 : index
    %c0_21 = arith.constant 0 : index
    %65 = vector.load %arg8[%c0_18, %c0_19, %c0_20, %c0_21] : memref<2x8x8x8xbf16, #tpu.memory_space<vmem>>, vector<2x8x8x8xbf16>
    tpu.vector_store %arg8[%c0_18, %c0_19, %c0_20, %c0_21], %64 {strides = array<i32>} : memref<2x8x8x8xbf16, #tpu.memory_space<vmem>>, vector<2x8x8x8xbf16>,
    %66 = arith.truncf %63 : vector<2x8x8x8xf32> to vector<2x8x8x8xbf16>
    %67 = vector.extract_strided_slice %66 {offsets = [0, 0, 0, 0], sizes = [2, 1, 8, 8], strides = [1, 1, 1, 1]} : vector<2x8x8x8xbf16> to vector<2x1x8x8xbf16>
    %68 = vector.shape_cast %67 : vector<2x1x8x8xbf16> to vector<2x8x8xbf16>
    %69 = vector.extract_strided_slice %13 {offsets = [0, 0, 0], sizes = [2, 8, 64], strides = [1, 1, 1]} : vector<2x8x512xbf16> to vector<2x8x64xbf16>
    "tpu.trace_start"() <{level = 10 : i32, message = "bqk,bkd->bqd"}> : () -> ()
    %cst_22 = arith.constant dense<0.000000e+00> : vector<2x8x64xf32>
    %70 = tpu.matmul %68, %69, %cst_22 {dimension_numbers = #tpu.dot_dimension_numbers<[2], [1], [1], [2], [0, 0, 0, 1, 1, 2], [0], [0]>} : vector<2x8x8xbf16>, vector<2x8x64xbf16>, vector<2x8x64xf32> -> vector<2x8x64xf32>
    "tpu.trace_stop"() : () -> ()
    %71 = vector.extract_strided_slice %66 {offsets = [0, 1, 0, 0], sizes = [2, 1, 8, 8], strides = [1, 1, 1, 1]} : vector<2x8x8x8xbf16> to vector<2x1x8x8xbf16>
    %72 = vector.shape_cast %71 : vector<2x1x8x8xbf16> to vector<2x8x8xbf16>
    %73 = vector.extract_strided_slice %13 {offsets = [0, 0, 64], sizes = [2, 8, 64], strides = [1, 1, 1]} : vector<2x8x512xbf16> to vector<2x8x64xbf16>
    "tpu.trace_start"() <{level = 10 : i32, message = "bqk,bkd->bqd"}> : () -> ()
    %cst_23 = arith.constant dense<0.000000e+00> : vector<2x8x64xf32>
    %74 = tpu.matmul %72, %73, %cst_23 {dimension_numbers = #tpu.dot_dimension_numbers<[2], [1], [1], [2], [0, 0, 0, 1, 1, 2], [0], [0]>} : vector<2x8x8xbf16>, vector<2x8x64xbf16>, vector<2x8x64xf32> -> vector<2x8x64xf32>
    "tpu.trace_stop"() : () -> ()
    %75 = vector.extract_strided_slice %66 {offsets = [0, 2, 0, 0], sizes = [2, 1, 8, 8], strides = [1, 1, 1, 1]} : vector<2x8x8x8xbf16> to vector<2x1x8x8xbf16>
    %76 = vector.shape_cast %75 : vector<2x1x8x8xbf16> to vector<2x8x8xbf16>
    %77 = vector.extract_strided_slice %13 {offsets = [0, 0, 128], sizes = [2, 8, 64], strides = [1, 1, 1]} : vector<2x8x512xbf16> to vector<2x8x64xbf16>
    "tpu.trace_start"() <{level = 10 : i32, message = "bqk,bkd->bqd"}> : () -> ()
    %cst_24 = arith.constant dense<0.000000e+00> : vector<2x8x64xf32>
    %78 = tpu.matmul %76, %77, %cst_24 {dimension_numbers = #tpu.dot_dimension_numbers<[2], [1], [1], [2], [0, 0, 0, 1, 1, 2], [0], [0]>} : vector<2x8x8xbf16>, vector<2x8x64xbf16>, vector<2x8x64xf32> -> vector<2x8x64xf32>
    "tpu.trace_stop"() : () -> ()
    %79 = vector.extract_strided_slice %66 {offsets = [0, 3, 0, 0], sizes = [2, 1, 8, 8], strides = [1, 1, 1, 1]} : vector<2x8x8x8xbf16> to vector<2x1x8x8xbf16>
    %80 = vector.shape_cast %79 : vector<2x1x8x8xbf16> to vector<2x8x8xbf16>
    %81 = vector.extract_strided_slice %13 {offsets = [0, 0, 192], sizes = [2, 8, 64], strides = [1, 1, 1]} : vector<2x8x512xbf16> to vector<2x8x64xbf16>
    "tpu.trace_start"() <{level = 10 : i32, message = "bqk,bkd->bqd"}> : () -> ()
    %cst_25 = arith.constant dense<0.000000e+00> : vector<2x8x64xf32>
    %82 = tpu.matmul %80, %81, %cst_25 {dimension_numbers = #tpu.dot_dimension_numbers<[2], [1], [1], [2], [0, 0, 0, 1, 1, 2], [0], [0]>} : vector<2x8x8xbf16>, vector<2x8x64xbf16>, vector<2x8x64xf32> -> vector<2x8x64xf32>
    "tpu.trace_stop"() : () -> ()
    %83 = vector.extract_strided_slice %66 {offsets = [0, 4, 0, 0], sizes = [2, 1, 8, 8], strides = [1, 1, 1, 1]} : vector<2x8x8x8xbf16> to vector<2x1x8x8xbf16>
    %84 = vector.shape_cast %83 : vector<2x1x8x8xbf16> to vector<2x8x8xbf16>
    %85 = vector.extract_strided_slice %13 {offsets = [0, 0, 256], sizes = [2, 8, 64], strides = [1, 1, 1]} : vector<2x8x512xbf16> to vector<2x8x64xbf16>
    "tpu.trace_start"() <{level = 10 : i32, message = "bqk,bkd->bqd"}> : () -> ()
    %cst_26 = arith.constant dense<0.000000e+00> : vector<2x8x64xf32>
    %86 = tpu.matmul %84, %85, %cst_26 {dimension_numbers = #tpu.dot_dimension_numbers<[2], [1], [1], [2], [0, 0, 0, 1, 1, 2], [0], [0]>} : vector<2x8x8xbf16>, vector<2x8x64xbf16>, vector<2x8x64xf32> -> vector<2x8x64xf32>
    "tpu.trace_stop"() : () -> ()
    %87 = vector.extract_strided_slice %66 {offsets = [0, 5, 0, 0], sizes = [2, 1, 8, 8], strides = [1, 1, 1, 1]} : vector<2x8x8x8xbf16> to vector<2x1x8x8xbf16>
    %88 = vector.shape_cast %87 : vector<2x1x8x8xbf16> to vector<2x8x8xbf16>
    %89 = vector.extract_strided_slice %13 {offsets = [0, 0, 320], sizes = [2, 8, 64], strides = [1, 1, 1]} : vector<2x8x512xbf16> to vector<2x8x64xbf16>
    "tpu.trace_start"() <{level = 10 : i32, message = "bqk,bkd->bqd"}> : () -> ()
    %cst_27 = arith.constant dense<0.000000e+00> : vector<2x8x64xf32>
    %90 = tpu.matmul %88, %89, %cst_27 {dimension_numbers = #tpu.dot_dimension_numbers<[2], [1], [1], [2], [0, 0, 0, 1, 1, 2], [0], [0]>} : vector<2x8x8xbf16>, vector<2x8x64xbf16>, vector<2x8x64xf32> -> vector<2x8x64xf32>
    "tpu.trace_stop"() : () -> ()
    %91 = vector.extract_strided_slice %66 {offsets = [0, 6, 0, 0], sizes = [2, 1, 8, 8], strides = [1, 1, 1, 1]} : vector<2x8x8x8xbf16> to vector<2x1x8x8xbf16>
    %92 = vector.shape_cast %91 : vector<2x1x8x8xbf16> to vector<2x8x8xbf16>
    %93 = vector.extract_strided_slice %13 {offsets = [0, 0, 384], sizes = [2, 8, 64], strides = [1, 1, 1]} : vector<2x8x512xbf16> to vector<2x8x64xbf16>
    "tpu.trace_start"() <{level = 10 : i32, message = "bqk,bkd->bqd"}> : () -> ()
    %cst_28 = arith.constant dense<0.000000e+00> : vector<2x8x64xf32>
    %94 = tpu.matmul %92, %93, %cst_28 {dimension_numbers = #tpu.dot_dimension_numbers<[2], [1], [1], [2], [0, 0, 0, 1, 1, 2], [0], [0]>} : vector<2x8x8xbf16>, vector<2x8x64xbf16>, vector<2x8x64xf32> -> vector<2x8x64xf32>
    "tpu.trace_stop"() : () -> ()
    %95 = vector.extract_strided_slice %66 {offsets = [0, 7, 0, 0], sizes = [2, 1, 8, 8], strides = [1, 1, 1, 1]} : vector<2x8x8x8xbf16> to vector<2x1x8x8xbf16>
    %96 = vector.shape_cast %95 : vector<2x1x8x8xbf16> to vector<2x8x8xbf16>
    %97 = vector.extract_strided_slice %13 {offsets = [0, 0, 448], sizes = [2, 8, 64], strides = [1, 1, 1]} : vector<2x8x512xbf16> to vector<2x8x64xbf16>
    "tpu.trace_start"() <{level = 10 : i32, message = "bqk,bkd->bqd"}> : () -> ()
    %cst_29 = arith.constant dense<0.000000e+00> : vector<2x8x64xf32>
    %98 = tpu.matmul %96, %97, %cst_29 {dimension_numbers = #tpu.dot_dimension_numbers<[2], [1], [1], [2], [0, 0, 0, 1, 1, 2], [0], [0]>} : vector<2x8x8xbf16>, vector<2x8x64xbf16>, vector<2x8x64xf32> -> vector<2x8x64xf32>
    "tpu.trace_stop"() : () -> ()
    %99 = tpu.concatenate %70, %74, %78, %82, %86, %90, %94, %98 in 2 : vector<2x8x64xf32>, vector<2x8x64xf32>, vector<2x8x64xf32>, vector<2x8x64xf32>, vector<2x8x64xf32>, vector<2x8x64xf32>, vector<2x8x64xf32>, vector<2x8x64xf32> -> vector<2x8x512xf32>
    %100 = vector.shape_cast %99 : vector<2x8x512xf32> to vector<16x512xf32>
    %101 = arith.truncf %100 : vector<16x512xf32> to vector<16x512xbf16>
    %c0_30 = arith.constant 0 : index
    %c0_31 = arith.constant 0 : index
    %102 = vector.load %arg4[%c0_30, %c0_31] : memref<512x512xbf16, #tpu.memory_space<vmem>>, vector<512x512xbf16>
    %cst_32 = arith.constant dense<0.000000e+00> : vector<16x512xf32>
    %103 = tpu.matmul %101, %102, %cst_32 {dimension_numbers = #tpu.dot_dimension_numbers<[1], [0], [0], [1], [0, 0, 1, 1], [], []>} : vector<16x512xbf16>, vector<512x512xbf16>, vector<16x512xf32> -> vector<16x512xf32>
    %104 = arith.addf %103, %1 : vector<16x512xf32>
    %cst_33 = arith.constant dense<0.000000e+00> : vector<16xf32>
    %105 = vector.multi_reduction <add>, %104, %cst_33 [1] : vector<16x512xf32> to vector<16xf32>
    %106 = vector.shape_cast %105 : vector<16xf32> to vector<16x1xf32>
    %cst_34 = arith.constant 5.120000e+02 : f32
    %107 = vector.broadcast %cst_34 : f32 to vector<16x1xf32>
    %108 = arith.divf %106, %107 : vector<16x1xf32>
    %109 = vector.broadcast %108 : vector<16x1xf32> to vector<16x512xf32>
    %110 = arith.subf %104, %109 : vector<16x512xf32>
    %111 = arith.mulf %110, %110 : vector<16x512xf32>
    %cst_35 = arith.constant dense<0.000000e+00> : vector<16xf32>
    %112 = vector.multi_reduction <add>, %111, %cst_35 [1] : vector<16x512xf32> to vector<16xf32>
    %113 = vector.shape_cast %112 : vector<16xf32> to vector<16x1xf32>
    %cst_36 = arith.constant 5.120000e+02 : f32
    %114 = vector.broadcast %cst_36 : f32 to vector<16x1xf32>
    %115 = arith.divf %113, %114 : vector<16x1xf32>
    %cst_37 = arith.constant 9.99999974E-6 : f32
    %116 = vector.broadcast %cst_37 : f32 to vector<16x1xf32>
    %117 = arith.addf %115, %116 : vector<16x1xf32>
    %118 = math.rsqrt %117 : vector<16x1xf32>
    %119 = vector.broadcast %118 : vector<16x1xf32> to vector<16x512xf32>
    %120 = arith.mulf %110, %119 : vector<16x512xf32>
    %121 = arith.truncf %120 : vector<16x512xf32> to vector<16x512xbf16>
    %c0_38 = arith.constant 0 : index
    %c0_39 = arith.constant 0 : index
    %122 = vector.load %arg5[%c0_38, %c0_39] : memref<512x2048xbf16, #tpu.memory_space<vmem>>, vector<512x2048xbf16>
    %cst_40 = arith.constant dense<0.000000e+00> : vector<16x2048xf32>
    %123 = tpu.matmul %121, %122, %cst_40 {dimension_numbers = #tpu.dot_dimension_numbers<[1], [0], [0], [1], [0, 0, 1, 1], [], []>} : vector<16x512xbf16>, vector<512x2048xbf16>, vector<16x2048xf32> -> vector<16x2048xf32>
    %cst_41 = arith.constant 0.000000e+00 : f32
    %124 = vector.broadcast %cst_41 : f32 to vector<16x2048xf32>
    %125 = arith.maximumf %123, %124 : vector<16x2048xf32>
    %126 = arith.truncf %125 : vector<16x2048xf32> to vector<16x2048xbf16>
    %c0_42 = arith.constant 0 : index
    %c0_43 = arith.constant 0 : index
    %127 = vector.load %arg6[%c0_42, %c0_43] : memref<2048x512xbf16, #tpu.memory_space<vmem>>, vector<2048x512xbf16>
    %cst_44 = arith.constant dense<0.000000e+00> : vector<16x512xf32>
    %128 = tpu.matmul %126, %127, %cst_44 {dimension_numbers = #tpu.dot_dimension_numbers<[1], [0], [0], [1], [0, 0, 1, 1], [], []>} : vector<16x2048xbf16>, vector<2048x512xbf16>, vector<16x512xf32> -> vector<16x512xf32>
    %129 = arith.addf %128, %120 : vector<16x512xf32>
    %cst_45 = arith.constant dense<0.000000e+00> : vector<16xf32>
    %130 = vector.multi_reduction <add>, %129, %cst_45 [1] : vector<16x512xf32> to vector<16xf32>
    %131 = vector.shape_cast %130 : vector<16xf32> to vector<16x1xf32>
    %cst_46 = arith.constant 5.120000e+02 : f32
    %132 = vector.broadcast %cst_46 : f32 to vector<16x1xf32>
    %133 = arith.divf %131, %132 : vector<16x1xf32>
    %134 = vector.broadcast %133 : vector<16x1xf32> to vector<16x512xf32>
    %135 = arith.subf %129, %134 : vector<16x512xf32>
    %136 = arith.mulf %135, %135 : vector<16x512xf32>
    %cst_47 = arith.constant dense<0.000000e+00> : vector<16xf32>
    %137 = vector.multi_reduction <add>, %136, %cst_47 [1] : vector<16x512xf32> to vector<16xf32>
    %138 = vector.shape_cast %137 : vector<16xf32> to vector<16x1xf32>
    %cst_48 = arith.constant 5.120000e+02 : f32
    %139 = vector.broadcast %cst_48 : f32 to vector<16x1xf32>
    %140 = arith.divf %138, %139 : vector<16x1xf32>
    %cst_49 = arith.constant 9.99999974E-6 : f32
    %141 = vector.broadcast %cst_49 : f32 to vector<16x1xf32>
    %142 = arith.addf %140, %141 : vector<16x1xf32>
    %143 = math.rsqrt %142 : vector<16x1xf32>
    %144 = vector.broadcast %143 : vector<16x1xf32> to vector<16x512xf32>
    %145 = arith.mulf %135, %144 : vector<16x512xf32>
    %146 = vector.shape_cast %145 : vector<16x512xf32> to vector<2x8x512xf32>
    %c0_50 = arith.constant 0 : index
    %c0_51 = arith.constant 0 : index
    %c0_52 = arith.constant 0 : index
    %147 = vector.load %arg7[%c0_50, %c0_51, %c0_52] : memref<2x8x512xf32, #tpu.memory_space<vmem>>, vector<2x8x512xf32>
    tpu.vector_store %arg7[%c0_50, %c0_51, %c0_52], %146 {strides = array<i32>} : memref<2x8x512xf32, #tpu.memory_space<vmem>>, vector<2x8x512xf32>,
    return
  }
  func.func @transform_0(%arg0: i32) -> (i32, i32, i32) {
    %c0_i32 = arith.constant 0 : i32
    %c0_i32_0 = arith.constant 0 : i32
    %c0_i32_1 = arith.constant 0 : i32
    return %arg0, %c0_i32, %c0_i32_0 : i32, i32, i32
  }
  func.func @transform_1(%arg0: i32) -> (i32, i32, i32) {
    %c0_i32 = arith.constant 0 : i32
    %c0_i32_0 = arith.constant 0 : i32
    %c0_i32_1 = arith.constant 0 : i32
    return %arg0, %c0_i32, %c0_i32_0 : i32, i32, i32
  }
  func.func @transform_2(%arg0: i32) -> (i32, i32) {
    %c0_i32 = arith.constant 0 : i32
    %c0_i32_0 = arith.constant 0 : i32
    %c0_i32_1 = arith.constant 0 : i32
    return %c0_i32, %c0_i32_0 : i32, i32
  }
  func.func @transform_3(%arg0: i32) -> (i32, i32) {
    %c0_i32 = arith.constant 0 : i32
    %c0_i32_0 = arith.constant 0 : i32
    %c0_i32_1 = arith.constant 0 : i32
    return %c0_i32, %c0_i32_0 : i32, i32
  }
  func.func @transform_4(%arg0: i32) -> (i32, i32) {
    %c0_i32 = arith.constant 0 : i32
    %c0_i32_0 = arith.constant 0 : i32
    %c0_i32_1 = arith.constant 0 : i32
    return %c0_i32, %c0_i32_0 : i32, i32
  }
  func.func @transform_5(%arg0: i32) -> (i32, i32) {
    %c0_i32 = arith.constant 0 : i32
    %c0_i32_0 = arith.constant 0 : i32
    %c0_i32_1 = arith.constant 0 : i32
    return %c0_i32, %c0_i32_0 : i32, i32
  }
  func.func @transform_6(%arg0: i32) -> (i32, i32, i32) {
    %c0_i32 = arith.constant 0 : i32
    %c0_i32_0 = arith.constant 0 : i32
    %c0_i32_1 = arith.constant 0 : i32
    return %arg0, %c0_i32, %c0_i32_0 : i32, i32, i32
  }
  func.func @transform_7(%arg0: i32) -> (i32, i32, i32, i32) {
    %c0_i32 = arith.constant 0 : i32
    %c0_i32_0 = arith.constant 0 : i32
    %c0_i32_1 = arith.constant 0 : i32
    %c0_i32_2 = arith.constant 0 : i32
    return %arg0, %c0_i32, %c0_i32_0, %c0_i32_1 : i32, i32, i32, i32
  }
}

</mosaic_0001>

<llo_original>
// kernel: tpu_custom_call.1
$region0: #{tpu_custom_call.1}
  #allocation0 [shape = 'u32[]', space=smem, size = 0x4, offset = 0x4, fixed_abs, tag = 'smem constant byte address 0x4 - core index']
  #allocation1 [shape = 'u32[72,128]{1,0:T(1,128)}', space=vmem, size = 0x9000, scoped, tag = 'internal scratch']
  %s0 = inlined_call_operand.hbm [shape: f32[2,8,512], index: 0, kind: input, shape index: {}]
  %s1 = inlined_call_operand.hbm [shape: s8[2,8,8], index: 1, kind: input, shape index: {}]
  %s2 = inlined_call_operand.hbm [shape: bf16[512,1536], index: 2, kind: input, shape index: {}]
  %s3 = inlined_call_operand.hbm [shape: bf16[512,512], index: 3, kind: input, shape index: {}]
  %s4 = inlined_call_operand.hbm [shape: bf16[512,2048], index: 4, kind: input, shape index: {}]
  %s5 = inlined_call_operand.hbm [shape: bf16[2048,512], index: 5, kind: input, shape index: {}]
  %s6 = inlined_call_operand.hbm [shape: f32[2,8,512], index: 6, kind: output, shape index: {0}]
  %s7 = inlined_call_operand.hbm [shape: bf16[2,8,8,8], index: 7, kind: output, shape index: {1}]
  %8 = xla_tuple %s6, %s7
  %s9 = sld [smem:[#allocation0]]
  $region66: #{tpu_custom_call.1} parent=0
    _
  %s11 = ssub.s32 1, %s9
  %s12 = scalar_select 0, %s11, %s9
  $region1: #{tpu_custom_call.1} parent=0
    #allocation2 [shape = 'u8[32768]{0}', space=vmem, size = 0x8000, scoped, tag = 'input window, operand 0, single buffered']
    #allocation3 [shape = 's32[1]{0}', space=sflag, size = 0x4, scoped, tag = 'scoped memory for tpu_custom_call.1']
    #allocation4 [shape = 's32[1]{0}', space=sflag, size = 0x4, scoped, tag = 'scoped memory for tpu_custom_call.1']
    #allocation5 [shape = 'u8[2048]{0}', space=vmem, size = 0x800, scoped, tag = 'input window, operand 1, single buffered']
    #allocation6 [shape = 's32[1]{0}', space=sflag, size = 0x4, scoped, tag = 'scoped memory for tpu_custom_call.1']
    #allocation7 [shape = 'u8[1572864]{0}', space=vmem, size = 0x180000, scoped, tag = 'input window, operand 2, single buffered']
    #allocation8 [shape = 'u8[524288]{0}', space=vmem, size = 0x80000, scoped, tag = 'input window, operand 3, single buffered']
    #allocation9 [shape = 's32[1]{0}', space=sflag, size = 0x4, scoped, tag = 'scoped memory for tpu_custom_call.1']
    #allocation10 [shape = 'u8[2097152]{0}', space=vmem, size = 0x200000, scoped, tag = 'input window, operand 4, single buffered']
    #allocation11 [shape = 'u8[2097152]{0}', space=vmem, size = 0x200000, scoped, tag = 'input window, operand 5, single buffered']
    #allocation12 [shape = 's32[1]{0}', space=sflag, size = 0x4, scoped, tag = 'scoped memory for tpu_custom_call.1']
    #allocation13 [shape = 'u8[32768]{0}', space=vmem, size = 0x8000, scoped, tag = 'output window, operand 0, single buffered']
    #allocation14 [shape = 'u8[32768]{0}', space=vmem, size = 0x8000, scoped, tag = 'output window, operand 1, single buffered']
    #allocation15 [shape = 's32[1]{0}', space=sflag, size = 0x4, scoped, tag = 'scoped memory for tpu_custom_call.1']
    %13 = vsyncpa [#allocation3], 0
    %14 = vsyncpa [#allocation6], 0
    %15 = vsyncpa [#allocation9], 0
    %16 = vsyncpa [#allocation12], 0
    %17 = vsyncpa [#allocation4], 0
    %18 = vsyncpa [#allocation15], 0
    // Predicated region
    $region2: #{tpu_custom_call.1} parent=1 // pred_check
      _
    $region3: #{tpu_custom_call.1} parent=1 // pred_check_branch
      %20 = sbr.rel (0) target = $region5
    $region4: #{tpu_custom_call.1} parent=1 // pred_region
      %22 = vsyncadd [#allocation3], 0
      %s23 = sshll.u32 %s0, 4
      %s24 = int_to_ptr.hbm [resolvable:$true] %s23
      %s25 = sshll.u32 [#allocation2], 4
      %s26 = int_to_ptr.vmem [resolvable:$true] %s25
      %31 = dma.hbm_to_vmem [thread:$0]  %s24, 1024, %s26, [#allocation3], 512, 512, 32
    $region5: #{tpu_custom_call.1} parent=1 // pred_fallthru
      _
    // Predicated region
    $region6: #{tpu_custom_call.1} parent=1 // pred_check
      _
    $region7: #{tpu_custom_call.1} parent=1 // pred_check_branch
      %33 = sbr.rel (0) target = $region9
    $region8: #{tpu_custom_call.1} parent=1 // pred_region
      %35 = vsyncadd [#allocation6], 0
      %s36 = sshll.u32 %s1, 4
      %s37 = int_to_ptr.hbm [resolvable:$true] %s36
      %s38 = sshll.u32 [#allocation5], 4
      %s39 = int_to_ptr.vmem [resolvable:$true] %s38
      %44 = dma.hbm_to_vmem [thread:$0]  %s37, 64, %s39, [#allocation6], 32, 32, 2
    $region9: #{tpu_custom_call.1} parent=1 // pred_fallthru
      _
    // Predicated region
    $region10: #{tpu_custom_call.1} parent=1 // pred_check
      _
    $region11: #{tpu_custom_call.1} parent=1 // pred_check_branch
      %46 = sbr.rel (0) target = $region13
    $region12: #{tpu_custom_call.1} parent=1 // pred_region
      %48 = vsyncadd [#allocation6], 0
      %s49 = sshll.u32 %s2, 4
      %s50 = int_to_ptr.hbm [resolvable:$true] %s49
      %s51 = sshll.u32 [#allocation7], 4
      %s52 = int_to_ptr.vmem [resolvable:$true] %s51
      %57 = dma.hbm_to_vmem [thread:$0]  %s50, 49152, %s52, [#allocation6], 768, 768, 48
    $region13: #{tpu_custom_call.1} parent=1 // pred_fallthru
      _
    // Predicated region
    $region14: #{tpu_custom_call.1} parent=1 // pred_check
      _
    $region15: #{tpu_custom_call.1} parent=1 // pred_check_branch
      %59 = sbr.rel (0) target = $region17
    $region16: #{tpu_custom_call.1} parent=1 // pred_region
      %61 = vsyncadd [#allocation9], 0
      %s62 = sshll.u32 %s3, 4
      %s63 = int_to_ptr.hbm [resolvable:$true] %s62
      %s64 = sshll.u32 [#allocation8], 4
      %s65 = int_to_ptr.vmem [resolvable:$true] %s64
      %70 = dma.hbm_to_vmem [thread:$0]  %s63, 16384, %s65, [#allocation9], 256, 256, 16
    $region17: #{tpu_custom_call.1} parent=1 // pred_fallthru
      _
    // Predicated region
    $region18: #{tpu_custom_call.1} parent=1 // pred_check
      _
    $region19: #{tpu_custom_call.1} parent=1 // pred_check_branch
      %72 = sbr.rel (0) target = $region21
    $region20: #{tpu_custom_call.1} parent=1 // pred_region
      %74 = vsyncadd [#allocation9], 0
      %s75 = sshll.u32 %s4, 4
      %s76 = int_to_ptr.hbm [resolvable:$true] %s75
      %s77 = sshll.u32 [#allocation10], 4
      %s78 = int_to_ptr.vmem [resolvable:$true] %s77
      %83 = dma.hbm_to_vmem [thread:$0]  %s76, 65536, %s78, [#allocation9], 1024, 1024, 64
    $region21: #{tpu_custom_call.1} parent=1 // pred_fallthru
      _
    // Predicated region
    $region22: #{tpu_custom_call.1} parent=1 // pred_check
      _
    $region23: #{tpu_custom_call.1} parent=1 // pred_check_branch
      %85 = sbr.rel (0) target = $region25
    $region24: #{tpu_custom_call.1} parent=1 // pred_region
      %87 = vsyncadd [#allocation12], 0
      %s88 = sshll.u32 %s5, 4
      %s89 = int_to_ptr.hbm [resolvable:$true] %s88
      %s90 = sshll.u32 [#allocation11], 4
      %s91 = int_to_ptr.vmem [resolvable:$true] %s90
      %96 = dma.hbm_to_vmem [thread:$0]  %s89, 65536, %s91, [#allocation12], 256, 256, 16
    $region25: #{tpu_custom_call.1} parent=1 // pred_fallthru
      _
    // Predicated region
    $region26: #{tpu_custom_call.1} parent=1 // pred_check
      _
    $region27: #{tpu_custom_call.1} parent=1 // pred_check_branch
      %98 = sbr.rel (0) target = $region29
    $region28: #{tpu_custom_call.1} parent=1 // pred_region
      %100 = dma.done [#allocation3], 1024
    $region29: #{tpu_custom_call.1} parent=1 // pred_fallthru
      _
    // Predicated region
    $region30: #{tpu_custom_call.1} parent=1 // pred_check
      _
    $region31: #{tpu_custom_call.1} parent=1 // pred_check_branch
      %102 = sbr.rel (0) target = $region33
    $region32: #{tpu_custom_call.1} parent=1 // pred_region
      %104 = dma.done [#allocation6], 64
    $region33: #{tpu_custom_call.1} parent=1 // pred_fallthru
      _
    // Predicated region
    $region34: #{tpu_custom_call.1} parent=1 // pred_check
      _
    $region35: #{tpu_custom_call.1} parent=1 // pred_check_branch
      %106 = sbr.rel (0) target = $region37
    $region36: #{tpu_custom_call.1} parent=1 // pred_region
      %108 = dma.done [#allocation6], 49152
    $region37: #{tpu_custom_call.1} parent=1 // pred_fallthru
      _
    // Predicated region
    $region38: #{tpu_custom_call.1} parent=1 // pred_check
      _
    $region39: #{tpu_custom_call.1} parent=1 // pred_check_branch
      %110 = sbr.rel (0) target = $region41
    $region40: #{tpu_custom_call.1} parent=1 // pred_region
      %112 = dma.done [#allocation9], 16384
    $region41: #{tpu_custom_call.1} parent=1 // pred_fallthru
      _
    // Predicated region
    $region42: #{tpu_custom_call.1} parent=1 // pred_check
      _
    $region43: #{tpu_custom_call.1} parent=1 // pred_check_branch
      %114 = sbr.rel (0) target = $region45
    $region44: #{tpu_custom_call.1} parent=1 // pred_region
      %116 = dma.done [#allocation9], 65536
    $region45: #{tpu_custom_call.1} parent=1 // pred_fallthru
      _
    // Predicated region
    $region46: #{tpu_custom_call.1} parent=1 // pred_check
      _
    $region47: #{tpu_custom_call.1} parent=1 // pred_check_branch
      %118 = sbr.rel (0) target = $region49
    $region48: #{tpu_custom_call.1} parent=1 // pred_region
      %120 = dma.done [#allocation12], 65536
    $region49: #{tpu_custom_call.1} parent=1 // pred_fallthru
      _
    %v122 = vld [vmem:[#allocation2] sm:$0xff]
    %v123 = vld [vmem:[#allocation2 + $0x8] sm:$0xff]
    %v124 = vld [vmem:[#allocation2 + $0x10] sm:$0xff]
    %v125 = vld [vmem:[#allocation2 + $0x18] sm:$0xff]
    %v126 = vld [vmem:[#allocation2 + $0x20] sm:$0xff]
    %v127 = vld [vmem:[#allocation2 + $0x28] sm:$0xff]
    %v128 = vld [vmem:[#allocation2 + $0x30] sm:$0xff]
    %v129 = vld [vmem:[#allocation2 + $0x38] sm:$0xff]
    %v130 = vpack.c.bf16 %v126, %v122
    %v131 = vpack.c.bf16 %v127, %v123
    %v132 = vpack.c.bf16 %v128, %v124
    %v133 = vpack.c.bf16 %v129, %v125
    %v134 = vld [vmem:[#allocation7] sm:$0xff]
    %v135 = vld [vmem:[#allocation7 + $0x8] sm:$0xff]
    %v136 = vld [vmem:[#allocation7 + $0x10] sm:$0xff]
    %v137 = vld [vmem:[#allocation7 + $0x18] sm:$0xff]
    %v138 = vld [vmem:[#allocation7 + $0x20] sm:$0xff]
    %v139 = vld [vmem:[#allocation7 + $0x28] sm:$0xff]
    %v140 = vld [vmem:[#allocation7 + $0x30] sm:$0xff]
    %v141 = vld [vmem:[#allocation7 + $0x38] sm:$0xff]
    %v142 = vld [vmem:[#allocation7 + $0x40] sm:$0xff]
    %v143 = vld [vmem:[#allocation7 + $0x48] sm:$0xff]
    %v144 = vld [vmem:[#allocation7 + $0x50] sm:$0xff]
    %v145 = vld [vmem:[#allocation7 + $0x58] sm:$0xff]
    %v146 = vld [vmem:[#allocation7 + $0x60] sm:$0xff]
    %v147 = vld [vmem:[#allocation7 + $0x68] sm:$0xff]
    %v148 = vld [vmem:[#allocation7 + $0x70] sm:$0xff]
    %v149 = vld [vmem:[#allocation7 + $0x78] sm:$0xff]
    %v150 = vld [vmem:[#allocation7 + $0x80] sm:$0xff]
    %v151 = vld [vmem:[#allocation7 + $0x88] sm:$0xff]
    %v152 = vld [vmem:[#allocation7 + $0x90] sm:$0xff]
    %v153 = vld [vmem:[#allocation7 + $0x98] sm:$0xff]
    %v154 = vld [vmem:[#allocation7 + $0xa0] sm:$0xff]
    %v155 = vld [vmem:[#allocation7 + $0xa8] sm:$0xff]
    %v156 = vld [vmem:[#allocation7 + $0xb0] sm:$0xff]
    %v157 = vld [vmem:[#allocation7 + $0xb8] sm:$0xff]
    %v158 = vld [vmem:[#allocation7 + $0xc0] sm:$0xff]
    %v159 = vld [vmem:[#allocation7 + $0xc8] sm:$0xff]
    %v160 = vld [vmem:[#allocation7 + $0xd0] sm:$0xff]
    %v161 = vld [vmem:[#allocation7 + $0xd8] sm:$0xff]
    %v162 = vld [vmem:[#allocation7 + $0xe0] sm:$0xff]
    %v163 = vld [vmem:[#allocation7 + $0xe8] sm:$0xff]
    %v164 = vld [vmem:[#allocation7 + $0xf0] sm:$0xff]
    %v165 = vld [vmem:[#allocation7 + $0xf8] sm:$0xff]
    %v166 = vld [vmem:[#allocation7 + $0x100] sm:$0xff]
    %v167 = vld [vmem:[#allocation7 + $0x108] sm:$0xff]
    %v168 = vld [vmem:[#allocation7 + $0x110] sm:$0xff]
    %v169 = vld [vmem:[#allocation7 + $0x118] sm:$0xff]
    %v170 = vld [vmem:[#allocation7 + $0x120] sm:$0xff]
    %v171 = vld [vmem:[#allocation7 + $0x128] sm:$0xff]
    %v172 = vld [vmem:[#allocation7 + $0x130] sm:$0xff]
    %v173 = vld [vmem:[#allocation7 + $0x138] sm:$0xff]
    %v174 = vld [vmem:[#allocation7 + $0x140] sm:$0xff]
    %v175 = vld [vmem:[#allocation7 + $0x148] sm:$0xff]
    %v176 = vld [vmem:[#allocation7 + $0x150] sm:$0xff]
    %v177 = vld [vmem:[#allocation7 + $0x158] sm:$0xff]
    %v178 = vld [vmem:[#allocation7 + $0x160] sm:$0xff]
    %v179 = vld [vmem:[#allocation7 + $0x168] sm:$0xff]
    %v180 = vld [vmem:[#allocation7 + $0x170] sm:$0xff]
    %v181 = vld [vmem:[#allocation7 + $0x178] sm:$0xff]
    %v182 = vld [vmem:[#allocation7 + $0x180] sm:$0xff]
    %v183 = vld [vmem:[#allocation7 + $0x188] sm:$0xff]
    %v184 = vld [vmem:[#allocation7 + $0x190] sm:$0xff]
    %v185 = vld [vmem:[#allocation7 + $0x198] sm:$0xff]
    %v186 = vld [vmem:[#allocation7 + $0x1a0] sm:$0xff]
    %v187 = vld [vmem:[#allocation7 + $0x1a8] sm:$0xff]
    %v188 = vld [vmem:[#allocation7 + $0x1b0] sm:$0xff]
    %v189 = vld [vmem:[#allocation7 + $0x1b8] sm:$0xff]
    %v190 = vld [vmem:[#allocation7 + $0x1c0] sm:$0xff]
    %v191 = vld [vmem:[#allocation7 + $0x1c8] sm:$0xff]
    %v192 = vld [vmem:[#allocation7 + $0x1d0] sm:$0xff]
    %v193 = vld [vmem:[#allocation7 + $0x1d8] sm:$0xff]
    %v194 = vld [vmem:[#allocation7 + $0x1e0] sm:$0xff]
    %v195 = vld [vmem:[#allocation7 + $0x1e8] sm:$0xff]
    %v196 = vld [vmem:[#allocation7 + $0x1f0] sm:$0xff]
    %v197 = vld [vmem:[#allocation7 + $0x1f8] sm:$0xff]
    %v198 = vld [vmem:[#allocation7 + $0x200] sm:$0xff]
    %v199 = vld [vmem:[#allocation7 + $0x208] sm:$0xff]
    %v200 = vld [vmem:[#allocation7 + $0x210] sm:$0xff]
    %v201 = vld [vmem:[#allocation7 + $0x218] sm:$0xff]
    %v202 = vld [vmem:[#allocation7 + $0x220] sm:$0xff]
    %v203 = vld [vmem:[#allocation7 + $0x228] sm:$0xff]
    %v204 = vld [vmem:[#allocation7 + $0x230] sm:$0xff]
    %v205 = vld [vmem:[#allocation7 + $0x238] sm:$0xff]
    %v206 = vld [vmem:[#allocation7 + $0x240] sm:$0xff]
    %v207 = vld [vmem:[#allocation7 + $0x248] sm:$0xff]
    %v208 = vld [vmem:[#allocation7 + $0x250] sm:$0xff]
    %v209 = vld [vmem:[#allocation7 + $0x258] sm:$0xff]
    %v210 = vld [vmem:[#allocation7 + $0x260] sm:$0xff]
    %v211 = vld [vmem:[#allocation7 + $0x268] sm:$0xff]
    %v212 = vld [vmem:[#allocation7 + $0x270] sm:$0xff]
    %v213 = vld [vmem:[#allocation7 + $0x278] sm:$0xff]
    %v214 = vld [vmem:[#allocation7 + $0x280] sm:$0xff]
    %v215 = vld [vmem:[#allocation7 + $0x288] sm:$0xff]
    %v216 = vld [vmem:[#allocation7 + $0x290] sm:$0xff]
    %v217 = vld [vmem:[#allocation7 + $0x298] sm:$0xff]
    %v218 = vld [vmem:[#allocation7 + $0x2a0] sm:$0xff]
    %v219 = vld [vmem:[#allocation7 + $0x2a8] sm:$0xff]
    %v220 = vld [vmem:[#allocation7 + $0x2b0] sm:$0xff]
    %v221 = vld [vmem:[#allocation7 + $0x2b8] sm:$0xff]
    %v222 = vld [vmem:[#allocation7 + $0x2c0] sm:$0xff]
    %v223 = vld [vmem:[#allocation7 + $0x2c8] sm:$0xff]
    %v224 = vld [vmem:[#allocation7 + $0x2d0] sm:$0xff]
    %v225 = vld [vmem:[#allocation7 + $0x2d8] sm:$0xff]
    %v226 = vld [vmem:[#allocation7 + $0x2e0] sm:$0xff]
    %v227 = vld [vmem:[#allocation7 + $0x2e8] sm:$0xff]
    %v228 = vld [vmem:[#allocation7 + $0x2f0] sm:$0xff]
    %v229 = vld [vmem:[#allocation7 + $0x2f8] sm:$0xff]
    %v230 = vld [vmem:[#allocation7 + $0x300] sm:$0xff]
    %v231 = vld [vmem:[#allocation7 + $0x308] sm:$0xff]
    %v232 = vld [vmem:[#allocation7 + $0x310] sm:$0xff]
    %v233 = vld [vmem:[#allocation7 + $0x318] sm:$0xff]
    %v234 = vld [vmem:[#allocation7 + $0x320] sm:$0xff]
    %v235 = vld [vmem:[#allocation7 + $0x328] sm:$0xff]
    %v236 = vld [vmem:[#allocation7 + $0x330] sm:$0xff]
    %v237 = vld [vmem:[#allocation7 + $0x338] sm:$0xff]
    %v238 = vld [vmem:[#allocation7 + $0x340] sm:$0xff]
    %v239 = vld [vmem:[#allocation7 + $0x348] sm:$0xff]
    %v240 = vld [vmem:[#allocation7 + $0x350] sm:$0xff]
    %v241 = vld [vmem:[#allocation7 + $0x358] sm:$0xff]
    %v242 = vld [vmem:[#allocation7 + $0x360] sm:$0xff]
    %v243 = vld [vmem:[#allocation7 + $0x368] sm:$0xff]
    %v244 = vld [vmem:[#allocation7 + $0x370] sm:$0xff]
    %v245 = vld [vmem:[#allocation7 + $0x378] sm:$0xff]
    %v246 = vld [vmem:[#allocation7 + $0x380] sm:$0xff]
    %v247 = vld [vmem:[#allocation7 + $0x388] sm:$0xff]
    %v248 = vld [vmem:[#allocation7 + $0x390] sm:$0xff]
    %v249 = vld [vmem:[#allocation7 + $0x398] sm:$0xff]
    %v250 = vld [vmem:[#allocation7 + $0x3a0] sm:$0xff]
    %v251 = vld [vmem:[#allocation7 + $0x3a8] sm:$0xff]
    %v252 = vld [vmem:[#allocation7 + $0x3b0] sm:$0xff]
    %v253 = vld [vmem:[#allocation7 + $0x3b8] sm:$0xff]
    %v254 = vld [vmem:[#allocation7 + $0x3c0] sm:$0xff]
    %v255 = vld [vmem:[#allocation7 + $0x3c8] sm:$0xff]
    %v256 = vld [vmem:[#allocation7 + $0x3d0] sm:$0xff]
    %v257 = vld [vmem:[#allocation7 + $0x3d8] sm:$0xff]
    %v258 = vld [vmem:[#allocation7 + $0x3e0] sm:$0xff]
    %v259 = vld [vmem:[#allocation7 + $0x3e8] sm:$0xff]
    %v260 = vld [vmem:[#allocation7 + $0x3f0] sm:$0xff]
    %v261 = vld [vmem:[#allocation7 + $0x3f8] sm:$0xff]
    %v262 = vld [vmem:[#allocation7 + $0x400] sm:$0xff]
    %v263 = vld [vmem:[#allocation7 + $0x408] sm:$0xff]
    %v264 = vld [vmem:[#allocation7 + $0x410] sm:$0xff]
    %v265 = vld [vmem:[#allocation7 + $0x418] sm:$0xff]
    %v266 = vld [vmem:[#allocation7 + $0x420] sm:$0xff]
    %v267 = vld [vmem:[#allocation7 + $0x428] sm:$0xff]
    %v268 = vld [vmem:[#allocation7 + $0x430] sm:$0xff]
    %v269 = vld [vmem:[#allocation7 + $0x438] sm:$0xff]
    %v270 = vld [vmem:[#allocation7 + $0x440] sm:$0xff]
    %v271 = vld [vmem:[#allocation7 + $0x448] sm:$0xff]
    %v272 = vld [vmem:[#allocation7 + $0x450] sm:$0xff]
    %v273 = vld [vmem:[#allocation7 + $0x458] sm:$0xff]
    %v274 = vld [vmem:[#allocation7 + $0x460] sm:$0xff]
    %v275 = vld [vmem:[#allocation7 + $0x468] sm:$0xff]
    %v276 = vld [vmem:[#allocation7 + $0x470] sm:$0xff]
    %v277 = vld [vmem:[#allocation7 + $0x478] sm:$0xff]
    %v278 = vld [vmem:[#allocation7 + $0x480] sm:$0xff]
    %v279 = vld [vmem:[#allocation7 + $0x488] sm:$0xff]
    %v280 = vld [vmem:[#allocation7 + $0x490] sm:$0xff]
    %v281 = vld [vmem:[#allocation7 + $0x498] sm:$0xff]
    %v282 = vld [vmem:[#allocation7 + $0x4a0] sm:$0xff]
    %v283 = vld [vmem:[#allocation7 + $0x4a8] sm:$0xff]
    %v284 = vld [vmem:[#allocation7 + $0x4b0] sm:$0xff]
    %v285 = vld [vmem:[#allocation7 + $0x4b8] sm:$0xff]
    %v286 = vld [vmem:[#allocation7 + $0x4c0] sm:$0xff]
    %v287 = vld [vmem:[#allocation7 + $0x4c8] sm:$0xff]
    %v288 = vld [vmem:[#allocation7 + $0x4d0] sm:$0xff]
    %v289 = vld [vmem:[#allocation7 + $0x4d8] sm:$0xff]
    %v290 = vld [vmem:[#allocation7 + $0x4e0] sm:$0xff]
    %v291 = vld [vmem:[#allocation7 + $0x4e8] sm:$0xff]
    %v292 = vld [vmem:[#allocation7 + $0x4f0] sm:$0xff]
    %v293 = vld [vmem:[#allocation7 + $0x4f8] sm:$0xff]
    %v294 = vld [vmem:[#allocation7 + $0x500] sm:$0xff]
    %v295 = vld [vmem:[#allocation7 + $0x508] sm:$0xff]
    %v296 = vld [vmem:[#allocation7 + $0x510] sm:$0xff]
    %v297 = vld [vmem:[#allocation7 + $0x518] sm:$0xff]
    %v298 = vld [vmem:[#allocation7 + $0x520] sm:$0xff]
    %v299 = vld [vmem:[#allocation7 + $0x528] sm:$0xff]
    %v300 = vld [vmem:[#allocation7 + $0x530] sm:$0xff]
    %v301 = vld [vmem:[#allocation7 + $0x538] sm:$0xff]
    %v302 = vld [vmem:[#allocation7 + $0x540] sm:$0xff]
    %v303 = vld [vmem:[#allocation7 + $0x548] sm:$0xff]
    %v304 = vld [vmem:[#allocation7 + $0x550] sm:$0xff]
    %v305 = vld [vmem:[#allocation7 + $0x558] sm:$0xff]
    %v306 = vld [vmem:[#allocation7 + $0x560] sm:$0xff]
    %v307 = vld [vmem:[#allocation7 + $0x568] sm:$0xff]
    %v308 = vld [vmem:[#allocation7 + $0x570] sm:$0xff]
    %v309 = vld [vmem:[#allocation7 + $0x578] sm:$0xff]
    %v310 = vld [vmem:[#allocation7 + $0x580] sm:$0xff]
    %v311 = vld [vmem:[#allocation7 + $0x588] sm:$0xff]
    %v312 = vld [vmem:[#allocation7 + $0x590] sm:$0xff]
    %v313 = vld [vmem:[#allocation7 + $0x598] sm:$0xff]
    %v314 = vld [vmem:[#allocation7 + $0x5a0] sm:$0xff]
    %v315 = vld [vmem:[#allocation7 + $0x5a8] sm:$0xff]
    %v316 = vld [vmem:[#allocation7 + $0x5b0] sm:$0xff]
    %v317 = vld [vmem:[#allocation7 + $0x5b8] sm:$0xff]
    %v318 = vld [vmem:[#allocation7 + $0x5c0] sm:$0xff]
    %v319 = vld [vmem:[#allocation7 + $0x5c8] sm:$0xff]
    %v320 = vld [vmem:[#allocation7 + $0x5d0] sm:$0xff]
    %v321 = vld [vmem:[#allocation7 + $0x5d8] sm:$0xff]
    %v322 = vld [vmem:[#allocation7 + $0x5e0] sm:$0xff]
    %v323 = vld [vmem:[#allocation7 + $0x5e8] sm:$0xff]
    %v324 = vld [vmem:[#allocation7 + $0x5f0] sm:$0xff]
    %v325 = vld [vmem:[#allocation7 + $0x5f8] sm:$0xff]
    %v326 = vld [vmem:[#allocation7 + $0x600] sm:$0xff]
    %v327 = vld [vmem:[#allocation7 + $0x608] sm:$0xff]
    %v328 = vld [vmem:[#allocation7 + $0x610] sm:$0xff]
    %v329 = vld [vmem:[#allocation7 + $0x618] sm:$0xff]
    %v330 = vld [vmem:[#allocation7 + $0x620] sm:$0xff]
    %v331 = vld [vmem:[#allocation7 + $0x628] sm:$0xff]
    %v332 = vld [vmem:[#allocation7 + $0x630] sm:$0xff]
    %v333 = vld [vmem:[#allocation7 + $0x638] sm:$0xff]
    %v334 = vld [vmem:[#allocation7 + $0x640] sm:$0xff]
    %v335 = vld [vmem:[#allocation7 + $0x648] sm:$0xff]
    %v336 = vld [vmem:[#allocation7 + $0x650] sm:$0xff]
    %v337 = vld [vmem:[#allocation7 + $0x658] sm:$0xff]
    %v338 = vld [vmem:[#allocation7 + $0x660] sm:$0xff]
    %v339 = vld [vmem:[#allocation7 + $0x668] sm:$0xff]
    %v340 = vld [vmem:[#allocation7 + $0x670] sm:$0xff]
    %v341 = vld [vmem:[#allocation7 + $0x678] sm:$0xff]
    %v342 = vld [vmem:[#allocation7 + $0x680] sm:$0xff]
    %v343 = vld [vmem:[#allocation7 + $0x688] sm:$0xff]
    %v344 = vld [vmem:[#allocation7 + $0x690] sm:$0xff]
    %v345 = vld [vmem:[#allocation7 + $0x698] sm:$0xff]
    %v346 = vld [vmem:[#allocation7 + $0x6a0] sm:$0xff]
    %v347 = vld [vmem:[#allocation7 + $0x6a8] sm:$0xff]
    %v348 = vld [vmem:[#allocation7 + $0x6b0] sm:$0xff]
    %v349 = vld [vmem:[#allocation7 + $0x6b8] sm:$0xff]
    %v350 = vld [vmem:[#allocation7 + $0x6c0] sm:$0xff]
    %v351 = vld [vmem:[#allocation7 + $0x6c8] sm:$0xff]
    %v352 = vld [vmem:[#allocation7 + $0x6d0] sm:$0xff]
    %v353 = vld [vmem:[#allocation7 + $0x6d8] sm:$0xff]
    %v354 = vld [vmem:[#allocation7 + $0x6e0] sm:$0xff]
    %v355 = vld [vmem:[#allocation7 + $0x6e8] sm:$0xff]
    %v356 = vld [vmem:[#allocation7 + $0x6f0] sm:$0xff]
    %v357 = vld [vmem:[#allocation7 + $0x6f8] sm:$0xff]
    %v358 = vld [vmem:[#allocation7 + $0x700] sm:$0xff]
    %v359 = vld [vmem:[#allocation7 + $0x708] sm:$0xff]
    %v360 = vld [vmem:[#allocation7 + $0x710] sm:$0xff]
    %v361 = vld [vmem:[#allocation7 + $0x718] sm:$0xff]
    %v362 = vld [vmem:[#allocation7 + $0x720] sm:$0xff]
    %v363 = vld [vmem:[#allocation7 + $0x728] sm:$0xff]
    %v364 = vld [vmem:[#allocation7 + $0x730] sm:$0xff]
    %v365 = vld [vmem:[#allocation7 + $0x738] sm:$0xff]
    %v366 = vld [vmem:[#allocation7 + $0x740] sm:$0xff]
    %v367 = vld [vmem:[#allocation7 + $0x748] sm:$0xff]
    %v368 = vld [vmem:[#allocation7 + $0x750] sm:$0xff]
    %v369 = vld [vmem:[#allocation7 + $0x758] sm:$0xff]
    %v370 = vld [vmem:[#allocation7 + $0x760] sm:$0xff]
    %v371 = vld [vmem:[#allocation7 + $0x768] sm:$0xff]
    %v372 = vld [vmem:[#allocation7 + $0x770] sm:$0xff]
    %v373 = vld [vmem:[#allocation7 + $0x778] sm:$0xff]
    %v374 = vld [vmem:[#allocation7 + $0x780] sm:$0xff]
    %v375 = vld [vmem:[#allocation7 + $0x788] sm:$0xff]
    %v376 = vld [vmem:[#allocation7 + $0x790] sm:$0xff]
    %v377 = vld [vmem:[#allocation7 + $0x798] sm:$0xff]
    %v378 = vld [vmem:[#allocation7 + $0x7a0] sm:$0xff]
    %v379 = vld [vmem:[#allocation7 + $0x7a8] sm:$0xff]
    %v380 = vld [vmem:[#allocation7 + $0x7b0] sm:$0xff]
    %v381 = vld [vmem:[#allocation7 + $0x7b8] sm:$0xff]
    %v382 = vld [vmem:[#allocation7 + $0x7c0] sm:$0xff]
    %v383 = vld [vmem:[#allocation7 + $0x7c8] sm:$0xff]
    %v384 = vld [vmem:[#allocation7 + $0x7d0] sm:$0xff]
    %v385 = vld [vmem:[#allocation7 + $0x7d8] sm:$0xff]
    %v386 = vld [vmem:[#allocation7 + $0x7e0] sm:$0xff]
    %v387 = vld [vmem:[#allocation7 + $0x7e8] sm:$0xff]
    %v388 = vld [vmem:[#allocation7 + $0x7f0] sm:$0xff]
    %v389 = vld [vmem:[#allocation7 + $0x7f8] sm:$0xff]
    %v390 = vld [vmem:[#allocation7 + $0x800] sm:$0xff]
    %v391 = vld [vmem:[#allocation7 + $0x808] sm:$0xff]
    %v392 = vld [vmem:[#allocation7 + $0x810] sm:$0xff]
    %v393 = vld [vmem:[#allocation7 + $0x818] sm:$0xff]
    %v394 = vld [vmem:[#allocation7 + $0x820] sm:$0xff]
    %v395 = vld [vmem:[#allocation7 + $0x828] sm:$0xff]
    %v396 = vld [vmem:[#allocation7 + $0x830] sm:$0xff]
    %v397 = vld [vmem:[#allocation7 + $0x838] sm:$0xff]
    %v398 = vld [vmem:[#allocation7 + $0x840] sm:$0xff]
    %v399 = vld [vmem:[#allocation7 + $0x848] sm:$0xff]
    %v400 = vld [vmem:[#allocation7 + $0x850] sm:$0xff]
    %v401 = vld [vmem:[#allocation7 + $0x858] sm:$0xff]
    %v402 = vld [vmem:[#allocation7 + $0x860] sm:$0xff]
    %v403 = vld [vmem:[#allocation7 + $0x868] sm:$0xff]
    %v404 = vld [vmem:[#allocation7 + $0x870] sm:$0xff]
    %v405 = vld [vmem:[#allocation7 + $0x878] sm:$0xff]
    %v406 = vld [vmem:[#allocation7 + $0x880] sm:$0xff]
    %v407 = vld [vmem:[#allocation7 + $0x888] sm:$0xff]
    %v408 = vld [vmem:[#allocation7 + $0x890] sm:$0xff]
    %v409 = vld [vmem:[#allocation7 + $0x898] sm:$0xff]
    %v410 = vld [vmem:[#allocation7 + $0x8a0] sm:$0xff]
    %v411 = vld [vmem:[#allocation7 + $0x8a8] sm:$0xff]
    %v412 = vld [vmem:[#allocation7 + $0x8b0] sm:$0xff]
    %v413 = vld [vmem:[#allocation7 + $0x8b8] sm:$0xff]
    %v414 = vld [vmem:[#allocation7 + $0x8c0] sm:$0xff]
    %v415 = vld [vmem:[#allocation7 + $0x8c8] sm:$0xff]
    %v416 = vld [vmem:[#allocation7 + $0x8d0] sm:$0xff]
    %v417 = vld [vmem:[#allocation7 + $0x8d8] sm:$0xff]
    %v418 = vld [vmem:[#allocation7 + $0x8e0] sm:$0xff]
    %v419 = vld [vmem:[#allocation7 + $0x8e8] sm:$0xff]
    %v420 = vld [vmem:[#allocation7 + $0x8f0] sm:$0xff]
    %v421 = vld [vmem:[#allocation7 + $0x8f8] sm:$0xff]
    %v422 = vld [vmem:[#allocation7 + $0x900] sm:$0xff]
    %v423 = vld [vmem:[#allocation7 + $0x908] sm:$0xff]
    %v424 = vld [vmem:[#allocation7 + $0x910] sm:$0xff]
    %v425 = vld [vmem:[#allocation7 + $0x918] sm:$0xff]
    %v426 = vld [vmem:[#allocation7 + $0x920] sm:$0xff]
    %v427 = vld [vmem:[#allocation7 + $0x928] sm:$0xff]
    %v428 = vld [vmem:[#allocation7 + $0x930] sm:$0xff]
    %v429 = vld [vmem:[#allocation7 + $0x938] sm:$0xff]
    %v430 = vld [vmem:[#allocation7 + $0x940] sm:$0xff]
    %v431 = vld [vmem:[#allocation7 + $0x948] sm:$0xff]
    %v432 = vld [vmem:[#allocation7 + $0x950] sm:$0xff]
    %v433 = vld [vmem:[#allocation7 + $0x958] sm:$0xff]
    %v434 = vld [vmem:[#allocation7 + $0x960] sm:$0xff]
    %v435 = vld [vmem:[#allocation7 + $0x968] sm:$0xff]
    %v436 = vld [vmem:[#allocation7 + $0x970] sm:$0xff]
    %v437 = vld [vmem:[#allocation7 + $0x978] sm:$0xff]
    %v438 = vld [vmem:[#allocation7 + $0x980] sm:$0xff]
    %v439 = vld [vmem:[#allocation7 + $0x988] sm:$0xff]
    %v440 = vld [vmem:[#allocation7 + $0x990] sm:$0xff]
    %v441 = vld [vmem:[#allocation7 + $0x998] sm:$0xff]
    %v442 = vld [vmem:[#allocation7 + $0x9a0] sm:$0xff]
    %v443 = vld [vmem:[#allocation7 + $0x9a8] sm:$0xff]
    %v444 = vld [vmem:[#allocation7 + $0x9b0] sm:$0xff]
    %v445 = vld [vmem:[#allocation7 + $0x9b8] sm:$0xff]
    %v446 = vld [vmem:[#allocation7 + $0x9c0] sm:$0xff]
    %v447 = vld [vmem:[#allocation7 + $0x9c8] sm:$0xff]
    %v448 = vld [vmem:[#allocation7 + $0x9d0] sm:$0xff]
    %v449 = vld [vmem:[#allocation7 + $0x9d8] sm:$0xff]
    %v450 = vld [vmem:[#allocation7 + $0x9e0] sm:$0xff]
    %v451 = vld [vmem:[#allocation7 + $0x9e8] sm:$0xff]
    %v452 = vld [vmem:[#allocation7 + $0x9f0] sm:$0xff]
    %v453 = vld [vmem:[#allocation7 + $0x9f8] sm:$0xff]
    %v454 = vld [vmem:[#allocation7 + $0xa00] sm:$0xff]
    %v455 = vld [vmem:[#allocation7 + $0xa08] sm:$0xff]
    %v456 = vld [vmem:[#allocation7 + $0xa10] sm:$0xff]
    %v457 = vld [vmem:[#allocation7 + $0xa18] sm:$0xff]
    %v458 = vld [vmem:[#allocation7 + $0xa20] sm:$0xff]
    %v459 = vld [vmem:[#allocation7 + $0xa28] sm:$0xff]
    %v460 = vld [vmem:[#allocation7 + $0xa30] sm:$0xff]
    %v461 = vld [vmem:[#allocation7 + $0xa38] sm:$0xff]
    %v462 = vld [vmem:[#allocation7 + $0xa40] sm:$0xff]
    %v463 = vld [vmem:[#allocation7 + $0xa48] sm:$0xff]
    %v464 = vld [vmem:[#allocation7 + $0xa50] sm:$0xff]
    %v465 = vld [vmem:[#allocation7 + $0xa58] sm:$0xff]
    %v466 = vld [vmem:[#allocation7 + $0xa60] sm:$0xff]
    %v467 = vld [vmem:[#allocation7 + $0xa68] sm:$0xff]
    %v468 = vld [vmem:[#allocation7 + $0xa70] sm:$0xff]
    %v469 = vld [vmem:[#allocation7 + $0xa78] sm:$0xff]
    %v470 = vld [vmem:[#allocation7 + $0xa80] sm:$0xff]
    %v471 = vld [vmem:[#allocation7 + $0xa88] sm:$0xff]
    %v472 = vld [vmem:[#allocation7 + $0xa90] sm:$0xff]
    %v473 = vld [vmem:[#allocation7 + $0xa98] sm:$0xff]
    %v474 = vld [vmem:[#allocation7 + $0xaa0] sm:$0xff]
    %v475 = vld [vmem:[#allocation7 + $0xaa8] sm:$0xff]
    %v476 = vld [vmem:[#allocation7 + $0xab0] sm:$0xff]
    %v477 = vld [vmem:[#allocation7 + $0xab8] sm:$0xff]
    %v478 = vld [vmem:[#allocation7 + $0xac0] sm:$0xff]
    %v479 = vld [vmem:[#allocation7 + $0xac8] sm:$0xff]
    %v480 = vld [vmem:[#allocation7 + $0xad0] sm:$0xff]
    %v481 = vld [vmem:[#allocation7 + $0xad8] sm:$0xff]
    %v482 = vld [vmem:[#allocation7 + $0xae0] sm:$0xff]
    %v483 = vld [vmem:[#allocation7 + $0xae8] sm:$0xff]
    %v484 = vld [vmem:[#allocation7 + $0xaf0] sm:$0xff]
    %v485 = vld [vmem:[#allocation7 + $0xaf8] sm:$0xff]
    %v486 = vld [vmem:[#allocation7 + $0xb00] sm:$0xff]
    %v487 = vld [vmem:[#allocation7 + $0xb08] sm:$0xff]
    %v488 = vld [vmem:[#allocation7 + $0xb10] sm:$0xff]
    %v489 = vld [vmem:[#allocation7 + $0xb18] sm:$0xff]
    %v490 = vld [vmem:[#allocation7 + $0xb20] sm:$0xff]
    %v491 = vld [vmem:[#allocation7 + $0xb28] sm:$0xff]
    %v492 = vld [vmem:[#allocation7 + $0xb30] sm:$0xff]
    %v493 = vld [vmem:[#allocation7 + $0xb38] sm:$0xff]
    %v494 = vld [vmem:[#allocation7 + $0xb40] sm:$0xff]
    %v495 = vld [vmem:[#allocation7 + $0xb48] sm:$0xff]
    %v496 = vld [vmem:[#allocation7 + $0xb50] sm:$0xff]
    %v497 = vld [vmem:[#allocation7 + $0xb58] sm:$0xff]
    %v498 = vld [vmem:[#allocation7 + $0xb60] sm:$0xff]
    %v499 = vld [vmem:[#allocation7 + $0xb68] sm:$0xff]
    %v500 = vld [vmem:[#allocation7 + $0xb70] sm:$0xff]
    %v501 = vld [vmem:[#allocation7 + $0xb78] sm:$0xff]
    %v502 = vld [vmem:[#allocation7 + $0xb80] sm:$0xff]
    %v503 = vld [vmem:[#allocation7 + $0xb88] sm:$0xff]
    %v504 = vld [vmem:[#allocation7 + $0xb90] sm:$0xff]
    %v505 = vld [vmem:[#allocation7 + $0xb98] sm:$0xff]
    %v506 = vld [vmem:[#allocation7 + $0xba0] sm:$0xff]
    %v507 = vld [vmem:[#allocation7 + $0xba8] sm:$0xff]
    %v508 = vld [vmem:[#allocation7 + $0xbb0] sm:$0xff]
    %v509 = vld [vmem:[#allocation7 + $0xbb8] sm:$0xff]
    %v510 = vld [vmem:[#allocation7 + $0xbc0] sm:$0xff]
    %v511 = vld [vmem:[#allocation7 + $0xbc8] sm:$0xff]
    %v512 = vld [vmem:[#allocation7 + $0xbd0] sm:$0xff]
    %v513 = vld [vmem:[#allocation7 + $0xbd8] sm:$0xff]
    %v514 = vld [vmem:[#allocation7 + $0xbe0] sm:$0xff]
    %v515 = vld [vmem:[#allocation7 + $0xbe8] sm:$0xff]
    %v516 = vld [vmem:[#allocation7 + $0xbf0] sm:$0xff]
    %v517 = vld [vmem:[#allocation7 + $0xbf8] sm:$0xff]
    %v902 = vunpack.c.l.b16 %v134
    %v903 = vunpack.c.h.b16 %v134
    %v904 = vunpack.c.l.b16 %v135
    %v905 = vunpack.c.h.b16 %v135
    %v906 = vunpack.c.l.b16 %v136
    %v907 = vunpack.c.h.b16 %v136
    %v908 = vunpack.c.l.b16 %v137
    %v909 = vunpack.c.h.b16 %v137
    %v910 = vunpack.c.l.b16 %v138
    %v911 = vunpack.c.h.b16 %v138
    %v912 = vunpack.c.l.b16 %v139
    %v913 = vunpack.c.h.b16 %v139
    %v914 = vunpack.c.l.b16 %v140
    %v915 = vunpack.c.h.b16 %v140
    %v916 = vunpack.c.l.b16 %v141
    %v917 = vunpack.c.h.b16 %v141
    %v918 = vunpack.c.l.b16 %v142
    %v919 = vunpack.c.h.b16 %v142
    %v920 = vunpack.c.l.b16 %v143
    %v921 = vunpack.c.h.b16 %v143
    %v922 = vunpack.c.l.b16 %v144
    %v923 = vunpack.c.h.b16 %v144
    %v924 = vunpack.c.l.b16 %v145
    %v925 = vunpack.c.h.b16 %v145
    %v926 = vunpack.c.l.b16 %v146
    %v927 = vunpack.c.h.b16 %v146
    %v928 = vunpack.c.l.b16 %v147
    %v929 = vunpack.c.h.b16 %v147
    %v930 = vunpack.c.l.b16 %v148
    %v931 = vunpack.c.h.b16 %v148
    %v932 = vunpack.c.l.b16 %v149
    %v933 = vunpack.c.h.b16 %v149
    %v934 = vunpack.c.l.b16 %v150
    %v935 = vunpack.c.h.b16 %v150
    %v936 = vunpack.c.l.b16 %v151
    %v937 = vunpack.c.h.b16 %v151
    %v938 = vunpack.c.l.b16 %v152
    %v939 = vunpack.c.h.b16 %v152
    %v940 = vunpack.c.l.b16 %v153
    %v941 = vunpack.c.h.b16 %v153
    %v942 = vunpack.c.l.b16 %v154
    %v943 = vunpack.c.h.b16 %v154
    %v944 = vunpack.c.l.b16 %v155
    %v945 = vunpack.c.h.b16 %v155
    %v946 = vunpack.c.l.b16 %v156
    %v947 = vunpack.c.h.b16 %v156
    %v948 = vunpack.c.l.b16 %v157
    %v949 = vunpack.c.h.b16 %v157
    %v950 = vunpack.c.l.b16 %v158
    %v951 = vunpack.c.h.b16 %v158
    %v952 = vunpack.c.l.b16 %v159
    %v953 = vunpack.c.h.b16 %v159
    %v954 = vunpack.c.l.b16 %v160
    %v955 = vunpack.c.h.b16 %v160
    %v956 = vunpack.c.l.b16 %v161
    %v957 = vunpack.c.h.b16 %v161
    %v958 = vunpack.c.l.b16 %v162
    %v959 = vunpack.c.h.b16 %v162
    %v960 = vunpack.c.l.b16 %v163
    %v961 = vunpack.c.h.b16 %v163
    %v962 = vunpack.c.l.b16 %v164
    %v963 = vunpack.c.h.b16 %v164
    %v964 = vunpack.c.l.b16 %v165
    %v965 = vunpack.c.h.b16 %v165
    %v966 = vunpack.c.l.b16 %v166
    %v967 = vunpack.c.h.b16 %v166
    %v968 = vunpack.c.l.b16 %v167
    %v969 = vunpack.c.h.b16 %v167
    %v970 = vunpack.c.l.b16 %v168
    %v971 = vunpack.c.h.b16 %v168
    %v972 = vunpack.c.l.b16 %v169
    %v973 = vunpack.c.h.b16 %v169
    %v974 = vunpack.c.l.b16 %v170
    %v975 = vunpack.c.h.b16 %v170
    %v976 = vunpack.c.l.b16 %v171
    %v977 = vunpack.c.h.b16 %v171
    %v978 = vunpack.c.l.b16 %v172
    %v979 = vunpack.c.h.b16 %v172
    %v980 = vunpack.c.l.b16 %v173
    %v981 = vunpack.c.h.b16 %v173
    %v982 = vunpack.c.l.b16 %v174
    %v983 = vunpack.c.h.b16 %v174
    %v984 = vunpack.c.l.b16 %v175
    %v985 = vunpack.c.h.b16 %v175
    %v986 = vunpack.c.l.b16 %v176
    %v987 = vunpack.c.h.b16 %v176
    %v988 = vunpack.c.l.b16 %v177
    %v989 = vunpack.c.h.b16 %v177
    %v990 = vunpack.c.l.b16 %v178
    %v991 = vunpack.c.h.b16 %v178
    %v992 = vunpack.c.l.b16 %v179
    %v993 = vunpack.c.h.b16 %v179
    %v994 = vunpack.c.l.b16 %v180
    %v995 = vunpack.c.h.b16 %v180
    %v996 = vunpack.c.l.b16 %v181
    %v997 = vunpack.c.h.b16 %v181
    %v998 = vunpack.c.l.b16 %v182
    %v999 = vunpack.c.h.b16 %v182
    %v1000 = vunpack.c.l.b16 %v183
    %v1001 = vunpack.c.h.b16 %v183
    %v1002 = vunpack.c.l.b16 %v184
    %v1003 = vunpack.c.h.b16 %v184
    %v1004 = vunpack.c.l.b16 %v185
    %v1005 = vunpack.c.h.b16 %v185
    %v1006 = vunpack.c.l.b16 %v186
    %v1007 = vunpack.c.h.b16 %v186
    %v1008 = vunpack.c.l.b16 %v187
    %v1009 = vunpack.c.h.b16 %v187
    %v1010 = vunpack.c.l.b16 %v188
    %v1011 = vunpack.c.h.b16 %v188
    %v1012 = vunpack.c.l.b16 %v189
    %v1013 = vunpack.c.h.b16 %v189
    %v1014 = vunpack.c.l.b16 %v190
    %v1015 = vunpack.c.h.b16 %v190
    %v1016 = vunpack.c.l.b16 %v191
    %v1017 = vunpack.c.h.b16 %v191
    %v1018 = vunpack.c.l.b16 %v192
    %v1019 = vunpack.c.h.b16 %v192
    %v1020 = vunpack.c.l.b16 %v193
    %v1021 = vunpack.c.h.b16 %v193
    %v1022 = vunpack.c.l.b16 %v194
    %v1023 = vunpack.c.h.b16 %v194
    %v1024 = vunpack.c.l.b16 %v195
    %v1025 = vunpack.c.h.b16 %v195
    %v1026 = vunpack.c.l.b16 %v196
    %v1027 = vunpack.c.h.b16 %v196
    %v1028 = vunpack.c.l.b16 %v197
    %v1029 = vunpack.c.h.b16 %v197
    %v1030 = vunpack.c.l.b16 %v198
    %v1031 = vunpack.c.h.b16 %v198
    %v1032 = vunpack.c.l.b16 %v199
    %v1033 = vunpack.c.h.b16 %v199
    %v1034 = vunpack.c.l.b16 %v200
    %v1035 = vunpack.c.h.b16 %v200
    %v1036 = vunpack.c.l.b16 %v201
    %v1037 = vunpack.c.h.b16 %v201
    %v1038 = vunpack.c.l.b16 %v202
    %v1039 = vunpack.c.h.b16 %v202
    %v1040 = vunpack.c.l.b16 %v203
    %v1041 = vunpack.c.h.b16 %v203
    %v1042 = vunpack.c.l.b16 %v204
    %v1043 = vunpack.c.h.b16 %v204
    %v1044 = vunpack.c.l.b16 %v205
    %v1045 = vunpack.c.h.b16 %v205
    %v1046 = vunpack.c.l.b16 %v206
    %v1047 = vunpack.c.h.b16 %v206
    %v1048 = vunpack.c.l.b16 %v207
    %v1049 = vunpack.c.h.b16 %v207
    %v1050 = vunpack.c.l.b16 %v208
    %v1051 = vunpack.c.h.b16 %v208
    %v1052 = vunpack.c.l.b16 %v209
    %v1053 = vunpack.c.h.b16 %v209
    %v1054 = vunpack.c.l.b16 %v210
    %v1055 = vunpack.c.h.b16 %v210
    %v1056 = vunpack.c.l.b16 %v211
    %v1057 = vunpack.c.h.b16 %v211
    %v1058 = vunpack.c.l.b16 %v212
    %v1059 = vunpack.c.h.b16 %v212
    %v1060 = vunpack.c.l.b16 %v213
    %v1061 = vunpack.c.h.b16 %v213
    %v1062 = vunpack.c.l.b16 %v214
    %v1063 = vunpack.c.h.b16 %v214
    %v1064 = vunpack.c.l.b16 %v215
    %v1065 = vunpack.c.h.b16 %v215
    %v1066 = vunpack.c.l.b16 %v216
    %v1067 = vunpack.c.h.b16 %v216
    %v1068 = vunpack.c.l.b16 %v217
    %v1069 = vunpack.c.h.b16 %v217
    %v1070 = vunpack.c.l.b16 %v218
    %v1071 = vunpack.c.h.b16 %v218
    %v1072 = vunpack.c.l.b16 %v219
    %v1073 = vunpack.c.h.b16 %v219
    %v1074 = vunpack.c.l.b16 %v220
    %v1075 = vunpack.c.h.b16 %v220
    %v1076 = vunpack.c.l.b16 %v221
    %v1077 = vunpack.c.h.b16 %v221
    %v1078 = vunpack.c.l.b16 %v222
    %v1079 = vunpack.c.h.b16 %v222
    %v1080 = vunpack.c.l.b16 %v223
    %v1081 = vunpack.c.h.b16 %v223
    %v1082 = vunpack.c.l.b16 %v224
    %v1083 = vunpack.c.h.b16 %v224
    %v1084 = vunpack.c.l.b16 %v225
    %v1085 = vunpack.c.h.b16 %v225
    %v1086 = vunpack.c.l.b16 %v226
    %v1087 = vunpack.c.h.b16 %v226
    %v1088 = vunpack.c.l.b16 %v227
    %v1089 = vunpack.c.h.b16 %v227
    %v1090 = vunpack.c.l.b16 %v228
    %v1091 = vunpack.c.h.b16 %v228
    %v1092 = vunpack.c.l.b16 %v229
    %v1093 = vunpack.c.h.b16 %v229
    %v1094 = vunpack.c.l.b16 %v230
    %v1095 = vunpack.c.h.b16 %v230
    %v1096 = vunpack.c.l.b16 %v231
    %v1097 = vunpack.c.h.b16 %v231
    %v1098 = vunpack.c.l.b16 %v232
    %v1099 = vunpack.c.h.b16 %v232
    %v1100 = vunpack.c.l.b16 %v233
    %v1101 = vunpack.c.h.b16 %v233
    %v1102 = vunpack.c.l.b16 %v234
    %v1103 = vunpack.c.h.b16 %v234
    %v1104 = vunpack.c.l.b16 %v235
    %v1105 = vunpack.c.h.b16 %v235
    %v1106 = vunpack.c.l.b16 %v236
    %v1107 = vunpack.c.h.b16 %v236
    %v1108 = vunpack.c.l.b16 %v237
    %v1109 = vunpack.c.h.b16 %v237
    %v1110 = vunpack.c.l.b16 %v238
    %v1111 = vunpack.c.h.b16 %v238
    %v1112 = vunpack.c.l.b16 %v239
    %v1113 = vunpack.c.h.b16 %v239
    %v1114 = vunpack.c.l.b16 %v240
    %v1115 = vunpack.c.h.b16 %v240
    %v1116 = vunpack.c.l.b16 %v241
    %v1117 = vunpack.c.h.b16 %v241
    %v1118 = vunpack.c.l.b16 %v242
    %v1119 = vunpack.c.h.b16 %v242
    %v1120 = vunpack.c.l.b16 %v243
    %v1121 = vunpack.c.h.b16 %v243
    %v1122 = vunpack.c.l.b16 %v244
    %v1123 = vunpack.c.h.b16 %v244
    %v1124 = vunpack.c.l.b16 %v245
    %v1125 = vunpack.c.h.b16 %v245
    %v1126 = vunpack.c.l.b16 %v246
    %v1127 = vunpack.c.h.b16 %v246
    %v1128 = vunpack.c.l.b16 %v247
    %v1129 = vunpack.c.h.b16 %v247
    %v1130 = vunpack.c.l.b16 %v248
    %v1131 = vunpack.c.h.b16 %v248
    %v1132 = vunpack.c.l.b16 %v249
    %v1133 = vunpack.c.h.b16 %v249
    %v1134 = vunpack.c.l.b16 %v250
    %v1135 = vunpack.c.h.b16 %v250
    %v1136 = vunpack.c.l.b16 %v251
    %v1137 = vunpack.c.h.b16 %v251
    %v1138 = vunpack.c.l.b16 %v252
    %v1139 = vunpack.c.h.b16 %v252
    %v1140 = vunpack.c.l.b16 %v253
    %v1141 = vunpack.c.h.b16 %v253
    %v1142 = vunpack.c.l.b16 %v254
    %v1143 = vunpack.c.h.b16 %v254
    %v1144 = vunpack.c.l.b16 %v255
    %v1145 = vunpack.c.h.b16 %v255
    %v1146 = vunpack.c.l.b16 %v256
    %v1147 = vunpack.c.h.b16 %v256
    %v1148 = vunpack.c.l.b16 %v257
    %v1149 = vunpack.c.h.b16 %v257
    %v1150 = vunpack.c.l.b16 %v258
    %v1151 = vunpack.c.h.b16 %v258
    %v1152 = vunpack.c.l.b16 %v259
    %v1153 = vunpack.c.h.b16 %v259
    %v1154 = vunpack.c.l.b16 %v260
    %v1155 = vunpack.c.h.b16 %v260
    %v1156 = vunpack.c.l.b16 %v261
    %v1157 = vunpack.c.h.b16 %v261
    %v1158 = vunpack.c.l.b16 %v262
    %v1159 = vunpack.c.h.b16 %v262
    %v1160 = vunpack.c.l.b16 %v263
    %v1161 = vunpack.c.h.b16 %v263
    %v1162 = vunpack.c.l.b16 %v264
    %v1163 = vunpack.c.h.b16 %v264
    %v1164 = vunpack.c.l.b16 %v265
    %v1165 = vunpack.c.h.b16 %v265
    %v1166 = vunpack.c.l.b16 %v266
    %v1167 = vunpack.c.h.b16 %v266
    %v1168 = vunpack.c.l.b16 %v267
    %v1169 = vunpack.c.h.b16 %v267
    %v1170 = vunpack.c.l.b16 %v268
    %v1171 = vunpack.c.h.b16 %v268
    %v1172 = vunpack.c.l.b16 %v269
    %v1173 = vunpack.c.h.b16 %v269
    %v1174 = vunpack.c.l.b16 %v270
    %v1175 = vunpack.c.h.b16 %v270
    %v1176 = vunpack.c.l.b16 %v271
    %v1177 = vunpack.c.h.b16 %v271
    %v1178 = vunpack.c.l.b16 %v272
    %v1179 = vunpack.c.h.b16 %v272
    %v1180 = vunpack.c.l.b16 %v273
    %v1181 = vunpack.c.h.b16 %v273
    %v1182 = vunpack.c.l.b16 %v274
    %v1183 = vunpack.c.h.b16 %v274
    %v1184 = vunpack.c.l.b16 %v275
    %v1185 = vunpack.c.h.b16 %v275
    %v1186 = vunpack.c.l.b16 %v276
    %v1187 = vunpack.c.h.b16 %v276
    %v1188 = vunpack.c.l.b16 %v277
    %v1189 = vunpack.c.h.b16 %v277
    %v1190 = vunpack.c.l.b16 %v278
    %v1191 = vunpack.c.h.b16 %v278
    %v1192 = vunpack.c.l.b16 %v279
    %v1193 = vunpack.c.h.b16 %v279
    %v1194 = vunpack.c.l.b16 %v280
    %v1195 = vunpack.c.h.b16 %v280
    %v1196 = vunpack.c.l.b16 %v281
    %v1197 = vunpack.c.h.b16 %v281
    %v1198 = vunpack.c.l.b16 %v282
    %v1199 = vunpack.c.h.b16 %v282
    %v1200 = vunpack.c.l.b16 %v283
    %v1201 = vunpack.c.h.b16 %v283
    %v1202 = vunpack.c.l.b16 %v284
    %v1203 = vunpack.c.h.b16 %v284
    %v1204 = vunpack.c.l.b16 %v285
    %v1205 = vunpack.c.h.b16 %v285
    %v1206 = vunpack.c.l.b16 %v286
    %v1207 = vunpack.c.h.b16 %v286
    %v1208 = vunpack.c.l.b16 %v287
    %v1209 = vunpack.c.h.b16 %v287
    %v1210 = vunpack.c.l.b16 %v288
    %v1211 = vunpack.c.h.b16 %v288
    %v1212 = vunpack.c.l.b16 %v289
    %v1213 = vunpack.c.h.b16 %v289
    %v1214 = vunpack.c.l.b16 %v290
    %v1215 = vunpack.c.h.b16 %v290
    %v1216 = vunpack.c.l.b16 %v291
    %v1217 = vunpack.c.h.b16 %v291
    %v1218 = vunpack.c.l.b16 %v292
    %v1219 = vunpack.c.h.b16 %v292
    %v1220 = vunpack.c.l.b16 %v293
    %v1221 = vunpack.c.h.b16 %v293
    %v1222 = vunpack.c.l.b16 %v294
    %v1223 = vunpack.c.h.b16 %v294
    %v1224 = vunpack.c.l.b16 %v295
    %v1225 = vunpack.c.h.b16 %v295
    %v1226 = vunpack.c.l.b16 %v296
    %v1227 = vunpack.c.h.b16 %v296
    %v1228 = vunpack.c.l.b16 %v297
    %v1229 = vunpack.c.h.b16 %v297
    %v1230 = vunpack.c.l.b16 %v298
    %v1231 = vunpack.c.h.b16 %v298
    %v1232 = vunpack.c.l.b16 %v299
    %v1233 = vunpack.c.h.b16 %v299
    %v1234 = vunpack.c.l.b16 %v300
    %v1235 = vunpack.c.h.b16 %v300
    %v1236 = vunpack.c.l.b16 %v301
    %v1237 = vunpack.c.h.b16 %v301
    %v1238 = vunpack.c.l.b16 %v302
    %v1239 = vunpack.c.h.b16 %v302
    %v1240 = vunpack.c.l.b16 %v303
    %v1241 = vunpack.c.h.b16 %v303
    %v1242 = vunpack.c.l.b16 %v304
    %v1243 = vunpack.c.h.b16 %v304
    %v1244 = vunpack.c.l.b16 %v305
    %v1245 = vunpack.c.h.b16 %v305
    %v1246 = vunpack.c.l.b16 %v306
    %v1247 = vunpack.c.h.b16 %v306
    %v1248 = vunpack.c.l.b16 %v307
    %v1249 = vunpack.c.h.b16 %v307
    %v1250 = vunpack.c.l.b16 %v308
    %v1251 = vunpack.c.h.b16 %v308
    %v1252 = vunpack.c.l.b16 %v309
    %v1253 = vunpack.c.h.b16 %v309
    %v1254 = vunpack.c.l.b16 %v310
    %v1255 = vunpack.c.h.b16 %v310
    %v1256 = vunpack.c.l.b16 %v311
    %v1257 = vunpack.c.h.b16 %v311
    %v1258 = vunpack.c.l.b16 %v312
    %v1259 = vunpack.c.h.b16 %v312
    %v1260 = vunpack.c.l.b16 %v313
    %v1261 = vunpack.c.h.b16 %v313
    %v1262 = vunpack.c.l.b16 %v314
    %v1263 = vunpack.c.h.b16 %v314
    %v1264 = vunpack.c.l.b16 %v315
    %v1265 = vunpack.c.h.b16 %v315
    %v1266 = vunpack.c.l.b16 %v316
    %v1267 = vunpack.c.h.b16 %v316
    %v1268 = vunpack.c.l.b16 %v317
    %v1269 = vunpack.c.h.b16 %v317
    %v1270 = vunpack.c.l.b16 %v318
    %v1271 = vunpack.c.h.b16 %v318
    %v1272 = vunpack.c.l.b16 %v319
    %v1273 = vunpack.c.h.b16 %v319
    %v1274 = vunpack.c.l.b16 %v320
    %v1275 = vunpack.c.h.b16 %v320
    %v1276 = vunpack.c.l.b16 %v321
    %v1277 = vunpack.c.h.b16 %v321
    %v1278 = vunpack.c.l.b16 %v322
    %v1279 = vunpack.c.h.b16 %v322
    %v1280 = vunpack.c.l.b16 %v323
    %v1281 = vunpack.c.h.b16 %v323
    %v1282 = vunpack.c.l.b16 %v324
    %v1283 = vunpack.c.h.b16 %v324
    %v1284 = vunpack.c.l.b16 %v325
    %v1285 = vunpack.c.h.b16 %v325
    %v1286 = vunpack.c.l.b16 %v326
    %v1287 = vunpack.c.h.b16 %v326
    %v1288 = vunpack.c.l.b16 %v327
    %v1289 = vunpack.c.h.b16 %v327
    %v1290 = vunpack.c.l.b16 %v328
    %v1291 = vunpack.c.h.b16 %v328
    %v1292 = vunpack.c.l.b16 %v329
    %v1293 = vunpack.c.h.b16 %v329
    %v1294 = vunpack.c.l.b16 %v330
    %v1295 = vunpack.c.h.b16 %v330
    %v1296 = vunpack.c.l.b16 %v331
    %v1297 = vunpack.c.h.b16 %v331
    %v1298 = vunpack.c.l.b16 %v332
    %v1299 = vunpack.c.h.b16 %v332
    %v1300 = vunpack.c.l.b16 %v333
    %v1301 = vunpack.c.h.b16 %v333
    %v1302 = vunpack.c.l.b16 %v334
    %v1303 = vunpack.c.h.b16 %v334
    %v1304 = vunpack.c.l.b16 %v335
    %v1305 = vunpack.c.h.b16 %v335
    %v1306 = vunpack.c.l.b16 %v336
    %v1307 = vunpack.c.h.b16 %v336
    %v1308 = vunpack.c.l.b16 %v337
    %v1309 = vunpack.c.h.b16 %v337
    %v1310 = vunpack.c.l.b16 %v338
    %v1311 = vunpack.c.h.b16 %v338
    %v1312 = vunpack.c.l.b16 %v339
    %v1313 = vunpack.c.h.b16 %v339
    %v1314 = vunpack.c.l.b16 %v340
    %v1315 = vunpack.c.h.b16 %v340
    %v1316 = vunpack.c.l.b16 %v341
    %v1317 = vunpack.c.h.b16 %v341
    %v1318 = vunpack.c.l.b16 %v342
    %v1319 = vunpack.c.h.b16 %v342
    %v1320 = vunpack.c.l.b16 %v343
    %v1321 = vunpack.c.h.b16 %v343
    %v1322 = vunpack.c.l.b16 %v344
    %v1323 = vunpack.c.h.b16 %v344
    %v1324 = vunpack.c.l.b16 %v345
    %v1325 = vunpack.c.h.b16 %v345
    %v1326 = vunpack.c.l.b16 %v346
    %v1327 = vunpack.c.h.b16 %v346
    %v1328 = vunpack.c.l.b16 %v347
    %v1329 = vunpack.c.h.b16 %v347
    %v1330 = vunpack.c.l.b16 %v348
    %v1331 = vunpack.c.h.b16 %v348
    %v1332 = vunpack.c.l.b16 %v349
    %v1333 = vunpack.c.h.b16 %v349
    %v1334 = vunpack.c.l.b16 %v350
    %v1335 = vunpack.c.h.b16 %v350
    %v1336 = vunpack.c.l.b16 %v351
    %v1337 = vunpack.c.h.b16 %v351
    %v1338 = vunpack.c.l.b16 %v352
    %v1339 = vunpack.c.h.b16 %v352
    %v1340 = vunpack.c.l.b16 %v353
    %v1341 = vunpack.c.h.b16 %v353
    %v1342 = vunpack.c.l.b16 %v354
    %v1343 = vunpack.c.h.b16 %v354
    %v1344 = vunpack.c.l.b16 %v355
    %v1345 = vunpack.c.h.b16 %v355
    %v1346 = vunpack.c.l.b16 %v356
    %v1347 = vunpack.c.h.b16 %v356
    %v1348 = vunpack.c.l.b16 %v357
    %v1349 = vunpack.c.h.b16 %v357
    %v1350 = vunpack.c.l.b16 %v358
    %v1351 = vunpack.c.h.b16 %v358
    %v1352 = vunpack.c.l.b16 %v359
    %v1353 = vunpack.c.h.b16 %v359
    %v1354 = vunpack.c.l.b16 %v360
    %v1355 = vunpack.c.h.b16 %v360
    %v1356 = vunpack.c.l.b16 %v361
    %v1357 = vunpack.c.h.b16 %v361
    %v1358 = vunpack.c.l.b16 %v362
    %v1359 = vunpack.c.h.b16 %v362
    %v1360 = vunpack.c.l.b16 %v363
    %v1361 = vunpack.c.h.b16 %v363
    %v1362 = vunpack.c.l.b16 %v364
    %v1363 = vunpack.c.h.b16 %v364
    %v1364 = vunpack.c.l.b16 %v365
    %v1365 = vunpack.c.h.b16 %v365
    %v1366 = vunpack.c.l.b16 %v366
    %v1367 = vunpack.c.h.b16 %v366
    %v1368 = vunpack.c.l.b16 %v367
    %v1369 = vunpack.c.h.b16 %v367
    %v1370 = vunpack.c.l.b16 %v368
    %v1371 = vunpack.c.h.b16 %v368
    %v1372 = vunpack.c.l.b16 %v369
    %v1373 = vunpack.c.h.b16 %v369
    %v1374 = vunpack.c.l.b16 %v370
    %v1375 = vunpack.c.h.b16 %v370
    %v1376 = vunpack.c.l.b16 %v371
    %v1377 = vunpack.c.h.b16 %v371
    %v1378 = vunpack.c.l.b16 %v372
    %v1379 = vunpack.c.h.b16 %v372
    %v1380 = vunpack.c.l.b16 %v373
    %v1381 = vunpack.c.h.b16 %v373
    %v1382 = vunpack.c.l.b16 %v374
    %v1383 = vunpack.c.h.b16 %v374
    %v1384 = vunpack.c.l.b16 %v375
    %v1385 = vunpack.c.h.b16 %v375
    %v1386 = vunpack.c.l.b16 %v376
    %v1387 = vunpack.c.h.b16 %v376
    %v1388 = vunpack.c.l.b16 %v377
    %v1389 = vunpack.c.h.b16 %v377
    %v1390 = vunpack.c.l.b16 %v378
    %v1391 = vunpack.c.h.b16 %v378
    %v1392 = vunpack.c.l.b16 %v379
    %v1393 = vunpack.c.h.b16 %v379
    %v1394 = vunpack.c.l.b16 %v380
    %v1395 = vunpack.c.h.b16 %v380
    %v1396 = vunpack.c.l.b16 %v381
    %v1397 = vunpack.c.h.b16 %v381
    %v1398 = vunpack.c.l.b16 %v382
    %v1399 = vunpack.c.h.b16 %v382
    %v1400 = vunpack.c.l.b16 %v383
    %v1401 = vunpack.c.h.b16 %v383
    %v1402 = vunpack.c.l.b16 %v384
    %v1403 = vunpack.c.h.b16 %v384
    %v1404 = vunpack.c.l.b16 %v385
    %v1405 = vunpack.c.h.b16 %v385
    %v1406 = vunpack.c.l.b16 %v386
    %v1407 = vunpack.c.h.b16 %v386
    %v1408 = vunpack.c.l.b16 %v387
    %v1409 = vunpack.c.h.b16 %v387
    %v1410 = vunpack.c.l.b16 %v388
    %v1411 = vunpack.c.h.b16 %v388
    %v1412 = vunpack.c.l.b16 %v389
    %v1413 = vunpack.c.h.b16 %v389
    %v1414 = vunpack.c.l.b16 %v390
    %v1415 = vunpack.c.h.b16 %v390
    %v1416 = vunpack.c.l.b16 %v391
    %v1417 = vunpack.c.h.b16 %v391
    %v1418 = vunpack.c.l.b16 %v392
    %v1419 = vunpack.c.h.b16 %v392
    %v1420 = vunpack.c.l.b16 %v393
    %v1421 = vunpack.c.h.b16 %v393
    %v1422 = vunpack.c.l.b16 %v394
    %v1423 = vunpack.c.h.b16 %v394
    %v1424 = vunpack.c.l.b16 %v395
    %v1425 = vunpack.c.h.b16 %v395
    %v1426 = vunpack.c.l.b16 %v396
    %v1427 = vunpack.c.h.b16 %v396
    %v1428 = vunpack.c.l.b16 %v397
    %v1429 = vunpack.c.h.b16 %v397
    %v1430 = vunpack.c.l.b16 %v398
    %v1431 = vunpack.c.h.b16 %v398
    %v1432 = vunpack.c.l.b16 %v399
    %v1433 = vunpack.c.h.b16 %v399
    %v1434 = vunpack.c.l.b16 %v400
    %v1435 = vunpack.c.h.b16 %v400
    %v1436 = vunpack.c.l.b16 %v401
    %v1437 = vunpack.c.h.b16 %v401
    %v1438 = vunpack.c.l.b16 %v402
    %v1439 = vunpack.c.h.b16 %v402
    %v1440 = vunpack.c.l.b16 %v403
    %v1441 = vunpack.c.h.b16 %v403
    %v1442 = vunpack.c.l.b16 %v404
    %v1443 = vunpack.c.h.b16 %v404
    %v1444 = vunpack.c.l.b16 %v405
    %v1445 = vunpack.c.h.b16 %v405
    %v1446 = vunpack.c.l.b16 %v406
    %v1447 = vunpack.c.h.b16 %v406
    %v1448 = vunpack.c.l.b16 %v407
    %v1449 = vunpack.c.h.b16 %v407
    %v1450 = vunpack.c.l.b16 %v408
    %v1451 = vunpack.c.h.b16 %v408
    %v1452 = vunpack.c.l.b16 %v409
    %v1453 = vunpack.c.h.b16 %v409
    %v1454 = vunpack.c.l.b16 %v410
    %v1455 = vunpack.c.h.b16 %v410
    %v1456 = vunpack.c.l.b16 %v411
    %v1457 = vunpack.c.h.b16 %v411
    %v1458 = vunpack.c.l.b16 %v412
    %v1459 = vunpack.c.h.b16 %v412
    %v1460 = vunpack.c.l.b16 %v413
    %v1461 = vunpack.c.h.b16 %v413
    %v1462 = vunpack.c.l.b16 %v414
    %v1463 = vunpack.c.h.b16 %v414
    %v1464 = vunpack.c.l.b16 %v415
    %v1465 = vunpack.c.h.b16 %v415
    %v1466 = vunpack.c.l.b16 %v416
    %v1467 = vunpack.c.h.b16 %v416
    %v1468 = vunpack.c.l.b16 %v417
    %v1469 = vunpack.c.h.b16 %v417
    %v1470 = vunpack.c.l.b16 %v418
    %v1471 = vunpack.c.h.b16 %v418
    %v1472 = vunpack.c.l.b16 %v419
    %v1473 = vunpack.c.h.b16 %v419
    %v1474 = vunpack.c.l.b16 %v420
    %v1475 = vunpack.c.h.b16 %v420
    %v1476 = vunpack.c.l.b16 %v421
    %v1477 = vunpack.c.h.b16 %v421
    %v1478 = vunpack.c.l.b16 %v422
    %v1479 = vunpack.c.h.b16 %v422
    %v1480 = vunpack.c.l.b16 %v423
    %v1481 = vunpack.c.h.b16 %v423
    %v1482 = vunpack.c.l.b16 %v424
    %v1483 = vunpack.c.h.b16 %v424
    %v1484 = vunpack.c.l.b16 %v425
    %v1485 = vunpack.c.h.b16 %v425
    %v1486 = vunpack.c.l.b16 %v426
    %v1487 = vunpack.c.h.b16 %v426
    %v1488 = vunpack.c.l.b16 %v427
    %v1489 = vunpack.c.h.b16 %v427
    %v1490 = vunpack.c.l.b16 %v428
    %v1491 = vunpack.c.h.b16 %v428
    %v1492 = vunpack.c.l.b16 %v429
    %v1493 = vunpack.c.h.b16 %v429
    %v1494 = vunpack.c.l.b16 %v430
    %v1495 = vunpack.c.h.b16 %v430
    %v1496 = vunpack.c.l.b16 %v431
    %v1497 = vunpack.c.h.b16 %v431
    %v1498 = vunpack.c.l.b16 %v432
    %v1499 = vunpack.c.h.b16 %v432
    %v1500 = vunpack.c.l.b16 %v433
    %v1501 = vunpack.c.h.b16 %v433
    %v1502 = vunpack.c.l.b16 %v434
    %v1503 = vunpack.c.h.b16 %v434
    %v1504 = vunpack.c.l.b16 %v435
    %v1505 = vunpack.c.h.b16 %v435
    %v1506 = vunpack.c.l.b16 %v436
    %v1507 = vunpack.c.h.b16 %v436
    %v1508 = vunpack.c.l.b16 %v437
    %v1509 = vunpack.c.h.b16 %v437
    %v1510 = vunpack.c.l.b16 %v438
    %v1511 = vunpack.c.h.b16 %v438
    %v1512 = vunpack.c.l.b16 %v439
    %v1513 = vunpack.c.h.b16 %v439
    %v1514 = vunpack.c.l.b16 %v440
    %v1515 = vunpack.c.h.b16 %v440
    %v1516 = vunpack.c.l.b16 %v441
    %v1517 = vunpack.c.h.b16 %v441
    %v1518 = vunpack.c.l.b16 %v442
    %v1519 = vunpack.c.h.b16 %v442
    %v1520 = vunpack.c.l.b16 %v443
    %v1521 = vunpack.c.h.b16 %v443
    %v1522 = vunpack.c.l.b16 %v444
    %v1523 = vunpack.c.h.b16 %v444
    %v1524 = vunpack.c.l.b16 %v445
    %v1525 = vunpack.c.h.b16 %v445
    %v1526 = vunpack.c.l.b16 %v446
    %v1527 = vunpack.c.h.b16 %v446
    %v1528 = vunpack.c.l.b16 %v447
    %v1529 = vunpack.c.h.b16 %v447
    %v1530 = vunpack.c.l.b16 %v448
    %v1531 = vunpack.c.h.b16 %v448
    %v1532 = vunpack.c.l.b16 %v449
    %v1533 = vunpack.c.h.b16 %v449
    %v1534 = vunpack.c.l.b16 %v450
    %v1535 = vunpack.c.h.b16 %v450
    %v1536 = vunpack.c.l.b16 %v451
    %v1537 = vunpack.c.h.b16 %v451
    %v1538 = vunpack.c.l.b16 %v452
    %v1539 = vunpack.c.h.b16 %v452
    %v1540 = vunpack.c.l.b16 %v453
    %v1541 = vunpack.c.h.b16 %v453
    %v1542 = vunpack.c.l.b16 %v454
    %v1543 = vunpack.c.h.b16 %v454
    %v1544 = vunpack.c.l.b16 %v455
    %v1545 = vunpack.c.h.b16 %v455
    %v1546 = vunpack.c.l.b16 %v456
    %v1547 = vunpack.c.h.b16 %v456
    %v1548 = vunpack.c.l.b16 %v457
    %v1549 = vunpack.c.h.b16 %v457
    %v1550 = vunpack.c.l.b16 %v458
    %v1551 = vunpack.c.h.b16 %v458
    %v1552 = vunpack.c.l.b16 %v459
    %v1553 = vunpack.c.h.b16 %v459
    %v1554 = vunpack.c.l.b16 %v460
    %v1555 = vunpack.c.h.b16 %v460
    %v1556 = vunpack.c.l.b16 %v461
    %v1557 = vunpack.c.h.b16 %v461
    %v1558 = vunpack.c.l.b16 %v462
    %v1559 = vunpack.c.h.b16 %v462
    %v1560 = vunpack.c.l.b16 %v463
    %v1561 = vunpack.c.h.b16 %v463
    %v1562 = vunpack.c.l.b16 %v464
    %v1563 = vunpack.c.h.b16 %v464
    %v1564 = vunpack.c.l.b16 %v465
    %v1565 = vunpack.c.h.b16 %v465
    %v1566 = vunpack.c.l.b16 %v466
    %v1567 = vunpack.c.h.b16 %v466
    %v1568 = vunpack.c.l.b16 %v467
    %v1569 = vunpack.c.h.b16 %v467
    %v1570 = vunpack.c.l.b16 %v468
    %v1571 = vunpack.c.h.b16 %v468
    %v1572 = vunpack.c.l.b16 %v469
    %v1573 = vunpack.c.h.b16 %v469
    %v1574 = vunpack.c.l.b16 %v470
    %v1575 = vunpack.c.h.b16 %v470
    %v1576 = vunpack.c.l.b16 %v471
    %v1577 = vunpack.c.h.b16 %v471
    %v1578 = vunpack.c.l.b16 %v472
    %v1579 = vunpack.c.h.b16 %v472
    %v1580 = vunpack.c.l.b16 %v473
    %v1581 = vunpack.c.h.b16 %v473
    %v1582 = vunpack.c.l.b16 %v474
    %v1583 = vunpack.c.h.b16 %v474
    %v1584 = vunpack.c.l.b16 %v475
    %v1585 = vunpack.c.h.b16 %v475
    %v1586 = vunpack.c.l.b16 %v476
    %v1587 = vunpack.c.h.b16 %v476
    %v1588 = vunpack.c.l.b16 %v477
    %v1589 = vunpack.c.h.b16 %v477
    %v1590 = vunpack.c.l.b16 %v478
    %v1591 = vunpack.c.h.b16 %v478
    %v1592 = vunpack.c.l.b16 %v479
    %v1593 = vunpack.c.h.b16 %v479
    %v1594 = vunpack.c.l.b16 %v480
    %v1595 = vunpack.c.h.b16 %v480
    %v1596 = vunpack.c.l.b16 %v481
    %v1597 = vunpack.c.h.b16 %v481
    %v1598 = vunpack.c.l.b16 %v482
    %v1599 = vunpack.c.h.b16 %v482
    %v1600 = vunpack.c.l.b16 %v483
    %v1601 = vunpack.c.h.b16 %v483
    %v1602 = vunpack.c.l.b16 %v484
    %v1603 = vunpack.c.h.b16 %v484
    %v1604 = vunpack.c.l.b16 %v485
    %v1605 = vunpack.c.h.b16 %v485
    %v1606 = vunpack.c.l.b16 %v486
    %v1607 = vunpack.c.h.b16 %v486
    %v1608 = vunpack.c.l.b16 %v487
    %v1609 = vunpack.c.h.b16 %v487
    %v1610 = vunpack.c.l.b16 %v488
    %v1611 = vunpack.c.h.b16 %v488
    %v1612 = vunpack.c.l.b16 %v489
    %v1613 = vunpack.c.h.b16 %v489
    %v1614 = vunpack.c.l.b16 %v490
    %v1615 = vunpack.c.h.b16 %v490
    %v1616 = vunpack.c.l.b16 %v491
    %v1617 = vunpack.c.h.b16 %v491
    %v1618 = vunpack.c.l.b16 %v492
    %v1619 = vunpack.c.h.b16 %v492
    %v1620 = vunpack.c.l.b16 %v493
    %v1621 = vunpack.c.h.b16 %v493
    %v1622 = vunpack.c.l.b16 %v494
    %v1623 = vunpack.c.h.b16 %v494
    %v1624 = vunpack.c.l.b16 %v495
    %v1625 = vunpack.c.h.b16 %v495
    %v1626 = vunpack.c.l.b16 %v496
    %v1627 = vunpack.c.h.b16 %v496
    %v1628 = vunpack.c.l.b16 %v497
    %v1629 = vunpack.c.h.b16 %v497
    %v1630 = vunpack.c.l.b16 %v498
    %v1631 = vunpack.c.h.b16 %v498
    %v1632 = vunpack.c.l.b16 %v499
    %v1633 = vunpack.c.h.b16 %v499
    %v1634 = vunpack.c.l.b16 %v500
    %v1635 = vunpack.c.h.b16 %v500
    %v1636 = vunpack.c.l.b16 %v501
    %v1637 = vunpack.c.h.b16 %v501
    %v1638 = vunpack.c.l.b16 %v502
    %v1639 = vunpack.c.h.b16 %v502
    %v1640 = vunpack.c.l.b16 %v503
    %v1641 = vunpack.c.h.b16 %v503
    %v1642 = vunpack.c.l.b16 %v504
    %v1643 = vunpack.c.h.b16 %v504
    %v1644 = vunpack.c.l.b16 %v505
    %v1645 = vunpack.c.h.b16 %v505
    %v1646 = vunpack.c.l.b16 %v506
    %v1647 = vunpack.c.h.b16 %v506
    %v1648 = vunpack.c.l.b16 %v507
    %v1649 = vunpack.c.h.b16 %v507
    %v1650 = vunpack.c.l.b16 %v508
    %v1651 = vunpack.c.h.b16 %v508
    %v1652 = vunpack.c.l.b16 %v509
    %v1653 = vunpack.c.h.b16 %v509
    %v1654 = vunpack.c.l.b16 %v510
    %v1655 = vunpack.c.h.b16 %v510
    %v1656 = vunpack.c.l.b16 %v511
    %v1657 = vunpack.c.h.b16 %v511
    %v1658 = vunpack.c.l.b16 %v512
    %v1659 = vunpack.c.h.b16 %v512
    %v1660 = vunpack.c.l.b16 %v513
    %v1661 = vunpack.c.h.b16 %v513
    %v1662 = vunpack.c.l.b16 %v514
    %v1663 = vunpack.c.h.b16 %v514
    %v1664 = vunpack.c.l.b16 %v515
    %v1665 = vunpack.c.h.b16 %v515
    %v1666 = vunpack.c.l.b16 %v516
    %v1667 = vunpack.c.h.b16 %v516
    %v1668 = vunpack.c.l.b16 %v517
    %v1669 = vunpack.c.h.b16 %v517
    %v1670 = vpack.c.b16 %v914, %v902
    %v1671 = vpack.c.b16 %v915, %v903
    %v1672 = vpack.c.b16 %v916, %v904
    %v1673 = vpack.c.b16 %v917, %v905
    %v1674 = vpack.c.b16 %v918, %v906
    %v1675 = vpack.c.b16 %v919, %v907
    %v1676 = vpack.c.b16 %v920, %v908
    %v1677 = vpack.c.b16 %v921, %v909
    %v1678 = vpack.c.b16 %v922, %v910
    %v1679 = vpack.c.b16 %v923, %v911
    %v1680 = vpack.c.b16 %v924, %v912
    %v1681 = vpack.c.b16 %v925, %v913
    %v1682 = vpack.c.b16 %v938, %v926
    %v1683 = vpack.c.b16 %v939, %v927
    %v1684 = vpack.c.b16 %v940, %v928
    %v1685 = vpack.c.b16 %v941, %v929
    %v1686 = vpack.c.b16 %v942, %v930
    %v1687 = vpack.c.b16 %v943, %v931
    %v1688 = vpack.c.b16 %v944, %v932
    %v1689 = vpack.c.b16 %v945, %v933
    %v1690 = vpack.c.b16 %v946, %v934
    %v1691 = vpack.c.b16 %v947, %v935
    %v1692 = vpack.c.b16 %v948, %v936
    %v1693 = vpack.c.b16 %v949, %v937
    %v1694 = vpack.c.b16 %v962, %v950
    %v1695 = vpack.c.b16 %v963, %v951
    %v1696 = vpack.c.b16 %v964, %v952
    %v1697 = vpack.c.b16 %v965, %v953
    %v1698 = vpack.c.b16 %v966, %v954
    %v1699 = vpack.c.b16 %v967, %v955
    %v1700 = vpack.c.b16 %v968, %v956
    %v1701 = vpack.c.b16 %v969, %v957
    %v1702 = vpack.c.b16 %v970, %v958
    %v1703 = vpack.c.b16 %v971, %v959
    %v1704 = vpack.c.b16 %v972, %v960
    %v1705 = vpack.c.b16 %v973, %v961
    %v1706 = vpack.c.b16 %v986, %v974
    %v1707 = vpack.c.b16 %v987, %v975
    %v1708 = vpack.c.b16 %v988, %v976
    %v1709 = vpack.c.b16 %v989, %v977
    %v1710 = vpack.c.b16 %v990, %v978
    %v1711 = vpack.c.b16 %v991, %v979
    %v1712 = vpack.c.b16 %v992, %v980
    %v1713 = vpack.c.b16 %v993, %v981
    %v1714 = vpack.c.b16 %v994, %v982
    %v1715 = vpack.c.b16 %v995, %v983
    %v1716 = vpack.c.b16 %v996, %v984
    %v1717 = vpack.c.b16 %v997, %v985
    %v1718 = vpack.c.b16 %v1010, %v998
    %v1719 = vpack.c.b16 %v1011, %v999
    %v1720 = vpack.c.b16 %v1012, %v1000
    %v1721 = vpack.c.b16 %v1013, %v1001
    %v1722 = vpack.c.b16 %v1014, %v1002
    %v1723 = vpack.c.b16 %v1015, %v1003
    %v1724 = vpack.c.b16 %v1016, %v1004
    %v1725 = vpack.c.b16 %v1017, %v1005
    %v1726 = vpack.c.b16 %v1018, %v1006
    %v1727 = vpack.c.b16 %v1019, %v1007
    %v1728 = vpack.c.b16 %v1020, %v1008
    %v1729 = vpack.c.b16 %v1021, %v1009
    %v1730 = vpack.c.b16 %v1034, %v1022
    %v1731 = vpack.c.b16 %v1035, %v1023
    %v1732 = vpack.c.b16 %v1036, %v1024
    %v1733 = vpack.c.b16 %v1037, %v1025
    %v1734 = vpack.c.b16 %v1038, %v1026
    %v1735 = vpack.c.b16 %v1039, %v1027
    %v1736 = vpack.c.b16 %v1040, %v1028
    %v1737 = vpack.c.b16 %v1041, %v1029
    %v1738 = vpack.c.b16 %v1042, %v1030
    %v1739 = vpack.c.b16 %v1043, %v1031
    %v1740 = vpack.c.b16 %v1044, %v1032
    %v1741 = vpack.c.b16 %v1045, %v1033
    %v1742 = vpack.c.b16 %v1058, %v1046
    %v1743 = vpack.c.b16 %v1059, %v1047
    %v1744 = vpack.c.b16 %v1060, %v1048
    %v1745 = vpack.c.b16 %v1061, %v1049
    %v1746 = vpack.c.b16 %v1062, %v1050
    %v1747 = vpack.c.b16 %v1063, %v1051
    %v1748 = vpack.c.b16 %v1064, %v1052
    %v1749 = vpack.c.b16 %v1065, %v1053
    %v1750 = vpack.c.b16 %v1066, %v1054
    %v1751 = vpack.c.b16 %v1067, %v1055
    %v1752 = vpack.c.b16 %v1068, %v1056
    %v1753 = vpack.c.b16 %v1069, %v1057
    %v1754 = vpack.c.b16 %v1082, %v1070
    %v1755 = vpack.c.b16 %v1083, %v1071
    %v1756 = vpack.c.b16 %v1084, %v1072
    %v1757 = vpack.c.b16 %v1085, %v1073
    %v1758 = vpack.c.b16 %v1086, %v1074
    %v1759 = vpack.c.b16 %v1087, %v1075
    %v1760 = vpack.c.b16 %v1088, %v1076
    %v1761 = vpack.c.b16 %v1089, %v1077
    %v1762 = vpack.c.b16 %v1090, %v1078
    %v1763 = vpack.c.b16 %v1091, %v1079
    %v1764 = vpack.c.b16 %v1092, %v1080
    %v1765 = vpack.c.b16 %v1093, %v1081
    %v1766 = vpack.c.b16 %v1106, %v1094
    %v1767 = vpack.c.b16 %v1107, %v1095
    %v1768 = vpack.c.b16 %v1108, %v1096
    %v1769 = vpack.c.b16 %v1109, %v1097
    %v1770 = vpack.c.b16 %v1110, %v1098
    %v1771 = vpack.c.b16 %v1111, %v1099
    %v1772 = vpack.c.b16 %v1112, %v1100
    %v1773 = vpack.c.b16 %v1113, %v1101
    %v1774 = vpack.c.b16 %v1114, %v1102
    %v1775 = vpack.c.b16 %v1115, %v1103
    %v1776 = vpack.c.b16 %v1116, %v1104
    %v1777 = vpack.c.b16 %v1117, %v1105
    %v1778 = vpack.c.b16 %v1130, %v1118
    %v1779 = vpack.c.b16 %v1131, %v1119
    %v1780 = vpack.c.b16 %v1132, %v1120
    %v1781 = vpack.c.b16 %v1133, %v1121
    %v1782 = vpack.c.b16 %v1134, %v1122
    %v1783 = vpack.c.b16 %v1135, %v1123
    %v1784 = vpack.c.b16 %v1136, %v1124
    %v1785 = vpack.c.b16 %v1137, %v1125
    %v1786 = vpack.c.b16 %v1138, %v1126
    %v1787 = vpack.c.b16 %v1139, %v1127
    %v1788 = vpack.c.b16 %v1140, %v1128
    %v1789 = vpack.c.b16 %v1141, %v1129
    %v1790 = vpack.c.b16 %v1154, %v1142
    %v1791 = vpack.c.b16 %v1155, %v1143
    %v1792 = vpack.c.b16 %v1156, %v1144
    %v1793 = vpack.c.b16 %v1157, %v1145
    %v1794 = vpack.c.b16 %v1158, %v1146
    %v1795 = vpack.c.b16 %v1159, %v1147
    %v1796 = vpack.c.b16 %v1160, %v1148
    %v1797 = vpack.c.b16 %v1161, %v1149
    %v1798 = vpack.c.b16 %v1162, %v1150
    %v1799 = vpack.c.b16 %v1163, %v1151
    %v1800 = vpack.c.b16 %v1164, %v1152
    %v1801 = vpack.c.b16 %v1165, %v1153
    %v1802 = vpack.c.b16 %v1178, %v1166
    %v1803 = vpack.c.b16 %v1179, %v1167
    %v1804 = vpack.c.b16 %v1180, %v1168
    %v1805 = vpack.c.b16 %v1181, %v1169
    %v1806 = vpack.c.b16 %v1182, %v1170
    %v1807 = vpack.c.b16 %v1183, %v1171
    %v1808 = vpack.c.b16 %v1184, %v1172
    %v1809 = vpack.c.b16 %v1185, %v1173
    %v1810 = vpack.c.b16 %v1186, %v1174
    %v1811 = vpack.c.b16 %v1187, %v1175
    %v1812 = vpack.c.b16 %v1188, %v1176
    %v1813 = vpack.c.b16 %v1189, %v1177
    %v1814 = vpack.c.b16 %v1202, %v1190
    %v1815 = vpack.c.b16 %v1203, %v1191
    %v1816 = vpack.c.b16 %v1204, %v1192
    %v1817 = vpack.c.b16 %v1205, %v1193
    %v1818 = vpack.c.b16 %v1206, %v1194
    %v1819 = vpack.c.b16 %v1207, %v1195
    %v1820 = vpack.c.b16 %v1208, %v1196
    %v1821 = vpack.c.b16 %v1209, %v1197
    %v1822 = vpack.c.b16 %v1210, %v1198
    %v1823 = vpack.c.b16 %v1211, %v1199
    %v1824 = vpack.c.b16 %v1212, %v1200
    %v1825 = vpack.c.b16 %v1213, %v1201
    %v1826 = vpack.c.b16 %v1226, %v1214
    %v1827 = vpack.c.b16 %v1227, %v1215
    %v1828 = vpack.c.b16 %v1228, %v1216
    %v1829 = vpack.c.b16 %v1229, %v1217
    %v1830 = vpack.c.b16 %v1230, %v1218
    %v1831 = vpack.c.b16 %v1231, %v1219
    %v1832 = vpack.c.b16 %v1232, %v1220
    %v1833 = vpack.c.b16 %v1233, %v1221
    %v1834 = vpack.c.b16 %v1234, %v1222
    %v1835 = vpack.c.b16 %v1235, %v1223
    %v1836 = vpack.c.b16 %v1236, %v1224
    %v1837 = vpack.c.b16 %v1237, %v1225
    %v1838 = vpack.c.b16 %v1250, %v1238
    %v1839 = vpack.c.b16 %v1251, %v1239
    %v1840 = vpack.c.b16 %v1252, %v1240
    %v1841 = vpack.c.b16 %v1253, %v1241
    %v1842 = vpack.c.b16 %v1254, %v1242
    %v1843 = vpack.c.b16 %v1255, %v1243
    %v1844 = vpack.c.b16 %v1256, %v1244
    %v1845 = vpack.c.b16 %v1257, %v1245
    %v1846 = vpack.c.b16 %v1258, %v1246
    %v1847 = vpack.c.b16 %v1259, %v1247
    %v1848 = vpack.c.b16 %v1260, %v1248
    %v1849 = vpack.c.b16 %v1261, %v1249
    %v1850 = vpack.c.b16 %v1274, %v1262
    %v1851 = vpack.c.b16 %v1275, %v1263
    %v1852 = vpack.c.b16 %v1276, %v1264
    %v1853 = vpack.c.b16 %v1277, %v1265
    %v1854 = vpack.c.b16 %v1278, %v1266
    %v1855 = vpack.c.b16 %v1279, %v1267
    %v1856 = vpack.c.b16 %v1280, %v1268
    %v1857 = vpack.c.b16 %v1281, %v1269
    %v1858 = vpack.c.b16 %v1282, %v1270
    %v1859 = vpack.c.b16 %v1283, %v1271
    %v1860 = vpack.c.b16 %v1284, %v1272
    %v1861 = vpack.c.b16 %v1285, %v1273
    %v1862 = vpack.c.b16 %v1298, %v1286
    %v1863 = vpack.c.b16 %v1299, %v1287
    %v1864 = vpack.c.b16 %v1300, %v1288
    %v1865 = vpack.c.b16 %v1301, %v1289
    %v1866 = vpack.c.b16 %v1302, %v1290
    %v1867 = vpack.c.b16 %v1303, %v1291
    %v1868 = vpack.c.b16 %v1304, %v1292
    %v1869 = vpack.c.b16 %v1305, %v1293
    %v1870 = vpack.c.b16 %v1306, %v1294
    %v1871 = vpack.c.b16 %v1307, %v1295
    %v1872 = vpack.c.b16 %v1308, %v1296
    %v1873 = vpack.c.b16 %v1309, %v1297
    %v1874 = vpack.c.b16 %v1322, %v1310
    %v1875 = vpack.c.b16 %v1323, %v1311
    %v1876 = vpack.c.b16 %v1324, %v1312
    %v1877 = vpack.c.b16 %v1325, %v1313
    %v1878 = vpack.c.b16 %v1326, %v1314
    %v1879 = vpack.c.b16 %v1327, %v1315
    %v1880 = vpack.c.b16 %v1328, %v1316
    %v1881 = vpack.c.b16 %v1329, %v1317
    %v1882 = vpack.c.b16 %v1330, %v1318
    %v1883 = vpack.c.b16 %v1331, %v1319
    %v1884 = vpack.c.b16 %v1332, %v1320
    %v1885 = vpack.c.b16 %v1333, %v1321
    %v1886 = vpack.c.b16 %v1346, %v1334
    %v1887 = vpack.c.b16 %v1347, %v1335
    %v1888 = vpack.c.b16 %v1348, %v1336
    %v1889 = vpack.c.b16 %v1349, %v1337
    %v1890 = vpack.c.b16 %v1350, %v1338
    %v1891 = vpack.c.b16 %v1351, %v1339
    %v1892 = vpack.c.b16 %v1352, %v1340
    %v1893 = vpack.c.b16 %v1353, %v1341
    %v1894 = vpack.c.b16 %v1354, %v1342
    %v1895 = vpack.c.b16 %v1355, %v1343
    %v1896 = vpack.c.b16 %v1356, %v1344
    %v1897 = vpack.c.b16 %v1357, %v1345
    %v1898 = vpack.c.b16 %v1370, %v1358
    %v1899 = vpack.c.b16 %v1371, %v1359
    %v1900 = vpack.c.b16 %v1372, %v1360
    %v1901 = vpack.c.b16 %v1373, %v1361
    %v1902 = vpack.c.b16 %v1374, %v1362
    %v1903 = vpack.c.b16 %v1375, %v1363
    %v1904 = vpack.c.b16 %v1376, %v1364
    %v1905 = vpack.c.b16 %v1377, %v1365
    %v1906 = vpack.c.b16 %v1378, %v1366
    %v1907 = vpack.c.b16 %v1379, %v1367
    %v1908 = vpack.c.b16 %v1380, %v1368
    %v1909 = vpack.c.b16 %v1381, %v1369
    %v1910 = vpack.c.b16 %v1394, %v1382
    %v1911 = vpack.c.b16 %v1395, %v1383
    %v1912 = vpack.c.b16 %v1396, %v1384
    %v1913 = vpack.c.b16 %v1397, %v1385
    %v1914 = vpack.c.b16 %v1398, %v1386
    %v1915 = vpack.c.b16 %v1399, %v1387
    %v1916 = vpack.c.b16 %v1400, %v1388
    %v1917 = vpack.c.b16 %v1401, %v1389
    %v1918 = vpack.c.b16 %v1402, %v1390
    %v1919 = vpack.c.b16 %v1403, %v1391
    %v1920 = vpack.c.b16 %v1404, %v1392
    %v1921 = vpack.c.b16 %v1405, %v1393
    %v1922 = vpack.c.b16 %v1418, %v1406
    %v1923 = vpack.c.b16 %v1419, %v1407
    %v1924 = vpack.c.b16 %v1420, %v1408
    %v1925 = vpack.c.b16 %v1421, %v1409
    %v1926 = vpack.c.b16 %v1422, %v1410
    %v1927 = vpack.c.b16 %v1423, %v1411
    %v1928 = vpack.c.b16 %v1424, %v1412
    %v1929 = vpack.c.b16 %v1425, %v1413
    %v1930 = vpack.c.b16 %v1426, %v1414
    %v1931 = vpack.c.b16 %v1427, %v1415
    %v1932 = vpack.c.b16 %v1428, %v1416
    %v1933 = vpack.c.b16 %v1429, %v1417
    %v1934 = vpack.c.b16 %v1442, %v1430
    %v1935 = vpack.c.b16 %v1443, %v1431
    %v1936 = vpack.c.b16 %v1444, %v1432
    %v1937 = vpack.c.b16 %v1445, %v1433
    %v1938 = vpack.c.b16 %v1446, %v1434
    %v1939 = vpack.c.b16 %v1447, %v1435
    %v1940 = vpack.c.b16 %v1448, %v1436
    %v1941 = vpack.c.b16 %v1449, %v1437
    %v1942 = vpack.c.b16 %v1450, %v1438
    %v1943 = vpack.c.b16 %v1451, %v1439
    %v1944 = vpack.c.b16 %v1452, %v1440
    %v1945 = vpack.c.b16 %v1453, %v1441
    %v1946 = vpack.c.b16 %v1466, %v1454
    %v1947 = vpack.c.b16 %v1467, %v1455
    %v1948 = vpack.c.b16 %v1468, %v1456
    %v1949 = vpack.c.b16 %v1469, %v1457
    %v1950 = vpack.c.b16 %v1470, %v1458
    %v1951 = vpack.c.b16 %v1471, %v1459
    %v1952 = vpack.c.b16 %v1472, %v1460
    %v1953 = vpack.c.b16 %v1473, %v1461
    %v1954 = vpack.c.b16 %v1474, %v1462
    %v1955 = vpack.c.b16 %v1475, %v1463
    %v1956 = vpack.c.b16 %v1476, %v1464
    %v1957 = vpack.c.b16 %v1477, %v1465
    %v1958 = vpack.c.b16 %v1490, %v1478
    %v1959 = vpack.c.b16 %v1491, %v1479
    %v1960 = vpack.c.b16 %v1492, %v1480
    %v1961 = vpack.c.b16 %v1493, %v1481
    %v1962 = vpack.c.b16 %v1494, %v1482
    %v1963 = vpack.c.b16 %v1495, %v1483
    %v1964 = vpack.c.b16 %v1496, %v1484
    %v1965 = vpack.c.b16 %v1497, %v1485
    %v1966 = vpack.c.b16 %v1498, %v1486
    %v1967 = vpack.c.b16 %v1499, %v1487
    %v1968 = vpack.c.b16 %v1500, %v1488
    %v1969 = vpack.c.b16 %v1501, %v1489
    %v1970 = vpack.c.b16 %v1514, %v1502
    %v1971 = vpack.c.b16 %v1515, %v1503
    %v1972 = vpack.c.b16 %v1516, %v1504
    %v1973 = vpack.c.b16 %v1517, %v1505
    %v1974 = vpack.c.b16 %v1518, %v1506
    %v1975 = vpack.c.b16 %v1519, %v1507
    %v1976 = vpack.c.b16 %v1520, %v1508
    %v1977 = vpack.c.b16 %v1521, %v1509
    %v1978 = vpack.c.b16 %v1522, %v1510
    %v1979 = vpack.c.b16 %v1523, %v1511
    %v1980 = vpack.c.b16 %v1524, %v1512
    %v1981 = vpack.c.b16 %v1525, %v1513
    %v1982 = vpack.c.b16 %v1538, %v1526
    %v1983 = vpack.c.b16 %v1539, %v1527
    %v1984 = vpack.c.b16 %v1540, %v1528
    %v1985 = vpack.c.b16 %v1541, %v1529
    %v1986 = vpack.c.b16 %v1542, %v1530
    %v1987 = vpack.c.b16 %v1543, %v1531
    %v1988 = vpack.c.b16 %v1544, %v1532
    %v1989 = vpack.c.b16 %v1545, %v1533
    %v1990 = vpack.c.b16 %v1546, %v1534
    %v1991 = vpack.c.b16 %v1547, %v1535
    %v1992 = vpack.c.b16 %v1548, %v1536
    %v1993 = vpack.c.b16 %v1549, %v1537
    %v1994 = vpack.c.b16 %v1562, %v1550
    %v1995 = vpack.c.b16 %v1563, %v1551
    %v1996 = vpack.c.b16 %v1564, %v1552
    %v1997 = vpack.c.b16 %v1565, %v1553
    %v1998 = vpack.c.b16 %v1566, %v1554
    %v1999 = vpack.c.b16 %v1567, %v1555
    %v2000 = vpack.c.b16 %v1568, %v1556
    %v2001 = vpack.c.b16 %v1569, %v1557
    %v2002 = vpack.c.b16 %v1570, %v1558
    %v2003 = vpack.c.b16 %v1571, %v1559
    %v2004 = vpack.c.b16 %v1572, %v1560
    %v2005 = vpack.c.b16 %v1573, %v1561
    %v2006 = vpack.c.b16 %v1586, %v1574
    %v2007 = vpack.c.b16 %v1587, %v1575
    %v2008 = vpack.c.b16 %v1588, %v1576
    %v2009 = vpack.c.b16 %v1589, %v1577
    %v2010 = vpack.c.b16 %v1590, %v1578
    %v2011 = vpack.c.b16 %v1591, %v1579
    %v2012 = vpack.c.b16 %v1592, %v1580
    %v2013 = vpack.c.b16 %v1593, %v1581
    %v2014 = vpack.c.b16 %v1594, %v1582
    %v2015 = vpack.c.b16 %v1595, %v1583
    %v2016 = vpack.c.b16 %v1596, %v1584
    %v2017 = vpack.c.b16 %v1597, %v1585
    %v2018 = vpack.c.b16 %v1610, %v1598
    %v2019 = vpack.c.b16 %v1611, %v1599
    %v2020 = vpack.c.b16 %v1612, %v1600
    %v2021 = vpack.c.b16 %v1613, %v1601
    %v2022 = vpack.c.b16 %v1614, %v1602
    %v2023 = vpack.c.b16 %v1615, %v1603
    %v2024 = vpack.c.b16 %v1616, %v1604
    %v2025 = vpack.c.b16 %v1617, %v1605
    %v2026 = vpack.c.b16 %v1618, %v1606
    %v2027 = vpack.c.b16 %v1619, %v1607
    %v2028 = vpack.c.b16 %v1620, %v1608
    %v2029 = vpack.c.b16 %v1621, %v1609
    %v2030 = vpack.c.b16 %v1634, %v1622
    %v2031 = vpack.c.b16 %v1635, %v1623
    %v2032 = vpack.c.b16 %v1636, %v1624
    %v2033 = vpack.c.b16 %v1637, %v1625
    %v2034 = vpack.c.b16 %v1638, %v1626
    %v2035 = vpack.c.b16 %v1639, %v1627
    %v2036 = vpack.c.b16 %v1640, %v1628
    %v2037 = vpack.c.b16 %v1641, %v1629
    %v2038 = vpack.c.b16 %v1642, %v1630
    %v2039 = vpack.c.b16 %v1643, %v1631
    %v2040 = vpack.c.b16 %v1644, %v1632
    %v2041 = vpack.c.b16 %v1645, %v1633
    %v2042 = vpack.c.b16 %v1658, %v1646
    %v2043 = vpack.c.b16 %v1659, %v1647
    %v2044 = vpack.c.b16 %v1660, %v1648
    %v2045 = vpack.c.b16 %v1661, %v1649
    %v2046 = vpack.c.b16 %v1662, %v1650
    %v2047 = vpack.c.b16 %v1663, %v1651
    %v2048 = vpack.c.b16 %v1664, %v1652
    %v2049 = vpack.c.b16 %v1665, %v1653
    %v2050 = vpack.c.b16 %v1666, %v1654
    %v2051 = vpack.c.b16 %v1667, %v1655
    %v2052 = vpack.c.b16 %v1668, %v1656
    %v2053 = vpack.c.b16 %v1669, %v1657
    %2438 = vmatpush.bf16.msra.mxu0 %v1754
    %2439 = vmatpush.bf16.msra.mxu0 %v1742
    %2440 = vmatpush.bf16.msra.mxu0 %v1730
    %2441 = vmatpush.bf16.msra.mxu0 %v1718
    %2442 = vmatpush.bf16.msra.mxu0 %v1706
    %2443 = vmatpush.bf16.msra.mxu0 %v1694
    %2444 = vmatpush.bf16.msra.mxu0 %v1682
    %2445 = vmatpush.bf16.msra.mxu0 %v1670
    %2446 = vmatmul.bf16.gmra.mxu0 %v130
    %v2447 = vpop.f32.mrf.mxu0
    %v2448 = vadd.f32 0.0, %v2447
    %v2449 = vpop.f32.mrf.mxu0
    %v2450 = vadd.f32 0.0, %v2449
    %2451 = vdwg.mxu0
    %2452 = vmatpush.bf16.msra.mxu0 %v1850
    %2453 = vmatpush.bf16.msra.mxu0 %v1838
    %2454 = vmatpush.bf16.msra.mxu0 %v1826
    %2455 = vmatpush.bf16.msra.mxu0 %v1814
    %2456 = vmatpush.bf16.msra.mxu0 %v1802
    %2457 = vmatpush.bf16.msra.mxu0 %v1790
    %2458 = vmatpush.bf16.msra.mxu0 %v1778
    %2459 = vmatpush.bf16.msra.mxu0 %v1766
    %2460 = vmatmul.bf16.gmra.mxu0 %v131
    %v2461 = vpop.f32.mrf.mxu0
    %v2462 = vadd.f32 %v2448, %v2461
    %v2463 = vpop.f32.mrf.mxu0
    %v2464 = vadd.f32 %v2450, %v2463
    %2465 = vdwg.mxu0
    %2466 = vmatpush.bf16.msra.mxu0 %v1946
    %2467 = vmatpush.bf16.msra.mxu0 %v1934
    %2468 = vmatpush.bf16.msra.mxu0 %v1922
    %2469 = vmatpush.bf16.msra.mxu0 %v1910
    %2470 = vmatpush.bf16.msra.mxu0 %v1898
    %2471 = vmatpush.bf16.msra.mxu0 %v1886
    %2472 = vmatpush.bf16.msra.mxu0 %v1874
    %2473 = vmatpush.bf16.msra.mxu0 %v1862
    %2474 = vmatmul.bf16.gmra.mxu0 %v132
    %v2475 = vpop.f32.mrf.mxu0
    %v2476 = vadd.f32 %v2462, %v2475
    %v2477 = vpop.f32.mrf.mxu0
    %v2478 = vadd.f32 %v2464, %v2477
    %2479 = vdwg.mxu0
    %2480 = vmatpush.bf16.msra.mxu0 %v2042
    %2481 = vmatpush.bf16.msra.mxu0 %v2030
    %2482 = vmatpush.bf16.msra.mxu0 %v2018
    %2483 = vmatpush.bf16.msra.mxu0 %v2006
    %2484 = vmatpush.bf16.msra.mxu0 %v1994
    %2485 = vmatpush.bf16.msra.mxu0 %v1982
    %2486 = vmatpush.bf16.msra.mxu0 %v1970
    %2487 = vmatpush.bf16.msra.mxu0 %v1958
    %2488 = vmatmul.bf16.gmra.mxu0 %v133
    %v2489 = vpop.f32.mrf.mxu0
    %v2490 = vadd.f32 %v2476, %v2489
    %v2491 = vpop.f32.mrf.mxu0
    %v2492 = vadd.f32 %v2478, %v2491
    %2493 = vdwg.mxu0
    %2494 = vmatpush.bf16.msra.mxu0 %v1755
    %2495 = vmatpush.bf16.msra.mxu0 %v1743
    %2496 = vmatpush.bf16.msra.mxu0 %v1731
    %2497 = vmatpush.bf16.msra.mxu0 %v1719
    %2498 = vmatpush.bf16.msra.mxu0 %v1707
    %2499 = vmatpush.bf16.msra.mxu0 %v1695
    %2500 = vmatpush.bf16.msra.mxu0 %v1683
    %2501 = vmatpush.bf16.msra.mxu0 %v1671
    %2502 = vmatmul.bf16.gmra.mxu0 %v130
    %v2503 = vpop.f32.mrf.mxu0
    %v2504 = vadd.f32 0.0, %v2503
    %v2505 = vpop.f32.mrf.mxu0
    %v2506 = vadd.f32 0.0, %v2505
    %2507 = vdwg.mxu0
    %2508 = vmatpush.bf16.msra.mxu0 %v1851
    %2509 = vmatpush.bf16.msra.mxu0 %v1839
    %2510 = vmatpush.bf16.msra.mxu0 %v1827
    %2511 = vmatpush.bf16.msra.mxu0 %v1815
    %2512 = vmatpush.bf16.msra.mxu0 %v1803
    %2513 = vmatpush.bf16.msra.mxu0 %v1791
    %2514 = vmatpush.bf16.msra.mxu0 %v1779
    %2515 = vmatpush.bf16.msra.mxu0 %v1767
    %2516 = vmatmul.bf16.gmra.mxu0 %v131
    %v2517 = vpop.f32.mrf.mxu0
    %v2518 = vadd.f32 %v2504, %v2517
    %v2519 = vpop.f32.mrf.mxu0
    %v2520 = vadd.f32 %v2506, %v2519
    %2521 = vdwg.mxu0
    %2522 = vmatpush.bf16.msra.mxu0 %v1947
    %2523 = vmatpush.bf16.msra.mxu0 %v1935
    %2524 = vmatpush.bf16.msra.mxu0 %v1923
    %2525 = vmatpush.bf16.msra.mxu0 %v1911
    %2526 = vmatpush.bf16.msra.mxu0 %v1899
    %2527 = vmatpush.bf16.msra.mxu0 %v1887
    %2528 = vmatpush.bf16.msra.mxu0 %v1875
    %2529 = vmatpush.bf16.msra.mxu0 %v1863
    %2530 = vmatmul.bf16.gmra.mxu0 %v132
    %v2531 = vpop.f32.mrf.mxu0
    %v2532 = vadd.f32 %v2518, %v2531
    %v2533 = vpop.f32.mrf.mxu0
    %v2534 = vadd.f32 %v2520, %v2533
    %2535 = vdwg.mxu0
    %2536 = vmatpush.bf16.msra.mxu0 %v2043
    %2537 = vmatpush.bf16.msra.mxu0 %v2031
    %2538 = vmatpush.bf16.msra.mxu0 %v2019
    %2539 = vmatpush.bf16.msra.mxu0 %v2007
    %2540 = vmatpush.bf16.msra.mxu0 %v1995
    %2541 = vmatpush.bf16.msra.mxu0 %v1983
    %2542 = vmatpush.bf16.msra.mxu0 %v1971
    %2543 = vmatpush.bf16.msra.mxu0 %v1959
    %2544 = vmatmul.bf16.gmra.mxu0 %v133
    %v2545 = vpop.f32.mrf.mxu0
    %v2546 = vadd.f32 %v2532, %v2545
    %v2547 = vpop.f32.mrf.mxu0
    %v2548 = vadd.f32 %v2534, %v2547
    %2549 = vdwg.mxu0
    %2550 = vmatpush.bf16.msra.mxu0 %v1756
    %2551 = vmatpush.bf16.msra.mxu0 %v1744
    %2552 = vmatpush.bf16.msra.mxu0 %v1732
    %2553 = vmatpush.bf16.msra.mxu0 %v1720
    %2554 = vmatpush.bf16.msra.mxu0 %v1708
    %2555 = vmatpush.bf16.msra.mxu0 %v1696
    %2556 = vmatpush.bf16.msra.mxu0 %v1684
    %2557 = vmatpush.bf16.msra.mxu0 %v1672
    %2558 = vmatmul.bf16.gmra.mxu0 %v130
    %v2559 = vpop.f32.mrf.mxu0
    %v2560 = vadd.f32 0.0, %v2559
    %v2561 = vpop.f32.mrf.mxu0
    %v2562 = vadd.f32 0.0, %v2561
    %2563 = vdwg.mxu0
    %2564 = vmatpush.bf16.msra.mxu0 %v1852
    %2565 = vmatpush.bf16.msra.mxu0 %v1840
    %2566 = vmatpush.bf16.msra.mxu0 %v1828
    %2567 = vmatpush.bf16.msra.mxu0 %v1816
    %2568 = vmatpush.bf16.msra.mxu0 %v1804
    %2569 = vmatpush.bf16.msra.mxu0 %v1792
    %2570 = vmatpush.bf16.msra.mxu0 %v1780
    %2571 = vmatpush.bf16.msra.mxu0 %v1768
    %2572 = vmatmul.bf16.gmra.mxu0 %v131
    %v2573 = vpop.f32.mrf.mxu0
    %v2574 = vadd.f32 %v2560, %v2573
    %v2575 = vpop.f32.mrf.mxu0
    %v2576 = vadd.f32 %v2562, %v2575
    %2577 = vdwg.mxu0
    %2578 = vmatpush.bf16.msra.mxu0 %v1948
    %2579 = vmatpush.bf16.msra.mxu0 %v1936
    %2580 = vmatpush.bf16.msra.mxu0 %v1924
    %2581 = vmatpush.bf16.msra.mxu0 %v1912
    %2582 = vmatpush.bf16.msra.mxu0 %v1900
    %2583 = vmatpush.bf16.msra.mxu0 %v1888
    %2584 = vmatpush.bf16.msra.mxu0 %v1876
    %2585 = vmatpush.bf16.msra.mxu0 %v1864
    %2586 = vmatmul.bf16.gmra.mxu0 %v132
    %v2587 = vpop.f32.mrf.mxu0
    %v2588 = vadd.f32 %v2574, %v2587
    %v2589 = vpop.f32.mrf.mxu0
    %v2590 = vadd.f32 %v2576, %v2589
    %2591 = vdwg.mxu0
    %2592 = vmatpush.bf16.msra.mxu0 %v2044
    %2593 = vmatpush.bf16.msra.mxu0 %v2032
    %2594 = vmatpush.bf16.msra.mxu0 %v2020
    %2595 = vmatpush.bf16.msra.mxu0 %v2008
    %2596 = vmatpush.bf16.msra.mxu0 %v1996
    %2597 = vmatpush.bf16.msra.mxu0 %v1984
    %2598 = vmatpush.bf16.msra.mxu0 %v1972
    %2599 = vmatpush.bf16.msra.mxu0 %v1960
    %2600 = vmatmul.bf16.gmra.mxu0 %v133
    %v2601 = vpop.f32.mrf.mxu0
    %v2602 = vadd.f32 %v2588, %v2601
    %v2603 = vpop.f32.mrf.mxu0
    %v2604 = vadd.f32 %v2590, %v2603
    %2605 = vdwg.mxu0
    %2606 = vmatpush.bf16.msra.mxu0 %v1757
    %2607 = vmatpush.bf16.msra.mxu0 %v1745
    %2608 = vmatpush.bf16.msra.mxu0 %v1733
    %2609 = vmatpush.bf16.msra.mxu0 %v1721
    %2610 = vmatpush.bf16.msra.mxu0 %v1709
    %2611 = vmatpush.bf16.msra.mxu0 %v1697
    %2612 = vmatpush.bf16.msra.mxu0 %v1685
    %2613 = vmatpush.bf16.msra.mxu0 %v1673
    %2614 = vmatmul.bf16.gmra.mxu0 %v130
    %v2615 = vpop.f32.mrf.mxu0
    %v2616 = vadd.f32 0.0, %v2615
    %v2617 = vpop.f32.mrf.mxu0
    %v2618 = vadd.f32 0.0, %v2617
    %2619 = vdwg.mxu0
    %2620 = vmatpush.bf16.msra.mxu0 %v1853
    %2621 = vmatpush.bf16.msra.mxu0 %v1841
    %2622 = vmatpush.bf16.msra.mxu0 %v1829
    %2623 = vmatpush.bf16.msra.mxu0 %v1817
    %2624 = vmatpush.bf16.msra.mxu0 %v1805
    %2625 = vmatpush.bf16.msra.mxu0 %v1793
    %2626 = vmatpush.bf16.msra.mxu0 %v1781
    %2627 = vmatpush.bf16.msra.mxu0 %v1769
    %2628 = vmatmul.bf16.gmra.mxu0 %v131
    %v2629 = vpop.f32.mrf.mxu0
    %v2630 = vadd.f32 %v2616, %v2629
    %v2631 = vpop.f32.mrf.mxu0
    %v2632 = vadd.f32 %v2618, %v2631
    %2633 = vdwg.mxu0
    %2634 = vmatpush.bf16.msra.mxu0 %v1949
    %2635 = vmatpush.bf16.msra.mxu0 %v1937
    %2636 = vmatpush.bf16.msra.mxu0 %v1925
    %2637 = vmatpush.bf16.msra.mxu0 %v1913
    %2638 = vmatpush.bf16.msra.mxu0 %v1901
    %2639 = vmatpush.bf16.msra.mxu0 %v1889
    %2640 = vmatpush.bf16.msra.mxu0 %v1877
    %2641 = vmatpush.bf16.msra.mxu0 %v1865
    %2642 = vmatmul.bf16.gmra.mxu0 %v132
    %v2643 = vpop.f32.mrf.mxu0
    %v2644 = vadd.f32 %v2630, %v2643
    %v2645 = vpop.f32.mrf.mxu0
    %v2646 = vadd.f32 %v2632, %v2645
    %2647 = vdwg.mxu0
    %2648 = vmatpush.bf16.msra.mxu0 %v2045
    %2649 = vmatpush.bf16.msra.mxu0 %v2033
    %2650 = vmatpush.bf16.msra.mxu0 %v2021
    %2651 = vmatpush.bf16.msra.mxu0 %v2009
    %2652 = vmatpush.bf16.msra.mxu0 %v1997
    %2653 = vmatpush.bf16.msra.mxu0 %v1985
    %2654 = vmatpush.bf16.msra.mxu0 %v1973
    %2655 = vmatpush.bf16.msra.mxu0 %v1961
    %2656 = vmatmul.bf16.gmra.mxu0 %v133
    %v2657 = vpop.f32.mrf.mxu0
    %v2658 = vadd.f32 %v2644, %v2657
    %v2659 = vpop.f32.mrf.mxu0
    %v2660 = vadd.f32 %v2646, %v2659
    %2661 = vdwg.mxu0
    %2662 = vmatpush.bf16.msra.mxu0 %v1758
    %2663 = vmatpush.bf16.msra.mxu0 %v1746
    %2664 = vmatpush.bf16.msra.mxu0 %v1734
    %2665 = vmatpush.bf16.msra.mxu0 %v1722
    %2666 = vmatpush.bf16.msra.mxu0 %v1710
    %2667 = vmatpush.bf16.msra.mxu0 %v1698
    %2668 = vmatpush.bf16.msra.mxu0 %v1686
    %2669 = vmatpush.bf16.msra.mxu0 %v1674
    %2670 = vmatmul.bf16.gmra.mxu0 %v130
    %v2671 = vpop.f32.mrf.mxu0
    %v2672 = vadd.f32 0.0, %v2671
    %v2673 = vpop.f32.mrf.mxu0
    %v2674 = vadd.f32 0.0, %v2673
    %2675 = vdwg.mxu0
    %2676 = vmatpush.bf16.msra.mxu0 %v1854
    %2677 = vmatpush.bf16.msra.mxu0 %v1842
    %2678 = vmatpush.bf16.msra.mxu0 %v1830
    %2679 = vmatpush.bf16.msra.mxu0 %v1818
    %2680 = vmatpush.bf16.msra.mxu0 %v1806
    %2681 = vmatpush.bf16.msra.mxu0 %v1794
    %2682 = vmatpush.bf16.msra.mxu0 %v1782
    %2683 = vmatpush.bf16.msra.mxu0 %v1770
    %2684 = vmatmul.bf16.gmra.mxu0 %v131
    %v2685 = vpop.f32.mrf.mxu0
    %v2686 = vadd.f32 %v2672, %v2685
    %v2687 = vpop.f32.mrf.mxu0
    %v2688 = vadd.f32 %v2674, %v2687
    %2689 = vdwg.mxu0
    %2690 = vmatpush.bf16.msra.mxu0 %v1950
    %2691 = vmatpush.bf16.msra.mxu0 %v1938
    %2692 = vmatpush.bf16.msra.mxu0 %v1926
    %2693 = vmatpush.bf16.msra.mxu0 %v1914
    %2694 = vmatpush.bf16.msra.mxu0 %v1902
    %2695 = vmatpush.bf16.msra.mxu0 %v1890
    %2696 = vmatpush.bf16.msra.mxu0 %v1878
    %2697 = vmatpush.bf16.msra.mxu0 %v1866
    %2698 = vmatmul.bf16.gmra.mxu0 %v132
    %v2699 = vpop.f32.mrf.mxu0
    %v2700 = vadd.f32 %v2686, %v2699
    %v2701 = vpop.f32.mrf.mxu0
    %v2702 = vadd.f32 %v2688, %v2701
    %2703 = vdwg.mxu0
    %2704 = vmatpush.bf16.msra.mxu0 %v2046
    %2705 = vmatpush.bf16.msra.mxu0 %v2034
    %2706 = vmatpush.bf16.msra.mxu0 %v2022
    %2707 = vmatpush.bf16.msra.mxu0 %v2010
    %2708 = vmatpush.bf16.msra.mxu0 %v1998
    %2709 = vmatpush.bf16.msra.mxu0 %v1986
    %2710 = vmatpush.bf16.msra.mxu0 %v1974
    %2711 = vmatpush.bf16.msra.mxu0 %v1962
    %2712 = vmatmul.bf16.gmra.mxu0 %v133
    %v2713 = vpop.f32.mrf.mxu0
    %v2714 = vadd.f32 %v2700, %v2713
    %v2715 = vpop.f32.mrf.mxu0
    %v2716 = vadd.f32 %v2702, %v2715
    %2717 = vdwg.mxu0
    %2718 = vmatpush.bf16.msra.mxu0 %v1759
    %2719 = vmatpush.bf16.msra.mxu0 %v1747
    %2720 = vmatpush.bf16.msra.mxu0 %v1735
    %2721 = vmatpush.bf16.msra.mxu0 %v1723
    %2722 = vmatpush.bf16.msra.mxu0 %v1711
    %2723 = vmatpush.bf16.msra.mxu0 %v1699
    %2724 = vmatpush.bf16.msra.mxu0 %v1687
    %2725 = vmatpush.bf16.msra.mxu0 %v1675
    %2726 = vmatmul.bf16.gmra.mxu0 %v130
    %v2727 = vpop.f32.mrf.mxu0
    %v2728 = vadd.f32 0.0, %v2727
    %v2729 = vpop.f32.mrf.mxu0
    %v2730 = vadd.f32 0.0, %v2729
    %2731 = vdwg.mxu0
    %2732 = vmatpush.bf16.msra.mxu0 %v1855
    %2733 = vmatpush.bf16.msra.mxu0 %v1843
    %2734 = vmatpush.bf16.msra.mxu0 %v1831
    %2735 = vmatpush.bf16.msra.mxu0 %v1819
    %2736 = vmatpush.bf16.msra.mxu0 %v1807
    %2737 = vmatpush.bf16.msra.mxu0 %v1795
    %2738 = vmatpush.bf16.msra.mxu0 %v1783
    %2739 = vmatpush.bf16.msra.mxu0 %v1771
    %2740 = vmatmul.bf16.gmra.mxu0 %v131
    %v2741 = vpop.f32.mrf.mxu0
    %v2742 = vadd.f32 %v2728, %v2741
    %v2743 = vpop.f32.mrf.mxu0
    %v2744 = vadd.f32 %v2730, %v2743
    %2745 = vdwg.mxu0
    %2746 = vmatpush.bf16.msra.mxu0 %v1951
    %2747 = vmatpush.bf16.msra.mxu0 %v1939
    %2748 = vmatpush.bf16.msra.mxu0 %v1927
    %2749 = vmatpush.bf16.msra.mxu0 %v1915
    %2750 = vmatpush.bf16.msra.mxu0 %v1903
    %2751 = vmatpush.bf16.msra.mxu0 %v1891
    %2752 = vmatpush.bf16.msra.mxu0 %v1879
    %2753 = vmatpush.bf16.msra.mxu0 %v1867
    %2754 = vmatmul.bf16.gmra.mxu0 %v132
    %v2755 = vpop.f32.mrf.mxu0
    %v2756 = vadd.f32 %v2742, %v2755
    %v2757 = vpop.f32.mrf.mxu0
    %v2758 = vadd.f32 %v2744, %v2757
    %2759 = vdwg.mxu0
    %2760 = vmatpush.bf16.msra.mxu0 %v2047
    %2761 = vmatpush.bf16.msra.mxu0 %v2035
    %2762 = vmatpush.bf16.msra.mxu0 %v2023
    %2763 = vmatpush.bf16.msra.mxu0 %v2011
    %2764 = vmatpush.bf16.msra.mxu0 %v1999
    %2765 = vmatpush.bf16.msra.mxu0 %v1987
    %2766 = vmatpush.bf16.msra.mxu0 %v1975
    %2767 = vmatpush.bf16.msra.mxu0 %v1963
    %2768 = vmatmul.bf16.gmra.mxu0 %v133
    %v2769 = vpop.f32.mrf.mxu0
    %v2770 = vadd.f32 %v2756, %v2769
    %v2771 = vpop.f32.mrf.mxu0
    %v2772 = vadd.f32 %v2758, %v2771
    %2773 = vdwg.mxu0
    %2774 = vmatpush.bf16.msra.mxu0 %v1760
    %2775 = vmatpush.bf16.msra.mxu0 %v1748
    %2776 = vmatpush.bf16.msra.mxu0 %v1736
    %2777 = vmatpush.bf16.msra.mxu0 %v1724
    %2778 = vmatpush.bf16.msra.mxu0 %v1712
    %2779 = vmatpush.bf16.msra.mxu0 %v1700
    %2780 = vmatpush.bf16.msra.mxu0 %v1688
    %2781 = vmatpush.bf16.msra.mxu0 %v1676
    %2782 = vmatmul.bf16.gmra.mxu0 %v130
    %v2783 = vpop.f32.mrf.mxu0
    %v2784 = vadd.f32 0.0, %v2783
    %v2785 = vpop.f32.mrf.mxu0
    %v2786 = vadd.f32 0.0, %v2785
    %2787 = vdwg.mxu0
    %2788 = vmatpush.bf16.msra.mxu0 %v1856
    %2789 = vmatpush.bf16.msra.mxu0 %v1844
    %2790 = vmatpush.bf16.msra.mxu0 %v1832
    %2791 = vmatpush.bf16.msra.mxu0 %v1820
    %2792 = vmatpush.bf16.msra.mxu0 %v1808
    %2793 = vmatpush.bf16.msra.mxu0 %v1796
    %2794 = vmatpush.bf16.msra.mxu0 %v1784
    %2795 = vmatpush.bf16.msra.mxu0 %v1772
    %2796 = vmatmul.bf16.gmra.mxu0 %v131
    %v2797 = vpop.f32.mrf.mxu0
    %v2798 = vadd.f32 %v2784, %v2797
    %v2799 = vpop.f32.mrf.mxu0
    %v2800 = vadd.f32 %v2786, %v2799
    %2801 = vdwg.mxu0
    %2802 = vmatpush.bf16.msra.mxu0 %v1952
    %2803 = vmatpush.bf16.msra.mxu0 %v1940
    %2804 = vmatpush.bf16.msra.mxu0 %v1928
    %2805 = vmatpush.bf16.msra.mxu0 %v1916
    %2806 = vmatpush.bf16.msra.mxu0 %v1904
    %2807 = vmatpush.bf16.msra.mxu0 %v1892
    %2808 = vmatpush.bf16.msra.mxu0 %v1880
    %2809 = vmatpush.bf16.msra.mxu0 %v1868
    %2810 = vmatmul.bf16.gmra.mxu0 %v132
    %v2811 = vpop.f32.mrf.mxu0
    %v2812 = vadd.f32 %v2798, %v2811
    %v2813 = vpop.f32.mrf.mxu0
    %v2814 = vadd.f32 %v2800, %v2813
    %2815 = vdwg.mxu0
    %2816 = vmatpush.bf16.msra.mxu0 %v2048
    %2817 = vmatpush.bf16.msra.mxu0 %v2036
    %2818 = vmatpush.bf16.msra.mxu0 %v2024
    %2819 = vmatpush.bf16.msra.mxu0 %v2012
    %2820 = vmatpush.bf16.msra.mxu0 %v2000
    %2821 = vmatpush.bf16.msra.mxu0 %v1988
    %2822 = vmatpush.bf16.msra.mxu0 %v1976
    %2823 = vmatpush.bf16.msra.mxu0 %v1964
    %2824 = vmatmul.bf16.gmra.mxu0 %v133
    %v2825 = vpop.f32.mrf.mxu0
    %v2826 = vadd.f32 %v2812, %v2825
    %v2827 = vpop.f32.mrf.mxu0
    %v2828 = vadd.f32 %v2814, %v2827
    %2829 = vdwg.mxu0
    %2830 = vmatpush.bf16.msra.mxu0 %v1761
    %2831 = vmatpush.bf16.msra.mxu0 %v1749
    %2832 = vmatpush.bf16.msra.mxu0 %v1737
    %2833 = vmatpush.bf16.msra.mxu0 %v1725
    %2834 = vmatpush.bf16.msra.mxu0 %v1713
    %2835 = vmatpush.bf16.msra.mxu0 %v1701
    %2836 = vmatpush.bf16.msra.mxu0 %v1689
    %2837 = vmatpush.bf16.msra.mxu0 %v1677
    %2838 = vmatmul.bf16.gmra.mxu0 %v130
    %v2839 = vpop.f32.mrf.mxu0
    %v2840 = vadd.f32 0.0, %v2839
    %v2841 = vpop.f32.mrf.mxu0
    %v2842 = vadd.f32 0.0, %v2841
    %2843 = vdwg.mxu0
    %2844 = vmatpush.bf16.msra.mxu0 %v1857
    %2845 = vmatpush.bf16.msra.mxu0 %v1845
    %2846 = vmatpush.bf16.msra.mxu0 %v1833
    %2847 = vmatpush.bf16.msra.mxu0 %v1821
    %2848 = vmatpush.bf16.msra.mxu0 %v1809
    %2849 = vmatpush.bf16.msra.mxu0 %v1797
    %2850 = vmatpush.bf16.msra.mxu0 %v1785
    %2851 = vmatpush.bf16.msra.mxu0 %v1773
    %2852 = vmatmul.bf16.gmra.mxu0 %v131
    %v2853 = vpop.f32.mrf.mxu0
    %v2854 = vadd.f32 %v2840, %v2853
    %v2855 = vpop.f32.mrf.mxu0
    %v2856 = vadd.f32 %v2842, %v2855
    %2857 = vdwg.mxu0
    %2858 = vmatpush.bf16.msra.mxu0 %v1953
    %2859 = vmatpush.bf16.msra.mxu0 %v1941
    %2860 = vmatpush.bf16.msra.mxu0 %v1929
    %2861 = vmatpush.bf16.msra.mxu0 %v1917
    %2862 = vmatpush.bf16.msra.mxu0 %v1905
    %2863 = vmatpush.bf16.msra.mxu0 %v1893
    %2864 = vmatpush.bf16.msra.mxu0 %v1881
    %2865 = vmatpush.bf16.msra.mxu0 %v1869
    %2866 = vmatmul.bf16.gmra.mxu0 %v132
    %v2867 = vpop.f32.mrf.mxu0
    %v2868 = vadd.f32 %v2854, %v2867
    %v2869 = vpop.f32.mrf.mxu0
    %v2870 = vadd.f32 %v2856, %v2869
    %2871 = vdwg.mxu0
    %2872 = vmatpush.bf16.msra.mxu0 %v2049
    %2873 = vmatpush.bf16.msra.mxu0 %v2037
    %2874 = vmatpush.bf16.msra.mxu0 %v2025
    %2875 = vmatpush.bf16.msra.mxu0 %v2013
    %2876 = vmatpush.bf16.msra.mxu0 %v2001
    %2877 = vmatpush.bf16.msra.mxu0 %v1989
    %2878 = vmatpush.bf16.msra.mxu0 %v1977
    %2879 = vmatpush.bf16.msra.mxu0 %v1965
    %2880 = vmatmul.bf16.gmra.mxu0 %v133
    %v2881 = vpop.f32.mrf.mxu0
    %v2882 = vadd.f32 %v2868, %v2881
    %v2883 = vpop.f32.mrf.mxu0
    %v2884 = vadd.f32 %v2870, %v2883
    %2885 = vdwg.mxu0
    %2886 = vmatpush.bf16.msra.mxu0 %v1762
    %2887 = vmatpush.bf16.msra.mxu0 %v1750
    %2888 = vmatpush.bf16.msra.mxu0 %v1738
    %2889 = vmatpush.bf16.msra.mxu0 %v1726
    %2890 = vmatpush.bf16.msra.mxu0 %v1714
    %2891 = vmatpush.bf16.msra.mxu0 %v1702
    %2892 = vmatpush.bf16.msra.mxu0 %v1690
    %2893 = vmatpush.bf16.msra.mxu0 %v1678
    %2894 = vmatmul.bf16.gmra.mxu0 %v130
    %v2895 = vpop.f32.mrf.mxu0
    %v2896 = vadd.f32 0.0, %v2895
    %v2897 = vpop.f32.mrf.mxu0
    %v2898 = vadd.f32 0.0, %v2897
    %2899 = vdwg.mxu0
    %2900 = vmatpush.bf16.msra.mxu0 %v1858
    %2901 = vmatpush.bf16.msra.mxu0 %v1846
    %2902 = vmatpush.bf16.msra.mxu0 %v1834
    %2903 = vmatpush.bf16.msra.mxu0 %v1822
    %2904 = vmatpush.bf16.msra.mxu0 %v1810
    %2905 = vmatpush.bf16.msra.mxu0 %v1798
    %2906 = vmatpush.bf16.msra.mxu0 %v1786
    %2907 = vmatpush.bf16.msra.mxu0 %v1774
    %2908 = vmatmul.bf16.gmra.mxu0 %v131
    %v2909 = vpop.f32.mrf.mxu0
    %v2910 = vadd.f32 %v2896, %v2909
    %v2911 = vpop.f32.mrf.mxu0
    %v2912 = vadd.f32 %v2898, %v2911
    %2913 = vdwg.mxu0
    %2914 = vmatpush.bf16.msra.mxu0 %v1954
    %2915 = vmatpush.bf16.msra.mxu0 %v1942
    %2916 = vmatpush.bf16.msra.mxu0 %v1930
    %2917 = vmatpush.bf16.msra.mxu0 %v1918
    %2918 = vmatpush.bf16.msra.mxu0 %v1906
    %2919 = vmatpush.bf16.msra.mxu0 %v1894
    %2920 = vmatpush.bf16.msra.mxu0 %v1882
    %2921 = vmatpush.bf16.msra.mxu0 %v1870
    %2922 = vmatmul.bf16.gmra.mxu0 %v132
    %v2923 = vpop.f32.mrf.mxu0
    %v2924 = vadd.f32 %v2910, %v2923
    %v2925 = vpop.f32.mrf.mxu0
    %v2926 = vadd.f32 %v2912, %v2925
    %2927 = vdwg.mxu0
    %2928 = vmatpush.bf16.msra.mxu0 %v2050
    %2929 = vmatpush.bf16.msra.mxu0 %v2038
    %2930 = vmatpush.bf16.msra.mxu0 %v2026
    %2931 = vmatpush.bf16.msra.mxu0 %v2014
    %2932 = vmatpush.bf16.msra.mxu0 %v2002
    %2933 = vmatpush.bf16.msra.mxu0 %v1990
    %2934 = vmatpush.bf16.msra.mxu0 %v1978
    %2935 = vmatpush.bf16.msra.mxu0 %v1966
    %2936 = vmatmul.bf16.gmra.mxu0 %v133
    %v2937 = vpop.f32.mrf.mxu0
    %v2938 = vadd.f32 %v2924, %v2937
    %v2939 = vpop.f32.mrf.mxu0
    %v2940 = vadd.f32 %v2926, %v2939
    %2941 = vdwg.mxu0
    %2942 = vmatpush.bf16.msra.mxu0 %v1763
    %2943 = vmatpush.bf16.msra.mxu0 %v1751
    %2944 = vmatpush.bf16.msra.mxu0 %v1739
    %2945 = vmatpush.bf16.msra.mxu0 %v1727
    %2946 = vmatpush.bf16.msra.mxu0 %v1715
    %2947 = vmatpush.bf16.msra.mxu0 %v1703
    %2948 = vmatpush.bf16.msra.mxu0 %v1691
    %2949 = vmatpush.bf16.msra.mxu0 %v1679
    %2950 = vmatmul.bf16.gmra.mxu0 %v130
    %v2951 = vpop.f32.mrf.mxu0
    %v2952 = vadd.f32 0.0, %v2951
    %v2953 = vpop.f32.mrf.mxu0
    %v2954 = vadd.f32 0.0, %v2953
    %2955 = vdwg.mxu0
    %2956 = vmatpush.bf16.msra.mxu0 %v1859
    %2957 = vmatpush.bf16.msra.mxu0 %v1847
    %2958 = vmatpush.bf16.msra.mxu0 %v1835
    %2959 = vmatpush.bf16.msra.mxu0 %v1823
    %2960 = vmatpush.bf16.msra.mxu0 %v1811
    %2961 = vmatpush.bf16.msra.mxu0 %v1799
    %2962 = vmatpush.bf16.msra.mxu0 %v1787
    %2963 = vmatpush.bf16.msra.mxu0 %v1775
    %2964 = vmatmul.bf16.gmra.mxu0 %v131
    %v2965 = vpop.f32.mrf.mxu0
    %v2966 = vadd.f32 %v2952, %v2965
    %v2967 = vpop.f32.mrf.mxu0
    %v2968 = vadd.f32 %v2954, %v2967
    %2969 = vdwg.mxu0
    %2970 = vmatpush.bf16.msra.mxu0 %v1955
    %2971 = vmatpush.bf16.msra.mxu0 %v1943
    %2972 = vmatpush.bf16.msra.mxu0 %v1931
    %2973 = vmatpush.bf16.msra.mxu0 %v1919
    %2974 = vmatpush.bf16.msra.mxu0 %v1907
    %2975 = vmatpush.bf16.msra.mxu0 %v1895
    %2976 = vmatpush.bf16.msra.mxu0 %v1883
    %2977 = vmatpush.bf16.msra.mxu0 %v1871
    %2978 = vmatmul.bf16.gmra.mxu0 %v132
    %v2979 = vpop.f32.mrf.mxu0
    %v2980 = vadd.f32 %v2966, %v2979
    %v2981 = vpop.f32.mrf.mxu0
    %v2982 = vadd.f32 %v2968, %v2981
    %2983 = vdwg.mxu0
    %2984 = vmatpush.bf16.msra.mxu0 %v2051
    %2985 = vmatpush.bf16.msra.mxu0 %v2039
    %2986 = vmatpush.bf16.msra.mxu0 %v2027
    %2987 = vmatpush.bf16.msra.mxu0 %v2015
    %2988 = vmatpush.bf16.msra.mxu0 %v2003
    %2989 = vmatpush.bf16.msra.mxu0 %v1991
    %2990 = vmatpush.bf16.msra.mxu0 %v1979
    %2991 = vmatpush.bf16.msra.mxu0 %v1967
    %2992 = vmatmul.bf16.gmra.mxu0 %v133
    %v2993 = vpop.f32.mrf.mxu0
    %v2994 = vadd.f32 %v2980, %v2993
    %v2995 = vpop.f32.mrf.mxu0
    %v2996 = vadd.f32 %v2982, %v2995
    %2997 = vdwg.mxu0
    %2998 = vmatpush.bf16.msra.mxu0 %v1764
    %2999 = vmatpush.bf16.msra.mxu0 %v1752
    %3000 = vmatpush.bf16.msra.mxu0 %v1740
    %3001 = vmatpush.bf16.msra.mxu0 %v1728
    %3002 = vmatpush.bf16.msra.mxu0 %v1716
    %3003 = vmatpush.bf16.msra.mxu0 %v1704
    %3004 = vmatpush.bf16.msra.mxu0 %v1692
    %3005 = vmatpush.bf16.msra.mxu0 %v1680
    %3006 = vmatmul.bf16.gmra.mxu0 %v130
    %v3007 = vpop.f32.mrf.mxu0
    %v3008 = vadd.f32 0.0, %v3007
    %v3009 = vpop.f32.mrf.mxu0
    %v3010 = vadd.f32 0.0, %v3009
    %3011 = vdwg.mxu0
    %3012 = vmatpush.bf16.msra.mxu0 %v1860
    %3013 = vmatpush.bf16.msra.mxu0 %v1848
    %3014 = vmatpush.bf16.msra.mxu0 %v1836
    %3015 = vmatpush.bf16.msra.mxu0 %v1824
    %3016 = vmatpush.bf16.msra.mxu0 %v1812
    %3017 = vmatpush.bf16.msra.mxu0 %v1800
    %3018 = vmatpush.bf16.msra.mxu0 %v1788
    %3019 = vmatpush.bf16.msra.mxu0 %v1776
    %3020 = vmatmul.bf16.gmra.mxu0 %v131
    %v3021 = vpop.f32.mrf.mxu0
    %v3022 = vadd.f32 %v3008, %v3021
    %v3023 = vpop.f32.mrf.mxu0
    %v3024 = vadd.f32 %v3010, %v3023
    %3025 = vdwg.mxu0
    %3026 = vmatpush.bf16.msra.mxu0 %v1956
    %3027 = vmatpush.bf16.msra.mxu0 %v1944
    %3028 = vmatpush.bf16.msra.mxu0 %v1932
    %3029 = vmatpush.bf16.msra.mxu0 %v1920
    %3030 = vmatpush.bf16.msra.mxu0 %v1908
    %3031 = vmatpush.bf16.msra.mxu0 %v1896
    %3032 = vmatpush.bf16.msra.mxu0 %v1884
    %3033 = vmatpush.bf16.msra.mxu0 %v1872
    %3034 = vmatmul.bf16.gmra.mxu0 %v132
    %v3035 = vpop.f32.mrf.mxu0
    %v3036 = vadd.f32 %v3022, %v3035
    %v3037 = vpop.f32.mrf.mxu0
    %v3038 = vadd.f32 %v3024, %v3037
    %3039 = vdwg.mxu0
    %3040 = vmatpush.bf16.msra.mxu0 %v2052
    %3041 = vmatpush.bf16.msra.mxu0 %v2040
    %3042 = vmatpush.bf16.msra.mxu0 %v2028
    %3043 = vmatpush.bf16.msra.mxu0 %v2016
    %3044 = vmatpush.bf16.msra.mxu0 %v2004
    %3045 = vmatpush.bf16.msra.mxu0 %v1992
    %3046 = vmatpush.bf16.msra.mxu0 %v1980
    %3047 = vmatpush.bf16.msra.mxu0 %v1968
    %3048 = vmatmul.bf16.gmra.mxu0 %v133
    %v3049 = vpop.f32.mrf.mxu0
    %v3050 = vadd.f32 %v3036, %v3049
    %v3051 = vpop.f32.mrf.mxu0
    %v3052 = vadd.f32 %v3038, %v3051
    %3053 = vdwg.mxu0
    %3054 = vmatpush.bf16.msra.mxu0 %v1765
    %3055 = vmatpush.bf16.msra.mxu0 %v1753
    %3056 = vmatpush.bf16.msra.mxu0 %v1741
    %3057 = vmatpush.bf16.msra.mxu0 %v1729
    %3058 = vmatpush.bf16.msra.mxu0 %v1717
    %3059 = vmatpush.bf16.msra.mxu0 %v1705
    %3060 = vmatpush.bf16.msra.mxu0 %v1693
    %3061 = vmatpush.bf16.msra.mxu0 %v1681
    %3062 = vmatmul.bf16.gmra.mxu0 %v130
    %v3063 = vpop.f32.mrf.mxu0
    %v3064 = vadd.f32 0.0, %v3063
    %v3065 = vpop.f32.mrf.mxu0
    %v3066 = vadd.f32 0.0, %v3065
    %3067 = vdwg.mxu0
    %3068 = vmatpush.bf16.msra.mxu0 %v1861
    %3069 = vmatpush.bf16.msra.mxu0 %v1849
    %3070 = vmatpush.bf16.msra.mxu0 %v1837
    %3071 = vmatpush.bf16.msra.mxu0 %v1825
    %3072 = vmatpush.bf16.msra.mxu0 %v1813
    %3073 = vmatpush.bf16.msra.mxu0 %v1801
    %3074 = vmatpush.bf16.msra.mxu0 %v1789
    %3075 = vmatpush.bf16.msra.mxu0 %v1777
    %3076 = vmatmul.bf16.gmra.mxu0 %v131
    %v3077 = vpop.f32.mrf.mxu0
    %v3078 = vadd.f32 %v3064, %v3077
    %v3079 = vpop.f32.mrf.mxu0
    %v3080 = vadd.f32 %v3066, %v3079
    %3081 = vdwg.mxu0
    %3082 = vmatpush.bf16.msra.mxu0 %v1957
    %3083 = vmatpush.bf16.msra.mxu0 %v1945
    %3084 = vmatpush.bf16.msra.mxu0 %v1933
    %3085 = vmatpush.bf16.msra.mxu0 %v1921
    %3086 = vmatpush.bf16.msra.mxu0 %v1909
    %3087 = vmatpush.bf16.msra.mxu0 %v1897
    %3088 = vmatpush.bf16.msra.mxu0 %v1885
    %3089 = vmatpush.bf16.msra.mxu0 %v1873
    %3090 = vmatmul.bf16.gmra.mxu0 %v132
    %v3091 = vpop.f32.mrf.mxu0
    %v3092 = vadd.f32 %v3078, %v3091
    %v3093 = vpop.f32.mrf.mxu0
    %v3094 = vadd.f32 %v3080, %v3093
    %3095 = vdwg.mxu0
    %3096 = vmatpush.bf16.msra.mxu0 %v2053
    %3097 = vmatpush.bf16.msra.mxu0 %v2041
    %3098 = vmatpush.bf16.msra.mxu0 %v2029
    %3099 = vmatpush.bf16.msra.mxu0 %v2017
    %3100 = vmatpush.bf16.msra.mxu0 %v2005
    %3101 = vmatpush.bf16.msra.mxu0 %v1993
    %3102 = vmatpush.bf16.msra.mxu0 %v1981
    %3103 = vmatpush.bf16.msra.mxu0 %v1969
    %3104 = vmatmul.bf16.gmra.mxu0 %v133
    %v3105 = vpop.f32.mrf.mxu0
    %v3106 = vadd.f32 %v3092, %v3105
    %v3107 = vpop.f32.mrf.mxu0
    %v3108 = vadd.f32 %v3094, %v3107
    %3109 = vdwg.mxu0
    %v3110 = vpack.c.bf16 %v2546, %v2490
    %v3111 = vpack.c.bf16 %v2658, %v2602
    %v3112 = vpack.c.bf16 %v2548, %v2492
    %v3113 = vpack.c.bf16 %v2660, %v2604
    %v3114 = vpack.c.bf16 %v2770, %v2714
    %v3115 = vpack.c.bf16 %v2882, %v2826
    %v3116 = vpack.c.bf16 %v2772, %v2716
    %v3117 = vpack.c.bf16 %v2884, %v2828
    %v3118 = vpack.c.bf16 %v2994, %v2938
    %v3119 = vpack.c.bf16 %v3106, %v3050
    %v3120 = vpack.c.bf16 %v2996, %v2940
    %v3121 = vpack.c.bf16 %v3108, %v3052
    %v3122 = vld [vmem:[#allocation5] sm:$0x3]
    %v3123 = vld [vmem:[#allocation5 + $0x2] sm:$0x3]
    %v3124 = vunpack.c.0.s8 %v3122
    %v3125 = vunpack.c.0.s8 %v3123
    %v3126 = vcvt.s32.f32 %v3124
    %v3127 = vcvt.s32.f32 %v3125
    %v3128 = vmul.f32 %v3126, -1e+09
    %v3129 = vmul.f32 %v3127, -1e+09
    %vm3130 = vcmask 523264
    %v3132 = vsel %vm3130, %v3110, 0
    %v3135 = vsel %vm3130, %v3114, 0
    %3137 = vmatpush.bf16.xpose.msra.mxu0 0
    %3138 = vmatpush.bf16.xpose.msra.mxu0 0
    %3139 = vmatpush.bf16.xpose.msra.mxu0 0
    %3140 = vmatpush.bf16.xpose.msra.mxu0 0
    %3141 = vmatpush.bf16.xpose.msra.mxu0 0
    %3142 = vmatpush.bf16.xpose.msra.mxu0 0
    %3143 = vmatpush.bf16.xpose.msra.mxu0 0
    %3144 = vmatpush.bf16.xpose.msra.mxu0 %v3135
    %3145 = vmatmul.bf16.gmra.mxu0 %v3132
    %v3146 = vpop.f32.mrf.mxu0
    %v3147 = vadd.f32 0.0, %v3146
    %v3148 = vpop.f32.mrf.mxu0
    %3149 = vdwg.mxu0
    %v3151 = vsel %vm3130, %v3112, 0
    %v3154 = vsel %vm3130, %v3116, 0
    %3156 = vmatpush.bf16.xpose.msra.mxu0 0
    %3157 = vmatpush.bf16.xpose.msra.mxu0 0
    %3158 = vmatpush.bf16.xpose.msra.mxu0 0
    %3159 = vmatpush.bf16.xpose.msra.mxu0 0
    %3160 = vmatpush.bf16.xpose.msra.mxu0 0
    %3161 = vmatpush.bf16.xpose.msra.mxu0 0
    %3162 = vmatpush.bf16.xpose.msra.mxu0 0
    %3163 = vmatpush.bf16.xpose.msra.mxu0 %v3154
    %3164 = vmatmul.bf16.gmra.mxu0 %v3151
    %v3165 = vpop.f32.mrf.mxu0
    %v3166 = vadd.f32 0.0, %v3165
    %v3167 = vpop.f32.mrf.mxu0
    %3168 = vdwg.mxu0
    %v3170 = vunpack.c.l.b16 %v3110
    %v3171 = vpack.c.b16 %v3170, %v3170
    %3172 = vrot.lane.b32.xlu0 %v3171, 64
    %v3173 = vpop.permute.xlu0 %3172
    %v3175 = vunpack.c.l.b16 %v3114
    %v3176 = vpack.c.b16 %v3175, %v3175
    %3177 = vrot.lane.b32.xlu0 %v3176, 64
    %v3178 = vpop.permute.xlu0 %3177
    %v3180 = vsel %vm3130, %v3173, 0
    %v3183 = vsel %vm3130, %v3178, 0
    %3185 = vmatpush.bf16.xpose.msra.mxu0 0
    %3186 = vmatpush.bf16.xpose.msra.mxu0 0
    %3187 = vmatpush.bf16.xpose.msra.mxu0 0
    %3188 = vmatpush.bf16.xpose.msra.mxu0 0
    %3189 = vmatpush.bf16.xpose.msra.mxu0 0
    %3190 = vmatpush.bf16.xpose.msra.mxu0 0
    %3191 = vmatpush.bf16.xpose.msra.mxu0 0
    %3192 = vmatpush.bf16.xpose.msra.mxu0 %v3183
    %3193 = vmatmul.bf16.gmra.mxu0 %v3180
    %v3194 = vpop.f32.mrf.mxu0
    %v3195 = vadd.f32 0.0, %v3194
    %v3196 = vpop.f32.mrf.mxu0
    %3197 = vdwg.mxu0
    %v3199 = vunpack.c.l.b16 %v3112
    %v3200 = vpack.c.b16 %v3199, %v3199
    %3201 = vrot.lane.b32.xlu0 %v3200, 64
    %v3202 = vpop.permute.xlu0 %3201
    %v3204 = vunpack.c.l.b16 %v3116
    %v3205 = vpack.c.b16 %v3204, %v3204
    %3206 = vrot.lane.b32.xlu0 %v3205, 64
    %v3207 = vpop.permute.xlu0 %3206
    %v3209 = vsel %vm3130, %v3202, 0
    %v3212 = vsel %vm3130, %v3207, 0
    %3214 = vmatpush.bf16.xpose.msra.mxu0 0
    %3215 = vmatpush.bf16.xpose.msra.mxu0 0
    %3216 = vmatpush.bf16.xpose.msra.mxu0 0
    %3217 = vmatpush.bf16.xpose.msra.mxu0 0
    %3218 = vmatpush.bf16.xpose.msra.mxu0 0
    %3219 = vmatpush.bf16.xpose.msra.mxu0 0
    %3220 = vmatpush.bf16.xpose.msra.mxu0 0
    %3221 = vmatpush.bf16.xpose.msra.mxu0 %v3212
    %3222 = vmatmul.bf16.gmra.mxu0 %v3209
    %v3223 = vpop.f32.mrf.mxu0
    %v3224 = vadd.f32 0.0, %v3223
    %v3225 = vpop.f32.mrf.mxu0
    %3226 = vdwg.mxu0
    %v3227 = vrot.slane %v3110, 4
    %v3228 = vrot.slane %v3114, 4
    %v3230 = vsel %vm3130, %v3227, 0
    %v3233 = vsel %vm3130, %v3228, 0
    %3235 = vmatpush.bf16.xpose.msra.mxu0 0
    %3236 = vmatpush.bf16.xpose.msra.mxu0 0
    %3237 = vmatpush.bf16.xpose.msra.mxu0 0
    %3238 = vmatpush.bf16.xpose.msra.mxu0 0
    %3239 = vmatpush.bf16.xpose.msra.mxu0 0
    %3240 = vmatpush.bf16.xpose.msra.mxu0 0
    %3241 = vmatpush.bf16.xpose.msra.mxu0 0
    %3242 = vmatpush.bf16.xpose.msra.mxu0 %v3233
    %3243 = vmatmul.bf16.gmra.mxu0 %v3230
    %v3244 = vpop.f32.mrf.mxu0
    %v3245 = vadd.f32 0.0, %v3244
    %v3246 = vpop.f32.mrf.mxu0
    %3247 = vdwg.mxu0
    %v3248 = vrot.slane %v3112, 4
    %v3249 = vrot.slane %v3116, 4
    %v3251 = vsel %vm3130, %v3248, 0
    %v3254 = vsel %vm3130, %v3249, 0
    %3256 = vmatpush.bf16.xpose.msra.mxu0 0
    %3257 = vmatpush.bf16.xpose.msra.mxu0 0
    %3258 = vmatpush.bf16.xpose.msra.mxu0 0
    %3259 = vmatpush.bf16.xpose.msra.mxu0 0
    %3260 = vmatpush.bf16.xpose.msra.mxu0 0
    %3261 = vmatpush.bf16.xpose.msra.mxu0 0
    %3262 = vmatpush.bf16.xpose.msra.mxu0 0
    %3263 = vmatpush.bf16.xpose.msra.mxu0 %v3254
    %3264 = vmatmul.bf16.gmra.mxu0 %v3251
    %v3265 = vpop.f32.mrf.mxu0
    %v3266 = vadd.f32 0.0, %v3265
    %v3267 = vpop.f32.mrf.mxu0
    %3268 = vdwg.mxu0
    %3269 = vrot.lane.b32.xlu0 %v3110, 64
    %v3270 = vpop.permute.xlu0 %3269
    %v3271 = vrot.slane %v3270, 4
    %3272 = vrot.lane.b32.xlu0 %v3114, 64
    %v3273 = vpop.permute.xlu0 %3272
    %v3274 = vrot.slane %v3273, 4
    %v3276 = vsel %vm3130, %v3271, 0
    %v3279 = vsel %vm3130, %v3274, 0
    %3281 = vmatpush.bf16.xpose.msra.mxu0 0
    %3282 = vmatpush.bf16.xpose.msra.mxu0 0
    %3283 = vmatpush.bf16.xpose.msra.mxu0 0
    %3284 = vmatpush.bf16.xpose.msra.mxu0 0
    %3285 = vmatpush.bf16.xpose.msra.mxu0 0
    %3286 = vmatpush.bf16.xpose.msra.mxu0 0
    %3287 = vmatpush.bf16.xpose.msra.mxu0 0
    %3288 = vmatpush.bf16.xpose.msra.mxu0 %v3279
    %3289 = vmatmul.bf16.gmra.mxu0 %v3276
    %v3290 = vpop.f32.mrf.mxu0
    %v3291 = vadd.f32 0.0, %v3290
    %v3292 = vpop.f32.mrf.mxu0
    %3293 = vdwg.mxu0
    %3294 = vrot.lane.b32.xlu0 %v3112, 64
    %v3295 = vpop.permute.xlu0 %3294
    %v3296 = vrot.slane %v3295, 4
    %3297 = vrot.lane.b32.xlu0 %v3116, 64
    %v3298 = vpop.permute.xlu0 %3297
    %v3299 = vrot.slane %v3298, 4
    %v3301 = vsel %vm3130, %v3296, 0
    %v3304 = vsel %vm3130, %v3299, 0
    %3306 = vmatpush.bf16.xpose.msra.mxu0 0
    %3307 = vmatpush.bf16.xpose.msra.mxu0 0
    %3308 = vmatpush.bf16.xpose.msra.mxu0 0
    %3309 = vmatpush.bf16.xpose.msra.mxu0 0
    %3310 = vmatpush.bf16.xpose.msra.mxu0 0
    %3311 = vmatpush.bf16.xpose.msra.mxu0 0
    %3312 = vmatpush.bf16.xpose.msra.mxu0 0
    %3313 = vmatpush.bf16.xpose.msra.mxu0 %v3304
    %3314 = vmatmul.bf16.gmra.mxu0 %v3301
    %v3315 = vpop.f32.mrf.mxu0
    %v3316 = vadd.f32 0.0, %v3315
    %v3317 = vpop.f32.mrf.mxu0
    %3318 = vdwg.mxu0
    %v3320 = vsel %vm3130, %v3111, 0
    %v3323 = vsel %vm3130, %v3115, 0
    %3325 = vmatpush.bf16.xpose.msra.mxu0 0
    %3326 = vmatpush.bf16.xpose.msra.mxu0 0
    %3327 = vmatpush.bf16.xpose.msra.mxu0 0
    %3328 = vmatpush.bf16.xpose.msra.mxu0 0
    %3329 = vmatpush.bf16.xpose.msra.mxu0 0
    %3330 = vmatpush.bf16.xpose.msra.mxu0 0
    %3331 = vmatpush.bf16.xpose.msra.mxu0 0
    %3332 = vmatpush.bf16.xpose.msra.mxu0 %v3323
    %3333 = vmatmul.bf16.gmra.mxu0 %v3320
    %v3334 = vpop.f32.mrf.mxu0
    %v3335 = vadd.f32 0.0, %v3334
    %v3336 = vpop.f32.mrf.mxu0
    %3337 = vdwg.mxu0
    %v3339 = vsel %vm3130, %v3113, 0
    %v3342 = vsel %vm3130, %v3117, 0
    %3344 = vmatpush.bf16.xpose.msra.mxu0 0
    %3345 = vmatpush.bf16.xpose.msra.mxu0 0
    %3346 = vmatpush.bf16.xpose.msra.mxu0 0
    %3347 = vmatpush.bf16.xpose.msra.mxu0 0
    %3348 = vmatpush.bf16.xpose.msra.mxu0 0
    %3349 = vmatpush.bf16.xpose.msra.mxu0 0
    %3350 = vmatpush.bf16.xpose.msra.mxu0 0
    %3351 = vmatpush.bf16.xpose.msra.mxu0 %v3342
    %3352 = vmatmul.bf16.gmra.mxu0 %v3339
    %v3353 = vpop.f32.mrf.mxu0
    %v3354 = vadd.f32 0.0, %v3353
    %v3355 = vpop.f32.mrf.mxu0
    %3356 = vdwg.mxu0
    %v3358 = vunpack.c.l.b16 %v3111
    %v3359 = vpack.c.b16 %v3358, %v3358
    %3360 = vrot.lane.b32.xlu0 %v3359, 64
    %v3361 = vpop.permute.xlu0 %3360
    %v3363 = vunpack.c.l.b16 %v3115
    %v3364 = vpack.c.b16 %v3363, %v3363
    %3365 = vrot.lane.b32.xlu0 %v3364, 64
    %v3366 = vpop.permute.xlu0 %3365
    %v3368 = vsel %vm3130, %v3361, 0
    %v3371 = vsel %vm3130, %v3366, 0
    %3373 = vmatpush.bf16.xpose.msra.mxu0 0
    %3374 = vmatpush.bf16.xpose.msra.mxu0 0
    %3375 = vmatpush.bf16.xpose.msra.mxu0 0
    %3376 = vmatpush.bf16.xpose.msra.mxu0 0
    %3377 = vmatpush.bf16.xpose.msra.mxu0 0
    %3378 = vmatpush.bf16.xpose.msra.mxu0 0
    %3379 = vmatpush.bf16.xpose.msra.mxu0 0
    %3380 = vmatpush.bf16.xpose.msra.mxu0 %v3371
    %3381 = vmatmul.bf16.gmra.mxu0 %v3368
    %v3382 = vpop.f32.mrf.mxu0
    %v3383 = vadd.f32 0.0, %v3382
    %v3384 = vpop.f32.mrf.mxu0
    %3385 = vdwg.mxu0
    %v3387 = vunpack.c.l.b16 %v3113
    %v3388 = vpack.c.b16 %v3387, %v3387
    %3389 = vrot.lane.b32.xlu0 %v3388, 64
    %v3390 = vpop.permute.xlu0 %3389
    %v3392 = vunpack.c.l.b16 %v3117
    %v3393 = vpack.c.b16 %v3392, %v3392
    %3394 = vrot.lane.b32.xlu0 %v3393, 64
    %v3395 = vpop.permute.xlu0 %3394
    %v3397 = vsel %vm3130, %v3390, 0
    %v3400 = vsel %vm3130, %v3395, 0
    %3402 = vmatpush.bf16.xpose.msra.mxu0 0
    %3403 = vmatpush.bf16.xpose.msra.mxu0 0
    %3404 = vmatpush.bf16.xpose.msra.mxu0 0
    %3405 = vmatpush.bf16.xpose.msra.mxu0 0
    %3406 = vmatpush.bf16.xpose.msra.mxu0 0
    %3407 = vmatpush.bf16.xpose.msra.mxu0 0
    %3408 = vmatpush.bf16.xpose.msra.mxu0 0
    %3409 = vmatpush.bf16.xpose.msra.mxu0 %v3400
    %3410 = vmatmul.bf16.gmra.mxu0 %v3397
    %v3411 = vpop.f32.mrf.mxu0
    %v3412 = vadd.f32 0.0, %v3411
    %v3413 = vpop.f32.mrf.mxu0
    %3414 = vdwg.mxu0
    %v3415 = vrot.slane %v3111, 4
    %v3416 = vrot.slane %v3115, 4
    %v3418 = vsel %vm3130, %v3415, 0
    %v3421 = vsel %vm3130, %v3416, 0
    %3423 = vmatpush.bf16.xpose.msra.mxu0 0
    %3424 = vmatpush.bf16.xpose.msra.mxu0 0
    %3425 = vmatpush.bf16.xpose.msra.mxu0 0
    %3426 = vmatpush.bf16.xpose.msra.mxu0 0
    %3427 = vmatpush.bf16.xpose.msra.mxu0 0
    %3428 = vmatpush.bf16.xpose.msra.mxu0 0
    %3429 = vmatpush.bf16.xpose.msra.mxu0 0
    %3430 = vmatpush.bf16.xpose.msra.mxu0 %v3421
    %3431 = vmatmul.bf16.gmra.mxu0 %v3418
    %v3432 = vpop.f32.mrf.mxu0
    %v3433 = vadd.f32 0.0, %v3432
    %v3434 = vpop.f32.mrf.mxu0
    %3435 = vdwg.mxu0
    %v3436 = vrot.slane %v3113, 4
    %v3437 = vrot.slane %v3117, 4
    %v3439 = vsel %vm3130, %v3436, 0
    %v3442 = vsel %vm3130, %v3437, 0
    %3444 = vmatpush.bf16.xpose.msra.mxu0 0
    %3445 = vmatpush.bf16.xpose.msra.mxu0 0
    %3446 = vmatpush.bf16.xpose.msra.mxu0 0
    %3447 = vmatpush.bf16.xpose.msra.mxu0 0
    %3448 = vmatpush.bf16.xpose.msra.mxu0 0
    %3449 = vmatpush.bf16.xpose.msra.mxu0 0
    %3450 = vmatpush.bf16.xpose.msra.mxu0 0
    %3451 = vmatpush.bf16.xpose.msra.mxu0 %v3442
    %3452 = vmatmul.bf16.gmra.mxu0 %v3439
    %v3453 = vpop.f32.mrf.mxu0
    %v3454 = vadd.f32 0.0, %v3453
    %v3455 = vpop.f32.mrf.mxu0
    %3456 = vdwg.mxu0
    %3457 = vrot.lane.b32.xlu0 %v3111, 64
    %v3458 = vpop.permute.xlu0 %3457
    %v3459 = vrot.slane %v3458, 4
    %3460 = vrot.lane.b32.xlu0 %v3115, 64
    %v3461 = vpop.permute.xlu0 %3460
    %v3462 = vrot.slane %v3461, 4
    %v3464 = vsel %vm3130, %v3459, 0
    %v3467 = vsel %vm3130, %v3462, 0
    %3469 = vmatpush.bf16.xpose.msra.mxu0 0
    %3470 = vmatpush.bf16.xpose.msra.mxu0 0
    %3471 = vmatpush.bf16.xpose.msra.mxu0 0
    %3472 = vmatpush.bf16.xpose.msra.mxu0 0
    %3473 = vmatpush.bf16.xpose.msra.mxu0 0
    %3474 = vmatpush.bf16.xpose.msra.mxu0 0
    %3475 = vmatpush.bf16.xpose.msra.mxu0 0
    %3476 = vmatpush.bf16.xpose.msra.mxu0 %v3467
    %3477 = vmatmul.bf16.gmra.mxu0 %v3464
    %v3478 = vpop.f32.mrf.mxu0
    %v3479 = vadd.f32 0.0, %v3478
    %v3480 = vpop.f32.mrf.mxu0
    %3481 = vdwg.mxu0
    %3482 = vrot.lane.b32.xlu0 %v3113, 64
    %v3483 = vpop.permute.xlu0 %3482
    %v3484 = vrot.slane %v3483, 4
    %3485 = vrot.lane.b32.xlu0 %v3117, 64
    %v3486 = vpop.permute.xlu0 %3485
    %v3487 = vrot.slane %v3486, 4
    %v3489 = vsel %vm3130, %v3484, 0
    %v3492 = vsel %vm3130, %v3487, 0
    %3494 = vmatpush.bf16.xpose.msra.mxu0 0
    %3495 = vmatpush.bf16.xpose.msra.mxu0 0
    %3496 = vmatpush.bf16.xpose.msra.mxu0 0
    %3497 = vmatpush.bf16.xpose.msra.mxu0 0
    %3498 = vmatpush.bf16.xpose.msra.mxu0 0
    %3499 = vmatpush.bf16.xpose.msra.mxu0 0
    %3500 = vmatpush.bf16.xpose.msra.mxu0 0
    %3501 = vmatpush.bf16.xpose.msra.mxu0 %v3492
    %3502 = vmatmul.bf16.gmra.mxu0 %v3489
    %v3503 = vpop.f32.mrf.mxu0
    %v3504 = vadd.f32 0.0, %v3503
    %v3505 = vpop.f32.mrf.mxu0
    %3506 = vdwg.mxu0
    %v3507 = vadd.f32 %v3147, %v3128
    %v3508 = vadd.f32 %v3195, %v3128
    %v3509 = vadd.f32 %v3245, %v3128
    %v3510 = vadd.f32 %v3291, %v3128
    %v3511 = vadd.f32 %v3335, %v3128
    %v3512 = vadd.f32 %v3383, %v3128
    %v3513 = vadd.f32 %v3433, %v3128
    %v3514 = vadd.f32 %v3479, %v3128
    %v3515 = vadd.f32 %v3166, %v3129
    %v3516 = vadd.f32 %v3224, %v3129
    %v3517 = vadd.f32 %v3266, %v3129
    %v3518 = vadd.f32 %v3316, %v3129
    %v3519 = vadd.f32 %v3354, %v3129
    %v3520 = vadd.f32 %v3412, %v3129
    %v3521 = vadd.f32 %v3454, %v3129
    %v3522 = vadd.f32 %v3504, %v3129
    %vm3523 = vcmask 64512
    %v3524 = vsel %vm3523, %v3507, -inf
    %3525 = vmax.xlane.f32.xlu0 %v3524
    %v3526 = vpop.xlane.xlu0 %3525
    %v3527 = vsel %vm3523, %v3508, -inf
    %3528 = vmax.xlane.f32.xlu0 %v3527
    %v3529 = vpop.xlane.xlu0 %3528
    %v3530 = vsel %vm3523, %v3509, -inf
    %3531 = vmax.xlane.f32.xlu0 %v3530
    %v3532 = vpop.xlane.xlu0 %3531
    %v3533 = vsel %vm3523, %v3510, -inf
    %3534 = vmax.xlane.f32.xlu0 %v3533
    %v3535 = vpop.xlane.xlu0 %3534
    %v3536 = vsel %vm3523, %v3511, -inf
    %3537 = vmax.xlane.f32.xlu0 %v3536
    %v3538 = vpop.xlane.xlu0 %3537
    %v3539 = vsel %vm3523, %v3512, -inf
    %3540 = vmax.xlane.f32.xlu0 %v3539
    %v3541 = vpop.xlane.xlu0 %3540
    %v3542 = vsel %vm3523, %v3513, -inf
    %3543 = vmax.xlane.f32.xlu0 %v3542
    %v3544 = vpop.xlane.xlu0 %3543
    %v3545 = vsel %vm3523, %v3514, -inf
    %3546 = vmax.xlane.f32.xlu0 %v3545
    %v3547 = vpop.xlane.xlu0 %3546
    %v3548 = vsel %vm3523, %v3515, -inf
    %3549 = vmax.xlane.f32.xlu0 %v3548
    %v3550 = vpop.xlane.xlu0 %3549
    %v3551 = vsel %vm3523, %v3516, -inf
    %3552 = vmax.xlane.f32.xlu0 %v3551
    %v3553 = vpop.xlane.xlu0 %3552
    %v3554 = vsel %vm3523, %v3517, -inf
    %3555 = vmax.xlane.f32.xlu0 %v3554
    %v3556 = vpop.xlane.xlu0 %3555
    %v3557 = vsel %vm3523, %v3518, -inf
    %3558 = vmax.xlane.f32.xlu0 %v3557
    %v3559 = vpop.xlane.xlu0 %3558
    %v3560 = vsel %vm3523, %v3519, -inf
    %3561 = vmax.xlane.f32.xlu0 %v3560
    %v3562 = vpop.xlane.xlu0 %3561
    %v3563 = vsel %vm3523, %v3520, -inf
    %3564 = vmax.xlane.f32.xlu0 %v3563
    %v3565 = vpop.xlane.xlu0 %3564
    %v3566 = vsel %vm3523, %v3521, -inf
    %3567 = vmax.xlane.f32.xlu0 %v3566
    %v3568 = vpop.xlane.xlu0 %3567
    %v3569 = vsel %vm3523, %v3522, -inf
    %3570 = vmax.xlane.f32.xlu0 %v3569
    %v3571 = vpop.xlane.xlu0 %3570
    %v3572 = vsub.f32 %v3507, %v3526
    %v3573 = vsub.f32 %v3508, %v3529
    %v3574 = vsub.f32 %v3509, %v3532
    %v3575 = vsub.f32 %v3510, %v3535
    %v3576 = vsub.f32 %v3511, %v3538
    %v3577 = vsub.f32 %v3512, %v3541
    %v3578 = vsub.f32 %v3513, %v3544
    %v3579 = vsub.f32 %v3514, %v3547
    %v3580 = vsub.f32 %v3515, %v3550
    %v3581 = vsub.f32 %v3516, %v3553
    %v3582 = vsub.f32 %v3517, %v3556
    %v3583 = vsub.f32 %v3518, %v3559
    %v3584 = vsub.f32 %v3519, %v3562
    %v3585 = vsub.f32 %v3520, %v3565
    %v3586 = vsub.f32 %v3521, %v3568
    %v3587 = vsub.f32 %v3522, %v3571
    %v3588 = vmul.f32 %v3572, 1.442695
    %v3589 = vpow.pop %v3588
    %v3590 = vmul.f32 %v3573, 1.442695
    %v3591 = vpow.pop %v3590
    %v3592 = vmul.f32 %v3574, 1.442695
    %v3593 = vpow.pop %v3592
    %v3594 = vmul.f32 %v3575, 1.442695
    %v3595 = vpow.pop %v3594
    %v3596 = vmul.f32 %v3576, 1.442695
    %v3597 = vpow.pop %v3596
    %v3598 = vmul.f32 %v3577, 1.442695
    %v3599 = vpow.pop %v3598
    %v3600 = vmul.f32 %v3578, 1.442695
    %v3601 = vpow.pop %v3600
    %v3602 = vmul.f32 %v3579, 1.442695
    %v3603 = vpow.pop %v3602
    %v3604 = vmul.f32 %v3580, 1.442695
    %v3605 = vpow.pop %v3604
    %v3606 = vmul.f32 %v3581, 1.442695
    %v3607 = vpow.pop %v3606
    %v3608 = vmul.f32 %v3582, 1.442695
    %v3609 = vpow.pop %v3608
    %v3610 = vmul.f32 %v3583, 1.442695
    %v3611 = vpow.pop %v3610
    %v3612 = vmul.f32 %v3584, 1.442695
    %v3613 = vpow.pop %v3612
    %v3614 = vmul.f32 %v3585, 1.442695
    %v3615 = vpow.pop %v3614
    %v3616 = vmul.f32 %v3586, 1.442695
    %v3617 = vpow.pop %v3616
    %v3618 = vmul.f32 %v3587, 1.442695
    %v3619 = vpow.pop %v3618
    %v3620 = vsel %vm3523, %v3589, 0.0
    %3621 = vadd.xlane.f32.xlu0 %v3620
    %v3622 = vpop.xlane.xlu0 %3621
    %v3623 = vsel %vm3523, %v3591, 0.0
    %3624 = vadd.xlane.f32.xlu0 %v3623
    %v3625 = vpop.xlane.xlu0 %3624
    %v3626 = vsel %vm3523, %v3593, 0.0
    %3627 = vadd.xlane.f32.xlu0 %v3626
    %v3628 = vpop.xlane.xlu0 %3627
    %v3629 = vsel %vm3523, %v3595, 0.0
    %3630 = vadd.xlane.f32.xlu0 %v3629
    %v3631 = vpop.xlane.xlu0 %3630
    %v3632 = vsel %vm3523, %v3597, 0.0
    %3633 = vadd.xlane.f32.xlu0 %v3632
    %v3634 = vpop.xlane.xlu0 %3633
    %v3635 = vsel %vm3523, %v3599, 0.0
    %3636 = vadd.xlane.f32.xlu0 %v3635
    %v3637 = vpop.xlane.xlu0 %3636
    %v3638 = vsel %vm3523, %v3601, 0.0
    %3639 = vadd.xlane.f32.xlu0 %v3638
    %v3640 = vpop.xlane.xlu0 %3639
    %v3641 = vsel %vm3523, %v3603, 0.0
    %3642 = vadd.xlane.f32.xlu0 %v3641
    %v3643 = vpop.xlane.xlu0 %3642
    %v3644 = vsel %vm3523, %v3605, 0.0
    %3645 = vadd.xlane.f32.xlu0 %v3644
    %v3646 = vpop.xlane.xlu0 %3645
    %v3647 = vsel %vm3523, %v3607, 0.0
    %3648 = vadd.xlane.f32.xlu0 %v3647
    %v3649 = vpop.xlane.xlu0 %3648
    %v3650 = vsel %vm3523, %v3609, 0.0
    %3651 = vadd.xlane.f32.xlu0 %v3650
    %v3652 = vpop.xlane.xlu0 %3651
    %v3653 = vsel %vm3523, %v3611, 0.0
    %3654 = vadd.xlane.f32.xlu0 %v3653
    %v3655 = vpop.xlane.xlu0 %3654
    %v3656 = vsel %vm3523, %v3613, 0.0
    %3657 = vadd.xlane.f32.xlu0 %v3656
    %v3658 = vpop.xlane.xlu0 %3657
    %v3659 = vsel %vm3523, %v3615, 0.0
    %3660 = vadd.xlane.f32.xlu0 %v3659
    %v3661 = vpop.xlane.xlu0 %3660
    %v3662 = vsel %vm3523, %v3617, 0.0
    %3663 = vadd.xlane.f32.xlu0 %v3662
    %v3664 = vpop.xlane.xlu0 %3663
    %v3665 = vsel %vm3523, %v3619, 0.0
    %3666 = vadd.xlane.f32.xlu0 %v3665
    %v3667 = vpop.xlane.xlu0 %3666
    %v3668 = vrcp.pop %v3622
    %v3669 = vrcp.pop %v3625
    %v3670 = vrcp.pop %v3628
    %v3671 = vrcp.pop %v3631
    %v3672 = vrcp.pop %v3634
    %v3673 = vrcp.pop %v3637
    %v3674 = vrcp.pop %v3640
    %v3675 = vrcp.pop %v3643
    %v3676 = vrcp.pop %v3646
    %v3677 = vrcp.pop %v3649
    %v3678 = vrcp.pop %v3652
    %v3679 = vrcp.pop %v3655
    %v3680 = vrcp.pop %v3658
    %v3681 = vrcp.pop %v3661
    %v3682 = vrcp.pop %v3664
    %v3683 = vrcp.pop %v3667
    %v3684 = vmul.f32 %v3589, %v3668
    %v3685 = vmul.f32 %v3591, %v3669
    %v3686 = vmul.f32 %v3593, %v3670
    %v3687 = vmul.f32 %v3595, %v3671
    %v3688 = vmul.f32 %v3597, %v3672
    %v3689 = vmul.f32 %v3599, %v3673
    %v3690 = vmul.f32 %v3601, %v3674
    %v3691 = vmul.f32 %v3603, %v3675
    %v3692 = vmul.f32 %v3605, %v3676
    %v3693 = vmul.f32 %v3607, %v3677
    %v3694 = vmul.f32 %v3609, %v3678
    %v3695 = vmul.f32 %v3611, %v3679
    %v3696 = vmul.f32 %v3613, %v3680
    %v3697 = vmul.f32 %v3615, %v3681
    %v3698 = vmul.f32 %v3617, %v3682
    %v3699 = vmul.f32 %v3619, %v3683
    %v3700 = vpack.c.bf16 %v3684, %v3684
    %v3701 = vpack.c.bf16 %v3685, %v3685
    %v3702 = vpack.c.bf16 %v3686, %v3686
    %v3703 = vpack.c.bf16 %v3687, %v3687
    %v3704 = vpack.c.bf16 %v3688, %v3688
    %v3705 = vpack.c.bf16 %v3689, %v3689
    %v3706 = vpack.c.bf16 %v3690, %v3690
    %v3707 = vpack.c.bf16 %v3691, %v3691
    %v3708 = vpack.c.bf16 %v3692, %v3692
    %v3709 = vpack.c.bf16 %v3693, %v3693
    %v3710 = vpack.c.bf16 %v3694, %v3694
    %v3711 = vpack.c.bf16 %v3695, %v3695
    %v3712 = vpack.c.bf16 %v3696, %v3696
    %v3713 = vpack.c.bf16 %v3697, %v3697
    %v3714 = vpack.c.bf16 %v3698, %v3698
    %v3715 = vpack.c.bf16 %v3699, %v3699
    %vm3716 = vcmask 60416
    %3717 = vst.msk [vmem:[#allocation14] sm:$0xf] %vm3716, %v3700
    %3718 = vst.msk [vmem:[#allocation14 + $0x4] sm:$0xf] %vm3716, %v3701
    %3719 = vst.msk [vmem:[#allocation14 + $0x8] sm:$0xf] %vm3716, %v3702
    %3720 = vst.msk [vmem:[#allocation14 + $0xc] sm:$0xf] %vm3716, %v3703
    %3721 = vst.msk [vmem:[#allocation14 + $0x10] sm:$0xf] %vm3716, %v3704
    %3722 = vst.msk [vmem:[#allocation14 + $0x14] sm:$0xf] %vm3716, %v3705
    %3723 = vst.msk [vmem:[#allocation14 + $0x18] sm:$0xf] %vm3716, %v3706
    %3724 = vst.msk [vmem:[#allocation14 + $0x1c] sm:$0xf] %vm3716, %v3707
    %3725 = vst.msk [vmem:[#allocation14 + $0x20] sm:$0xf] %vm3716, %v3708
    %3726 = vst.msk [vmem:[#allocation14 + $0x24] sm:$0xf] %vm3716, %v3709
    %3727 = vst.msk [vmem:[#allocation14 + $0x28] sm:$0xf] %vm3716, %v3710
    %3728 = vst.msk [vmem:[#allocation14 + $0x2c] sm:$0xf] %vm3716, %v3711
    %3729 = vst.msk [vmem:[#allocation14 + $0x30] sm:$0xf] %vm3716, %v3712
    %3730 = vst.msk [vmem:[#allocation14 + $0x34] sm:$0xf] %vm3716, %v3713
    %3731 = vst.msk [vmem:[#allocation14 + $0x38] sm:$0xf] %vm3716, %v3714
    %3732 = vst.msk [vmem:[#allocation14 + $0x3c] sm:$0xf] %vm3716, %v3715
    %v3734 = vsel %vm3523, %v3700, 0
    %vm3736 = vcmask 1043456
    %v3738 = vsel %vm3736, %v3118, 0
    %3740 = vmatpush.bf16.msra.mxu0 0
    %3741 = vmatpush.bf16.msra.mxu0 0
    %3742 = vmatpush.bf16.msra.mxu0 0
    %3743 = vmatpush.bf16.msra.mxu0 0
    %3744 = vmatpush.bf16.msra.mxu0 0
    %3745 = vmatpush.bf16.msra.mxu0 0
    %3746 = vmatpush.bf16.msra.mxu0 0
    %3747 = vmatpush.bf16.msra.mxu0 %v3738
    %3748 = vmatmul.bf16.gmra.mxu0 %v3734
    %v3749 = vpop.f32.mrf.mxu0
    %v3750 = vadd.f32 0.0, %v3749
    %v3751 = vpop.f32.mrf.mxu0
    %3752 = vdwg.mxu0
    %v3754 = vsel %vm3523, %v3708, 0
    %v3757 = vsel %vm3736, %v3120, 0
    %3759 = vmatpush.bf16.msra.mxu0 0
    %3760 = vmatpush.bf16.msra.mxu0 0
    %3761 = vmatpush.bf16.msra.mxu0 0
    %3762 = vmatpush.bf16.msra.mxu0 0
    %3763 = vmatpush.bf16.msra.mxu0 0
    %3764 = vmatpush.bf16.msra.mxu0 0
    %3765 = vmatpush.bf16.msra.mxu0 0
    %3766 = vmatpush.bf16.msra.mxu0 %v3757
    %3767 = vmatmul.bf16.gmra.mxu0 %v3754
    %v3768 = vpop.f32.mrf.mxu0
    %v3769 = vadd.f32 0.0, %v3768
    %v3770 = vpop.f32.mrf.mxu0
    %3771 = vdwg.mxu0
    %v3773 = vunpack.c.l.b16 %v3118
    %v3774 = vpack.c.b16 %v3773, %v3773
    %3775 = vrot.lane.b32.xlu0 %v3774, 64
    %v3776 = vpop.permute.xlu0 %3775
    %v3778 = vsel %vm3523, %v3701, 0
    %v3781 = vsel %vm3736, %v3776, 0
    %3783 = vmatpush.bf16.msra.mxu0 0
    %3784 = vmatpush.bf16.msra.mxu0 0
    %3785 = vmatpush.bf16.msra.mxu0 0
    %3786 = vmatpush.bf16.msra.mxu0 0
    %3787 = vmatpush.bf16.msra.mxu0 0
    %3788 = vmatpush.bf16.msra.mxu0 0
    %3789 = vmatpush.bf16.msra.mxu0 0
    %3790 = vmatpush.bf16.msra.mxu0 %v3781
    %3791 = vmatmul.bf16.gmra.mxu0 %v3778
    %v3792 = vpop.f32.mrf.mxu0
    %v3793 = vadd.f32 0.0, %v3792
    %v3794 = vpop.f32.mrf.mxu0
    %3795 = vdwg.mxu0
    %v3797 = vunpack.c.l.b16 %v3120
    %v3798 = vpack.c.b16 %v3797, %v3797
    %3799 = vrot.lane.b32.xlu0 %v3798, 64
    %v3800 = vpop.permute.xlu0 %3799
    %v3802 = vsel %vm3523, %v3709, 0
    %v3805 = vsel %vm3736, %v3800, 0
    %3807 = vmatpush.bf16.msra.mxu0 0
    %3808 = vmatpush.bf16.msra.mxu0 0
    %3809 = vmatpush.bf16.msra.mxu0 0
    %3810 = vmatpush.bf16.msra.mxu0 0
    %3811 = vmatpush.bf16.msra.mxu0 0
    %3812 = vmatpush.bf16.msra.mxu0 0
    %3813 = vmatpush.bf16.msra.mxu0 0
    %3814 = vmatpush.bf16.msra.mxu0 %v3805
    %3815 = vmatmul.bf16.gmra.mxu0 %v3802
    %v3816 = vpop.f32.mrf.mxu0
    %v3817 = vadd.f32 0.0, %v3816
    %v3818 = vpop.f32.mrf.mxu0
    %3819 = vdwg.mxu0
    %v3820 = vrot.slane %v3118, 4
    %v3822 = vsel %vm3523, %v3702, 0
    %v3825 = vsel %vm3736, %v3820, 0
    %3827 = vmatpush.bf16.msra.mxu0 0
    %3828 = vmatpush.bf16.msra.mxu0 0
    %3829 = vmatpush.bf16.msra.mxu0 0
    %3830 = vmatpush.bf16.msra.mxu0 0
    %3831 = vmatpush.bf16.msra.mxu0 0
    %3832 = vmatpush.bf16.msra.mxu0 0
    %3833 = vmatpush.bf16.msra.mxu0 0
    %3834 = vmatpush.bf16.msra.mxu0 %v3825
    %3835 = vmatmul.bf16.gmra.mxu0 %v3822
    %v3836 = vpop.f32.mrf.mxu0
    %v3837 = vadd.f32 0.0, %v3836
    %v3838 = vpop.f32.mrf.mxu0
    %3839 = vdwg.mxu0
    %v3840 = vrot.slane %v3120, 4
    %v3842 = vsel %vm3523, %v3710, 0
    %v3845 = vsel %vm3736, %v3840, 0
    %3847 = vmatpush.bf16.msra.mxu0 0
    %3848 = vmatpush.bf16.msra.mxu0 0
    %3849 = vmatpush.bf16.msra.mxu0 0
    %3850 = vmatpush.bf16.msra.mxu0 0
    %3851 = vmatpush.bf16.msra.mxu0 0
    %3852 = vmatpush.bf16.msra.mxu0 0
    %3853 = vmatpush.bf16.msra.mxu0 0
    %3854 = vmatpush.bf16.msra.mxu0 %v3845
    %3855 = vmatmul.bf16.gmra.mxu0 %v3842
    %v3856 = vpop.f32.mrf.mxu0
    %v3857 = vadd.f32 0.0, %v3856
    %v3858 = vpop.f32.mrf.mxu0
    %3859 = vdwg.mxu0
    %3860 = vrot.lane.b32.xlu0 %v3118, 64
    %v3861 = vpop.permute.xlu0 %3860
    %v3862 = vrot.slane %v3861, 4
    %v3864 = vsel %vm3523, %v3703, 0
    %v3867 = vsel %vm3736, %v3862, 0
    %3869 = vmatpush.bf16.msra.mxu0 0
    %3870 = vmatpush.bf16.msra.mxu0 0
    %3871 = vmatpush.bf16.msra.mxu0 0
    %3872 = vmatpush.bf16.msra.mxu0 0
    %3873 = vmatpush.bf16.msra.mxu0 0
    %3874 = vmatpush.bf16.msra.mxu0 0
    %3875 = vmatpush.bf16.msra.mxu0 0
    %3876 = vmatpush.bf16.msra.mxu0 %v3867
    %3877 = vmatmul.bf16.gmra.mxu0 %v3864
    %v3878 = vpop.f32.mrf.mxu0
    %v3879 = vadd.f32 0.0, %v3878
    %v3880 = vpop.f32.mrf.mxu0
    %3881 = vdwg.mxu0
    %3882 = vrot.lane.b32.xlu0 %v3120, 64
    %v3883 = vpop.permute.xlu0 %3882
    %v3884 = vrot.slane %v3883, 4
    %v3886 = vsel %vm3523, %v3711, 0
    %v3889 = vsel %vm3736, %v3884, 0
    %3891 = vmatpush.bf16.msra.mxu0 0
    %3892 = vmatpush.bf16.msra.mxu0 0
    %3893 = vmatpush.bf16.msra.mxu0 0
    %3894 = vmatpush.bf16.msra.mxu0 0
    %3895 = vmatpush.bf16.msra.mxu0 0
    %3896 = vmatpush.bf16.msra.mxu0 0
    %3897 = vmatpush.bf16.msra.mxu0 0
    %3898 = vmatpush.bf16.msra.mxu0 %v3889
    %3899 = vmatmul.bf16.gmra.mxu0 %v3886
    %v3900 = vpop.f32.mrf.mxu0
    %v3901 = vadd.f32 0.0, %v3900
    %v3902 = vpop.f32.mrf.mxu0
    %3903 = vdwg.mxu0
    %v3905 = vsel %vm3523, %v3704, 0
    %v3908 = vsel %vm3736, %v3119, 0
    %3910 = vmatpush.bf16.msra.mxu0 0
    %3911 = vmatpush.bf16.msra.mxu0 0
    %3912 = vmatpush.bf16.msra.mxu0 0
    %3913 = vmatpush.bf16.msra.mxu0 0
    %3914 = vmatpush.bf16.msra.mxu0 0
    %3915 = vmatpush.bf16.msra.mxu0 0
    %3916 = vmatpush.bf16.msra.mxu0 0
    %3917 = vmatpush.bf16.msra.mxu0 %v3908
    %3918 = vmatmul.bf16.gmra.mxu0 %v3905
    %v3919 = vpop.f32.mrf.mxu0
    %v3920 = vadd.f32 0.0, %v3919
    %v3921 = vpop.f32.mrf.mxu0
    %3922 = vdwg.mxu0
    %v3924 = vsel %vm3523, %v3712, 0
    %v3927 = vsel %vm3736, %v3121, 0
    %3929 = vmatpush.bf16.msra.mxu0 0
    %3930 = vmatpush.bf16.msra.mxu0 0
    %3931 = vmatpush.bf16.msra.mxu0 0
    %3932 = vmatpush.bf16.msra.mxu0 0
    %3933 = vmatpush.bf16.msra.mxu0 0
    %3934 = vmatpush.bf16.msra.mxu0 0
    %3935 = vmatpush.bf16.msra.mxu0 0
    %3936 = vmatpush.bf16.msra.mxu0 %v3927
    %3937 = vmatmul.bf16.gmra.mxu0 %v3924
    %v3938 = vpop.f32.mrf.mxu0
    %v3939 = vadd.f32 0.0, %v3938
    %v3940 = vpop.f32.mrf.mxu0
    %3941 = vdwg.mxu0
    %v3943 = vunpack.c.l.b16 %v3119
    %v3944 = vpack.c.b16 %v3943, %v3943
    %3945 = vrot.lane.b32.xlu0 %v3944, 64
    %v3946 = vpop.permute.xlu0 %3945
    %v3948 = vsel %vm3523, %v3705, 0
    %v3951 = vsel %vm3736, %v3946, 0
    %3953 = vmatpush.bf16.msra.mxu0 0
    %3954 = vmatpush.bf16.msra.mxu0 0
    %3955 = vmatpush.bf16.msra.mxu0 0
    %3956 = vmatpush.bf16.msra.mxu0 0
    %3957 = vmatpush.bf16.msra.mxu0 0
    %3958 = vmatpush.bf16.msra.mxu0 0
    %3959 = vmatpush.bf16.msra.mxu0 0
    %3960 = vmatpush.bf16.msra.mxu0 %v3951
    %3961 = vmatmul.bf16.gmra.mxu0 %v3948
    %v3962 = vpop.f32.mrf.mxu0
    %v3963 = vadd.f32 0.0, %v3962
    %v3964 = vpop.f32.mrf.mxu0
    %3965 = vdwg.mxu0
    %v3967 = vunpack.c.l.b16 %v3121
    %v3968 = vpack.c.b16 %v3967, %v3967
    %3969 = vrot.lane.b32.xlu0 %v3968, 64
    %v3970 = vpop.permute.xlu0 %3969
    %v3972 = vsel %vm3523, %v3713, 0
    %v3975 = vsel %vm3736, %v3970, 0
    %3977 = vmatpush.bf16.msra.mxu0 0
    %3978 = vmatpush.bf16.msra.mxu0 0
    %3979 = vmatpush.bf16.msra.mxu0 0
    %3980 = vmatpush.bf16.msra.mxu0 0
    %3981 = vmatpush.bf16.msra.mxu0 0
    %3982 = vmatpush.bf16.msra.mxu0 0
    %3983 = vmatpush.bf16.msra.mxu0 0
    %3984 = vmatpush.bf16.msra.mxu0 %v3975
    %3985 = vmatmul.bf16.gmra.mxu0 %v3972
    %v3986 = vpop.f32.mrf.mxu0
    %v3987 = vadd.f32 0.0, %v3986
    %v3988 = vpop.f32.mrf.mxu0
    %3989 = vdwg.mxu0
    %v3990 = vrot.slane %v3119, 4
    %v3992 = vsel %vm3523, %v3706, 0
    %v3995 = vsel %vm3736, %v3990, 0
    %3997 = vmatpush.bf16.msra.mxu0 0
    %3998 = vmatpush.bf16.msra.mxu0 0
    %3999 = vmatpush.bf16.msra.mxu0 0
    %4000 = vmatpush.bf16.msra.mxu0 0
    %4001 = vmatpush.bf16.msra.mxu0 0
    %4002 = vmatpush.bf16.msra.mxu0 0
    %4003 = vmatpush.bf16.msra.mxu0 0
    %4004 = vmatpush.bf16.msra.mxu0 %v3995
    %4005 = vmatmul.bf16.gmra.mxu0 %v3992
    %v4006 = vpop.f32.mrf.mxu0
    %v4007 = vadd.f32 0.0, %v4006
    %v4008 = vpop.f32.mrf.mxu0
    %4009 = vdwg.mxu0
    %v4010 = vrot.slane %v3121, 4
    %v4012 = vsel %vm3523, %v3714, 0
    %v4015 = vsel %vm3736, %v4010, 0
    %4017 = vmatpush.bf16.msra.mxu0 0
    %4018 = vmatpush.bf16.msra.mxu0 0
    %4019 = vmatpush.bf16.msra.mxu0 0
    %4020 = vmatpush.bf16.msra.mxu0 0
    %4021 = vmatpush.bf16.msra.mxu0 0
    %4022 = vmatpush.bf16.msra.mxu0 0
    %4023 = vmatpush.bf16.msra.mxu0 0
    %4024 = vmatpush.bf16.msra.mxu0 %v4015
    %4025 = vmatmul.bf16.gmra.mxu0 %v4012
    %v4026 = vpop.f32.mrf.mxu0
    %v4027 = vadd.f32 0.0, %v4026
    %v4028 = vpop.f32.mrf.mxu0
    %4029 = vdwg.mxu0
    %4030 = vrot.lane.b32.xlu0 %v3119, 64
    %v4031 = vpop.permute.xlu0 %4030
    %v4032 = vrot.slane %v4031, 4
    %v4034 = vsel %vm3523, %v3707, 0
    %v4037 = vsel %vm3736, %v4032, 0
    %4039 = vmatpush.bf16.msra.mxu0 0
    %4040 = vmatpush.bf16.msra.mxu0 0
    %4041 = vmatpush.bf16.msra.mxu0 0
    %4042 = vmatpush.bf16.msra.mxu0 0
    %4043 = vmatpush.bf16.msra.mxu0 0
    %4044 = vmatpush.bf16.msra.mxu0 0
    %4045 = vmatpush.bf16.msra.mxu0 0
    %4046 = vmatpush.bf16.msra.mxu0 %v4037
    %4047 = vmatmul.bf16.gmra.mxu0 %v4034
    %v4048 = vpop.f32.mrf.mxu0
    %v4049 = vadd.f32 0.0, %v4048
    %v4050 = vpop.f32.mrf.mxu0
    %4051 = vdwg.mxu0
    %4052 = vrot.lane.b32.xlu0 %v3121, 64
    %v4053 = vpop.permute.xlu0 %4052
    %v4054 = vrot.slane %v4053, 4
    %v4056 = vsel %vm3523, %v3715, 0
    %v4059 = vsel %vm3736, %v4054, 0
    %4061 = vmatpush.bf16.msra.mxu0 0
    %4062 = vmatpush.bf16.msra.mxu0 0
    %4063 = vmatpush.bf16.msra.mxu0 0
    %4064 = vmatpush.bf16.msra.mxu0 0
    %4065 = vmatpush.bf16.msra.mxu0 0
    %4066 = vmatpush.bf16.msra.mxu0 0
    %4067 = vmatpush.bf16.msra.mxu0 0
    %4068 = vmatpush.bf16.msra.mxu0 %v4059
    %4069 = vmatmul.bf16.gmra.mxu0 %v4056
    %v4070 = vpop.f32.mrf.mxu0
    %v4071 = vadd.f32 0.0, %v4070
    %v4072 = vpop.f32.mrf.mxu0
    %4073 = vdwg.mxu0
    %4076 = vrot.lane.b32.xlu0 %v3793, 64
    %v4077 = vpop.permute.xlu0 %4076
    %4078 = vrot.lane.b32.xlu0 %v3817, 64
    %v4079 = vpop.permute.xlu0 %4078
    %4084 = vrot.lane.b32.xlu0 %v3879, 64
    %v4085 = vpop.permute.xlu0 %4084
    %4086 = vrot.lane.b32.xlu0 %v3901, 64
    %v4087 = vpop.permute.xlu0 %4086
    %4092 = vrot.lane.b32.xlu0 %v3963, 64
    %v4093 = vpop.permute.xlu0 %4092
    %4094 = vrot.lane.b32.xlu0 %v3987, 64
    %v4095 = vpop.permute.xlu0 %4094
    %4100 = vrot.lane.b32.xlu0 %v4049, 64
    %v4101 = vpop.permute.xlu0 %4100
    %4102 = vrot.lane.b32.xlu0 %v4071, 64
    %v4103 = vpop.permute.xlu0 %4102
    %v4106 = vsel %vm3130, %v3750, %v4077
    %v4107 = vsel %vm3130, %v3769, %v4079
    %v4108 = vsel %vm3130, %v3837, %v4085
    %v4109 = vsel %vm3130, %v3857, %v4087
    %v4110 = vsel %vm3130, %v3920, %v4093
    %v4111 = vsel %vm3130, %v3939, %v4095
    %v4112 = vsel %vm3130, %v4007, %v4101
    %v4113 = vsel %vm3130, %v4027, %v4103
    %v4114 = vpack.c.bf16 %v4107, %v4106
    %v4115 = vpack.c.bf16 %v4109, %v4108
    %v4116 = vpack.c.bf16 %v4111, %v4110
    %v4117 = vpack.c.bf16 %v4113, %v4112
    %v4118 = vld [vmem:[#allocation8] sm:$0xff]
    %v4119 = vld [vmem:[#allocation8 + $0x8] sm:$0xff]
    %v4120 = vld [vmem:[#allocation8 + $0x10] sm:$0xff]
    %v4121 = vld [vmem:[#allocation8 + $0x18] sm:$0xff]
    %v4122 = vld [vmem:[#allocation8 + $0x20] sm:$0xff]
    %v4123 = vld [vmem:[#allocation8 + $0x28] sm:$0xff]
    %v4124 = vld [vmem:[#allocation8 + $0x30] sm:$0xff]
    %v4125 = vld [vmem:[#allocation8 + $0x38] sm:$0xff]
    %v4126 = vld [vmem:[#allocation8 + $0x40] sm:$0xff]
    %v4127 = vld [vmem:[#allocation8 + $0x48] sm:$0xff]
    %v4128 = vld [vmem:[#allocation8 + $0x50] sm:$0xff]
    %v4129 = vld [vmem:[#allocation8 + $0x58] sm:$0xff]
    %v4130 = vld [vmem:[#allocation8 + $0x60] sm:$0xff]
    %v4131 = vld [vmem:[#allocation8 + $0x68] sm:$0xff]
    %v4132 = vld [vmem:[#allocation8 + $0x70] sm:$0xff]
    %v4133 = vld [vmem:[#allocation8 + $0x78] sm:$0xff]
    %v4134 = vld [vmem:[#allocation8 + $0x80] sm:$0xff]
    %v4135 = vld [vmem:[#allocation8 + $0x88] sm:$0xff]
    %v4136 = vld [vmem:[#allocation8 + $0x90] sm:$0xff]
    %v4137 = vld [vmem:[#allocation8 + $0x98] sm:$0xff]
    %v4138 = vld [vmem:[#allocation8 + $0xa0] sm:$0xff]
    %v4139 = vld [vmem:[#allocation8 + $0xa8] sm:$0xff]
    %v4140 = vld [vmem:[#allocation8 + $0xb0] sm:$0xff]
    %v4141 = vld [vmem:[#allocation8 + $0xb8] sm:$0xff]
    %v4142 = vld [vmem:[#allocation8 + $0xc0] sm:$0xff]
    %v4143 = vld [vmem:[#allocation8 + $0xc8] sm:$0xff]
    %v4144 = vld [vmem:[#allocation8 + $0xd0] sm:$0xff]
    %v4145 = vld [vmem:[#allocation8 + $0xd8] sm:$0xff]
    %v4146 = vld [vmem:[#allocation8 + $0xe0] sm:$0xff]
    %v4147 = vld [vmem:[#allocation8 + $0xe8] sm:$0xff]
    %v4148 = vld [vmem:[#allocation8 + $0xf0] sm:$0xff]
    %v4149 = vld [vmem:[#allocation8 + $0xf8] sm:$0xff]
    %v4150 = vld [vmem:[#allocation8 + $0x100] sm:$0xff]
    %v4151 = vld [vmem:[#allocation8 + $0x108] sm:$0xff]
    %v4152 = vld [vmem:[#allocation8 + $0x110] sm:$0xff]
    %v4153 = vld [vmem:[#allocation8 + $0x118] sm:$0xff]
    %v4154 = vld [vmem:[#allocation8 + $0x120] sm:$0xff]
    %v4155 = vld [vmem:[#allocation8 + $0x128] sm:$0xff]
    %v4156 = vld [vmem:[#allocation8 + $0x130] sm:$0xff]
    %v4157 = vld [vmem:[#allocation8 + $0x138] sm:$0xff]
    %v4158 = vld [vmem:[#allocation8 + $0x140] sm:$0xff]
    %v4159 = vld [vmem:[#allocation8 + $0x148] sm:$0xff]
    %v4160 = vld [vmem:[#allocation8 + $0x150] sm:$0xff]
    %v4161 = vld [vmem:[#allocation8 + $0x158] sm:$0xff]
    %v4162 = vld [vmem:[#allocation8 + $0x160] sm:$0xff]
    %v4163 = vld [vmem:[#allocation8 + $0x168] sm:$0xff]
    %v4164 = vld [vmem:[#allocation8 + $0x170] sm:$0xff]
    %v4165 = vld [vmem:[#allocation8 + $0x178] sm:$0xff]
    %v4166 = vld [vmem:[#allocation8 + $0x180] sm:$0xff]
    %v4167 = vld [vmem:[#allocation8 + $0x188] sm:$0xff]
    %v4168 = vld [vmem:[#allocation8 + $0x190] sm:$0xff]
    %v4169 = vld [vmem:[#allocation8 + $0x198] sm:$0xff]
    %v4170 = vld [vmem:[#allocation8 + $0x1a0] sm:$0xff]
    %v4171 = vld [vmem:[#allocation8 + $0x1a8] sm:$0xff]
    %v4172 = vld [vmem:[#allocation8 + $0x1b0] sm:$0xff]
    %v4173 = vld [vmem:[#allocation8 + $0x1b8] sm:$0xff]
    %v4174 = vld [vmem:[#allocation8 + $0x1c0] sm:$0xff]
    %v4175 = vld [vmem:[#allocation8 + $0x1c8] sm:$0xff]
    %v4176 = vld [vmem:[#allocation8 + $0x1d0] sm:$0xff]
    %v4177 = vld [vmem:[#allocation8 + $0x1d8] sm:$0xff]
    %v4178 = vld [vmem:[#allocation8 + $0x1e0] sm:$0xff]
    %v4179 = vld [vmem:[#allocation8 + $0x1e8] sm:$0xff]
    %v4180 = vld [vmem:[#allocation8 + $0x1f0] sm:$0xff]
    %v4181 = vld [vmem:[#allocation8 + $0x1f8] sm:$0xff]
    %v4182 = vld [vmem:[#allocation8 + $0x200] sm:$0xff]
    %v4183 = vld [vmem:[#allocation8 + $0x208] sm:$0xff]
    %v4184 = vld [vmem:[#allocation8 + $0x210] sm:$0xff]
    %v4185 = vld [vmem:[#allocation8 + $0x218] sm:$0xff]
    %v4186 = vld [vmem:[#allocation8 + $0x220] sm:$0xff]
    %v4187 = vld [vmem:[#allocation8 + $0x228] sm:$0xff]
    %v4188 = vld [vmem:[#allocation8 + $0x230] sm:$0xff]
    %v4189 = vld [vmem:[#allocation8 + $0x238] sm:$0xff]
    %v4190 = vld [vmem:[#allocation8 + $0x240] sm:$0xff]
    %v4191 = vld [vmem:[#allocation8 + $0x248] sm:$0xff]
    %v4192 = vld [vmem:[#allocation8 + $0x250] sm:$0xff]
    %v4193 = vld [vmem:[#allocation8 + $0x258] sm:$0xff]
    %v4194 = vld [vmem:[#allocation8 + $0x260] sm:$0xff]
    %v4195 = vld [vmem:[#allocation8 + $0x268] sm:$0xff]
    %v4196 = vld [vmem:[#allocation8 + $0x270] sm:$0xff]
    %v4197 = vld [vmem:[#allocation8 + $0x278] sm:$0xff]
    %v4198 = vld [vmem:[#allocation8 + $0x280] sm:$0xff]
    %v4199 = vld [vmem:[#allocation8 + $0x288] sm:$0xff]
    %v4200 = vld [vmem:[#allocation8 + $0x290] sm:$0xff]
    %v4201 = vld [vmem:[#allocation8 + $0x298] sm:$0xff]
    %v4202 = vld [vmem:[#allocation8 + $0x2a0] sm:$0xff]
    %v4203 = vld [vmem:[#allocation8 + $0x2a8] sm:$0xff]
    %v4204 = vld [vmem:[#allocation8 + $0x2b0] sm:$0xff]
    %v4205 = vld [vmem:[#allocation8 + $0x2b8] sm:$0xff]
    %v4206 = vld [vmem:[#allocation8 + $0x2c0] sm:$0xff]
    %v4207 = vld [vmem:[#allocation8 + $0x2c8] sm:$0xff]
    %v4208 = vld [vmem:[#allocation8 + $0x2d0] sm:$0xff]
    %v4209 = vld [vmem:[#allocation8 + $0x2d8] sm:$0xff]
    %v4210 = vld [vmem:[#allocation8 + $0x2e0] sm:$0xff]
    %v4211 = vld [vmem:[#allocation8 + $0x2e8] sm:$0xff]
    %v4212 = vld [vmem:[#allocation8 + $0x2f0] sm:$0xff]
    %v4213 = vld [vmem:[#allocation8 + $0x2f8] sm:$0xff]
    %v4214 = vld [vmem:[#allocation8 + $0x300] sm:$0xff]
    %v4215 = vld [vmem:[#allocation8 + $0x308] sm:$0xff]
    %v4216 = vld [vmem:[#allocation8 + $0x310] sm:$0xff]
    %v4217 = vld [vmem:[#allocation8 + $0x318] sm:$0xff]
    %v4218 = vld [vmem:[#allocation8 + $0x320] sm:$0xff]
    %v4219 = vld [vmem:[#allocation8 + $0x328] sm:$0xff]
    %v4220 = vld [vmem:[#allocation8 + $0x330] sm:$0xff]
    %v4221 = vld [vmem:[#allocation8 + $0x338] sm:$0xff]
    %v4222 = vld [vmem:[#allocation8 + $0x340] sm:$0xff]
    %v4223 = vld [vmem:[#allocation8 + $0x348] sm:$0xff]
    %v4224 = vld [vmem:[#allocation8 + $0x350] sm:$0xff]
    %v4225 = vld [vmem:[#allocation8 + $0x358] sm:$0xff]
    %v4226 = vld [vmem:[#allocation8 + $0x360] sm:$0xff]
    %v4227 = vld [vmem:[#allocation8 + $0x368] sm:$0xff]
    %v4228 = vld [vmem:[#allocation8 + $0x370] sm:$0xff]
    %v4229 = vld [vmem:[#allocation8 + $0x378] sm:$0xff]
    %v4230 = vld [vmem:[#allocation8 + $0x380] sm:$0xff]
    %v4231 = vld [vmem:[#allocation8 + $0x388] sm:$0xff]
    %v4232 = vld [vmem:[#allocation8 + $0x390] sm:$0xff]
    %v4233 = vld [vmem:[#allocation8 + $0x398] sm:$0xff]
    %v4234 = vld [vmem:[#allocation8 + $0x3a0] sm:$0xff]
    %v4235 = vld [vmem:[#allocation8 + $0x3a8] sm:$0xff]
    %v4236 = vld [vmem:[#allocation8 + $0x3b0] sm:$0xff]
    %v4237 = vld [vmem:[#allocation8 + $0x3b8] sm:$0xff]
    %v4238 = vld [vmem:[#allocation8 + $0x3c0] sm:$0xff]
    %v4239 = vld [vmem:[#allocation8 + $0x3c8] sm:$0xff]
    %v4240 = vld [vmem:[#allocation8 + $0x3d0] sm:$0xff]
    %v4241 = vld [vmem:[#allocation8 + $0x3d8] sm:$0xff]
    %v4242 = vld [vmem:[#allocation8 + $0x3e0] sm:$0xff]
    %v4243 = vld [vmem:[#allocation8 + $0x3e8] sm:$0xff]
    %v4244 = vld [vmem:[#allocation8 + $0x3f0] sm:$0xff]
    %v4245 = vld [vmem:[#allocation8 + $0x3f8] sm:$0xff]
    %v4374 = vunpack.c.l.b16 %v4118
    %v4375 = vunpack.c.h.b16 %v4118
    %v4376 = vunpack.c.l.b16 %v4119
    %v4377 = vunpack.c.h.b16 %v4119
    %v4378 = vunpack.c.l.b16 %v4120
    %v4379 = vunpack.c.h.b16 %v4120
    %v4380 = vunpack.c.l.b16 %v4121
    %v4381 = vunpack.c.h.b16 %v4121
    %v4382 = vunpack.c.l.b16 %v4122
    %v4383 = vunpack.c.h.b16 %v4122
    %v4384 = vunpack.c.l.b16 %v4123
    %v4385 = vunpack.c.h.b16 %v4123
    %v4386 = vunpack.c.l.b16 %v4124
    %v4387 = vunpack.c.h.b16 %v4124
    %v4388 = vunpack.c.l.b16 %v4125
    %v4389 = vunpack.c.h.b16 %v4125
    %v4390 = vunpack.c.l.b16 %v4126
    %v4391 = vunpack.c.h.b16 %v4126
    %v4392 = vunpack.c.l.b16 %v4127
    %v4393 = vunpack.c.h.b16 %v4127
    %v4394 = vunpack.c.l.b16 %v4128
    %v4395 = vunpack.c.h.b16 %v4128
    %v4396 = vunpack.c.l.b16 %v4129
    %v4397 = vunpack.c.h.b16 %v4129
    %v4398 = vunpack.c.l.b16 %v4130
    %v4399 = vunpack.c.h.b16 %v4130
    %v4400 = vunpack.c.l.b16 %v4131
    %v4401 = vunpack.c.h.b16 %v4131
    %v4402 = vunpack.c.l.b16 %v4132
    %v4403 = vunpack.c.h.b16 %v4132
    %v4404 = vunpack.c.l.b16 %v4133
    %v4405 = vunpack.c.h.b16 %v4133
    %v4406 = vunpack.c.l.b16 %v4134
    %v4407 = vunpack.c.h.b16 %v4134
    %v4408 = vunpack.c.l.b16 %v4135
    %v4409 = vunpack.c.h.b16 %v4135
    %v4410 = vunpack.c.l.b16 %v4136
    %v4411 = vunpack.c.h.b16 %v4136
    %v4412 = vunpack.c.l.b16 %v4137
    %v4413 = vunpack.c.h.b16 %v4137
    %v4414 = vunpack.c.l.b16 %v4138
    %v4415 = vunpack.c.h.b16 %v4138
    %v4416 = vunpack.c.l.b16 %v4139
    %v4417 = vunpack.c.h.b16 %v4139
    %v4418 = vunpack.c.l.b16 %v4140
    %v4419 = vunpack.c.h.b16 %v4140
    %v4420 = vunpack.c.l.b16 %v4141
    %v4421 = vunpack.c.h.b16 %v4141
    %v4422 = vunpack.c.l.b16 %v4142
    %v4423 = vunpack.c.h.b16 %v4142
    %v4424 = vunpack.c.l.b16 %v4143
    %v4425 = vunpack.c.h.b16 %v4143
    %v4426 = vunpack.c.l.b16 %v4144
    %v4427 = vunpack.c.h.b16 %v4144
    %v4428 = vunpack.c.l.b16 %v4145
    %v4429 = vunpack.c.h.b16 %v4145
    %v4430 = vunpack.c.l.b16 %v4146
    %v4431 = vunpack.c.h.b16 %v4146
    %v4432 = vunpack.c.l.b16 %v4147
    %v4433 = vunpack.c.h.b16 %v4147
    %v4434 = vunpack.c.l.b16 %v4148
    %v4435 = vunpack.c.h.b16 %v4148
    %v4436 = vunpack.c.l.b16 %v4149
    %v4437 = vunpack.c.h.b16 %v4149
    %v4438 = vunpack.c.l.b16 %v4150
    %v4439 = vunpack.c.h.b16 %v4150
    %v4440 = vunpack.c.l.b16 %v4151
    %v4441 = vunpack.c.h.b16 %v4151
    %v4442 = vunpack.c.l.b16 %v4152
    %v4443 = vunpack.c.h.b16 %v4152
    %v4444 = vunpack.c.l.b16 %v4153
    %v4445 = vunpack.c.h.b16 %v4153
    %v4446 = vunpack.c.l.b16 %v4154
    %v4447 = vunpack.c.h.b16 %v4154
    %v4448 = vunpack.c.l.b16 %v4155
    %v4449 = vunpack.c.h.b16 %v4155
    %v4450 = vunpack.c.l.b16 %v4156
    %v4451 = vunpack.c.h.b16 %v4156
    %v4452 = vunpack.c.l.b16 %v4157
    %v4453 = vunpack.c.h.b16 %v4157
    %v4454 = vunpack.c.l.b16 %v4158
    %v4455 = vunpack.c.h.b16 %v4158
    %v4456 = vunpack.c.l.b16 %v4159
    %v4457 = vunpack.c.h.b16 %v4159
    %v4458 = vunpack.c.l.b16 %v4160
    %v4459 = vunpack.c.h.b16 %v4160
    %v4460 = vunpack.c.l.b16 %v4161
    %v4461 = vunpack.c.h.b16 %v4161
    %v4462 = vunpack.c.l.b16 %v4162
    %v4463 = vunpack.c.h.b16 %v4162
    %v4464 = vunpack.c.l.b16 %v4163
    %v4465 = vunpack.c.h.b16 %v4163
    %v4466 = vunpack.c.l.b16 %v4164
    %v4467 = vunpack.c.h.b16 %v4164
    %v4468 = vunpack.c.l.b16 %v4165
    %v4469 = vunpack.c.h.b16 %v4165
    %v4470 = vunpack.c.l.b16 %v4166
    %v4471 = vunpack.c.h.b16 %v4166
    %v4472 = vunpack.c.l.b16 %v4167
    %v4473 = vunpack.c.h.b16 %v4167
    %v4474 = vunpack.c.l.b16 %v4168
    %v4475 = vunpack.c.h.b16 %v4168
    %v4476 = vunpack.c.l.b16 %v4169
    %v4477 = vunpack.c.h.b16 %v4169
    %v4478 = vunpack.c.l.b16 %v4170
    %v4479 = vunpack.c.h.b16 %v4170
    %v4480 = vunpack.c.l.b16 %v4171
    %v4481 = vunpack.c.h.b16 %v4171
    %v4482 = vunpack.c.l.b16 %v4172
    %v4483 = vunpack.c.h.b16 %v4172
    %v4484 = vunpack.c.l.b16 %v4173
    %v4485 = vunpack.c.h.b16 %v4173
    %v4486 = vunpack.c.l.b16 %v4174
    %v4487 = vunpack.c.h.b16 %v4174
    %v4488 = vunpack.c.l.b16 %v4175
    %v4489 = vunpack.c.h.b16 %v4175
    %v4490 = vunpack.c.l.b16 %v4176
    %v4491 = vunpack.c.h.b16 %v4176
    %v4492 = vunpack.c.l.b16 %v4177
    %v4493 = vunpack.c.h.b16 %v4177
    %v4494 = vunpack.c.l.b16 %v4178
    %v4495 = vunpack.c.h.b16 %v4178
    %v4496 = vunpack.c.l.b16 %v4179
    %v4497 = vunpack.c.h.b16 %v4179
    %v4498 = vunpack.c.l.b16 %v4180
    %v4499 = vunpack.c.h.b16 %v4180
    %v4500 = vunpack.c.l.b16 %v4181
    %v4501 = vunpack.c.h.b16 %v4181
    %v4502 = vunpack.c.l.b16 %v4182
    %v4503 = vunpack.c.h.b16 %v4182
    %v4504 = vunpack.c.l.b16 %v4183
    %v4505 = vunpack.c.h.b16 %v4183
    %v4506 = vunpack.c.l.b16 %v4184
    %v4507 = vunpack.c.h.b16 %v4184
    %v4508 = vunpack.c.l.b16 %v4185
    %v4509 = vunpack.c.h.b16 %v4185
    %v4510 = vunpack.c.l.b16 %v4186
    %v4511 = vunpack.c.h.b16 %v4186
    %v4512 = vunpack.c.l.b16 %v4187
    %v4513 = vunpack.c.h.b16 %v4187
    %v4514 = vunpack.c.l.b16 %v4188
    %v4515 = vunpack.c.h.b16 %v4188
    %v4516 = vunpack.c.l.b16 %v4189
    %v4517 = vunpack.c.h.b16 %v4189
    %v4518 = vunpack.c.l.b16 %v4190
    %v4519 = vunpack.c.h.b16 %v4190
    %v4520 = vunpack.c.l.b16 %v4191
    %v4521 = vunpack.c.h.b16 %v4191
    %v4522 = vunpack.c.l.b16 %v4192
    %v4523 = vunpack.c.h.b16 %v4192
    %v4524 = vunpack.c.l.b16 %v4193
    %v4525 = vunpack.c.h.b16 %v4193
    %v4526 = vunpack.c.l.b16 %v4194
    %v4527 = vunpack.c.h.b16 %v4194
    %v4528 = vunpack.c.l.b16 %v4195
    %v4529 = vunpack.c.h.b16 %v4195
    %v4530 = vunpack.c.l.b16 %v4196
    %v4531 = vunpack.c.h.b16 %v4196
    %v4532 = vunpack.c.l.b16 %v4197
    %v4533 = vunpack.c.h.b16 %v4197
    %v4534 = vunpack.c.l.b16 %v4198
    %v4535 = vunpack.c.h.b16 %v4198
    %v4536 = vunpack.c.l.b16 %v4199
    %v4537 = vunpack.c.h.b16 %v4199
    %v4538 = vunpack.c.l.b16 %v4200
    %v4539 = vunpack.c.h.b16 %v4200
    %v4540 = vunpack.c.l.b16 %v4201
    %v4541 = vunpack.c.h.b16 %v4201
    %v4542 = vunpack.c.l.b16 %v4202
    %v4543 = vunpack.c.h.b16 %v4202
    %v4544 = vunpack.c.l.b16 %v4203
    %v4545 = vunpack.c.h.b16 %v4203
    %v4546 = vunpack.c.l.b16 %v4204
    %v4547 = vunpack.c.h.b16 %v4204
    %v4548 = vunpack.c.l.b16 %v4205
    %v4549 = vunpack.c.h.b16 %v4205
    %v4550 = vunpack.c.l.b16 %v4206
    %v4551 = vunpack.c.h.b16 %v4206
    %v4552 = vunpack.c.l.b16 %v4207
    %v4553 = vunpack.c.h.b16 %v4207
    %v4554 = vunpack.c.l.b16 %v4208
    %v4555 = vunpack.c.h.b16 %v4208
    %v4556 = vunpack.c.l.b16 %v4209
    %v4557 = vunpack.c.h.b16 %v4209
    %v4558 = vunpack.c.l.b16 %v4210
    %v4559 = vunpack.c.h.b16 %v4210
    %v4560 = vunpack.c.l.b16 %v4211
    %v4561 = vunpack.c.h.b16 %v4211
    %v4562 = vunpack.c.l.b16 %v4212
    %v4563 = vunpack.c.h.b16 %v4212
    %v4564 = vunpack.c.l.b16 %v4213
    %v4565 = vunpack.c.h.b16 %v4213
    %v4566 = vunpack.c.l.b16 %v4214
    %v4567 = vunpack.c.h.b16 %v4214
    %v4568 = vunpack.c.l.b16 %v4215
    %v4569 = vunpack.c.h.b16 %v4215
    %v4570 = vunpack.c.l.b16 %v4216
    %v4571 = vunpack.c.h.b16 %v4216
    %v4572 = vunpack.c.l.b16 %v4217
    %v4573 = vunpack.c.h.b16 %v4217
    %v4574 = vunpack.c.l.b16 %v4218
    %v4575 = vunpack.c.h.b16 %v4218
    %v4576 = vunpack.c.l.b16 %v4219
    %v4577 = vunpack.c.h.b16 %v4219
    %v4578 = vunpack.c.l.b16 %v4220
    %v4579 = vunpack.c.h.b16 %v4220
    %v4580 = vunpack.c.l.b16 %v4221
    %v4581 = vunpack.c.h.b16 %v4221
    %v4582 = vunpack.c.l.b16 %v4222
    %v4583 = vunpack.c.h.b16 %v4222
    %v4584 = vunpack.c.l.b16 %v4223
    %v4585 = vunpack.c.h.b16 %v4223
    %v4586 = vunpack.c.l.b16 %v4224
    %v4587 = vunpack.c.h.b16 %v4224
    %v4588 = vunpack.c.l.b16 %v4225
    %v4589 = vunpack.c.h.b16 %v4225
    %v4590 = vunpack.c.l.b16 %v4226
    %v4591 = vunpack.c.h.b16 %v4226
    %v4592 = vunpack.c.l.b16 %v4227
    %v4593 = vunpack.c.h.b16 %v4227
    %v4594 = vunpack.c.l.b16 %v4228
    %v4595 = vunpack.c.h.b16 %v4228
    %v4596 = vunpack.c.l.b16 %v4229
    %v4597 = vunpack.c.h.b16 %v4229
    %v4598 = vunpack.c.l.b16 %v4230
    %v4599 = vunpack.c.h.b16 %v4230
    %v4600 = vunpack.c.l.b16 %v4231
    %v4601 = vunpack.c.h.b16 %v4231
    %v4602 = vunpack.c.l.b16 %v4232
    %v4603 = vunpack.c.h.b16 %v4232
    %v4604 = vunpack.c.l.b16 %v4233
    %v4605 = vunpack.c.h.b16 %v4233
    %v4606 = vunpack.c.l.b16 %v4234
    %v4607 = vunpack.c.h.b16 %v4234
    %v4608 = vunpack.c.l.b16 %v4235
    %v4609 = vunpack.c.h.b16 %v4235
    %v4610 = vunpack.c.l.b16 %v4236
    %v4611 = vunpack.c.h.b16 %v4236
    %v4612 = vunpack.c.l.b16 %v4237
    %v4613 = vunpack.c.h.b16 %v4237
    %v4614 = vunpack.c.l.b16 %v4238
    %v4615 = vunpack.c.h.b16 %v4238
    %v4616 = vunpack.c.l.b16 %v4239
    %v4617 = vunpack.c.h.b16 %v4239
    %v4618 = vunpack.c.l.b16 %v4240
    %v4619 = vunpack.c.h.b16 %v4240
    %v4620 = vunpack.c.l.b16 %v4241
    %v4621 = vunpack.c.h.b16 %v4241
    %v4622 = vunpack.c.l.b16 %v4242
    %v4623 = vunpack.c.h.b16 %v4242
    %v4624 = vunpack.c.l.b16 %v4243
    %v4625 = vunpack.c.h.b16 %v4243
    %v4626 = vunpack.c.l.b16 %v4244
    %v4627 = vunpack.c.h.b16 %v4244
    %v4628 = vunpack.c.l.b16 %v4245
    %v4629 = vunpack.c.h.b16 %v4245
    %v4630 = vpack.c.b16 %v4378, %v4374
    %v4631 = vpack.c.b16 %v4379, %v4375
    %v4632 = vpack.c.b16 %v4380, %v4376
    %v4633 = vpack.c.b16 %v4381, %v4377
    %v4634 = vpack.c.b16 %v4386, %v4382
    %v4635 = vpack.c.b16 %v4387, %v4383
    %v4636 = vpack.c.b16 %v4388, %v4384
    %v4637 = vpack.c.b16 %v4389, %v4385
    %v4638 = vpack.c.b16 %v4394, %v4390
    %v4639 = vpack.c.b16 %v4395, %v4391
    %v4640 = vpack.c.b16 %v4396, %v4392
    %v4641 = vpack.c.b16 %v4397, %v4393
    %v4642 = vpack.c.b16 %v4402, %v4398
    %v4643 = vpack.c.b16 %v4403, %v4399
    %v4644 = vpack.c.b16 %v4404, %v4400
    %v4645 = vpack.c.b16 %v4405, %v4401
    %v4646 = vpack.c.b16 %v4410, %v4406
    %v4647 = vpack.c.b16 %v4411, %v4407
    %v4648 = vpack.c.b16 %v4412, %v4408
    %v4649 = vpack.c.b16 %v4413, %v4409
    %v4650 = vpack.c.b16 %v4418, %v4414
    %v4651 = vpack.c.b16 %v4419, %v4415
    %v4652 = vpack.c.b16 %v4420, %v4416
    %v4653 = vpack.c.b16 %v4421, %v4417
    %v4654 = vpack.c.b16 %v4426, %v4422
    %v4655 = vpack.c.b16 %v4427, %v4423
    %v4656 = vpack.c.b16 %v4428, %v4424
    %v4657 = vpack.c.b16 %v4429, %v4425
    %v4658 = vpack.c.b16 %v4434, %v4430
    %v4659 = vpack.c.b16 %v4435, %v4431
    %v4660 = vpack.c.b16 %v4436, %v4432
    %v4661 = vpack.c.b16 %v4437, %v4433
    %v4662 = vpack.c.b16 %v4442, %v4438
    %v4663 = vpack.c.b16 %v4443, %v4439
    %v4664 = vpack.c.b16 %v4444, %v4440
    %v4665 = vpack.c.b16 %v4445, %v4441
    %v4666 = vpack.c.b16 %v4450, %v4446
    %v4667 = vpack.c.b16 %v4451, %v4447
    %v4668 = vpack.c.b16 %v4452, %v4448
    %v4669 = vpack.c.b16 %v4453, %v4449
    %v4670 = vpack.c.b16 %v4458, %v4454
    %v4671 = vpack.c.b16 %v4459, %v4455
    %v4672 = vpack.c.b16 %v4460, %v4456
    %v4673 = vpack.c.b16 %v4461, %v4457
    %v4674 = vpack.c.b16 %v4466, %v4462
    %v4675 = vpack.c.b16 %v4467, %v4463
    %v4676 = vpack.c.b16 %v4468, %v4464
    %v4677 = vpack.c.b16 %v4469, %v4465
    %v4678 = vpack.c.b16 %v4474, %v4470
    %v4679 = vpack.c.b16 %v4475, %v4471
    %v4680 = vpack.c.b16 %v4476, %v4472
    %v4681 = vpack.c.b16 %v4477, %v4473
    %v4682 = vpack.c.b16 %v4482, %v4478
    %v4683 = vpack.c.b16 %v4483, %v4479
    %v4684 = vpack.c.b16 %v4484, %v4480
    %v4685 = vpack.c.b16 %v4485, %v4481
    %v4686 = vpack.c.b16 %v4490, %v4486
    %v4687 = vpack.c.b16 %v4491, %v4487
    %v4688 = vpack.c.b16 %v4492, %v4488
    %v4689 = vpack.c.b16 %v4493, %v4489
    %v4690 = vpack.c.b16 %v4498, %v4494
    %v4691 = vpack.c.b16 %v4499, %v4495
    %v4692 = vpack.c.b16 %v4500, %v4496
    %v4693 = vpack.c.b16 %v4501, %v4497
    %v4694 = vpack.c.b16 %v4506, %v4502
    %v4695 = vpack.c.b16 %v4507, %v4503
    %v4696 = vpack.c.b16 %v4508, %v4504
    %v4697 = vpack.c.b16 %v4509, %v4505
    %v4698 = vpack.c.b16 %v4514, %v4510
    %v4699 = vpack.c.b16 %v4515, %v4511
    %v4700 = vpack.c.b16 %v4516, %v4512
    %v4701 = vpack.c.b16 %v4517, %v4513
    %v4702 = vpack.c.b16 %v4522, %v4518
    %v4703 = vpack.c.b16 %v4523, %v4519
    %v4704 = vpack.c.b16 %v4524, %v4520
    %v4705 = vpack.c.b16 %v4525, %v4521
    %v4706 = vpack.c.b16 %v4530, %v4526
    %v4707 = vpack.c.b16 %v4531, %v4527
    %v4708 = vpack.c.b16 %v4532, %v4528
    %v4709 = vpack.c.b16 %v4533, %v4529
    %v4710 = vpack.c.b16 %v4538, %v4534
    %v4711 = vpack.c.b16 %v4539, %v4535
    %v4712 = vpack.c.b16 %v4540, %v4536
    %v4713 = vpack.c.b16 %v4541, %v4537
    %v4714 = vpack.c.b16 %v4546, %v4542
    %v4715 = vpack.c.b16 %v4547, %v4543
    %v4716 = vpack.c.b16 %v4548, %v4544
    %v4717 = vpack.c.b16 %v4549, %v4545
    %v4718 = vpack.c.b16 %v4554, %v4550
    %v4719 = vpack.c.b16 %v4555, %v4551
    %v4720 = vpack.c.b16 %v4556, %v4552
    %v4721 = vpack.c.b16 %v4557, %v4553
    %v4722 = vpack.c.b16 %v4562, %v4558
    %v4723 = vpack.c.b16 %v4563, %v4559
    %v4724 = vpack.c.b16 %v4564, %v4560
    %v4725 = vpack.c.b16 %v4565, %v4561
    %v4726 = vpack.c.b16 %v4570, %v4566
    %v4727 = vpack.c.b16 %v4571, %v4567
    %v4728 = vpack.c.b16 %v4572, %v4568
    %v4729 = vpack.c.b16 %v4573, %v4569
    %v4730 = vpack.c.b16 %v4578, %v4574
    %v4731 = vpack.c.b16 %v4579, %v4575
    %v4732 = vpack.c.b16 %v4580, %v4576
    %v4733 = vpack.c.b16 %v4581, %v4577
    %v4734 = vpack.c.b16 %v4586, %v4582
    %v4735 = vpack.c.b16 %v4587, %v4583
    %v4736 = vpack.c.b16 %v4588, %v4584
    %v4737 = vpack.c.b16 %v4589, %v4585
    %v4738 = vpack.c.b16 %v4594, %v4590
    %v4739 = vpack.c.b16 %v4595, %v4591
    %v4740 = vpack.c.b16 %v4596, %v4592
    %v4741 = vpack.c.b16 %v4597, %v4593
    %v4742 = vpack.c.b16 %v4602, %v4598
    %v4743 = vpack.c.b16 %v4603, %v4599
    %v4744 = vpack.c.b16 %v4604, %v4600
    %v4745 = vpack.c.b16 %v4605, %v4601
    %v4746 = vpack.c.b16 %v4610, %v4606
    %v4747 = vpack.c.b16 %v4611, %v4607
    %v4748 = vpack.c.b16 %v4612, %v4608
    %v4749 = vpack.c.b16 %v4613, %v4609
    %v4750 = vpack.c.b16 %v4618, %v4614
    %v4751 = vpack.c.b16 %v4619, %v4615
    %v4752 = vpack.c.b16 %v4620, %v4616
    %v4753 = vpack.c.b16 %v4621, %v4617
    %v4754 = vpack.c.b16 %v4626, %v4622
    %v4755 = vpack.c.b16 %v4627, %v4623
    %v4756 = vpack.c.b16 %v4628, %v4624
    %v4757 = vpack.c.b16 %v4629, %v4625
    %4886 = vmatpush.bf16.msra.mxu0 %v4658
    %4887 = vmatpush.bf16.msra.mxu0 %v4654
    %4888 = vmatpush.bf16.msra.mxu0 %v4650
    %4889 = vmatpush.bf16.msra.mxu0 %v4646
    %4890 = vmatpush.bf16.msra.mxu0 %v4642
    %4891 = vmatpush.bf16.msra.mxu0 %v4638
    %4892 = vmatpush.bf16.msra.mxu0 %v4634
    %4893 = vmatpush.bf16.msra.mxu0 %v4630
    %4894 = vmatmul.bf16.gmra.mxu0 %v4114
    %v4895 = vpop.f32.mrf.mxu0
    %v4896 = vadd.f32 %v122, %v4895
    %v4897 = vpop.f32.mrf.mxu0
    %v4898 = vadd.f32 %v126, %v4897
    %4899 = vdwg.mxu0
    %4900 = vmatpush.bf16.msra.mxu0 %v4690
    %4901 = vmatpush.bf16.msra.mxu0 %v4686
    %4902 = vmatpush.bf16.msra.mxu0 %v4682
    %4903 = vmatpush.bf16.msra.mxu0 %v4678
    %4904 = vmatpush.bf16.msra.mxu0 %v4674
    %4905 = vmatpush.bf16.msra.mxu0 %v4670
    %4906 = vmatpush.bf16.msra.mxu0 %v4666
    %4907 = vmatpush.bf16.msra.mxu0 %v4662
    %4908 = vmatmul.bf16.gmra.mxu0 %v4115
    %v4909 = vpop.f32.mrf.mxu0
    %v4910 = vadd.f32 %v4896, %v4909
    %v4911 = vpop.f32.mrf.mxu0
    %v4912 = vadd.f32 %v4898, %v4911
    %4913 = vdwg.mxu0
    %4914 = vmatpush.bf16.msra.mxu0 %v4722
    %4915 = vmatpush.bf16.msra.mxu0 %v4718
    %4916 = vmatpush.bf16.msra.mxu0 %v4714
    %4917 = vmatpush.bf16.msra.mxu0 %v4710
    %4918 = vmatpush.bf16.msra.mxu0 %v4706
    %4919 = vmatpush.bf16.msra.mxu0 %v4702
    %4920 = vmatpush.bf16.msra.mxu0 %v4698
    %4921 = vmatpush.bf16.msra.mxu0 %v4694
    %4922 = vmatmul.bf16.gmra.mxu0 %v4116
    %v4923 = vpop.f32.mrf.mxu0
    %v4924 = vadd.f32 %v4910, %v4923
    %v4925 = vpop.f32.mrf.mxu0
    %v4926 = vadd.f32 %v4912, %v4925
    %4927 = vdwg.mxu0
    %4928 = vmatpush.bf16.msra.mxu0 %v4754
    %4929 = vmatpush.bf16.msra.mxu0 %v4750
    %4930 = vmatpush.bf16.msra.mxu0 %v4746
    %4931 = vmatpush.bf16.msra.mxu0 %v4742
    %4932 = vmatpush.bf16.msra.mxu0 %v4738
    %4933 = vmatpush.bf16.msra.mxu0 %v4734
    %4934 = vmatpush.bf16.msra.mxu0 %v4730
    %4935 = vmatpush.bf16.msra.mxu0 %v4726
    %4936 = vmatmul.bf16.gmra.mxu0 %v4117
    %v4937 = vpop.f32.mrf.mxu0
    %v4938 = vadd.f32 %v4924, %v4937
    %v4939 = vpop.f32.mrf.mxu0
    %v4940 = vadd.f32 %v4926, %v4939
    %4941 = vdwg.mxu0
    %4942 = vmatpush.bf16.msra.mxu0 %v4659
    %4943 = vmatpush.bf16.msra.mxu0 %v4655
    %4944 = vmatpush.bf16.msra.mxu0 %v4651
    %4945 = vmatpush.bf16.msra.mxu0 %v4647
    %4946 = vmatpush.bf16.msra.mxu0 %v4643
    %4947 = vmatpush.bf16.msra.mxu0 %v4639
    %4948 = vmatpush.bf16.msra.mxu0 %v4635
    %4949 = vmatpush.bf16.msra.mxu0 %v4631
    %4950 = vmatmul.bf16.gmra.mxu0 %v4114
    %v4951 = vpop.f32.mrf.mxu0
    %v4952 = vadd.f32 %v123, %v4951
    %v4953 = vpop.f32.mrf.mxu0
    %v4954 = vadd.f32 %v127, %v4953
    %4955 = vdwg.mxu0
    %4956 = vmatpush.bf16.msra.mxu0 %v4691
    %4957 = vmatpush.bf16.msra.mxu0 %v4687
    %4958 = vmatpush.bf16.msra.mxu0 %v4683
    %4959 = vmatpush.bf16.msra.mxu0 %v4679
    %4960 = vmatpush.bf16.msra.mxu0 %v4675
    %4961 = vmatpush.bf16.msra.mxu0 %v4671
    %4962 = vmatpush.bf16.msra.mxu0 %v4667
    %4963 = vmatpush.bf16.msra.mxu0 %v4663
    %4964 = vmatmul.bf16.gmra.mxu0 %v4115
    %v4965 = vpop.f32.mrf.mxu0
    %v4966 = vadd.f32 %v4952, %v4965
    %v4967 = vpop.f32.mrf.mxu0
    %v4968 = vadd.f32 %v4954, %v4967
    %4969 = vdwg.mxu0
    %4970 = vmatpush.bf16.msra.mxu0 %v4723
    %4971 = vmatpush.bf16.msra.mxu0 %v4719
    %4972 = vmatpush.bf16.msra.mxu0 %v4715
    %4973 = vmatpush.bf16.msra.mxu0 %v4711
    %4974 = vmatpush.bf16.msra.mxu0 %v4707
    %4975 = vmatpush.bf16.msra.mxu0 %v4703
    %4976 = vmatpush.bf16.msra.mxu0 %v4699
    %4977 = vmatpush.bf16.msra.mxu0 %v4695
    %4978 = vmatmul.bf16.gmra.mxu0 %v4116
    %v4979 = vpop.f32.mrf.mxu0
    %v4980 = vadd.f32 %v4966, %v4979
    %v4981 = vpop.f32.mrf.mxu0
    %v4982 = vadd.f32 %v4968, %v4981
    %4983 = vdwg.mxu0
    %4984 = vmatpush.bf16.msra.mxu0 %v4755
    %4985 = vmatpush.bf16.msra.mxu0 %v4751
    %4986 = vmatpush.bf16.msra.mxu0 %v4747
    %4987 = vmatpush.bf16.msra.mxu0 %v4743
    %4988 = vmatpush.bf16.msra.mxu0 %v4739
    %4989 = vmatpush.bf16.msra.mxu0 %v4735
    %4990 = vmatpush.bf16.msra.mxu0 %v4731
    %4991 = vmatpush.bf16.msra.mxu0 %v4727
    %4992 = vmatmul.bf16.gmra.mxu0 %v4117
    %v4993 = vpop.f32.mrf.mxu0
    %v4994 = vadd.f32 %v4980, %v4993
    %v4995 = vpop.f32.mrf.mxu0
    %v4996 = vadd.f32 %v4982, %v4995
    %4997 = vdwg.mxu0
    %4998 = vmatpush.bf16.msra.mxu0 %v4660
    %4999 = vmatpush.bf16.msra.mxu0 %v4656
    %5000 = vmatpush.bf16.msra.mxu0 %v4652
    %5001 = vmatpush.bf16.msra.mxu0 %v4648
    %5002 = vmatpush.bf16.msra.mxu0 %v4644
    %5003 = vmatpush.bf16.msra.mxu0 %v4640
    %5004 = vmatpush.bf16.msra.mxu0 %v4636
    %5005 = vmatpush.bf16.msra.mxu0 %v4632
    %5006 = vmatmul.bf16.gmra.mxu0 %v4114
    %v5007 = vpop.f32.mrf.mxu0
    %v5008 = vadd.f32 %v124, %v5007
    %v5009 = vpop.f32.mrf.mxu0
    %v5010 = vadd.f32 %v128, %v5009
    %5011 = vdwg.mxu0
    %5012 = vmatpush.bf16.msra.mxu0 %v4692
    %5013 = vmatpush.bf16.msra.mxu0 %v4688
    %5014 = vmatpush.bf16.msra.mxu0 %v4684
    %5015 = vmatpush.bf16.msra.mxu0 %v4680
    %5016 = vmatpush.bf16.msra.mxu0 %v4676
    %5017 = vmatpush.bf16.msra.mxu0 %v4672
    %5018 = vmatpush.bf16.msra.mxu0 %v4668
    %5019 = vmatpush.bf16.msra.mxu0 %v4664
    %5020 = vmatmul.bf16.gmra.mxu0 %v4115
    %v5021 = vpop.f32.mrf.mxu0
    %v5022 = vadd.f32 %v5008, %v5021
    %v5023 = vpop.f32.mrf.mxu0
    %v5024 = vadd.f32 %v5010, %v5023
    %5025 = vdwg.mxu0
    %5026 = vmatpush.bf16.msra.mxu0 %v4724
    %5027 = vmatpush.bf16.msra.mxu0 %v4720
    %5028 = vmatpush.bf16.msra.mxu0 %v4716
    %5029 = vmatpush.bf16.msra.mxu0 %v4712
    %5030 = vmatpush.bf16.msra.mxu0 %v4708
    %5031 = vmatpush.bf16.msra.mxu0 %v4704
    %5032 = vmatpush.bf16.msra.mxu0 %v4700
    %5033 = vmatpush.bf16.msra.mxu0 %v4696
    %5034 = vmatmul.bf16.gmra.mxu0 %v4116
    %v5035 = vpop.f32.mrf.mxu0
    %v5036 = vadd.f32 %v5022, %v5035
    %v5037 = vpop.f32.mrf.mxu0
    %v5038 = vadd.f32 %v5024, %v5037
    %5039 = vdwg.mxu0
    %5040 = vmatpush.bf16.msra.mxu0 %v4756
    %5041 = vmatpush.bf16.msra.mxu0 %v4752
    %5042 = vmatpush.bf16.msra.mxu0 %v4748
    %5043 = vmatpush.bf16.msra.mxu0 %v4744
    %5044 = vmatpush.bf16.msra.mxu0 %v4740
    %5045 = vmatpush.bf16.msra.mxu0 %v4736
    %5046 = vmatpush.bf16.msra.mxu0 %v4732
    %5047 = vmatpush.bf16.msra.mxu0 %v4728
    %5048 = vmatmul.bf16.gmra.mxu0 %v4117
    %v5049 = vpop.f32.mrf.mxu0
    %v5050 = vadd.f32 %v5036, %v5049
    %v5051 = vpop.f32.mrf.mxu0
    %v5052 = vadd.f32 %v5038, %v5051
    %5053 = vdwg.mxu0
    %5054 = vmatpush.bf16.msra.mxu0 %v4661
    %5055 = vmatpush.bf16.msra.mxu0 %v4657
    %5056 = vmatpush.bf16.msra.mxu0 %v4653
    %5057 = vmatpush.bf16.msra.mxu0 %v4649
    %5058 = vmatpush.bf16.msra.mxu0 %v4645
    %5059 = vmatpush.bf16.msra.mxu0 %v4641
    %5060 = vmatpush.bf16.msra.mxu0 %v4637
    %5061 = vmatpush.bf16.msra.mxu0 %v4633
    %5062 = vmatmul.bf16.gmra.mxu0 %v4114
    %v5063 = vpop.f32.mrf.mxu0
    %v5064 = vadd.f32 %v125, %v5063
    %v5065 = vpop.f32.mrf.mxu0
    %v5066 = vadd.f32 %v129, %v5065
    %5067 = vdwg.mxu0
    %5068 = vmatpush.bf16.msra.mxu0 %v4693
    %5069 = vmatpush.bf16.msra.mxu0 %v4689
    %5070 = vmatpush.bf16.msra.mxu0 %v4685
    %5071 = vmatpush.bf16.msra.mxu0 %v4681
    %5072 = vmatpush.bf16.msra.mxu0 %v4677
    %5073 = vmatpush.bf16.msra.mxu0 %v4673
    %5074 = vmatpush.bf16.msra.mxu0 %v4669
    %5075 = vmatpush.bf16.msra.mxu0 %v4665
    %5076 = vmatmul.bf16.gmra.mxu0 %v4115
    %v5077 = vpop.f32.mrf.mxu0
    %v5078 = vadd.f32 %v5064, %v5077
    %v5079 = vpop.f32.mrf.mxu0
    %v5080 = vadd.f32 %v5066, %v5079
    %5081 = vdwg.mxu0
    %5082 = vmatpush.bf16.msra.mxu0 %v4725
    %5083 = vmatpush.bf16.msra.mxu0 %v4721
    %5084 = vmatpush.bf16.msra.mxu0 %v4717
    %5085 = vmatpush.bf16.msra.mxu0 %v4713
    %5086 = vmatpush.bf16.msra.mxu0 %v4709
    %5087 = vmatpush.bf16.msra.mxu0 %v4705
    %5088 = vmatpush.bf16.msra.mxu0 %v4701
    %5089 = vmatpush.bf16.msra.mxu0 %v4697
    %5090 = vmatmul.bf16.gmra.mxu0 %v4116
    %v5091 = vpop.f32.mrf.mxu0
    %v5092 = vadd.f32 %v5078, %v5091
    %v5093 = vpop.f32.mrf.mxu0
    %v5094 = vadd.f32 %v5080, %v5093
    %5095 = vdwg.mxu0
    %5096 = vmatpush.bf16.msra.mxu0 %v4757
    %5097 = vmatpush.bf16.msra.mxu0 %v4753
    %5098 = vmatpush.bf16.msra.mxu0 %v4749
    %5099 = vmatpush.bf16.msra.mxu0 %v4745
    %5100 = vmatpush.bf16.msra.mxu0 %v4741
    %5101 = vmatpush.bf16.msra.mxu0 %v4737
    %5102 = vmatpush.bf16.msra.mxu0 %v4733
    %5103 = vmatpush.bf16.msra.mxu0 %v4729
    %5104 = vmatmul.bf16.gmra.mxu0 %v4117
    %v5105 = vpop.f32.mrf.mxu0
    %v5106 = vadd.f32 %v5092, %v5105
    %v5107 = vpop.f32.mrf.mxu0
    %v5108 = vadd.f32 %v5094, %v5107
    %5109 = vdwg.mxu0
    %v5110 = vadd.f32 %v4938, %v4994
    %v5111 = vadd.f32 %v5110, %v5050
    %v5112 = vadd.f32 %v5111, %v5106
    %5113 = vadd.xlane.f32.xlu0 %v5112
    %v5114 = vpop.xlane.xlu0 %5113
    %v5115 = vadd.f32 %v4940, %v4996
    %v5116 = vadd.f32 %v5115, %v5052
    %v5117 = vadd.f32 %v5116, %v5108
    %5118 = vadd.xlane.f32.xlu0 %v5117
    %v5119 = vpop.xlane.xlu0 %5118
    %v5120 = vrcp.pop 512.0
    %v5121 = vmul.f32 512.0, %v5120
    %v5122 = vsub.f32 1.0, %v5121
    %v5123 = vmul.f32 %v5120, %v5122
    %v5124 = vadd.f32 %v5120, %v5123
    %vm5125 = vweird.f32 %v5120
    %v5126 = vsel %vm5125, %v5120, %v5124
    %v5127 = vmul.f32 %v5114, %v5126
    %v5128 = vmul.f32 %v5119, %v5126
    %v5129 = vsub.f32 %v4938, %v5127
    %v5130 = vsub.f32 %v4994, %v5127
    %v5131 = vsub.f32 %v5050, %v5127
    %v5132 = vsub.f32 %v5106, %v5127
    %v5133 = vsub.f32 %v4940, %v5128
    %v5134 = vsub.f32 %v4996, %v5128
    %v5135 = vsub.f32 %v5052, %v5128
    %v5136 = vsub.f32 %v5108, %v5128
    %v5137 = vmul.f32 %v5129, %v5129
    %v5138 = vmul.f32 %v5130, %v5130
    %v5139 = vmul.f32 %v5131, %v5131
    %v5140 = vmul.f32 %v5132, %v5132
    %v5141 = vmul.f32 %v5133, %v5133
    %v5142 = vmul.f32 %v5134, %v5134
    %v5143 = vmul.f32 %v5135, %v5135
    %v5144 = vmul.f32 %v5136, %v5136
    %v5145 = vadd.f32 %v5137, %v5138
    %v5146 = vadd.f32 %v5145, %v5139
    %v5147 = vadd.f32 %v5146, %v5140
    %5148 = vadd.xlane.f32.xlu0 %v5147
    %v5149 = vpop.xlane.xlu0 %5148
    %v5150 = vadd.f32 %v5141, %v5142
    %v5151 = vadd.f32 %v5150, %v5143
    %v5152 = vadd.f32 %v5151, %v5144
    %5153 = vadd.xlane.f32.xlu0 %v5152
    %v5154 = vpop.xlane.xlu0 %5153
    %v5155 = vmul.f32 %v5149, %v5126
    %v5156 = vmul.f32 %v5154, %v5126
    %v5157 = vadd.f32 %v5155, 1e-05
    %v5158 = vadd.f32 %v5156, 1e-05
    %v5159 = vrsqrt.pop %v5157
    %v5160 = vmul.f32 %v5159, %v5157
    %v5161 = vmul.f32 %v5160, %v5159
    %v5162 = vmul.f32 0.5, %v5161
    %v5163 = vsub.f32 1.5, %v5162
    %v5164 = vmul.f32 %v5159, %v5163
    %vm5165 = vweird.f32 %v5157
    %vm5166 = vweird.f32 %v5159
    %vm5167 = vmor %vm5165, %vm5166
    %v5168 = vsel %vm5167, %v5159, %v5164
    %v5169 = vrsqrt.pop %v5158
    %v5170 = vmul.f32 %v5169, %v5158
    %v5171 = vmul.f32 %v5170, %v5169
    %v5172 = vmul.f32 0.5, %v5171
    %v5173 = vsub.f32 1.5, %v5172
    %v5174 = vmul.f32 %v5169, %v5173
    %vm5175 = vweird.f32 %v5158
    %vm5176 = vweird.f32 %v5169
    %vm5177 = vmor %vm5175, %vm5176
    %v5178 = vsel %vm5177, %v5169, %v5174
    %v5179 = vmul.f32 %v5129, %v5168
    %v5180 = vmul.f32 %v5130, %v5168
    %v5181 = vmul.f32 %v5131, %v5168
    %v5182 = vmul.f32 %v5132, %v5168
    %v5183 = vmul.f32 %v5133, %v5178
    %v5184 = vmul.f32 %v5134, %v5178
    %v5185 = vmul.f32 %v5135, %v5178
    %v5186 = vmul.f32 %v5136, %v5178
    %v5187 = vpack.c.bf16 %v5183, %v5179
    %v5188 = vpack.c.bf16 %v5184, %v5180
    %v5189 = vpack.c.bf16 %v5185, %v5181
    %v5190 = vpack.c.bf16 %v5186, %v5182
    %v5191 = vld [vmem:[#allocation10] sm:$0xff]
    %v5192 = vld [vmem:[#allocation10 + $0x8] sm:$0xff]
    %v5193 = vld [vmem:[#allocation10 + $0x10] sm:$0xff]
    %v5194 = vld [vmem:[#allocation10 + $0x18] sm:$0xff]
    %v5195 = vld [vmem:[#allocation10 + $0x20] sm:$0xff]
    %v5196 = vld [vmem:[#allocation10 + $0x28] sm:$0xff]
    %v5197 = vld [vmem:[#allocation10 + $0x30] sm:$0xff]
    %v5198 = vld [vmem:[#allocation10 + $0x38] sm:$0xff]
    %v5199 = vld [vmem:[#allocation10 + $0x40] sm:$0xff]
    %v5200 = vld [vmem:[#allocation10 + $0x48] sm:$0xff]
    %v5201 = vld [vmem:[#allocation10 + $0x50] sm:$0xff]
    %v5202 = vld [vmem:[#allocation10 + $0x58] sm:$0xff]
    %v5203 = vld [vmem:[#allocation10 + $0x60] sm:$0xff]
    %v5204 = vld [vmem:[#allocation10 + $0x68] sm:$0xff]
    %v5205 = vld [vmem:[#allocation10 + $0x70] sm:$0xff]
    %v5206 = vld [vmem:[#allocation10 + $0x78] sm:$0xff]
    %v5207 = vld [vmem:[#allocation10 + $0x80] sm:$0xff]
    %v5208 = vld [vmem:[#allocation10 + $0x88] sm:$0xff]
    %v5209 = vld [vmem:[#allocation10 + $0x90] sm:$0xff]
    %v5210 = vld [vmem:[#allocation10 + $0x98] sm:$0xff]
    %v5211 = vld [vmem:[#allocation10 + $0xa0] sm:$0xff]
    %v5212 = vld [vmem:[#allocation10 + $0xa8] sm:$0xff]
    %v5213 = vld [vmem:[#allocation10 + $0xb0] sm:$0xff]
    %v5214 = vld [vmem:[#allocation10 + $0xb8] sm:$0xff]
    %v5215 = vld [vmem:[#allocation10 + $0xc0] sm:$0xff]
    %v5216 = vld [vmem:[#allocation10 + $0xc8] sm:$0xff]
    %v5217 = vld [vmem:[#allocation10 + $0xd0] sm:$0xff]
    %v5218 = vld [vmem:[#allocation10 + $0xd8] sm:$0xff]
    %v5219 = vld [vmem:[#allocation10 + $0xe0] sm:$0xff]
    %v5220 = vld [vmem:[#allocation10 + $0xe8] sm:$0xff]
    %v5221 = vld [vmem:[#allocation10 + $0xf0] sm:$0xff]
    %v5222 = vld [vmem:[#allocation10 + $0xf8] sm:$0xff]
    %v5223 = vld [vmem:[#allocation10 + $0x100] sm:$0xff]
    %v5224 = vld [vmem:[#allocation10 + $0x108] sm:$0xff]
    %v5225 = vld [vmem:[#allocation10 + $0x110] sm:$0xff]
    %v5226 = vld [vmem:[#allocation10 + $0x118] sm:$0xff]
    %v5227 = vld [vmem:[#allocation10 + $0x120] sm:$0xff]
    %v5228 = vld [vmem:[#allocation10 + $0x128] sm:$0xff]
    %v5229 = vld [vmem:[#allocation10 + $0x130] sm:$0xff]
    %v5230 = vld [vmem:[#allocation10 + $0x138] sm:$0xff]
    %v5231 = vld [vmem:[#allocation10 + $0x140] sm:$0xff]
    %v5232 = vld [vmem:[#allocation10 + $0x148] sm:$0xff]
    %v5233 = vld [vmem:[#allocation10 + $0x150] sm:$0xff]
    %v5234 = vld [vmem:[#allocation10 + $0x158] sm:$0xff]
    %v5235 = vld [vmem:[#allocation10 + $0x160] sm:$0xff]
    %v5236 = vld [vmem:[#allocation10 + $0x168] sm:$0xff]
    %v5237 = vld [vmem:[#allocation10 + $0x170] sm:$0xff]
    %v5238 = vld [vmem:[#allocation10 + $0x178] sm:$0xff]
    %v5239 = vld [vmem:[#allocation10 + $0x180] sm:$0xff]
    %v5240 = vld [vmem:[#allocation10 + $0x188] sm:$0xff]
    %v5241 = vld [vmem:[#allocation10 + $0x190] sm:$0xff]
    %v5242 = vld [vmem:[#allocation10 + $0x198] sm:$0xff]
    %v5243 = vld [vmem:[#allocation10 + $0x1a0] sm:$0xff]
    %v5244 = vld [vmem:[#allocation10 + $0x1a8] sm:$0xff]
    %v5245 = vld [vmem:[#allocation10 + $0x1b0] sm:$0xff]
    %v5246 = vld [vmem:[#allocation10 + $0x1b8] sm:$0xff]
    %v5247 = vld [vmem:[#allocation10 + $0x1c0] sm:$0xff]
    %v5248 = vld [vmem:[#allocation10 + $0x1c8] sm:$0xff]
    %v5249 = vld [vmem:[#allocation10 + $0x1d0] sm:$0xff]
    %v5250 = vld [vmem:[#allocation10 + $0x1d8] sm:$0xff]
    %v5251 = vld [vmem:[#allocation10 + $0x1e0] sm:$0xff]
    %v5252 = vld [vmem:[#allocation10 + $0x1e8] sm:$0xff]
    %v5253 = vld [vmem:[#allocation10 + $0x1f0] sm:$0xff]
    %v5254 = vld [vmem:[#allocation10 + $0x1f8] sm:$0xff]
    %v5255 = vld [vmem:[#allocation10 + $0x200] sm:$0xff]
    %v5256 = vld [vmem:[#allocation10 + $0x208] sm:$0xff]
    %v5257 = vld [vmem:[#allocation10 + $0x210] sm:$0xff]
    %v5258 = vld [vmem:[#allocation10 + $0x218] sm:$0xff]
    %v5259 = vld [vmem:[#allocation10 + $0x220] sm:$0xff]
    %v5260 = vld [vmem:[#allocation10 + $0x228] sm:$0xff]
    %v5261 = vld [vmem:[#allocation10 + $0x230] sm:$0xff]
    %v5262 = vld [vmem:[#allocation10 + $0x238] sm:$0xff]
    %v5263 = vld [vmem:[#allocation10 + $0x240] sm:$0xff]
    %v5264 = vld [vmem:[#allocation10 + $0x248] sm:$0xff]
    %v5265 = vld [vmem:[#allocation10 + $0x250] sm:$0xff]
    %v5266 = vld [vmem:[#allocation10 + $0x258] sm:$0xff]
    %v5267 = vld [vmem:[#allocation10 + $0x260] sm:$0xff]
    %v5268 = vld [vmem:[#allocation10 + $0x268] sm:$0xff]
    %v5269 = vld [vmem:[#allocation10 + $0x270] sm:$0xff]
    %v5270 = vld [vmem:[#allocation10 + $0x278] sm:$0xff]
    %v5271 = vld [vmem:[#allocation10 + $0x280] sm:$0xff]
    %v5272 = vld [vmem:[#allocation10 + $0x288] sm:$0xff]
    %v5273 = vld [vmem:[#allocation10 + $0x290] sm:$0xff]
    %v5274 = vld [vmem:[#allocation10 + $0x298] sm:$0xff]
    %v5275 = vld [vmem:[#allocation10 + $0x2a0] sm:$0xff]
    %v5276 = vld [vmem:[#allocation10 + $0x2a8] sm:$0xff]
    %v5277 = vld [vmem:[#allocation10 + $0x2b0] sm:$0xff]
    %v5278 = vld [vmem:[#allocation10 + $0x2b8] sm:$0xff]
    %v5279 = vld [vmem:[#allocation10 + $0x2c0] sm:$0xff]
    %v5280 = vld [vmem:[#allocation10 + $0x2c8] sm:$0xff]
    %v5281 = vld [vmem:[#allocation10 + $0x2d0] sm:$0xff]
    %v5282 = vld [vmem:[#allocation10 + $0x2d8] sm:$0xff]
    %v5283 = vld [vmem:[#allocation10 + $0x2e0] sm:$0xff]
    %v5284 = vld [vmem:[#allocation10 + $0x2e8] sm:$0xff]
    %v5285 = vld [vmem:[#allocation10 + $0x2f0] sm:$0xff]
    %v5286 = vld [vmem:[#allocation10 + $0x2f8] sm:$0xff]
    %v5287 = vld [vmem:[#allocation10 + $0x300] sm:$0xff]
    %v5288 = vld [vmem:[#allocation10 + $0x308] sm:$0xff]
    %v5289 = vld [vmem:[#allocation10 + $0x310] sm:$0xff]
    %v5290 = vld [vmem:[#allocation10 + $0x318] sm:$0xff]
    %v5291 = vld [vmem:[#allocation10 + $0x320] sm:$0xff]
    %v5292 = vld [vmem:[#allocation10 + $0x328] sm:$0xff]
    %v5293 = vld [vmem:[#allocation10 + $0x330] sm:$0xff]
    %v5294 = vld [vmem:[#allocation10 + $0x338] sm:$0xff]
    %v5295 = vld [vmem:[#allocation10 + $0x340] sm:$0xff]
    %v5296 = vld [vmem:[#allocation10 + $0x348] sm:$0xff]
    %v5297 = vld [vmem:[#allocation10 + $0x350] sm:$0xff]
    %v5298 = vld [vmem:[#allocation10 + $0x358] sm:$0xff]
    %v5299 = vld [vmem:[#allocation10 + $0x360] sm:$0xff]
    %v5300 = vld [vmem:[#allocation10 + $0x368] sm:$0xff]
    %v5301 = vld [vmem:[#allocation10 + $0x370] sm:$0xff]
    %v5302 = vld [vmem:[#allocation10 + $0x378] sm:$0xff]
    %v5303 = vld [vmem:[#allocation10 + $0x380] sm:$0xff]
    %v5304 = vld [vmem:[#allocation10 + $0x388] sm:$0xff]
    %v5305 = vld [vmem:[#allocation10 + $0x390] sm:$0xff]
    %v5306 = vld [vmem:[#allocation10 + $0x398] sm:$0xff]
    %v5307 = vld [vmem:[#allocation10 + $0x3a0] sm:$0xff]
    %v5308 = vld [vmem:[#allocation10 + $0x3a8] sm:$0xff]
    %v5309 = vld [vmem:[#allocation10 + $0x3b0] sm:$0xff]
    %v5310 = vld [vmem:[#allocation10 + $0x3b8] sm:$0xff]
    %v5311 = vld [vmem:[#allocation10 + $0x3c0] sm:$0xff]
    %v5312 = vld [vmem:[#allocation10 + $0x3c8] sm:$0xff]
    %v5313 = vld [vmem:[#allocation10 + $0x3d0] sm:$0xff]
    %v5314 = vld [vmem:[#allocation10 + $0x3d8] sm:$0xff]
    %v5315 = vld [vmem:[#allocation10 + $0x3e0] sm:$0xff]
    %v5316 = vld [vmem:[#allocation10 + $0x3e8] sm:$0xff]
    %v5317 = vld [vmem:[#allocation10 + $0x3f0] sm:$0xff]
    %v5318 = vld [vmem:[#allocation10 + $0x3f8] sm:$0xff]
    %v5319 = vld [vmem:[#allocation10 + $0x400] sm:$0xff]
    %v5320 = vld [vmem:[#allocation10 + $0x408] sm:$0xff]
    %v5321 = vld [vmem:[#allocation10 + $0x410] sm:$0xff]
    %v5322 = vld [vmem:[#allocation10 + $0x418] sm:$0xff]
    %v5323 = vld [vmem:[#allocation10 + $0x420] sm:$0xff]
    %v5324 = vld [vmem:[#allocation10 + $0x428] sm:$0xff]
    %v5325 = vld [vmem:[#allocation10 + $0x430] sm:$0xff]
    %v5326 = vld [vmem:[#allocation10 + $0x438] sm:$0xff]
    %v5327 = vld [vmem:[#allocation10 + $0x440] sm:$0xff]
    %v5328 = vld [vmem:[#allocation10 + $0x448] sm:$0xff]
    %v5329 = vld [vmem:[#allocation10 + $0x450] sm:$0xff]
    %v5330 = vld [vmem:[#allocation10 + $0x458] sm:$0xff]
    %v5331 = vld [vmem:[#allocation10 + $0x460] sm:$0xff]
    %v5332 = vld [vmem:[#allocation10 + $0x468] sm:$0xff]
    %v5333 = vld [vmem:[#allocation10 + $0x470] sm:$0xff]
    %v5334 = vld [vmem:[#allocation10 + $0x478] sm:$0xff]
    %v5335 = vld [vmem:[#allocation10 + $0x480] sm:$0xff]
    %v5336 = vld [vmem:[#allocation10 + $0x488] sm:$0xff]
    %v5337 = vld [vmem:[#allocation10 + $0x490] sm:$0xff]
    %v5338 = vld [vmem:[#allocation10 + $0x498] sm:$0xff]
    %v5339 = vld [vmem:[#allocation10 + $0x4a0] sm:$0xff]
    %v5340 = vld [vmem:[#allocation10 + $0x4a8] sm:$0xff]
    %v5341 = vld [vmem:[#allocation10 + $0x4b0] sm:$0xff]
    %v5342 = vld [vmem:[#allocation10 + $0x4b8] sm:$0xff]
    %v5343 = vld [vmem:[#allocation10 + $0x4c0] sm:$0xff]
    %v5344 = vld [vmem:[#allocation10 + $0x4c8] sm:$0xff]
    %v5345 = vld [vmem:[#allocation10 + $0x4d0] sm:$0xff]
    %v5346 = vld [vmem:[#allocation10 + $0x4d8] sm:$0xff]
    %v5347 = vld [vmem:[#allocation10 + $0x4e0] sm:$0xff]
    %v5348 = vld [vmem:[#allocation10 + $0x4e8] sm:$0xff]
    %v5349 = vld [vmem:[#allocation10 + $0x4f0] sm:$0xff]
    %v5350 = vld [vmem:[#allocation10 + $0x4f8] sm:$0xff]
    %v5351 = vld [vmem:[#allocation10 + $0x500] sm:$0xff]
    %v5352 = vld [vmem:[#allocation10 + $0x508] sm:$0xff]
    %v5353 = vld [vmem:[#allocation10 + $0x510] sm:$0xff]
    %v5354 = vld [vmem:[#allocation10 + $0x518] sm:$0xff]
    %v5355 = vld [vmem:[#allocation10 + $0x520] sm:$0xff]
    %v5356 = vld [vmem:[#allocation10 + $0x528] sm:$0xff]
    %v5357 = vld [vmem:[#allocation10 + $0x530] sm:$0xff]
    %v5358 = vld [vmem:[#allocation10 + $0x538] sm:$0xff]
    %v5359 = vld [vmem:[#allocation10 + $0x540] sm:$0xff]
    %v5360 = vld [vmem:[#allocation10 + $0x548] sm:$0xff]
    %v5361 = vld [vmem:[#allocation10 + $0x550] sm:$0xff]
    %v5362 = vld [vmem:[#allocation10 + $0x558] sm:$0xff]
    %v5363 = vld [vmem:[#allocation10 + $0x560] sm:$0xff]
    %v5364 = vld [vmem:[#allocation10 + $0x568] sm:$0xff]
    %v5365 = vld [vmem:[#allocation10 + $0x570] sm:$0xff]
    %v5366 = vld [vmem:[#allocation10 + $0x578] sm:$0xff]
    %v5367 = vld [vmem:[#allocation10 + $0x580] sm:$0xff]
    %v5368 = vld [vmem:[#allocation10 + $0x588] sm:$0xff]
    %v5369 = vld [vmem:[#allocation10 + $0x590] sm:$0xff]
    %v5370 = vld [vmem:[#allocation10 + $0x598] sm:$0xff]
    %v5371 = vld [vmem:[#allocation10 + $0x5a0] sm:$0xff]
    %v5372 = vld [vmem:[#allocation10 + $0x5a8] sm:$0xff]
    %v5373 = vld [vmem:[#allocation10 + $0x5b0] sm:$0xff]
    %v5374 = vld [vmem:[#allocation10 + $0x5b8] sm:$0xff]
    %v5375 = vld [vmem:[#allocation10 + $0x5c0] sm:$0xff]
    %v5376 = vld [vmem:[#allocation10 + $0x5c8] sm:$0xff]
    %v5377 = vld [vmem:[#allocation10 + $0x5d0] sm:$0xff]
    %v5378 = vld [vmem:[#allocation10 + $0x5d8] sm:$0xff]
    %v5379 = vld [vmem:[#allocation10 + $0x5e0] sm:$0xff]
    %v5380 = vld [vmem:[#allocation10 + $0x5e8] sm:$0xff]
    %v5381 = vld [vmem:[#allocation10 + $0x5f0] sm:$0xff]
    %v5382 = vld [vmem:[#allocation10 + $0x5f8] sm:$0xff]
    %v5383 = vld [vmem:[#allocation10 + $0x600] sm:$0xff]
    %v5384 = vld [vmem:[#allocation10 + $0x608] sm:$0xff]
    %v5385 = vld [vmem:[#allocation10 + $0x610] sm:$0xff]
    %v5386 = vld [vmem:[#allocation10 + $0x618] sm:$0xff]
    %v5387 = vld [vmem:[#allocation10 + $0x620] sm:$0xff]
    %v5388 = vld [vmem:[#allocation10 + $0x628] sm:$0xff]
    %v5389 = vld [vmem:[#allocation10 + $0x630] sm:$0xff]
    %v5390 = vld [vmem:[#allocation10 + $0x638] sm:$0xff]
    %v5391 = vld [vmem:[#allocation10 + $0x640] sm:$0xff]
    %v5392 = vld [vmem:[#allocation10 + $0x648] sm:$0xff]
    %v5393 = vld [vmem:[#allocation10 + $0x650] sm:$0xff]
    %v5394 = vld [vmem:[#allocation10 + $0x658] sm:$0xff]
    %v5395 = vld [vmem:[#allocation10 + $0x660] sm:$0xff]
    %v5396 = vld [vmem:[#allocation10 + $0x668] sm:$0xff]
    %v5397 = vld [vmem:[#allocation10 + $0x670] sm:$0xff]
    %v5398 = vld [vmem:[#allocation10 + $0x678] sm:$0xff]
    %v5399 = vld [vmem:[#allocation10 + $0x680] sm:$0xff]
    %v5400 = vld [vmem:[#allocation10 + $0x688] sm:$0xff]
    %v5401 = vld [vmem:[#allocation10 + $0x690] sm:$0xff]
    %v5402 = vld [vmem:[#allocation10 + $0x698] sm:$0xff]
    %v5403 = vld [vmem:[#allocation10 + $0x6a0] sm:$0xff]
    %v5404 = vld [vmem:[#allocation10 + $0x6a8] sm:$0xff]
    %v5405 = vld [vmem:[#allocation10 + $0x6b0] sm:$0xff]
    %v5406 = vld [vmem:[#allocation10 + $0x6b8] sm:$0xff]
    %v5407 = vld [vmem:[#allocation10 + $0x6c0] sm:$0xff]
    %v5408 = vld [vmem:[#allocation10 + $0x6c8] sm:$0xff]
    %v5409 = vld [vmem:[#allocation10 + $0x6d0] sm:$0xff]
    %v5410 = vld [vmem:[#allocation10 + $0x6d8] sm:$0xff]
    %v5411 = vld [vmem:[#allocation10 + $0x6e0] sm:$0xff]
    %v5412 = vld [vmem:[#allocation10 + $0x6e8] sm:$0xff]
    %v5413 = vld [vmem:[#allocation10 + $0x6f0] sm:$0xff]
    %v5414 = vld [vmem:[#allocation10 + $0x6f8] sm:$0xff]
    %v5415 = vld [vmem:[#allocation10 + $0x700] sm:$0xff]
    %v5416 = vld [vmem:[#allocation10 + $0x708] sm:$0xff]
    %v5417 = vld [vmem:[#allocation10 + $0x710] sm:$0xff]
    %v5418 = vld [vmem:[#allocation10 + $0x718] sm:$0xff]
    %v5419 = vld [vmem:[#allocation10 + $0x720] sm:$0xff]
    %v5420 = vld [vmem:[#allocation10 + $0x728] sm:$0xff]
    %v5421 = vld [vmem:[#allocation10 + $0x730] sm:$0xff]
    %v5422 = vld [vmem:[#allocation10 + $0x738] sm:$0xff]
    %v5423 = vld [vmem:[#allocation10 + $0x740] sm:$0xff]
    %v5424 = vld [vmem:[#allocation10 + $0x748] sm:$0xff]
    %v5425 = vld [vmem:[#allocation10 + $0x750] sm:$0xff]
    %v5426 = vld [vmem:[#allocation10 + $0x758] sm:$0xff]
    %v5427 = vld [vmem:[#allocation10 + $0x760] sm:$0xff]
    %v5428 = vld [vmem:[#allocation10 + $0x768] sm:$0xff]
    %v5429 = vld [vmem:[#allocation10 + $0x770] sm:$0xff]
    %v5430 = vld [vmem:[#allocation10 + $0x778] sm:$0xff]
    %v5431 = vld [vmem:[#allocation10 + $0x780] sm:$0xff]
    %v5432 = vld [vmem:[#allocation10 + $0x788] sm:$0xff]
    %v5433 = vld [vmem:[#allocation10 + $0x790] sm:$0xff]
    %v5434 = vld [vmem:[#allocation10 + $0x798] sm:$0xff]
    %v5435 = vld [vmem:[#allocation10 + $0x7a0] sm:$0xff]
    %v5436 = vld [vmem:[#allocation10 + $0x7a8] sm:$0xff]
    %v5437 = vld [vmem:[#allocation10 + $0x7b0] sm:$0xff]
    %v5438 = vld [vmem:[#allocation10 + $0x7b8] sm:$0xff]
    %v5439 = vld [vmem:[#allocation10 + $0x7c0] sm:$0xff]
    %v5440 = vld [vmem:[#allocation10 + $0x7c8] sm:$0xff]
    %v5441 = vld [vmem:[#allocation10 + $0x7d0] sm:$0xff]
    %v5442 = vld [vmem:[#allocation10 + $0x7d8] sm:$0xff]
    %v5443 = vld [vmem:[#allocation10 + $0x7e0] sm:$0xff]
    %v5444 = vld [vmem:[#allocation10 + $0x7e8] sm:$0xff]
    %v5445 = vld [vmem:[#allocation10 + $0x7f0] sm:$0xff]
    %v5446 = vld [vmem:[#allocation10 + $0x7f8] sm:$0xff]
    %v5447 = vld [vmem:[#allocation10 + $0x800] sm:$0xff]
    %v5448 = vld [vmem:[#allocation10 + $0x808] sm:$0xff]
    %v5449 = vld [vmem:[#allocation10 + $0x810] sm:$0xff]
    %v5450 = vld [vmem:[#allocation10 + $0x818] sm:$0xff]
    %v5451 = vld [vmem:[#allocation10 + $0x820] sm:$0xff]
    %v5452 = vld [vmem:[#allocation10 + $0x828] sm:$0xff]
    %v5453 = vld [vmem:[#allocation10 + $0x830] sm:$0xff]
    %v5454 = vld [vmem:[#allocation10 + $0x838] sm:$0xff]
    %v5455 = vld [vmem:[#allocation10 + $0x840] sm:$0xff]
    %v5456 = vld [vmem:[#allocation10 + $0x848] sm:$0xff]
    %v5457 = vld [vmem:[#allocation10 + $0x850] sm:$0xff]
    %v5458 = vld [vmem:[#allocation10 + $0x858] sm:$0xff]
    %v5459 = vld [vmem:[#allocation10 + $0x860] sm:$0xff]
    %v5460 = vld [vmem:[#allocation10 + $0x868] sm:$0xff]
    %v5461 = vld [vmem:[#allocation10 + $0x870] sm:$0xff]
    %v5462 = vld [vmem:[#allocation10 + $0x878] sm:$0xff]
    %v5463 = vld [vmem:[#allocation10 + $0x880] sm:$0xff]
    %v5464 = vld [vmem:[#allocation10 + $0x888] sm:$0xff]
    %v5465 = vld [vmem:[#allocation10 + $0x890] sm:$0xff]
    %v5466 = vld [vmem:[#allocation10 + $0x898] sm:$0xff]
    %v5467 = vld [vmem:[#allocation10 + $0x8a0] sm:$0xff]
    %v5468 = vld [vmem:[#allocation10 + $0x8a8] sm:$0xff]
    %v5469 = vld [vmem:[#allocation10 + $0x8b0] sm:$0xff]
    %v5470 = vld [vmem:[#allocation10 + $0x8b8] sm:$0xff]
    %v5471 = vld [vmem:[#allocation10 + $0x8c0] sm:$0xff]
    %v5472 = vld [vmem:[#allocation10 + $0x8c8] sm:$0xff]
    %v5473 = vld [vmem:[#allocation10 + $0x8d0] sm:$0xff]
    %v5474 = vld [vmem:[#allocation10 + $0x8d8] sm:$0xff]
    %v5475 = vld [vmem:[#allocation10 + $0x8e0] sm:$0xff]
    %v5476 = vld [vmem:[#allocation10 + $0x8e8] sm:$0xff]
    %v5477 = vld [vmem:[#allocation10 + $0x8f0] sm:$0xff]
    %v5478 = vld [vmem:[#allocation10 + $0x8f8] sm:$0xff]
    %v5479 = vld [vmem:[#allocation10 + $0x900] sm:$0xff]
    %v5480 = vld [vmem:[#allocation10 + $0x908] sm:$0xff]
    %v5481 = vld [vmem:[#allocation10 + $0x910] sm:$0xff]
    %v5482 = vld [vmem:[#allocation10 + $0x918] sm:$0xff]
    %v5483 = vld [vmem:[#allocation10 + $0x920] sm:$0xff]
    %v5484 = vld [vmem:[#allocation10 + $0x928] sm:$0xff]
    %v5485 = vld [vmem:[#allocation10 + $0x930] sm:$0xff]
    %v5486 = vld [vmem:[#allocation10 + $0x938] sm:$0xff]
    %v5487 = vld [vmem:[#allocation10 + $0x940] sm:$0xff]
    %v5488 = vld [vmem:[#allocation10 + $0x948] sm:$0xff]
    %v5489 = vld [vmem:[#allocation10 + $0x950] sm:$0xff]
    %v5490 = vld [vmem:[#allocation10 + $0x958] sm:$0xff]
    %v5491 = vld [vmem:[#allocation10 + $0x960] sm:$0xff]
    %v5492 = vld [vmem:[#allocation10 + $0x968] sm:$0xff]
    %v5493 = vld [vmem:[#allocation10 + $0x970] sm:$0xff]
    %v5494 = vld [vmem:[#allocation10 + $0x978] sm:$0xff]
    %v5495 = vld [vmem:[#allocation10 + $0x980] sm:$0xff]
    %v5496 = vld [vmem:[#allocation10 + $0x988] sm:$0xff]
    %v5497 = vld [vmem:[#allocation10 + $0x990] sm:$0xff]
    %v5498 = vld [vmem:[#allocation10 + $0x998] sm:$0xff]
    %v5499 = vld [vmem:[#allocation10 + $0x9a0] sm:$0xff]
    %v5500 = vld [vmem:[#allocation10 + $0x9a8] sm:$0xff]
    %v5501 = vld [vmem:[#allocation10 + $0x9b0] sm:$0xff]
    %v5502 = vld [vmem:[#allocation10 + $0x9b8] sm:$0xff]
    %v5503 = vld [vmem:[#allocation10 + $0x9c0] sm:$0xff]
    %v5504 = vld [vmem:[#allocation10 + $0x9c8] sm:$0xff]
    %v5505 = vld [vmem:[#allocation10 + $0x9d0] sm:$0xff]
    %v5506 = vld [vmem:[#allocation10 + $0x9d8] sm:$0xff]
    %v5507 = vld [vmem:[#allocation10 + $0x9e0] sm:$0xff]
    %v5508 = vld [vmem:[#allocation10 + $0x9e8] sm:$0xff]
    %v5509 = vld [vmem:[#allocation10 + $0x9f0] sm:$0xff]
    %v5510 = vld [vmem:[#allocation10 + $0x9f8] sm:$0xff]
    %v5511 = vld [vmem:[#allocation10 + $0xa00] sm:$0xff]
    %v5512 = vld [vmem:[#allocation10 + $0xa08] sm:$0xff]
    %v5513 = vld [vmem:[#allocation10 + $0xa10] sm:$0xff]
    %v5514 = vld [vmem:[#allocation10 + $0xa18] sm:$0xff]
    %v5515 = vld [vmem:[#allocation10 + $0xa20] sm:$0xff]
    %v5516 = vld [vmem:[#allocation10 + $0xa28] sm:$0xff]
    %v5517 = vld [vmem:[#allocation10 + $0xa30] sm:$0xff]
    %v5518 = vld [vmem:[#allocation10 + $0xa38] sm:$0xff]
    %v5519 = vld [vmem:[#allocation10 + $0xa40] sm:$0xff]
    %v5520 = vld [vmem:[#allocation10 + $0xa48] sm:$0xff]
    %v5521 = vld [vmem:[#allocation10 + $0xa50] sm:$0xff]
    %v5522 = vld [vmem:[#allocation10 + $0xa58] sm:$0xff]
    %v5523 = vld [vmem:[#allocation10 + $0xa60] sm:$0xff]
    %v5524 = vld [vmem:[#allocation10 + $0xa68] sm:$0xff]
    %v5525 = vld [vmem:[#allocation10 + $0xa70] sm:$0xff]
    %v5526 = vld [vmem:[#allocation10 + $0xa78] sm:$0xff]
    %v5527 = vld [vmem:[#allocation10 + $0xa80] sm:$0xff]
    %v5528 = vld [vmem:[#allocation10 + $0xa88] sm:$0xff]
    %v5529 = vld [vmem:[#allocation10 + $0xa90] sm:$0xff]
    %v5530 = vld [vmem:[#allocation10 + $0xa98] sm:$0xff]
    %v5531 = vld [vmem:[#allocation10 + $0xaa0] sm:$0xff]
    %v5532 = vld [vmem:[#allocation10 + $0xaa8] sm:$0xff]
    %v5533 = vld [vmem:[#allocation10 + $0xab0] sm:$0xff]
    %v5534 = vld [vmem:[#allocation10 + $0xab8] sm:$0xff]
    %v5535 = vld [vmem:[#allocation10 + $0xac0] sm:$0xff]
    %v5536 = vld [vmem:[#allocation10 + $0xac8] sm:$0xff]
    %v5537 = vld [vmem:[#allocation10 + $0xad0] sm:$0xff]
    %v5538 = vld [vmem:[#allocation10 + $0xad8] sm:$0xff]
    %v5539 = vld [vmem:[#allocation10 + $0xae0] sm:$0xff]
    %v5540 = vld [vmem:[#allocation10 + $0xae8] sm:$0xff]
    %v5541 = vld [vmem:[#allocation10 + $0xaf0] sm:$0xff]
    %v5542 = vld [vmem:[#allocation10 + $0xaf8] sm:$0xff]
    %v5543 = vld [vmem:[#allocation10 + $0xb00] sm:$0xff]
    %v5544 = vld [vmem:[#allocation10 + $0xb08] sm:$0xff]
    %v5545 = vld [vmem:[#allocation10 + $0xb10] sm:$0xff]
    %v5546 = vld [vmem:[#allocation10 + $0xb18] sm:$0xff]
    %v5547 = vld [vmem:[#allocation10 + $0xb20] sm:$0xff]
    %v5548 = vld [vmem:[#allocation10 + $0xb28] sm:$0xff]
    %v5549 = vld [vmem:[#allocation10 + $0xb30] sm:$0xff]
    %v5550 = vld [vmem:[#allocation10 + $0xb38] sm:$0xff]
    %v5551 = vld [vmem:[#allocation10 + $0xb40] sm:$0xff]
    %v5552 = vld [vmem:[#allocation10 + $0xb48] sm:$0xff]
    %v5553 = vld [vmem:[#allocation10 + $0xb50] sm:$0xff]
    %v5554 = vld [vmem:[#allocation10 + $0xb58] sm:$0xff]
    %v5555 = vld [vmem:[#allocation10 + $0xb60] sm:$0xff]
    %v5556 = vld [vmem:[#allocation10 + $0xb68] sm:$0xff]
    %v5557 = vld [vmem:[#allocation10 + $0xb70] sm:$0xff]
    %v5558 = vld [vmem:[#allocation10 + $0xb78] sm:$0xff]
    %v5559 = vld [vmem:[#allocation10 + $0xb80] sm:$0xff]
    %v5560 = vld [vmem:[#allocation10 + $0xb88] sm:$0xff]
    %v5561 = vld [vmem:[#allocation10 + $0xb90] sm:$0xff]
    %v5562 = vld [vmem:[#allocation10 + $0xb98] sm:$0xff]
    %v5563 = vld [vmem:[#allocation10 + $0xba0] sm:$0xff]
    %v5564 = vld [vmem:[#allocation10 + $0xba8] sm:$0xff]
    %v5565 = vld [vmem:[#allocation10 + $0xbb0] sm:$0xff]
    %v5566 = vld [vmem:[#allocation10 + $0xbb8] sm:$0xff]
    %v5567 = vld [vmem:[#allocation10 + $0xbc0] sm:$0xff]
    %v5568 = vld [vmem:[#allocation10 + $0xbc8] sm:$0xff]
    %v5569 = vld [vmem:[#allocation10 + $0xbd0] sm:$0xff]
    %v5570 = vld [vmem:[#allocation10 + $0xbd8] sm:$0xff]
    %v5571 = vld [vmem:[#allocation10 + $0xbe0] sm:$0xff]
    %v5572 = vld [vmem:[#allocation10 + $0xbe8] sm:$0xff]
    %v5573 = vld [vmem:[#allocation10 + $0xbf0] sm:$0xff]
    %v5574 = vld [vmem:[#allocation10 + $0xbf8] sm:$0xff]
    %v5575 = vld [vmem:[#allocation10 + $0xc00] sm:$0xff]
    %v5576 = vld [vmem:[#allocation10 + $0xc08] sm:$0xff]
    %v5577 = vld [vmem:[#allocation10 + $0xc10] sm:$0xff]
    %v5578 = vld [vmem:[#allocation10 + $0xc18] sm:$0xff]
    %v5579 = vld [vmem:[#allocation10 + $0xc20] sm:$0xff]
    %v5580 = vld [vmem:[#allocation10 + $0xc28] sm:$0xff]
    %v5581 = vld [vmem:[#allocation10 + $0xc30] sm:$0xff]
    %v5582 = vld [vmem:[#allocation10 + $0xc38] sm:$0xff]
    %v5583 = vld [vmem:[#allocation10 + $0xc40] sm:$0xff]
    %v5584 = vld [vmem:[#allocation10 + $0xc48] sm:$0xff]
    %v5585 = vld [vmem:[#allocation10 + $0xc50] sm:$0xff]
    %v5586 = vld [vmem:[#allocation10 + $0xc58] sm:$0xff]
    %v5587 = vld [vmem:[#allocation10 + $0xc60] sm:$0xff]
    %v5588 = vld [vmem:[#allocation10 + $0xc68] sm:$0xff]
    %v5589 = vld [vmem:[#allocation10 + $0xc70] sm:$0xff]
    %v5590 = vld [vmem:[#allocation10 + $0xc78] sm:$0xff]
    %v5591 = vld [vmem:[#allocation10 + $0xc80] sm:$0xff]
    %v5592 = vld [vmem:[#allocation10 + $0xc88] sm:$0xff]
    %v5593 = vld [vmem:[#allocation10 + $0xc90] sm:$0xff]
    %v5594 = vld [vmem:[#allocation10 + $0xc98] sm:$0xff]
    %v5595 = vld [vmem:[#allocation10 + $0xca0] sm:$0xff]
    %v5596 = vld [vmem:[#allocation10 + $0xca8] sm:$0xff]
    %v5597 = vld [vmem:[#allocation10 + $0xcb0] sm:$0xff]
    %v5598 = vld [vmem:[#allocation10 + $0xcb8] sm:$0xff]
    %v5599 = vld [vmem:[#allocation10 + $0xcc0] sm:$0xff]
    %v5600 = vld [vmem:[#allocation10 + $0xcc8] sm:$0xff]
    %v5601 = vld [vmem:[#allocation10 + $0xcd0] sm:$0xff]
    %v5602 = vld [vmem:[#allocation10 + $0xcd8] sm:$0xff]
    %v5603 = vld [vmem:[#allocation10 + $0xce0] sm:$0xff]
    %v5604 = vld [vmem:[#allocation10 + $0xce8] sm:$0xff]
    %v5605 = vld [vmem:[#allocation10 + $0xcf0] sm:$0xff]
    %v5606 = vld [vmem:[#allocation10 + $0xcf8] sm:$0xff]
    %v5607 = vld [vmem:[#allocation10 + $0xd00] sm:$0xff]
    %v5608 = vld [vmem:[#allocation10 + $0xd08] sm:$0xff]
    %v5609 = vld [vmem:[#allocation10 + $0xd10] sm:$0xff]
    %v5610 = vld [vmem:[#allocation10 + $0xd18] sm:$0xff]
    %v5611 = vld [vmem:[#allocation10 + $0xd20] sm:$0xff]
    %v5612 = vld [vmem:[#allocation10 + $0xd28] sm:$0xff]
    %v5613 = vld [vmem:[#allocation10 + $0xd30] sm:$0xff]
    %v5614 = vld [vmem:[#allocation10 + $0xd38] sm:$0xff]
    %v5615 = vld [vmem:[#allocation10 + $0xd40] sm:$0xff]
    %v5616 = vld [vmem:[#allocation10 + $0xd48] sm:$0xff]
    %v5617 = vld [vmem:[#allocation10 + $0xd50] sm:$0xff]
    %v5618 = vld [vmem:[#allocation10 + $0xd58] sm:$0xff]
    %v5619 = vld [vmem:[#allocation10 + $0xd60] sm:$0xff]
    %v5620 = vld [vmem:[#allocation10 + $0xd68] sm:$0xff]
    %v5621 = vld [vmem:[#allocation10 + $0xd70] sm:$0xff]
    %v5622 = vld [vmem:[#allocation10 + $0xd78] sm:$0xff]
    %v5623 = vld [vmem:[#allocation10 + $0xd80] sm:$0xff]
    %v5624 = vld [vmem:[#allocation10 + $0xd88] sm:$0xff]
    %v5625 = vld [vmem:[#allocation10 + $0xd90] sm:$0xff]
    %v5626 = vld [vmem:[#allocation10 + $0xd98] sm:$0xff]
    %v5627 = vld [vmem:[#allocation10 + $0xda0] sm:$0xff]
    %v5628 = vld [vmem:[#allocation10 + $0xda8] sm:$0xff]
    %v5629 = vld [vmem:[#allocation10 + $0xdb0] sm:$0xff]
    %v5630 = vld [vmem:[#allocation10 + $0xdb8] sm:$0xff]
    %v5631 = vld [vmem:[#allocation10 + $0xdc0] sm:$0xff]
    %v5632 = vld [vmem:[#allocation10 + $0xdc8] sm:$0xff]
    %v5633 = vld [vmem:[#allocation10 + $0xdd0] sm:$0xff]
    %v5634 = vld [vmem:[#allocation10 + $0xdd8] sm:$0xff]
    %v5635 = vld [vmem:[#allocation10 + $0xde0] sm:$0xff]
    %v5636 = vld [vmem:[#allocation10 + $0xde8] sm:$0xff]
    %v5637 = vld [vmem:[#allocation10 + $0xdf0] sm:$0xff]
    %v5638 = vld [vmem:[#allocation10 + $0xdf8] sm:$0xff]
    %v5639 = vld [vmem:[#allocation10 + $0xe00] sm:$0xff]
    %v5640 = vld [vmem:[#allocation10 + $0xe08] sm:$0xff]
    %v5641 = vld [vmem:[#allocation10 + $0xe10] sm:$0xff]
    %v5642 = vld [vmem:[#allocation10 + $0xe18] sm:$0xff]
    %v5643 = vld [vmem:[#allocation10 + $0xe20] sm:$0xff]
    %v5644 = vld [vmem:[#allocation10 + $0xe28] sm:$0xff]
    %v5645 = vld [vmem:[#allocation10 + $0xe30] sm:$0xff]
    %v5646 = vld [vmem:[#allocation10 + $0xe38] sm:$0xff]
    %v5647 = vld [vmem:[#allocation10 + $0xe40] sm:$0xff]
    %v5648 = vld [vmem:[#allocation10 + $0xe48] sm:$0xff]
    %v5649 = vld [vmem:[#allocation10 + $0xe50] sm:$0xff]
    %v5650 = vld [vmem:[#allocation10 + $0xe58] sm:$0xff]
    %v5651 = vld [vmem:[#allocation10 + $0xe60] sm:$0xff]
    %v5652 = vld [vmem:[#allocation10 + $0xe68] sm:$0xff]
    %v5653 = vld [vmem:[#allocation10 + $0xe70] sm:$0xff]
    %v5654 = vld [vmem:[#allocation10 + $0xe78] sm:$0xff]
    %v5655 = vld [vmem:[#allocation10 + $0xe80] sm:$0xff]
    %v5656 = vld [vmem:[#allocation10 + $0xe88] sm:$0xff]
    %v5657 = vld [vmem:[#allocation10 + $0xe90] sm:$0xff]
    %v5658 = vld [vmem:[#allocation10 + $0xe98] sm:$0xff]
    %v5659 = vld [vmem:[#allocation10 + $0xea0] sm:$0xff]
    %v5660 = vld [vmem:[#allocation10 + $0xea8] sm:$0xff]
    %v5661 = vld [vmem:[#allocation10 + $0xeb0] sm:$0xff]
    %v5662 = vld [vmem:[#allocation10 + $0xeb8] sm:$0xff]
    %v5663 = vld [vmem:[#allocation10 + $0xec0] sm:$0xff]
    %v5664 = vld [vmem:[#allocation10 + $0xec8] sm:$0xff]
    %v5665 = vld [vmem:[#allocation10 + $0xed0] sm:$0xff]
    %v5666 = vld [vmem:[#allocation10 + $0xed8] sm:$0xff]
    %v5667 = vld [vmem:[#allocation10 + $0xee0] sm:$0xff]
    %v5668 = vld [vmem:[#allocation10 + $0xee8] sm:$0xff]
    %v5669 = vld [vmem:[#allocation10 + $0xef0] sm:$0xff]
    %v5670 = vld [vmem:[#allocation10 + $0xef8] sm:$0xff]
    %v5671 = vld [vmem:[#allocation10 + $0xf00] sm:$0xff]
    %v5672 = vld [vmem:[#allocation10 + $0xf08] sm:$0xff]
    %v5673 = vld [vmem:[#allocation10 + $0xf10] sm:$0xff]
    %v5674 = vld [vmem:[#allocation10 + $0xf18] sm:$0xff]
    %v5675 = vld [vmem:[#allocation10 + $0xf20] sm:$0xff]
    %v5676 = vld [vmem:[#allocation10 + $0xf28] sm:$0xff]
    %v5677 = vld [vmem:[#allocation10 + $0xf30] sm:$0xff]
    %v5678 = vld [vmem:[#allocation10 + $0xf38] sm:$0xff]
    %v5679 = vld [vmem:[#allocation10 + $0xf40] sm:$0xff]
    %v5680 = vld [vmem:[#allocation10 + $0xf48] sm:$0xff]
    %v5681 = vld [vmem:[#allocation10 + $0xf50] sm:$0xff]
    %v5682 = vld [vmem:[#allocation10 + $0xf58] sm:$0xff]
    %v5683 = vld [vmem:[#allocation10 + $0xf60] sm:$0xff]
    %v5684 = vld [vmem:[#allocation10 + $0xf68] sm:$0xff]
    %v5685 = vld [vmem:[#allocation10 + $0xf70] sm:$0xff]
    %v5686 = vld [vmem:[#allocation10 + $0xf78] sm:$0xff]
    %v5687 = vld [vmem:[#allocation10 + $0xf80] sm:$0xff]
    %v5688 = vld [vmem:[#allocation10 + $0xf88] sm:$0xff]
    %v5689 = vld [vmem:[#allocation10 + $0xf90] sm:$0xff]
    %v5690 = vld [vmem:[#allocation10 + $0xf98] sm:$0xff]
    %v5691 = vld [vmem:[#allocation10 + $0xfa0] sm:$0xff]
    %v5692 = vld [vmem:[#allocation10 + $0xfa8] sm:$0xff]
    %v5693 = vld [vmem:[#allocation10 + $0xfb0] sm:$0xff]
    %v5694 = vld [vmem:[#allocation10 + $0xfb8] sm:$0xff]
    %v5695 = vld [vmem:[#allocation10 + $0xfc0] sm:$0xff]
    %v5696 = vld [vmem:[#allocation10 + $0xfc8] sm:$0xff]
    %v5697 = vld [vmem:[#allocation10 + $0xfd0] sm:$0xff]
    %v5698 = vld [vmem:[#allocation10 + $0xfd8] sm:$0xff]
    %v5699 = vld [vmem:[#allocation10 + $0xfe0] sm:$0xff]
    %v5700 = vld [vmem:[#allocation10 + $0xfe8] sm:$0xff]
    %v5701 = vld [vmem:[#allocation10 + $0xff0] sm:$0xff]
    %v5702 = vld [vmem:[#allocation10 + $0xff8] sm:$0xff]
    %v6215 = vunpack.c.l.b16 %v5191
    %v6216 = vunpack.c.h.b16 %v5191
    %v6217 = vunpack.c.l.b16 %v5192
    %v6218 = vunpack.c.h.b16 %v5192
    %v6219 = vunpack.c.l.b16 %v5193
    %v6220 = vunpack.c.h.b16 %v5193
    %v6221 = vunpack.c.l.b16 %v5194
    %v6222 = vunpack.c.h.b16 %v5194
    %v6223 = vunpack.c.l.b16 %v5195
    %v6224 = vunpack.c.h.b16 %v5195
    %v6225 = vunpack.c.l.b16 %v5196
    %v6226 = vunpack.c.h.b16 %v5196
    %v6227 = vunpack.c.l.b16 %v5197
    %v6228 = vunpack.c.h.b16 %v5197
    %v6229 = vunpack.c.l.b16 %v5198
    %v6230 = vunpack.c.h.b16 %v5198
    %v6231 = vunpack.c.l.b16 %v5199
    %v6232 = vunpack.c.h.b16 %v5199
    %v6233 = vunpack.c.l.b16 %v5200
    %v6234 = vunpack.c.h.b16 %v5200
    %v6235 = vunpack.c.l.b16 %v5201
    %v6236 = vunpack.c.h.b16 %v5201
    %v6237 = vunpack.c.l.b16 %v5202
    %v6238 = vunpack.c.h.b16 %v5202
    %v6239 = vunpack.c.l.b16 %v5203
    %v6240 = vunpack.c.h.b16 %v5203
    %v6241 = vunpack.c.l.b16 %v5204
    %v6242 = vunpack.c.h.b16 %v5204
    %v6243 = vunpack.c.l.b16 %v5205
    %v6244 = vunpack.c.h.b16 %v5205
    %v6245 = vunpack.c.l.b16 %v5206
    %v6246 = vunpack.c.h.b16 %v5206
    %v6247 = vunpack.c.l.b16 %v5207
    %v6248 = vunpack.c.h.b16 %v5207
    %v6249 = vunpack.c.l.b16 %v5208
    %v6250 = vunpack.c.h.b16 %v5208
    %v6251 = vunpack.c.l.b16 %v5209
    %v6252 = vunpack.c.h.b16 %v5209
    %v6253 = vunpack.c.l.b16 %v5210
    %v6254 = vunpack.c.h.b16 %v5210
    %v6255 = vunpack.c.l.b16 %v5211
    %v6256 = vunpack.c.h.b16 %v5211
    %v6257 = vunpack.c.l.b16 %v5212
    %v6258 = vunpack.c.h.b16 %v5212
    %v6259 = vunpack.c.l.b16 %v5213
    %v6260 = vunpack.c.h.b16 %v5213
    %v6261 = vunpack.c.l.b16 %v5214
    %v6262 = vunpack.c.h.b16 %v5214
    %v6263 = vunpack.c.l.b16 %v5215
    %v6264 = vunpack.c.h.b16 %v5215
    %v6265 = vunpack.c.l.b16 %v5216
    %v6266 = vunpack.c.h.b16 %v5216
    %v6267 = vunpack.c.l.b16 %v5217
    %v6268 = vunpack.c.h.b16 %v5217
    %v6269 = vunpack.c.l.b16 %v5218
    %v6270 = vunpack.c.h.b16 %v5218
    %v6271 = vunpack.c.l.b16 %v5219
    %v6272 = vunpack.c.h.b16 %v5219
    %v6273 = vunpack.c.l.b16 %v5220
    %v6274 = vunpack.c.h.b16 %v5220
    %v6275 = vunpack.c.l.b16 %v5221
    %v6276 = vunpack.c.h.b16 %v5221
    %v6277 = vunpack.c.l.b16 %v5222
    %v6278 = vunpack.c.h.b16 %v5222
    %v6279 = vunpack.c.l.b16 %v5223
    %v6280 = vunpack.c.h.b16 %v5223
    %v6281 = vunpack.c.l.b16 %v5224
    %v6282 = vunpack.c.h.b16 %v5224
    %v6283 = vunpack.c.l.b16 %v5225
    %v6284 = vunpack.c.h.b16 %v5225
    %v6285 = vunpack.c.l.b16 %v5226
    %v6286 = vunpack.c.h.b16 %v5226
    %v6287 = vunpack.c.l.b16 %v5227
    %v6288 = vunpack.c.h.b16 %v5227
    %v6289 = vunpack.c.l.b16 %v5228
    %v6290 = vunpack.c.h.b16 %v5228
    %v6291 = vunpack.c.l.b16 %v5229
    %v6292 = vunpack.c.h.b16 %v5229
    %v6293 = vunpack.c.l.b16 %v5230
    %v6294 = vunpack.c.h.b16 %v5230
    %v6295 = vunpack.c.l.b16 %v5231
    %v6296 = vunpack.c.h.b16 %v5231
    %v6297 = vunpack.c.l.b16 %v5232
    %v6298 = vunpack.c.h.b16 %v5232
    %v6299 = vunpack.c.l.b16 %v5233
    %v6300 = vunpack.c.h.b16 %v5233
    %v6301 = vunpack.c.l.b16 %v5234
    %v6302 = vunpack.c.h.b16 %v5234
    %v6303 = vunpack.c.l.b16 %v5235
    %v6304 = vunpack.c.h.b16 %v5235
    %v6305 = vunpack.c.l.b16 %v5236
    %v6306 = vunpack.c.h.b16 %v5236
    %v6307 = vunpack.c.l.b16 %v5237
    %v6308 = vunpack.c.h.b16 %v5237
    %v6309 = vunpack.c.l.b16 %v5238
    %v6310 = vunpack.c.h.b16 %v5238
    %v6311 = vunpack.c.l.b16 %v5239
    %v6312 = vunpack.c.h.b16 %v5239
    %v6313 = vunpack.c.l.b16 %v5240
    %v6314 = vunpack.c.h.b16 %v5240
    %v6315 = vunpack.c.l.b16 %v5241
    %v6316 = vunpack.c.h.b16 %v5241
    %v6317 = vunpack.c.l.b16 %v5242
    %v6318 = vunpack.c.h.b16 %v5242
    %v6319 = vunpack.c.l.b16 %v5243
    %v6320 = vunpack.c.h.b16 %v5243
    %v6321 = vunpack.c.l.b16 %v5244
    %v6322 = vunpack.c.h.b16 %v5244
    %v6323 = vunpack.c.l.b16 %v5245
    %v6324 = vunpack.c.h.b16 %v5245
    %v6325 = vunpack.c.l.b16 %v5246
    %v6326 = vunpack.c.h.b16 %v5246
    %v6327 = vunpack.c.l.b16 %v5247
    %v6328 = vunpack.c.h.b16 %v5247
    %v6329 = vunpack.c.l.b16 %v5248
    %v6330 = vunpack.c.h.b16 %v5248
    %v6331 = vunpack.c.l.b16 %v5249
    %v6332 = vunpack.c.h.b16 %v5249
    %v6333 = vunpack.c.l.b16 %v5250
    %v6334 = vunpack.c.h.b16 %v5250
    %v6335 = vunpack.c.l.b16 %v5251
    %v6336 = vunpack.c.h.b16 %v5251
    %v6337 = vunpack.c.l.b16 %v5252
    %v6338 = vunpack.c.h.b16 %v5252
    %v6339 = vunpack.c.l.b16 %v5253
    %v6340 = vunpack.c.h.b16 %v5253
    %v6341 = vunpack.c.l.b16 %v5254
    %v6342 = vunpack.c.h.b16 %v5254
    %v6343 = vunpack.c.l.b16 %v5255
    %v6344 = vunpack.c.h.b16 %v5255
    %v6345 = vunpack.c.l.b16 %v5256
    %v6346 = vunpack.c.h.b16 %v5256
    %v6347 = vunpack.c.l.b16 %v5257
    %v6348 = vunpack.c.h.b16 %v5257
    %v6349 = vunpack.c.l.b16 %v5258
    %v6350 = vunpack.c.h.b16 %v5258
    %v6351 = vunpack.c.l.b16 %v5259
    %v6352 = vunpack.c.h.b16 %v5259
    %v6353 = vunpack.c.l.b16 %v5260
    %v6354 = vunpack.c.h.b16 %v5260
    %v6355 = vunpack.c.l.b16 %v5261
    %v6356 = vunpack.c.h.b16 %v5261
    %v6357 = vunpack.c.l.b16 %v5262
    %v6358 = vunpack.c.h.b16 %v5262
    %v6359 = vunpack.c.l.b16 %v5263
    %v6360 = vunpack.c.h.b16 %v5263
    %v6361 = vunpack.c.l.b16 %v5264
    %v6362 = vunpack.c.h.b16 %v5264
    %v6363 = vunpack.c.l.b16 %v5265
    %v6364 = vunpack.c.h.b16 %v5265
    %v6365 = vunpack.c.l.b16 %v5266
    %v6366 = vunpack.c.h.b16 %v5266
    %v6367 = vunpack.c.l.b16 %v5267
    %v6368 = vunpack.c.h.b16 %v5267
    %v6369 = vunpack.c.l.b16 %v5268
    %v6370 = vunpack.c.h.b16 %v5268
    %v6371 = vunpack.c.l.b16 %v5269
    %v6372 = vunpack.c.h.b16 %v5269
    %v6373 = vunpack.c.l.b16 %v5270
    %v6374 = vunpack.c.h.b16 %v5270
    %v6375 = vunpack.c.l.b16 %v5271
    %v6376 = vunpack.c.h.b16 %v5271
    %v6377 = vunpack.c.l.b16 %v5272
    %v6378 = vunpack.c.h.b16 %v5272
    %v6379 = vunpack.c.l.b16 %v5273
    %v6380 = vunpack.c.h.b16 %v5273
    %v6381 = vunpack.c.l.b16 %v5274
    %v6382 = vunpack.c.h.b16 %v5274
    %v6383 = vunpack.c.l.b16 %v5275
    %v6384 = vunpack.c.h.b16 %v5275
    %v6385 = vunpack.c.l.b16 %v5276
    %v6386 = vunpack.c.h.b16 %v5276
    %v6387 = vunpack.c.l.b16 %v5277
    %v6388 = vunpack.c.h.b16 %v5277
    %v6389 = vunpack.c.l.b16 %v5278
    %v6390 = vunpack.c.h.b16 %v5278
    %v6391 = vunpack.c.l.b16 %v5279
    %v6392 = vunpack.c.h.b16 %v5279
    %v6393 = vunpack.c.l.b16 %v5280
    %v6394 = vunpack.c.h.b16 %v5280
    %v6395 = vunpack.c.l.b16 %v5281
    %v6396 = vunpack.c.h.b16 %v5281
    %v6397 = vunpack.c.l.b16 %v5282
    %v6398 = vunpack.c.h.b16 %v5282
    %v6399 = vunpack.c.l.b16 %v5283
    %v6400 = vunpack.c.h.b16 %v5283
    %v6401 = vunpack.c.l.b16 %v5284
    %v6402 = vunpack.c.h.b16 %v5284
    %v6403 = vunpack.c.l.b16 %v5285
    %v6404 = vunpack.c.h.b16 %v5285
    %v6405 = vunpack.c.l.b16 %v5286
    %v6406 = vunpack.c.h.b16 %v5286
    %v6407 = vunpack.c.l.b16 %v5287
    %v6408 = vunpack.c.h.b16 %v5287
    %v6409 = vunpack.c.l.b16 %v5288
    %v6410 = vunpack.c.h.b16 %v5288
    %v6411 = vunpack.c.l.b16 %v5289
    %v6412 = vunpack.c.h.b16 %v5289
    %v6413 = vunpack.c.l.b16 %v5290
    %v6414 = vunpack.c.h.b16 %v5290
    %v6415 = vunpack.c.l.b16 %v5291
    %v6416 = vunpack.c.h.b16 %v5291
    %v6417 = vunpack.c.l.b16 %v5292
    %v6418 = vunpack.c.h.b16 %v5292
    %v6419 = vunpack.c.l.b16 %v5293
    %v6420 = vunpack.c.h.b16 %v5293
    %v6421 = vunpack.c.l.b16 %v5294
    %v6422 = vunpack.c.h.b16 %v5294
    %v6423 = vunpack.c.l.b16 %v5295
    %v6424 = vunpack.c.h.b16 %v5295
    %v6425 = vunpack.c.l.b16 %v5296
    %v6426 = vunpack.c.h.b16 %v5296
    %v6427 = vunpack.c.l.b16 %v5297
    %v6428 = vunpack.c.h.b16 %v5297
    %v6429 = vunpack.c.l.b16 %v5298
    %v6430 = vunpack.c.h.b16 %v5298
    %v6431 = vunpack.c.l.b16 %v5299
    %v6432 = vunpack.c.h.b16 %v5299
    %v6433 = vunpack.c.l.b16 %v5300
    %v6434 = vunpack.c.h.b16 %v5300
    %v6435 = vunpack.c.l.b16 %v5301
    %v6436 = vunpack.c.h.b16 %v5301
    %v6437 = vunpack.c.l.b16 %v5302
    %v6438 = vunpack.c.h.b16 %v5302
    %v6439 = vunpack.c.l.b16 %v5303
    %v6440 = vunpack.c.h.b16 %v5303
    %v6441 = vunpack.c.l.b16 %v5304
    %v6442 = vunpack.c.h.b16 %v5304
    %v6443 = vunpack.c.l.b16 %v5305
    %v6444 = vunpack.c.h.b16 %v5305
    %v6445 = vunpack.c.l.b16 %v5306
    %v6446 = vunpack.c.h.b16 %v5306
    %v6447 = vunpack.c.l.b16 %v5307
    %v6448 = vunpack.c.h.b16 %v5307
    %v6449 = vunpack.c.l.b16 %v5308
    %v6450 = vunpack.c.h.b16 %v5308
    %v6451 = vunpack.c.l.b16 %v5309
    %v6452 = vunpack.c.h.b16 %v5309
    %v6453 = vunpack.c.l.b16 %v5310
    %v6454 = vunpack.c.h.b16 %v5310
    %v6455 = vunpack.c.l.b16 %v5311
    %v6456 = vunpack.c.h.b16 %v5311
    %v6457 = vunpack.c.l.b16 %v5312
    %v6458 = vunpack.c.h.b16 %v5312
    %v6459 = vunpack.c.l.b16 %v5313
    %v6460 = vunpack.c.h.b16 %v5313
    %v6461 = vunpack.c.l.b16 %v5314
    %v6462 = vunpack.c.h.b16 %v5314
    %v6463 = vunpack.c.l.b16 %v5315
    %v6464 = vunpack.c.h.b16 %v5315
    %v6465 = vunpack.c.l.b16 %v5316
    %v6466 = vunpack.c.h.b16 %v5316
    %v6467 = vunpack.c.l.b16 %v5317
    %v6468 = vunpack.c.h.b16 %v5317
    %v6469 = vunpack.c.l.b16 %v5318
    %v6470 = vunpack.c.h.b16 %v5318
    %v6471 = vunpack.c.l.b16 %v5319
    %v6472 = vunpack.c.h.b16 %v5319
    %v6473 = vunpack.c.l.b16 %v5320
    %v6474 = vunpack.c.h.b16 %v5320
    %v6475 = vunpack.c.l.b16 %v5321
    %v6476 = vunpack.c.h.b16 %v5321
    %v6477 = vunpack.c.l.b16 %v5322
    %v6478 = vunpack.c.h.b16 %v5322
    %v6479 = vunpack.c.l.b16 %v5323
    %v6480 = vunpack.c.h.b16 %v5323
    %v6481 = vunpack.c.l.b16 %v5324
    %v6482 = vunpack.c.h.b16 %v5324
    %v6483 = vunpack.c.l.b16 %v5325
    %v6484 = vunpack.c.h.b16 %v5325
    %v6485 = vunpack.c.l.b16 %v5326
    %v6486 = vunpack.c.h.b16 %v5326
    %v6487 = vunpack.c.l.b16 %v5327
    %v6488 = vunpack.c.h.b16 %v5327
    %v6489 = vunpack.c.l.b16 %v5328
    %v6490 = vunpack.c.h.b16 %v5328
    %v6491 = vunpack.c.l.b16 %v5329
    %v6492 = vunpack.c.h.b16 %v5329
    %v6493 = vunpack.c.l.b16 %v5330
    %v6494 = vunpack.c.h.b16 %v5330
    %v6495 = vunpack.c.l.b16 %v5331
    %v6496 = vunpack.c.h.b16 %v5331
    %v6497 = vunpack.c.l.b16 %v5332
    %v6498 = vunpack.c.h.b16 %v5332
    %v6499 = vunpack.c.l.b16 %v5333
    %v6500 = vunpack.c.h.b16 %v5333
    %v6501 = vunpack.c.l.b16 %v5334
    %v6502 = vunpack.c.h.b16 %v5334
    %v6503 = vunpack.c.l.b16 %v5335
    %v6504 = vunpack.c.h.b16 %v5335
    %v6505 = vunpack.c.l.b16 %v5336
    %v6506 = vunpack.c.h.b16 %v5336
    %v6507 = vunpack.c.l.b16 %v5337
    %v6508 = vunpack.c.h.b16 %v5337
    %v6509 = vunpack.c.l.b16 %v5338
    %v6510 = vunpack.c.h.b16 %v5338
    %v6511 = vunpack.c.l.b16 %v5339
    %v6512 = vunpack.c.h.b16 %v5339
    %v6513 = vunpack.c.l.b16 %v5340
    %v6514 = vunpack.c.h.b16 %v5340
    %v6515 = vunpack.c.l.b16 %v5341
    %v6516 = vunpack.c.h.b16 %v5341
    %v6517 = vunpack.c.l.b16 %v5342
    %v6518 = vunpack.c.h.b16 %v5342
    %v6519 = vunpack.c.l.b16 %v5343
    %v6520 = vunpack.c.h.b16 %v5343
    %v6521 = vunpack.c.l.b16 %v5344
    %v6522 = vunpack.c.h.b16 %v5344
    %v6523 = vunpack.c.l.b16 %v5345
    %v6524 = vunpack.c.h.b16 %v5345
    %v6525 = vunpack.c.l.b16 %v5346
    %v6526 = vunpack.c.h.b16 %v5346
    %v6527 = vunpack.c.l.b16 %v5347
    %v6528 = vunpack.c.h.b16 %v5347
    %v6529 = vunpack.c.l.b16 %v5348
    %v6530 = vunpack.c.h.b16 %v5348
    %v6531 = vunpack.c.l.b16 %v5349
    %v6532 = vunpack.c.h.b16 %v5349
    %v6533 = vunpack.c.l.b16 %v5350
    %v6534 = vunpack.c.h.b16 %v5350
    %v6535 = vunpack.c.l.b16 %v5351
    %v6536 = vunpack.c.h.b16 %v5351
    %v6537 = vunpack.c.l.b16 %v5352
    %v6538 = vunpack.c.h.b16 %v5352
    %v6539 = vunpack.c.l.b16 %v5353
    %v6540 = vunpack.c.h.b16 %v5353
    %v6541 = vunpack.c.l.b16 %v5354
    %v6542 = vunpack.c.h.b16 %v5354
    %v6543 = vunpack.c.l.b16 %v5355
    %v6544 = vunpack.c.h.b16 %v5355
    %v6545 = vunpack.c.l.b16 %v5356
    %v6546 = vunpack.c.h.b16 %v5356
    %v6547 = vunpack.c.l.b16 %v5357
    %v6548 = vunpack.c.h.b16 %v5357
    %v6549 = vunpack.c.l.b16 %v5358
    %v6550 = vunpack.c.h.b16 %v5358
    %v6551 = vunpack.c.l.b16 %v5359
    %v6552 = vunpack.c.h.b16 %v5359
    %v6553 = vunpack.c.l.b16 %v5360
    %v6554 = vunpack.c.h.b16 %v5360
    %v6555 = vunpack.c.l.b16 %v5361
    %v6556 = vunpack.c.h.b16 %v5361
    %v6557 = vunpack.c.l.b16 %v5362
    %v6558 = vunpack.c.h.b16 %v5362
    %v6559 = vunpack.c.l.b16 %v5363
    %v6560 = vunpack.c.h.b16 %v5363
    %v6561 = vunpack.c.l.b16 %v5364
    %v6562 = vunpack.c.h.b16 %v5364
    %v6563 = vunpack.c.l.b16 %v5365
    %v6564 = vunpack.c.h.b16 %v5365
    %v6565 = vunpack.c.l.b16 %v5366
    %v6566 = vunpack.c.h.b16 %v5366
    %v6567 = vunpack.c.l.b16 %v5367
    %v6568 = vunpack.c.h.b16 %v5367
    %v6569 = vunpack.c.l.b16 %v5368
    %v6570 = vunpack.c.h.b16 %v5368
    %v6571 = vunpack.c.l.b16 %v5369
    %v6572 = vunpack.c.h.b16 %v5369
    %v6573 = vunpack.c.l.b16 %v5370
    %v6574 = vunpack.c.h.b16 %v5370
    %v6575 = vunpack.c.l.b16 %v5371
    %v6576 = vunpack.c.h.b16 %v5371
    %v6577 = vunpack.c.l.b16 %v5372
    %v6578 = vunpack.c.h.b16 %v5372
    %v6579 = vunpack.c.l.b16 %v5373
    %v6580 = vunpack.c.h.b16 %v5373
    %v6581 = vunpack.c.l.b16 %v5374
    %v6582 = vunpack.c.h.b16 %v5374
    %v6583 = vunpack.c.l.b16 %v5375
    %v6584 = vunpack.c.h.b16 %v5375
    %v6585 = vunpack.c.l.b16 %v5376
    %v6586 = vunpack.c.h.b16 %v5376
    %v6587 = vunpack.c.l.b16 %v5377
    %v6588 = vunpack.c.h.b16 %v5377
    %v6589 = vunpack.c.l.b16 %v5378
    %v6590 = vunpack.c.h.b16 %v5378
    %v6591 = vunpack.c.l.b16 %v5379
    %v6592 = vunpack.c.h.b16 %v5379
    %v6593 = vunpack.c.l.b16 %v5380
    %v6594 = vunpack.c.h.b16 %v5380
    %v6595 = vunpack.c.l.b16 %v5381
    %v6596 = vunpack.c.h.b16 %v5381
    %v6597 = vunpack.c.l.b16 %v5382
    %v6598 = vunpack.c.h.b16 %v5382
    %v6599 = vunpack.c.l.b16 %v5383
    %v6600 = vunpack.c.h.b16 %v5383
    %v6601 = vunpack.c.l.b16 %v5384
    %v6602 = vunpack.c.h.b16 %v5384
    %v6603 = vunpack.c.l.b16 %v5385
    %v6604 = vunpack.c.h.b16 %v5385
    %v6605 = vunpack.c.l.b16 %v5386
    %v6606 = vunpack.c.h.b16 %v5386
    %v6607 = vunpack.c.l.b16 %v5387
    %v6608 = vunpack.c.h.b16 %v5387
    %v6609 = vunpack.c.l.b16 %v5388
    %v6610 = vunpack.c.h.b16 %v5388
    %v6611 = vunpack.c.l.b16 %v5389
    %v6612 = vunpack.c.h.b16 %v5389
    %v6613 = vunpack.c.l.b16 %v5390
    %v6614 = vunpack.c.h.b16 %v5390
    %v6615 = vunpack.c.l.b16 %v5391
    %v6616 = vunpack.c.h.b16 %v5391
    %v6617 = vunpack.c.l.b16 %v5392
    %v6618 = vunpack.c.h.b16 %v5392
    %v6619 = vunpack.c.l.b16 %v5393
    %v6620 = vunpack.c.h.b16 %v5393
    %v6621 = vunpack.c.l.b16 %v5394
    %v6622 = vunpack.c.h.b16 %v5394
    %v6623 = vunpack.c.l.b16 %v5395
    %v6624 = vunpack.c.h.b16 %v5395
    %v6625 = vunpack.c.l.b16 %v5396
    %v6626 = vunpack.c.h.b16 %v5396
    %v6627 = vunpack.c.l.b16 %v5397
    %v6628 = vunpack.c.h.b16 %v5397
    %v6629 = vunpack.c.l.b16 %v5398
    %v6630 = vunpack.c.h.b16 %v5398
    %v6631 = vunpack.c.l.b16 %v5399
    %v6632 = vunpack.c.h.b16 %v5399
    %v6633 = vunpack.c.l.b16 %v5400
    %v6634 = vunpack.c.h.b16 %v5400
    %v6635 = vunpack.c.l.b16 %v5401
    %v6636 = vunpack.c.h.b16 %v5401
    %v6637 = vunpack.c.l.b16 %v5402
    %v6638 = vunpack.c.h.b16 %v5402
    %v6639 = vunpack.c.l.b16 %v5403
    %v6640 = vunpack.c.h.b16 %v5403
    %v6641 = vunpack.c.l.b16 %v5404
    %v6642 = vunpack.c.h.b16 %v5404
    %v6643 = vunpack.c.l.b16 %v5405
    %v6644 = vunpack.c.h.b16 %v5405
    %v6645 = vunpack.c.l.b16 %v5406
    %v6646 = vunpack.c.h.b16 %v5406
    %v6647 = vunpack.c.l.b16 %v5407
    %v6648 = vunpack.c.h.b16 %v5407
    %v6649 = vunpack.c.l.b16 %v5408
    %v6650 = vunpack.c.h.b16 %v5408
    %v6651 = vunpack.c.l.b16 %v5409
    %v6652 = vunpack.c.h.b16 %v5409
    %v6653 = vunpack.c.l.b16 %v5410
    %v6654 = vunpack.c.h.b16 %v5410
    %v6655 = vunpack.c.l.b16 %v5411
    %v6656 = vunpack.c.h.b16 %v5411
    %v6657 = vunpack.c.l.b16 %v5412
    %v6658 = vunpack.c.h.b16 %v5412
    %v6659 = vunpack.c.l.b16 %v5413
    %v6660 = vunpack.c.h.b16 %v5413
    %v6661 = vunpack.c.l.b16 %v5414
    %v6662 = vunpack.c.h.b16 %v5414
    %v6663 = vunpack.c.l.b16 %v5415
    %v6664 = vunpack.c.h.b16 %v5415
    %v6665 = vunpack.c.l.b16 %v5416
    %v6666 = vunpack.c.h.b16 %v5416
    %v6667 = vunpack.c.l.b16 %v5417
    %v6668 = vunpack.c.h.b16 %v5417
    %v6669 = vunpack.c.l.b16 %v5418
    %v6670 = vunpack.c.h.b16 %v5418
    %v6671 = vunpack.c.l.b16 %v5419
    %v6672 = vunpack.c.h.b16 %v5419
    %v6673 = vunpack.c.l.b16 %v5420
    %v6674 = vunpack.c.h.b16 %v5420
    %v6675 = vunpack.c.l.b16 %v5421
    %v6676 = vunpack.c.h.b16 %v5421
    %v6677 = vunpack.c.l.b16 %v5422
    %v6678 = vunpack.c.h.b16 %v5422
    %v6679 = vunpack.c.l.b16 %v5423
    %v6680 = vunpack.c.h.b16 %v5423
    %v6681 = vunpack.c.l.b16 %v5424
    %v6682 = vunpack.c.h.b16 %v5424
    %v6683 = vunpack.c.l.b16 %v5425
    %v6684 = vunpack.c.h.b16 %v5425
    %v6685 = vunpack.c.l.b16 %v5426
    %v6686 = vunpack.c.h.b16 %v5426
    %v6687 = vunpack.c.l.b16 %v5427
    %v6688 = vunpack.c.h.b16 %v5427
    %v6689 = vunpack.c.l.b16 %v5428
    %v6690 = vunpack.c.h.b16 %v5428
    %v6691 = vunpack.c.l.b16 %v5429
    %v6692 = vunpack.c.h.b16 %v5429
    %v6693 = vunpack.c.l.b16 %v5430
    %v6694 = vunpack.c.h.b16 %v5430
    %v6695 = vunpack.c.l.b16 %v5431
    %v6696 = vunpack.c.h.b16 %v5431
    %v6697 = vunpack.c.l.b16 %v5432
    %v6698 = vunpack.c.h.b16 %v5432
    %v6699 = vunpack.c.l.b16 %v5433
    %v6700 = vunpack.c.h.b16 %v5433
    %v6701 = vunpack.c.l.b16 %v5434
    %v6702 = vunpack.c.h.b16 %v5434
    %v6703 = vunpack.c.l.b16 %v5435
    %v6704 = vunpack.c.h.b16 %v5435
    %v6705 = vunpack.c.l.b16 %v5436
    %v6706 = vunpack.c.h.b16 %v5436
    %v6707 = vunpack.c.l.b16 %v5437
    %v6708 = vunpack.c.h.b16 %v5437
    %v6709 = vunpack.c.l.b16 %v5438
    %v6710 = vunpack.c.h.b16 %v5438
    %v6711 = vunpack.c.l.b16 %v5439
    %v6712 = vunpack.c.h.b16 %v5439
    %v6713 = vunpack.c.l.b16 %v5440
    %v6714 = vunpack.c.h.b16 %v5440
    %v6715 = vunpack.c.l.b16 %v5441
    %v6716 = vunpack.c.h.b16 %v5441
    %v6717 = vunpack.c.l.b16 %v5442
    %v6718 = vunpack.c.h.b16 %v5442
    %v6719 = vunpack.c.l.b16 %v5443
    %v6720 = vunpack.c.h.b16 %v5443
    %v6721 = vunpack.c.l.b16 %v5444
    %v6722 = vunpack.c.h.b16 %v5444
    %v6723 = vunpack.c.l.b16 %v5445
    %v6724 = vunpack.c.h.b16 %v5445
    %v6725 = vunpack.c.l.b16 %v5446
    %v6726 = vunpack.c.h.b16 %v5446
    %v6727 = vunpack.c.l.b16 %v5447
    %v6728 = vunpack.c.h.b16 %v5447
    %v6729 = vunpack.c.l.b16 %v5448
    %v6730 = vunpack.c.h.b16 %v5448
    %v6731 = vunpack.c.l.b16 %v5449
    %v6732 = vunpack.c.h.b16 %v5449
    %v6733 = vunpack.c.l.b16 %v5450
    %v6734 = vunpack.c.h.b16 %v5450
    %v6735 = vunpack.c.l.b16 %v5451
    %v6736 = vunpack.c.h.b16 %v5451
    %v6737 = vunpack.c.l.b16 %v5452
    %v6738 = vunpack.c.h.b16 %v5452
    %v6739 = vunpack.c.l.b16 %v5453
    %v6740 = vunpack.c.h.b16 %v5453
    %v6741 = vunpack.c.l.b16 %v5454
    %v6742 = vunpack.c.h.b16 %v5454
    %v6743 = vunpack.c.l.b16 %v5455
    %v6744 = vunpack.c.h.b16 %v5455
    %v6745 = vunpack.c.l.b16 %v5456
    %v6746 = vunpack.c.h.b16 %v5456
    %v6747 = vunpack.c.l.b16 %v5457
    %v6748 = vunpack.c.h.b16 %v5457
    %v6749 = vunpack.c.l.b16 %v5458
    %v6750 = vunpack.c.h.b16 %v5458
    %v6751 = vunpack.c.l.b16 %v5459
    %v6752 = vunpack.c.h.b16 %v5459
    %v6753 = vunpack.c.l.b16 %v5460
    %v6754 = vunpack.c.h.b16 %v5460
    %v6755 = vunpack.c.l.b16 %v5461
    %v6756 = vunpack.c.h.b16 %v5461
    %v6757 = vunpack.c.l.b16 %v5462
    %v6758 = vunpack.c.h.b16 %v5462
    %v6759 = vunpack.c.l.b16 %v5463
    %v6760 = vunpack.c.h.b16 %v5463
    %v6761 = vunpack.c.l.b16 %v5464
    %v6762 = vunpack.c.h.b16 %v5464
    %v6763 = vunpack.c.l.b16 %v5465
    %v6764 = vunpack.c.h.b16 %v5465
    %v6765 = vunpack.c.l.b16 %v5466
    %v6766 = vunpack.c.h.b16 %v5466
    %v6767 = vunpack.c.l.b16 %v5467
    %v6768 = vunpack.c.h.b16 %v5467
    %v6769 = vunpack.c.l.b16 %v5468
    %v6770 = vunpack.c.h.b16 %v5468
    %v6771 = vunpack.c.l.b16 %v5469
    %v6772 = vunpack.c.h.b16 %v5469
    %v6773 = vunpack.c.l.b16 %v5470
    %v6774 = vunpack.c.h.b16 %v5470
    %v6775 = vunpack.c.l.b16 %v5471
    %v6776 = vunpack.c.h.b16 %v5471
    %v6777 = vunpack.c.l.b16 %v5472
    %v6778 = vunpack.c.h.b16 %v5472
    %v6779 = vunpack.c.l.b16 %v5473
    %v6780 = vunpack.c.h.b16 %v5473
    %v6781 = vunpack.c.l.b16 %v5474
    %v6782 = vunpack.c.h.b16 %v5474
    %v6783 = vunpack.c.l.b16 %v5475
    %v6784 = vunpack.c.h.b16 %v5475
    %v6785 = vunpack.c.l.b16 %v5476
    %v6786 = vunpack.c.h.b16 %v5476
    %v6787 = vunpack.c.l.b16 %v5477
    %v6788 = vunpack.c.h.b16 %v5477
    %v6789 = vunpack.c.l.b16 %v5478
    %v6790 = vunpack.c.h.b16 %v5478
    %v6791 = vunpack.c.l.b16 %v5479
    %v6792 = vunpack.c.h.b16 %v5479
    %v6793 = vunpack.c.l.b16 %v5480
    %v6794 = vunpack.c.h.b16 %v5480
    %v6795 = vunpack.c.l.b16 %v5481
    %v6796 = vunpack.c.h.b16 %v5481
    %v6797 = vunpack.c.l.b16 %v5482
    %v6798 = vunpack.c.h.b16 %v5482
    %v6799 = vunpack.c.l.b16 %v5483
    %v6800 = vunpack.c.h.b16 %v5483
    %v6801 = vunpack.c.l.b16 %v5484
    %v6802 = vunpack.c.h.b16 %v5484
    %v6803 = vunpack.c.l.b16 %v5485
    %v6804 = vunpack.c.h.b16 %v5485
    %v6805 = vunpack.c.l.b16 %v5486
    %v6806 = vunpack.c.h.b16 %v5486
    %v6807 = vunpack.c.l.b16 %v5487
    %v6808 = vunpack.c.h.b16 %v5487
    %v6809 = vunpack.c.l.b16 %v5488
    %v6810 = vunpack.c.h.b16 %v5488
    %v6811 = vunpack.c.l.b16 %v5489
    %v6812 = vunpack.c.h.b16 %v5489
    %v6813 = vunpack.c.l.b16 %v5490
    %v6814 = vunpack.c.h.b16 %v5490
    %v6815 = vunpack.c.l.b16 %v5491
    %v6816 = vunpack.c.h.b16 %v5491
    %v6817 = vunpack.c.l.b16 %v5492
    %v6818 = vunpack.c.h.b16 %v5492
    %v6819 = vunpack.c.l.b16 %v5493
    %v6820 = vunpack.c.h.b16 %v5493
    %v6821 = vunpack.c.l.b16 %v5494
    %v6822 = vunpack.c.h.b16 %v5494
    %v6823 = vunpack.c.l.b16 %v5495
    %v6824 = vunpack.c.h.b16 %v5495
    %v6825 = vunpack.c.l.b16 %v5496
    %v6826 = vunpack.c.h.b16 %v5496
    %v6827 = vunpack.c.l.b16 %v5497
    %v6828 = vunpack.c.h.b16 %v5497
    %v6829 = vunpack.c.l.b16 %v5498
    %v6830 = vunpack.c.h.b16 %v5498
    %v6831 = vunpack.c.l.b16 %v5499
    %v6832 = vunpack.c.h.b16 %v5499
    %v6833 = vunpack.c.l.b16 %v5500
    %v6834 = vunpack.c.h.b16 %v5500
    %v6835 = vunpack.c.l.b16 %v5501
    %v6836 = vunpack.c.h.b16 %v5501
    %v6837 = vunpack.c.l.b16 %v5502
    %v6838 = vunpack.c.h.b16 %v5502
    %v6839 = vunpack.c.l.b16 %v5503
    %v6840 = vunpack.c.h.b16 %v5503
    %v6841 = vunpack.c.l.b16 %v5504
    %v6842 = vunpack.c.h.b16 %v5504
    %v6843 = vunpack.c.l.b16 %v5505
    %v6844 = vunpack.c.h.b16 %v5505
    %v6845 = vunpack.c.l.b16 %v5506
    %v6846 = vunpack.c.h.b16 %v5506
    %v6847 = vunpack.c.l.b16 %v5507
    %v6848 = vunpack.c.h.b16 %v5507
    %v6849 = vunpack.c.l.b16 %v5508
    %v6850 = vunpack.c.h.b16 %v5508
    %v6851 = vunpack.c.l.b16 %v5509
    %v6852 = vunpack.c.h.b16 %v5509
    %v6853 = vunpack.c.l.b16 %v5510
    %v6854 = vunpack.c.h.b16 %v5510
    %v6855 = vunpack.c.l.b16 %v5511
    %v6856 = vunpack.c.h.b16 %v5511
    %v6857 = vunpack.c.l.b16 %v5512
    %v6858 = vunpack.c.h.b16 %v5512
    %v6859 = vunpack.c.l.b16 %v5513
    %v6860 = vunpack.c.h.b16 %v5513
    %v6861 = vunpack.c.l.b16 %v5514
    %v6862 = vunpack.c.h.b16 %v5514
    %v6863 = vunpack.c.l.b16 %v5515
    %v6864 = vunpack.c.h.b16 %v5515
    %v6865 = vunpack.c.l.b16 %v5516
    %v6866 = vunpack.c.h.b16 %v5516
    %v6867 = vunpack.c.l.b16 %v5517
    %v6868 = vunpack.c.h.b16 %v5517
    %v6869 = vunpack.c.l.b16 %v5518
    %v6870 = vunpack.c.h.b16 %v5518
    %v6871 = vunpack.c.l.b16 %v5519
    %v6872 = vunpack.c.h.b16 %v5519
    %v6873 = vunpack.c.l.b16 %v5520
    %v6874 = vunpack.c.h.b16 %v5520
    %v6875 = vunpack.c.l.b16 %v5521
    %v6876 = vunpack.c.h.b16 %v5521
    %v6877 = vunpack.c.l.b16 %v5522
    %v6878 = vunpack.c.h.b16 %v5522
    %v6879 = vunpack.c.l.b16 %v5523
    %v6880 = vunpack.c.h.b16 %v5523
    %v6881 = vunpack.c.l.b16 %v5524
    %v6882 = vunpack.c.h.b16 %v5524
    %v6883 = vunpack.c.l.b16 %v5525
    %v6884 = vunpack.c.h.b16 %v5525
    %v6885 = vunpack.c.l.b16 %v5526
    %v6886 = vunpack.c.h.b16 %v5526
    %v6887 = vunpack.c.l.b16 %v5527
    %v6888 = vunpack.c.h.b16 %v5527
    %v6889 = vunpack.c.l.b16 %v5528
    %v6890 = vunpack.c.h.b16 %v5528
    %v6891 = vunpack.c.l.b16 %v5529
    %v6892 = vunpack.c.h.b16 %v5529
    %v6893 = vunpack.c.l.b16 %v5530
    %v6894 = vunpack.c.h.b16 %v5530
    %v6895 = vunpack.c.l.b16 %v5531
    %v6896 = vunpack.c.h.b16 %v5531
    %v6897 = vunpack.c.l.b16 %v5532
    %v6898 = vunpack.c.h.b16 %v5532
    %v6899 = vunpack.c.l.b16 %v5533
    %v6900 = vunpack.c.h.b16 %v5533
    %v6901 = vunpack.c.l.b16 %v5534
    %v6902 = vunpack.c.h.b16 %v5534
    %v6903 = vunpack.c.l.b16 %v5535
    %v6904 = vunpack.c.h.b16 %v5535
    %v6905 = vunpack.c.l.b16 %v5536
    %v6906 = vunpack.c.h.b16 %v5536
    %v6907 = vunpack.c.l.b16 %v5537
    %v6908 = vunpack.c.h.b16 %v5537
    %v6909 = vunpack.c.l.b16 %v5538
    %v6910 = vunpack.c.h.b16 %v5538
    %v6911 = vunpack.c.l.b16 %v5539
    %v6912 = vunpack.c.h.b16 %v5539
    %v6913 = vunpack.c.l.b16 %v5540
    %v6914 = vunpack.c.h.b16 %v5540
    %v6915 = vunpack.c.l.b16 %v5541
    %v6916 = vunpack.c.h.b16 %v5541
    %v6917 = vunpack.c.l.b16 %v5542
    %v6918 = vunpack.c.h.b16 %v5542
    %v6919 = vunpack.c.l.b16 %v5543
    %v6920 = vunpack.c.h.b16 %v5543
    %v6921 = vunpack.c.l.b16 %v5544
    %v6922 = vunpack.c.h.b16 %v5544
    %v6923 = vunpack.c.l.b16 %v5545
    %v6924 = vunpack.c.h.b16 %v5545
    %v6925 = vunpack.c.l.b16 %v5546
    %v6926 = vunpack.c.h.b16 %v5546
    %v6927 = vunpack.c.l.b16 %v5547
    %v6928 = vunpack.c.h.b16 %v5547
    %v6929 = vunpack.c.l.b16 %v5548
    %v6930 = vunpack.c.h.b16 %v5548
    %v6931 = vunpack.c.l.b16 %v5549
    %v6932 = vunpack.c.h.b16 %v5549
    %v6933 = vunpack.c.l.b16 %v5550
    %v6934 = vunpack.c.h.b16 %v5550
    %v6935 = vunpack.c.l.b16 %v5551
    %v6936 = vunpack.c.h.b16 %v5551
    %v6937 = vunpack.c.l.b16 %v5552
    %v6938 = vunpack.c.h.b16 %v5552
    %v6939 = vunpack.c.l.b16 %v5553
    %v6940 = vunpack.c.h.b16 %v5553
    %v6941 = vunpack.c.l.b16 %v5554
    %v6942 = vunpack.c.h.b16 %v5554
    %v6943 = vunpack.c.l.b16 %v5555
    %v6944 = vunpack.c.h.b16 %v5555
    %v6945 = vunpack.c.l.b16 %v5556
    %v6946 = vunpack.c.h.b16 %v5556
    %v6947 = vunpack.c.l.b16 %v5557
    %v6948 = vunpack.c.h.b16 %v5557
    %v6949 = vunpack.c.l.b16 %v5558
    %v6950 = vunpack.c.h.b16 %v5558
    %v6951 = vunpack.c.l.b16 %v5559
    %v6952 = vunpack.c.h.b16 %v5559
    %v6953 = vunpack.c.l.b16 %v5560
    %v6954 = vunpack.c.h.b16 %v5560
    %v6955 = vunpack.c.l.b16 %v5561
    %v6956 = vunpack.c.h.b16 %v5561
    %v6957 = vunpack.c.l.b16 %v5562
    %v6958 = vunpack.c.h.b16 %v5562
    %v6959 = vunpack.c.l.b16 %v5563
    %v6960 = vunpack.c.h.b16 %v5563
    %v6961 = vunpack.c.l.b16 %v5564
    %v6962 = vunpack.c.h.b16 %v5564
    %v6963 = vunpack.c.l.b16 %v5565
    %v6964 = vunpack.c.h.b16 %v5565
    %v6965 = vunpack.c.l.b16 %v5566
    %v6966 = vunpack.c.h.b16 %v5566
    %v6967 = vunpack.c.l.b16 %v5567
    %v6968 = vunpack.c.h.b16 %v5567
    %v6969 = vunpack.c.l.b16 %v5568
    %v6970 = vunpack.c.h.b16 %v5568
    %v6971 = vunpack.c.l.b16 %v5569
    %v6972 = vunpack.c.h.b16 %v5569
    %v6973 = vunpack.c.l.b16 %v5570
    %v6974 = vunpack.c.h.b16 %v5570
    %v6975 = vunpack.c.l.b16 %v5571
    %v6976 = vunpack.c.h.b16 %v5571
    %v6977 = vunpack.c.l.b16 %v5572
    %v6978 = vunpack.c.h.b16 %v5572
    %v6979 = vunpack.c.l.b16 %v5573
    %v6980 = vunpack.c.h.b16 %v5573
    %v6981 = vunpack.c.l.b16 %v5574
    %v6982 = vunpack.c.h.b16 %v5574
    %v6983 = vunpack.c.l.b16 %v5575
    %v6984 = vunpack.c.h.b16 %v5575
    %v6985 = vunpack.c.l.b16 %v5576
    %v6986 = vunpack.c.h.b16 %v5576
    %v6987 = vunpack.c.l.b16 %v5577
    %v6988 = vunpack.c.h.b16 %v5577
    %v6989 = vunpack.c.l.b16 %v5578
    %v6990 = vunpack.c.h.b16 %v5578
    %v6991 = vunpack.c.l.b16 %v5579
    %v6992 = vunpack.c.h.b16 %v5579
    %v6993 = vunpack.c.l.b16 %v5580
    %v6994 = vunpack.c.h.b16 %v5580
    %v6995 = vunpack.c.l.b16 %v5581
    %v6996 = vunpack.c.h.b16 %v5581
    %v6997 = vunpack.c.l.b16 %v5582
    %v6998 = vunpack.c.h.b16 %v5582
    %v6999 = vunpack.c.l.b16 %v5583
    %v7000 = vunpack.c.h.b16 %v5583
    %v7001 = vunpack.c.l.b16 %v5584
    %v7002 = vunpack.c.h.b16 %v5584
    %v7003 = vunpack.c.l.b16 %v5585
    %v7004 = vunpack.c.h.b16 %v5585
    %v7005 = vunpack.c.l.b16 %v5586
    %v7006 = vunpack.c.h.b16 %v5586
    %v7007 = vunpack.c.l.b16 %v5587
    %v7008 = vunpack.c.h.b16 %v5587
    %v7009 = vunpack.c.l.b16 %v5588
    %v7010 = vunpack.c.h.b16 %v5588
    %v7011 = vunpack.c.l.b16 %v5589
    %v7012 = vunpack.c.h.b16 %v5589
    %v7013 = vunpack.c.l.b16 %v5590
    %v7014 = vunpack.c.h.b16 %v5590
    %v7015 = vunpack.c.l.b16 %v5591
    %v7016 = vunpack.c.h.b16 %v5591
    %v7017 = vunpack.c.l.b16 %v5592
    %v7018 = vunpack.c.h.b16 %v5592
    %v7019 = vunpack.c.l.b16 %v5593
    %v7020 = vunpack.c.h.b16 %v5593
    %v7021 = vunpack.c.l.b16 %v5594
    %v7022 = vunpack.c.h.b16 %v5594
    %v7023 = vunpack.c.l.b16 %v5595
    %v7024 = vunpack.c.h.b16 %v5595
    %v7025 = vunpack.c.l.b16 %v5596
    %v7026 = vunpack.c.h.b16 %v5596
    %v7027 = vunpack.c.l.b16 %v5597
    %v7028 = vunpack.c.h.b16 %v5597
    %v7029 = vunpack.c.l.b16 %v5598
    %v7030 = vunpack.c.h.b16 %v5598
    %v7031 = vunpack.c.l.b16 %v5599
    %v7032 = vunpack.c.h.b16 %v5599
    %v7033 = vunpack.c.l.b16 %v5600
    %v7034 = vunpack.c.h.b16 %v5600
    %v7035 = vunpack.c.l.b16 %v5601
    %v7036 = vunpack.c.h.b16 %v5601
    %v7037 = vunpack.c.l.b16 %v5602
    %v7038 = vunpack.c.h.b16 %v5602
    %v7039 = vunpack.c.l.b16 %v5603
    %v7040 = vunpack.c.h.b16 %v5603
    %v7041 = vunpack.c.l.b16 %v5604
    %v7042 = vunpack.c.h.b16 %v5604
    %v7043 = vunpack.c.l.b16 %v5605
    %v7044 = vunpack.c.h.b16 %v5605
    %v7045 = vunpack.c.l.b16 %v5606
    %v7046 = vunpack.c.h.b16 %v5606
    %v7047 = vunpack.c.l.b16 %v5607
    %v7048 = vunpack.c.h.b16 %v5607
    %v7049 = vunpack.c.l.b16 %v5608
    %v7050 = vunpack.c.h.b16 %v5608
    %v7051 = vunpack.c.l.b16 %v5609
    %v7052 = vunpack.c.h.b16 %v5609
    %v7053 = vunpack.c.l.b16 %v5610
    %v7054 = vunpack.c.h.b16 %v5610
    %v7055 = vunpack.c.l.b16 %v5611
    %v7056 = vunpack.c.h.b16 %v5611
    %v7057 = vunpack.c.l.b16 %v5612
    %v7058 = vunpack.c.h.b16 %v5612
    %v7059 = vunpack.c.l.b16 %v5613
    %v7060 = vunpack.c.h.b16 %v5613
    %v7061 = vunpack.c.l.b16 %v5614
    %v7062 = vunpack.c.h.b16 %v5614
    %v7063 = vunpack.c.l.b16 %v5615
    %v7064 = vunpack.c.h.b16 %v5615
    %v7065 = vunpack.c.l.b16 %v5616
    %v7066 = vunpack.c.h.b16 %v5616
    %v7067 = vunpack.c.l.b16 %v5617
    %v7068 = vunpack.c.h.b16 %v5617
    %v7069 = vunpack.c.l.b16 %v5618
    %v7070 = vunpack.c.h.b16 %v5618
    %v7071 = vunpack.c.l.b16 %v5619
    %v7072 = vunpack.c.h.b16 %v5619
    %v7073 = vunpack.c.l.b16 %v5620
    %v7074 = vunpack.c.h.b16 %v5620
    %v7075 = vunpack.c.l.b16 %v5621
    %v7076 = vunpack.c.h.b16 %v5621
    %v7077 = vunpack.c.l.b16 %v5622
    %v7078 = vunpack.c.h.b16 %v5622
    %v7079 = vunpack.c.l.b16 %v5623
    %v7080 = vunpack.c.h.b16 %v5623
    %v7081 = vunpack.c.l.b16 %v5624
    %v7082 = vunpack.c.h.b16 %v5624
    %v7083 = vunpack.c.l.b16 %v5625
    %v7084 = vunpack.c.h.b16 %v5625
    %v7085 = vunpack.c.l.b16 %v5626
    %v7086 = vunpack.c.h.b16 %v5626
    %v7087 = vunpack.c.l.b16 %v5627
    %v7088 = vunpack.c.h.b16 %v5627
    %v7089 = vunpack.c.l.b16 %v5628
    %v7090 = vunpack.c.h.b16 %v5628
    %v7091 = vunpack.c.l.b16 %v5629
    %v7092 = vunpack.c.h.b16 %v5629
    %v7093 = vunpack.c.l.b16 %v5630
    %v7094 = vunpack.c.h.b16 %v5630
    %v7095 = vunpack.c.l.b16 %v5631
    %v7096 = vunpack.c.h.b16 %v5631
    %v7097 = vunpack.c.l.b16 %v5632
    %v7098 = vunpack.c.h.b16 %v5632
    %v7099 = vunpack.c.l.b16 %v5633
    %v7100 = vunpack.c.h.b16 %v5633
    %v7101 = vunpack.c.l.b16 %v5634
    %v7102 = vunpack.c.h.b16 %v5634
    %v7103 = vunpack.c.l.b16 %v5635
    %v7104 = vunpack.c.h.b16 %v5635
    %v7105 = vunpack.c.l.b16 %v5636
    %v7106 = vunpack.c.h.b16 %v5636
    %v7107 = vunpack.c.l.b16 %v5637
    %v7108 = vunpack.c.h.b16 %v5637
    %v7109 = vunpack.c.l.b16 %v5638
    %v7110 = vunpack.c.h.b16 %v5638
    %v7111 = vunpack.c.l.b16 %v5639
    %v7112 = vunpack.c.h.b16 %v5639
    %v7113 = vunpack.c.l.b16 %v5640
    %v7114 = vunpack.c.h.b16 %v5640
    %v7115 = vunpack.c.l.b16 %v5641
    %v7116 = vunpack.c.h.b16 %v5641
    %v7117 = vunpack.c.l.b16 %v5642
    %v7118 = vunpack.c.h.b16 %v5642
    %v7119 = vunpack.c.l.b16 %v5643
    %v7120 = vunpack.c.h.b16 %v5643
    %v7121 = vunpack.c.l.b16 %v5644
    %v7122 = vunpack.c.h.b16 %v5644
    %v7123 = vunpack.c.l.b16 %v5645
    %v7124 = vunpack.c.h.b16 %v5645
    %v7125 = vunpack.c.l.b16 %v5646
    %v7126 = vunpack.c.h.b16 %v5646
    %v7127 = vunpack.c.l.b16 %v5647
    %v7128 = vunpack.c.h.b16 %v5647
    %v7129 = vunpack.c.l.b16 %v5648
    %v7130 = vunpack.c.h.b16 %v5648
    %v7131 = vunpack.c.l.b16 %v5649
    %v7132 = vunpack.c.h.b16 %v5649
    %v7133 = vunpack.c.l.b16 %v5650
    %v7134 = vunpack.c.h.b16 %v5650
    %v7135 = vunpack.c.l.b16 %v5651
    %v7136 = vunpack.c.h.b16 %v5651
    %v7137 = vunpack.c.l.b16 %v5652
    %v7138 = vunpack.c.h.b16 %v5652
    %v7139 = vunpack.c.l.b16 %v5653
    %v7140 = vunpack.c.h.b16 %v5653
    %v7141 = vunpack.c.l.b16 %v5654
    %v7142 = vunpack.c.h.b16 %v5654
    %v7143 = vunpack.c.l.b16 %v5655
    %v7144 = vunpack.c.h.b16 %v5655
    %v7145 = vunpack.c.l.b16 %v5656
    %v7146 = vunpack.c.h.b16 %v5656
    %v7147 = vunpack.c.l.b16 %v5657
    %v7148 = vunpack.c.h.b16 %v5657
    %v7149 = vunpack.c.l.b16 %v5658
    %v7150 = vunpack.c.h.b16 %v5658
    %v7151 = vunpack.c.l.b16 %v5659
    %v7152 = vunpack.c.h.b16 %v5659
    %v7153 = vunpack.c.l.b16 %v5660
    %v7154 = vunpack.c.h.b16 %v5660
    %v7155 = vunpack.c.l.b16 %v5661
    %v7156 = vunpack.c.h.b16 %v5661
    %v7157 = vunpack.c.l.b16 %v5662
    %v7158 = vunpack.c.h.b16 %v5662
    %v7159 = vunpack.c.l.b16 %v5663
    %v7160 = vunpack.c.h.b16 %v5663
    %v7161 = vunpack.c.l.b16 %v5664
    %v7162 = vunpack.c.h.b16 %v5664
    %v7163 = vunpack.c.l.b16 %v5665
    %v7164 = vunpack.c.h.b16 %v5665
    %v7165 = vunpack.c.l.b16 %v5666
    %v7166 = vunpack.c.h.b16 %v5666
    %v7167 = vunpack.c.l.b16 %v5667
    %v7168 = vunpack.c.h.b16 %v5667
    %v7169 = vunpack.c.l.b16 %v5668
    %v7170 = vunpack.c.h.b16 %v5668
    %v7171 = vunpack.c.l.b16 %v5669
    %v7172 = vunpack.c.h.b16 %v5669
    %v7173 = vunpack.c.l.b16 %v5670
    %v7174 = vunpack.c.h.b16 %v5670
    %v7175 = vunpack.c.l.b16 %v5671
    %v7176 = vunpack.c.h.b16 %v5671
    %v7177 = vunpack.c.l.b16 %v5672
    %v7178 = vunpack.c.h.b16 %v5672
    %v7179 = vunpack.c.l.b16 %v5673
    %v7180 = vunpack.c.h.b16 %v5673
    %v7181 = vunpack.c.l.b16 %v5674
    %v7182 = vunpack.c.h.b16 %v5674
    %v7183 = vunpack.c.l.b16 %v5675
    %v7184 = vunpack.c.h.b16 %v5675
    %v7185 = vunpack.c.l.b16 %v5676
    %v7186 = vunpack.c.h.b16 %v5676
    %v7187 = vunpack.c.l.b16 %v5677
    %v7188 = vunpack.c.h.b16 %v5677
    %v7189 = vunpack.c.l.b16 %v5678
    %v7190 = vunpack.c.h.b16 %v5678
    %v7191 = vunpack.c.l.b16 %v5679
    %v7192 = vunpack.c.h.b16 %v5679
    %v7193 = vunpack.c.l.b16 %v5680
    %v7194 = vunpack.c.h.b16 %v5680
    %v7195 = vunpack.c.l.b16 %v5681
    %v7196 = vunpack.c.h.b16 %v5681
    %v7197 = vunpack.c.l.b16 %v5682
    %v7198 = vunpack.c.h.b16 %v5682
    %v7199 = vunpack.c.l.b16 %v5683
    %v7200 = vunpack.c.h.b16 %v5683
    %v7201 = vunpack.c.l.b16 %v5684
    %v7202 = vunpack.c.h.b16 %v5684
    %v7203 = vunpack.c.l.b16 %v5685
    %v7204 = vunpack.c.h.b16 %v5685
    %v7205 = vunpack.c.l.b16 %v5686
    %v7206 = vunpack.c.h.b16 %v5686
    %v7207 = vunpack.c.l.b16 %v5687
    %v7208 = vunpack.c.h.b16 %v5687
    %v7209 = vunpack.c.l.b16 %v5688
    %v7210 = vunpack.c.h.b16 %v5688
    %v7211 = vunpack.c.l.b16 %v5689
    %v7212 = vunpack.c.h.b16 %v5689
    %v7213 = vunpack.c.l.b16 %v5690
    %v7214 = vunpack.c.h.b16 %v5690
    %v7215 = vunpack.c.l.b16 %v5691
    %v7216 = vunpack.c.h.b16 %v5691
    %v7217 = vunpack.c.l.b16 %v5692
    %v7218 = vunpack.c.h.b16 %v5692
    %v7219 = vunpack.c.l.b16 %v5693
    %v7220 = vunpack.c.h.b16 %v5693
    %v7221 = vunpack.c.l.b16 %v5694
    %v7222 = vunpack.c.h.b16 %v5694
    %v7223 = vunpack.c.l.b16 %v5695
    %v7224 = vunpack.c.h.b16 %v5695
    %v7225 = vunpack.c.l.b16 %v5696
    %v7226 = vunpack.c.h.b16 %v5696
    %v7227 = vunpack.c.l.b16 %v5697
    %v7228 = vunpack.c.h.b16 %v5697
    %v7229 = vunpack.c.l.b16 %v5698
    %v7230 = vunpack.c.h.b16 %v5698
    %v7231 = vunpack.c.l.b16 %v5699
    %v7232 = vunpack.c.h.b16 %v5699
    %v7233 = vunpack.c.l.b16 %v5700
    %v7234 = vunpack.c.h.b16 %v5700
    %v7235 = vunpack.c.l.b16 %v5701
    %v7236 = vunpack.c.h.b16 %v5701
    %v7237 = vunpack.c.l.b16 %v5702
    %v7238 = vunpack.c.h.b16 %v5702
    %v7239 = vpack.c.b16 %v6231, %v6215
    %v7240 = vpack.c.b16 %v6232, %v6216
    %v7241 = vpack.c.b16 %v6233, %v6217
    %v7242 = vpack.c.b16 %v6234, %v6218
    %v7243 = vpack.c.b16 %v6235, %v6219
    %v7244 = vpack.c.b16 %v6236, %v6220
    %v7245 = vpack.c.b16 %v6237, %v6221
    %v7246 = vpack.c.b16 %v6238, %v6222
    %v7247 = vpack.c.b16 %v6239, %v6223
    %v7248 = vpack.c.b16 %v6240, %v6224
    %v7249 = vpack.c.b16 %v6241, %v6225
    %v7250 = vpack.c.b16 %v6242, %v6226
    %v7251 = vpack.c.b16 %v6243, %v6227
    %v7252 = vpack.c.b16 %v6244, %v6228
    %v7253 = vpack.c.b16 %v6245, %v6229
    %v7254 = vpack.c.b16 %v6246, %v6230
    %v7255 = vpack.c.b16 %v6263, %v6247
    %v7256 = vpack.c.b16 %v6264, %v6248
    %v7257 = vpack.c.b16 %v6265, %v6249
    %v7258 = vpack.c.b16 %v6266, %v6250
    %v7259 = vpack.c.b16 %v6267, %v6251
    %v7260 = vpack.c.b16 %v6268, %v6252
    %v7261 = vpack.c.b16 %v6269, %v6253
    %v7262 = vpack.c.b16 %v6270, %v6254
    %v7263 = vpack.c.b16 %v6271, %v6255
    %v7264 = vpack.c.b16 %v6272, %v6256
    %v7265 = vpack.c.b16 %v6273, %v6257
    %v7266 = vpack.c.b16 %v6274, %v6258
    %v7267 = vpack.c.b16 %v6275, %v6259
    %v7268 = vpack.c.b16 %v6276, %v6260
    %v7269 = vpack.c.b16 %v6277, %v6261
    %v7270 = vpack.c.b16 %v6278, %v6262
    %v7271 = vpack.c.b16 %v6295, %v6279
    %v7272 = vpack.c.b16 %v6296, %v6280
    %v7273 = vpack.c.b16 %v6297, %v6281
    %v7274 = vpack.c.b16 %v6298, %v6282
    %v7275 = vpack.c.b16 %v6299, %v6283
    %v7276 = vpack.c.b16 %v6300, %v6284
    %v7277 = vpack.c.b16 %v6301, %v6285
    %v7278 = vpack.c.b16 %v6302, %v6286
    %v7279 = vpack.c.b16 %v6303, %v6287
    %v7280 = vpack.c.b16 %v6304, %v6288
    %v7281 = vpack.c.b16 %v6305, %v6289
    %v7282 = vpack.c.b16 %v6306, %v6290
    %v7283 = vpack.c.b16 %v6307, %v6291
    %v7284 = vpack.c.b16 %v6308, %v6292
    %v7285 = vpack.c.b16 %v6309, %v6293
    %v7286 = vpack.c.b16 %v6310, %v6294
    %v7287 = vpack.c.b16 %v6327, %v6311
    %v7288 = vpack.c.b16 %v6328, %v6312
    %v7289 = vpack.c.b16 %v6329, %v6313
    %v7290 = vpack.c.b16 %v6330, %v6314
    %v7291 = vpack.c.b16 %v6331, %v6315
    %v7292 = vpack.c.b16 %v6332, %v6316
    %v7293 = vpack.c.b16 %v6333, %v6317
    %v7294 = vpack.c.b16 %v6334, %v6318
    %v7295 = vpack.c.b16 %v6335, %v6319
    %v7296 = vpack.c.b16 %v6336, %v6320
    %v7297 = vpack.c.b16 %v6337, %v6321
    %v7298 = vpack.c.b16 %v6338, %v6322
    %v7299 = vpack.c.b16 %v6339, %v6323
    %v7300 = vpack.c.b16 %v6340, %v6324
    %v7301 = vpack.c.b16 %v6341, %v6325
    %v7302 = vpack.c.b16 %v6342, %v6326
    %v7303 = vpack.c.b16 %v6359, %v6343
    %v7304 = vpack.c.b16 %v6360, %v6344
    %v7305 = vpack.c.b16 %v6361, %v6345
    %v7306 = vpack.c.b16 %v6362, %v6346
    %v7307 = vpack.c.b16 %v6363, %v6347
    %v7308 = vpack.c.b16 %v6364, %v6348
    %v7309 = vpack.c.b16 %v6365, %v6349
    %v7310 = vpack.c.b16 %v6366, %v6350
    %v7311 = vpack.c.b16 %v6367, %v6351
    %v7312 = vpack.c.b16 %v6368, %v6352
    %v7313 = vpack.c.b16 %v6369, %v6353
    %v7314 = vpack.c.b16 %v6370, %v6354
    %v7315 = vpack.c.b16 %v6371, %v6355
    %v7316 = vpack.c.b16 %v6372, %v6356
    %v7317 = vpack.c.b16 %v6373, %v6357
    %v7318 = vpack.c.b16 %v6374, %v6358
    %v7319 = vpack.c.b16 %v6391, %v6375
    %v7320 = vpack.c.b16 %v6392, %v6376
    %v7321 = vpack.c.b16 %v6393, %v6377
    %v7322 = vpack.c.b16 %v6394, %v6378
    %v7323 = vpack.c.b16 %v6395, %v6379
    %v7324 = vpack.c.b16 %v6396, %v6380
    %v7325 = vpack.c.b16 %v6397, %v6381
    %v7326 = vpack.c.b16 %v6398, %v6382
    %v7327 = vpack.c.b16 %v6399, %v6383
    %v7328 = vpack.c.b16 %v6400, %v6384
    %v7329 = vpack.c.b16 %v6401, %v6385
    %v7330 = vpack.c.b16 %v6402, %v6386
    %v7331 = vpack.c.b16 %v6403, %v6387
    %v7332 = vpack.c.b16 %v6404, %v6388
    %v7333 = vpack.c.b16 %v6405, %v6389
    %v7334 = vpack.c.b16 %v6406, %v6390
    %v7335 = vpack.c.b16 %v6423, %v6407
    %v7336 = vpack.c.b16 %v6424, %v6408
    %v7337 = vpack.c.b16 %v6425, %v6409
    %v7338 = vpack.c.b16 %v6426, %v6410
    %v7339 = vpack.c.b16 %v6427, %v6411
    %v7340 = vpack.c.b16 %v6428, %v6412
    %v7341 = vpack.c.b16 %v6429, %v6413
    %v7342 = vpack.c.b16 %v6430, %v6414
    %v7343 = vpack.c.b16 %v6431, %v6415
    %v7344 = vpack.c.b16 %v6432, %v6416
    %v7345 = vpack.c.b16 %v6433, %v6417
    %v7346 = vpack.c.b16 %v6434, %v6418
    %v7347 = vpack.c.b16 %v6435, %v6419
    %v7348 = vpack.c.b16 %v6436, %v6420
    %v7349 = vpack.c.b16 %v6437, %v6421
    %v7350 = vpack.c.b16 %v6438, %v6422
    %v7351 = vpack.c.b16 %v6455, %v6439
    %v7352 = vpack.c.b16 %v6456, %v6440
    %v7353 = vpack.c.b16 %v6457, %v6441
    %v7354 = vpack.c.b16 %v6458, %v6442
    %v7355 = vpack.c.b16 %v6459, %v6443
    %v7356 = vpack.c.b16 %v6460, %v6444
    %v7357 = vpack.c.b16 %v6461, %v6445
    %v7358 = vpack.c.b16 %v6462, %v6446
    %v7359 = vpack.c.b16 %v6463, %v6447
    %v7360 = vpack.c.b16 %v6464, %v6448
    %v7361 = vpack.c.b16 %v6465, %v6449
    %v7362 = vpack.c.b16 %v6466, %v6450
    %v7363 = vpack.c.b16 %v6467, %v6451
    %v7364 = vpack.c.b16 %v6468, %v6452
    %v7365 = vpack.c.b16 %v6469, %v6453
    %v7366 = vpack.c.b16 %v6470, %v6454
    %v7367 = vpack.c.b16 %v6487, %v6471
    %v7368 = vpack.c.b16 %v6488, %v6472
    %v7369 = vpack.c.b16 %v6489, %v6473
    %v7370 = vpack.c.b16 %v6490, %v6474
    %v7371 = vpack.c.b16 %v6491, %v6475
    %v7372 = vpack.c.b16 %v6492, %v6476
    %v7373 = vpack.c.b16 %v6493, %v6477
    %v7374 = vpack.c.b16 %v6494, %v6478
    %v7375 = vpack.c.b16 %v6495, %v6479
    %v7376 = vpack.c.b16 %v6496, %v6480
    %v7377 = vpack.c.b16 %v6497, %v6481
    %v7378 = vpack.c.b16 %v6498, %v6482
    %v7379 = vpack.c.b16 %v6499, %v6483
    %v7380 = vpack.c.b16 %v6500, %v6484
    %v7381 = vpack.c.b16 %v6501, %v6485
    %v7382 = vpack.c.b16 %v6502, %v6486
    %v7383 = vpack.c.b16 %v6519, %v6503
    %v7384 = vpack.c.b16 %v6520, %v6504
    %v7385 = vpack.c.b16 %v6521, %v6505
    %v7386 = vpack.c.b16 %v6522, %v6506
    %v7387 = vpack.c.b16 %v6523, %v6507
    %v7388 = vpack.c.b16 %v6524, %v6508
    %v7389 = vpack.c.b16 %v6525, %v6509
    %v7390 = vpack.c.b16 %v6526, %v6510
    %v7391 = vpack.c.b16 %v6527, %v6511
    %v7392 = vpack.c.b16 %v6528, %v6512
    %v7393 = vpack.c.b16 %v6529, %v6513
    %v7394 = vpack.c.b16 %v6530, %v6514
    %v7395 = vpack.c.b16 %v6531, %v6515
    %v7396 = vpack.c.b16 %v6532, %v6516
    %v7397 = vpack.c.b16 %v6533, %v6517
    %v7398 = vpack.c.b16 %v6534, %v6518
    %v7399 = vpack.c.b16 %v6551, %v6535
    %v7400 = vpack.c.b16 %v6552, %v6536
    %v7401 = vpack.c.b16 %v6553, %v6537
    %v7402 = vpack.c.b16 %v6554, %v6538
    %v7403 = vpack.c.b16 %v6555, %v6539
    %v7404 = vpack.c.b16 %v6556, %v6540
    %v7405 = vpack.c.b16 %v6557, %v6541
    %v7406 = vpack.c.b16 %v6558, %v6542
    %v7407 = vpack.c.b16 %v6559, %v6543
    %v7408 = vpack.c.b16 %v6560, %v6544
    %v7409 = vpack.c.b16 %v6561, %v6545
    %v7410 = vpack.c.b16 %v6562, %v6546
    %v7411 = vpack.c.b16 %v6563, %v6547
    %v7412 = vpack.c.b16 %v6564, %v6548
    %v7413 = vpack.c.b16 %v6565, %v6549
    %v7414 = vpack.c.b16 %v6566, %v6550
    %v7415 = vpack.c.b16 %v6583, %v6567
    %v7416 = vpack.c.b16 %v6584, %v6568
    %v7417 = vpack.c.b16 %v6585, %v6569
    %v7418 = vpack.c.b16 %v6586, %v6570
    %v7419 = vpack.c.b16 %v6587, %v6571
    %v7420 = vpack.c.b16 %v6588, %v6572
    %v7421 = vpack.c.b16 %v6589, %v6573
    %v7422 = vpack.c.b16 %v6590, %v6574
    %v7423 = vpack.c.b16 %v6591, %v6575
    %v7424 = vpack.c.b16 %v6592, %v6576
    %v7425 = vpack.c.b16 %v6593, %v6577
    %v7426 = vpack.c.b16 %v6594, %v6578
    %v7427 = vpack.c.b16 %v6595, %v6579
    %v7428 = vpack.c.b16 %v6596, %v6580
    %v7429 = vpack.c.b16 %v6597, %v6581
    %v7430 = vpack.c.b16 %v6598, %v6582
    %v7431 = vpack.c.b16 %v6615, %v6599
    %v7432 = vpack.c.b16 %v6616, %v6600
    %v7433 = vpack.c.b16 %v6617, %v6601
    %v7434 = vpack.c.b16 %v6618, %v6602
    %v7435 = vpack.c.b16 %v6619, %v6603
    %v7436 = vpack.c.b16 %v6620, %v6604
    %v7437 = vpack.c.b16 %v6621, %v6605
    %v7438 = vpack.c.b16 %v6622, %v6606
    %v7439 = vpack.c.b16 %v6623, %v6607
    %v7440 = vpack.c.b16 %v6624, %v6608
    %v7441 = vpack.c.b16 %v6625, %v6609
    %v7442 = vpack.c.b16 %v6626, %v6610
    %v7443 = vpack.c.b16 %v6627, %v6611
    %v7444 = vpack.c.b16 %v6628, %v6612
    %v7445 = vpack.c.b16 %v6629, %v6613
    %v7446 = vpack.c.b16 %v6630, %v6614
    %v7447 = vpack.c.b16 %v6647, %v6631
    %v7448 = vpack.c.b16 %v6648, %v6632
    %v7449 = vpack.c.b16 %v6649, %v6633
    %v7450 = vpack.c.b16 %v6650, %v6634
    %v7451 = vpack.c.b16 %v6651, %v6635
    %v7452 = vpack.c.b16 %v6652, %v6636
    %v7453 = vpack.c.b16 %v6653, %v6637
    %v7454 = vpack.c.b16 %v6654, %v6638
    %v7455 = vpack.c.b16 %v6655, %v6639
    %v7456 = vpack.c.b16 %v6656, %v6640
    %v7457 = vpack.c.b16 %v6657, %v6641
    %v7458 = vpack.c.b16 %v6658, %v6642
    %v7459 = vpack.c.b16 %v6659, %v6643
    %v7460 = vpack.c.b16 %v6660, %v6644
    %v7461 = vpack.c.b16 %v6661, %v6645
    %v7462 = vpack.c.b16 %v6662, %v6646
    %v7463 = vpack.c.b16 %v6679, %v6663
    %v7464 = vpack.c.b16 %v6680, %v6664
    %v7465 = vpack.c.b16 %v6681, %v6665
    %v7466 = vpack.c.b16 %v6682, %v6666
    %v7467 = vpack.c.b16 %v6683, %v6667
    %v7468 = vpack.c.b16 %v6684, %v6668
    %v7469 = vpack.c.b16 %v6685, %v6669
    %v7470 = vpack.c.b16 %v6686, %v6670
    %v7471 = vpack.c.b16 %v6687, %v6671
    %v7472 = vpack.c.b16 %v6688, %v6672
    %v7473 = vpack.c.b16 %v6689, %v6673
    %v7474 = vpack.c.b16 %v6690, %v6674
    %v7475 = vpack.c.b16 %v6691, %v6675
    %v7476 = vpack.c.b16 %v6692, %v6676
    %v7477 = vpack.c.b16 %v6693, %v6677
    %v7478 = vpack.c.b16 %v6694, %v6678
    %v7479 = vpack.c.b16 %v6711, %v6695
    %v7480 = vpack.c.b16 %v6712, %v6696
    %v7481 = vpack.c.b16 %v6713, %v6697
    %v7482 = vpack.c.b16 %v6714, %v6698
    %v7483 = vpack.c.b16 %v6715, %v6699
    %v7484 = vpack.c.b16 %v6716, %v6700
    %v7485 = vpack.c.b16 %v6717, %v6701
    %v7486 = vpack.c.b16 %v6718, %v6702
    %v7487 = vpack.c.b16 %v6719, %v6703
    %v7488 = vpack.c.b16 %v6720, %v6704
    %v7489 = vpack.c.b16 %v6721, %v6705
    %v7490 = vpack.c.b16 %v6722, %v6706
    %v7491 = vpack.c.b16 %v6723, %v6707
    %v7492 = vpack.c.b16 %v6724, %v6708
    %v7493 = vpack.c.b16 %v6725, %v6709
    %v7494 = vpack.c.b16 %v6726, %v6710
    %v7495 = vpack.c.b16 %v6743, %v6727
    %v7496 = vpack.c.b16 %v6744, %v6728
    %v7497 = vpack.c.b16 %v6745, %v6729
    %v7498 = vpack.c.b16 %v6746, %v6730
    %v7499 = vpack.c.b16 %v6747, %v6731
    %v7500 = vpack.c.b16 %v6748, %v6732
    %v7501 = vpack.c.b16 %v6749, %v6733
    %v7502 = vpack.c.b16 %v6750, %v6734
    %v7503 = vpack.c.b16 %v6751, %v6735
    %v7504 = vpack.c.b16 %v6752, %v6736
    %v7505 = vpack.c.b16 %v6753, %v6737
    %v7506 = vpack.c.b16 %v6754, %v6738
    %v7507 = vpack.c.b16 %v6755, %v6739
    %v7508 = vpack.c.b16 %v6756, %v6740
    %v7509 = vpack.c.b16 %v6757, %v6741
    %v7510 = vpack.c.b16 %v6758, %v6742
    %v7511 = vpack.c.b16 %v6775, %v6759
    %v7512 = vpack.c.b16 %v6776, %v6760
    %v7513 = vpack.c.b16 %v6777, %v6761
    %v7514 = vpack.c.b16 %v6778, %v6762
    %v7515 = vpack.c.b16 %v6779, %v6763
    %v7516 = vpack.c.b16 %v6780, %v6764
    %v7517 = vpack.c.b16 %v6781, %v6765
    %v7518 = vpack.c.b16 %v6782, %v6766
    %v7519 = vpack.c.b16 %v6783, %v6767
    %v7520 = vpack.c.b16 %v6784, %v6768
    %v7521 = vpack.c.b16 %v6785, %v6769
    %v7522 = vpack.c.b16 %v6786, %v6770
    %v7523 = vpack.c.b16 %v6787, %v6771
    %v7524 = vpack.c.b16 %v6788, %v6772
    %v7525 = vpack.c.b16 %v6789, %v6773
    %v7526 = vpack.c.b16 %v6790, %v6774
    %v7527 = vpack.c.b16 %v6807, %v6791
    %v7528 = vpack.c.b16 %v6808, %v6792
    %v7529 = vpack.c.b16 %v6809, %v6793
    %v7530 = vpack.c.b16 %v6810, %v6794
    %v7531 = vpack.c.b16 %v6811, %v6795
    %v7532 = vpack.c.b16 %v6812, %v6796
    %v7533 = vpack.c.b16 %v6813, %v6797
    %v7534 = vpack.c.b16 %v6814, %v6798
    %v7535 = vpack.c.b16 %v6815, %v6799
    %v7536 = vpack.c.b16 %v6816, %v6800
    %v7537 = vpack.c.b16 %v6817, %v6801
    %v7538 = vpack.c.b16 %v6818, %v6802
    %v7539 = vpack.c.b16 %v6819, %v6803
    %v7540 = vpack.c.b16 %v6820, %v6804
    %v7541 = vpack.c.b16 %v6821, %v6805
    %v7542 = vpack.c.b16 %v6822, %v6806
    %v7543 = vpack.c.b16 %v6839, %v6823
    %v7544 = vpack.c.b16 %v6840, %v6824
    %v7545 = vpack.c.b16 %v6841, %v6825
    %v7546 = vpack.c.b16 %v6842, %v6826
    %v7547 = vpack.c.b16 %v6843, %v6827
    %v7548 = vpack.c.b16 %v6844, %v6828
    %v7549 = vpack.c.b16 %v6845, %v6829
    %v7550 = vpack.c.b16 %v6846, %v6830
    %v7551 = vpack.c.b16 %v6847, %v6831
    %v7552 = vpack.c.b16 %v6848, %v6832
    %v7553 = vpack.c.b16 %v6849, %v6833
    %v7554 = vpack.c.b16 %v6850, %v6834
    %v7555 = vpack.c.b16 %v6851, %v6835
    %v7556 = vpack.c.b16 %v6852, %v6836
    %v7557 = vpack.c.b16 %v6853, %v6837
    %v7558 = vpack.c.b16 %v6854, %v6838
    %v7559 = vpack.c.b16 %v6871, %v6855
    %v7560 = vpack.c.b16 %v6872, %v6856
    %v7561 = vpack.c.b16 %v6873, %v6857
    %v7562 = vpack.c.b16 %v6874, %v6858
    %v7563 = vpack.c.b16 %v6875, %v6859
    %v7564 = vpack.c.b16 %v6876, %v6860
    %v7565 = vpack.c.b16 %v6877, %v6861
    %v7566 = vpack.c.b16 %v6878, %v6862
    %v7567 = vpack.c.b16 %v6879, %v6863
    %v7568 = vpack.c.b16 %v6880, %v6864
    %v7569 = vpack.c.b16 %v6881, %v6865
    %v7570 = vpack.c.b16 %v6882, %v6866
    %v7571 = vpack.c.b16 %v6883, %v6867
    %v7572 = vpack.c.b16 %v6884, %v6868
    %v7573 = vpack.c.b16 %v6885, %v6869
    %v7574 = vpack.c.b16 %v6886, %v6870
    %v7575 = vpack.c.b16 %v6903, %v6887
    %v7576 = vpack.c.b16 %v6904, %v6888
    %v7577 = vpack.c.b16 %v6905, %v6889
    %v7578 = vpack.c.b16 %v6906, %v6890
    %v7579 = vpack.c.b16 %v6907, %v6891
    %v7580 = vpack.c.b16 %v6908, %v6892
    %v7581 = vpack.c.b16 %v6909, %v6893
    %v7582 = vpack.c.b16 %v6910, %v6894
    %v7583 = vpack.c.b16 %v6911, %v6895
    %v7584 = vpack.c.b16 %v6912, %v6896
    %v7585 = vpack.c.b16 %v6913, %v6897
    %v7586 = vpack.c.b16 %v6914, %v6898
    %v7587 = vpack.c.b16 %v6915, %v6899
    %v7588 = vpack.c.b16 %v6916, %v6900
    %v7589 = vpack.c.b16 %v6917, %v6901
    %v7590 = vpack.c.b16 %v6918, %v6902
    %v7591 = vpack.c.b16 %v6935, %v6919
    %v7592 = vpack.c.b16 %v6936, %v6920
    %v7593 = vpack.c.b16 %v6937, %v6921
    %v7594 = vpack.c.b16 %v6938, %v6922
    %v7595 = vpack.c.b16 %v6939, %v6923
    %v7596 = vpack.c.b16 %v6940, %v6924
    %v7597 = vpack.c.b16 %v6941, %v6925
    %v7598 = vpack.c.b16 %v6942, %v6926
    %v7599 = vpack.c.b16 %v6943, %v6927
    %v7600 = vpack.c.b16 %v6944, %v6928
    %v7601 = vpack.c.b16 %v6945, %v6929
    %v7602 = vpack.c.b16 %v6946, %v6930
    %v7603 = vpack.c.b16 %v6947, %v6931
    %v7604 = vpack.c.b16 %v6948, %v6932
    %v7605 = vpack.c.b16 %v6949, %v6933
    %v7606 = vpack.c.b16 %v6950, %v6934
    %v7607 = vpack.c.b16 %v6967, %v6951
    %v7608 = vpack.c.b16 %v6968, %v6952
    %v7609 = vpack.c.b16 %v6969, %v6953
    %v7610 = vpack.c.b16 %v6970, %v6954
    %v7611 = vpack.c.b16 %v6971, %v6955
    %v7612 = vpack.c.b16 %v6972, %v6956
    %v7613 = vpack.c.b16 %v6973, %v6957
    %v7614 = vpack.c.b16 %v6974, %v6958
    %v7615 = vpack.c.b16 %v6975, %v6959
    %v7616 = vpack.c.b16 %v6976, %v6960
    %v7617 = vpack.c.b16 %v6977, %v6961
    %v7618 = vpack.c.b16 %v6978, %v6962
    %v7619 = vpack.c.b16 %v6979, %v6963
    %v7620 = vpack.c.b16 %v6980, %v6964
    %v7621 = vpack.c.b16 %v6981, %v6965
    %v7622 = vpack.c.b16 %v6982, %v6966
    %v7623 = vpack.c.b16 %v6999, %v6983
    %v7624 = vpack.c.b16 %v7000, %v6984
    %v7625 = vpack.c.b16 %v7001, %v6985
    %v7626 = vpack.c.b16 %v7002, %v6986
    %v7627 = vpack.c.b16 %v7003, %v6987
    %v7628 = vpack.c.b16 %v7004, %v6988
    %v7629 = vpack.c.b16 %v7005, %v6989
    %v7630 = vpack.c.b16 %v7006, %v6990
    %v7631 = vpack.c.b16 %v7007, %v6991
    %v7632 = vpack.c.b16 %v7008, %v6992
    %v7633 = vpack.c.b16 %v7009, %v6993
    %v7634 = vpack.c.b16 %v7010, %v6994
    %v7635 = vpack.c.b16 %v7011, %v6995
    %v7636 = vpack.c.b16 %v7012, %v6996
    %v7637 = vpack.c.b16 %v7013, %v6997
    %v7638 = vpack.c.b16 %v7014, %v6998
    %v7639 = vpack.c.b16 %v7031, %v7015
    %v7640 = vpack.c.b16 %v7032, %v7016
    %v7641 = vpack.c.b16 %v7033, %v7017
    %v7642 = vpack.c.b16 %v7034, %v7018
    %v7643 = vpack.c.b16 %v7035, %v7019
    %v7644 = vpack.c.b16 %v7036, %v7020
    %v7645 = vpack.c.b16 %v7037, %v7021
    %v7646 = vpack.c.b16 %v7038, %v7022
    %v7647 = vpack.c.b16 %v7039, %v7023
    %v7648 = vpack.c.b16 %v7040, %v7024
    %v7649 = vpack.c.b16 %v7041, %v7025
    %v7650 = vpack.c.b16 %v7042, %v7026
    %v7651 = vpack.c.b16 %v7043, %v7027
    %v7652 = vpack.c.b16 %v7044, %v7028
    %v7653 = vpack.c.b16 %v7045, %v7029
    %v7654 = vpack.c.b16 %v7046, %v7030
    %v7655 = vpack.c.b16 %v7063, %v7047
    %v7656 = vpack.c.b16 %v7064, %v7048
    %v7657 = vpack.c.b16 %v7065, %v7049
    %v7658 = vpack.c.b16 %v7066, %v7050
    %v7659 = vpack.c.b16 %v7067, %v7051
    %v7660 = vpack.c.b16 %v7068, %v7052
    %v7661 = vpack.c.b16 %v7069, %v7053
    %v7662 = vpack.c.b16 %v7070, %v7054
    %v7663 = vpack.c.b16 %v7071, %v7055
    %v7664 = vpack.c.b16 %v7072, %v7056
    %v7665 = vpack.c.b16 %v7073, %v7057
    %v7666 = vpack.c.b16 %v7074, %v7058
    %v7667 = vpack.c.b16 %v7075, %v7059
    %v7668 = vpack.c.b16 %v7076, %v7060
    %v7669 = vpack.c.b16 %v7077, %v7061
    %v7670 = vpack.c.b16 %v7078, %v7062
    %v7671 = vpack.c.b16 %v7095, %v7079
    %v7672 = vpack.c.b16 %v7096, %v7080
    %v7673 = vpack.c.b16 %v7097, %v7081
    %v7674 = vpack.c.b16 %v7098, %v7082
    %v7675 = vpack.c.b16 %v7099, %v7083
    %v7676 = vpack.c.b16 %v7100, %v7084
    %v7677 = vpack.c.b16 %v7101, %v7085
    %v7678 = vpack.c.b16 %v7102, %v7086
    %v7679 = vpack.c.b16 %v7103, %v7087
    %v7680 = vpack.c.b16 %v7104, %v7088
    %v7681 = vpack.c.b16 %v7105, %v7089
    %v7682 = vpack.c.b16 %v7106, %v7090
    %v7683 = vpack.c.b16 %v7107, %v7091
    %v7684 = vpack.c.b16 %v7108, %v7092
    %v7685 = vpack.c.b16 %v7109, %v7093
    %v7686 = vpack.c.b16 %v7110, %v7094
    %v7687 = vpack.c.b16 %v7127, %v7111
    %v7688 = vpack.c.b16 %v7128, %v7112
    %v7689 = vpack.c.b16 %v7129, %v7113
    %v7690 = vpack.c.b16 %v7130, %v7114
    %v7691 = vpack.c.b16 %v7131, %v7115
    %v7692 = vpack.c.b16 %v7132, %v7116
    %v7693 = vpack.c.b16 %v7133, %v7117
    %v7694 = vpack.c.b16 %v7134, %v7118
    %v7695 = vpack.c.b16 %v7135, %v7119
    %v7696 = vpack.c.b16 %v7136, %v7120
    %v7697 = vpack.c.b16 %v7137, %v7121
    %v7698 = vpack.c.b16 %v7138, %v7122
    %v7699 = vpack.c.b16 %v7139, %v7123
    %v7700 = vpack.c.b16 %v7140, %v7124
    %v7701 = vpack.c.b16 %v7141, %v7125
    %v7702 = vpack.c.b16 %v7142, %v7126
    %v7703 = vpack.c.b16 %v7159, %v7143
    %v7704 = vpack.c.b16 %v7160, %v7144
    %v7705 = vpack.c.b16 %v7161, %v7145
    %v7706 = vpack.c.b16 %v7162, %v7146
    %v7707 = vpack.c.b16 %v7163, %v7147
    %v7708 = vpack.c.b16 %v7164, %v7148
    %v7709 = vpack.c.b16 %v7165, %v7149
    %v7710 = vpack.c.b16 %v7166, %v7150
    %v7711 = vpack.c.b16 %v7167, %v7151
    %v7712 = vpack.c.b16 %v7168, %v7152
    %v7713 = vpack.c.b16 %v7169, %v7153
    %v7714 = vpack.c.b16 %v7170, %v7154
    %v7715 = vpack.c.b16 %v7171, %v7155
    %v7716 = vpack.c.b16 %v7172, %v7156
    %v7717 = vpack.c.b16 %v7173, %v7157
    %v7718 = vpack.c.b16 %v7174, %v7158
    %v7719 = vpack.c.b16 %v7191, %v7175
    %v7720 = vpack.c.b16 %v7192, %v7176
    %v7721 = vpack.c.b16 %v7193, %v7177
    %v7722 = vpack.c.b16 %v7194, %v7178
    %v7723 = vpack.c.b16 %v7195, %v7179
    %v7724 = vpack.c.b16 %v7196, %v7180
    %v7725 = vpack.c.b16 %v7197, %v7181
    %v7726 = vpack.c.b16 %v7198, %v7182
    %v7727 = vpack.c.b16 %v7199, %v7183
    %v7728 = vpack.c.b16 %v7200, %v7184
    %v7729 = vpack.c.b16 %v7201, %v7185
    %v7730 = vpack.c.b16 %v7202, %v7186
    %v7731 = vpack.c.b16 %v7203, %v7187
    %v7732 = vpack.c.b16 %v7204, %v7188
    %v7733 = vpack.c.b16 %v7205, %v7189
    %v7734 = vpack.c.b16 %v7206, %v7190
    %v7735 = vpack.c.b16 %v7223, %v7207
    %v7736 = vpack.c.b16 %v7224, %v7208
    %v7737 = vpack.c.b16 %v7225, %v7209
    %v7738 = vpack.c.b16 %v7226, %v7210
    %v7739 = vpack.c.b16 %v7227, %v7211
    %v7740 = vpack.c.b16 %v7228, %v7212
    %v7741 = vpack.c.b16 %v7229, %v7213
    %v7742 = vpack.c.b16 %v7230, %v7214
    %v7743 = vpack.c.b16 %v7231, %v7215
    %v7744 = vpack.c.b16 %v7232, %v7216
    %v7745 = vpack.c.b16 %v7233, %v7217
    %v7746 = vpack.c.b16 %v7234, %v7218
    %v7747 = vpack.c.b16 %v7235, %v7219
    %v7748 = vpack.c.b16 %v7236, %v7220
    %v7749 = vpack.c.b16 %v7237, %v7221
    %v7750 = vpack.c.b16 %v7238, %v7222
    %8263 = vmatpush.bf16.msra.mxu0 %v7351
    %8264 = vmatpush.bf16.msra.mxu0 %v7335
    %8265 = vmatpush.bf16.msra.mxu0 %v7319
    %8266 = vmatpush.bf16.msra.mxu0 %v7303
    %8267 = vmatpush.bf16.msra.mxu0 %v7287
    %8268 = vmatpush.bf16.msra.mxu0 %v7271
    %8269 = vmatpush.bf16.msra.mxu0 %v7255
    %8270 = vmatpush.bf16.msra.mxu0 %v7239
    %8271 = vmatmul.bf16.gmra.mxu0 %v5187
    %v8272 = vpop.f32.mrf.mxu0
    %v8273 = vadd.f32 0.0, %v8272
    %v8274 = vpop.f32.mrf.mxu0
    %v8275 = vadd.f32 0.0, %v8274
    %8276 = vdwg.mxu0
    %8277 = vmatpush.bf16.msra.mxu0 %v7479
    %8278 = vmatpush.bf16.msra.mxu0 %v7463
    %8279 = vmatpush.bf16.msra.mxu0 %v7447
    %8280 = vmatpush.bf16.msra.mxu0 %v7431
    %8281 = vmatpush.bf16.msra.mxu0 %v7415
    %8282 = vmatpush.bf16.msra.mxu0 %v7399
    %8283 = vmatpush.bf16.msra.mxu0 %v7383
    %8284 = vmatpush.bf16.msra.mxu0 %v7367
    %8285 = vmatmul.bf16.gmra.mxu0 %v5188
    %v8286 = vpop.f32.mrf.mxu0
    %v8287 = vadd.f32 %v8273, %v8286
    %v8288 = vpop.f32.mrf.mxu0
    %v8289 = vadd.f32 %v8275, %v8288
    %8290 = vdwg.mxu0
    %8291 = vmatpush.bf16.msra.mxu0 %v7607
    %8292 = vmatpush.bf16.msra.mxu0 %v7591
    %8293 = vmatpush.bf16.msra.mxu0 %v7575
    %8294 = vmatpush.bf16.msra.mxu0 %v7559
    %8295 = vmatpush.bf16.msra.mxu0 %v7543
    %8296 = vmatpush.bf16.msra.mxu0 %v7527
    %8297 = vmatpush.bf16.msra.mxu0 %v7511
    %8298 = vmatpush.bf16.msra.mxu0 %v7495
    %8299 = vmatmul.bf16.gmra.mxu0 %v5189
    %v8300 = vpop.f32.mrf.mxu0
    %v8301 = vadd.f32 %v8287, %v8300
    %v8302 = vpop.f32.mrf.mxu0
    %v8303 = vadd.f32 %v8289, %v8302
    %8304 = vdwg.mxu0
    %8305 = vmatpush.bf16.msra.mxu0 %v7735
    %8306 = vmatpush.bf16.msra.mxu0 %v7719
    %8307 = vmatpush.bf16.msra.mxu0 %v7703
    %8308 = vmatpush.bf16.msra.mxu0 %v7687
    %8309 = vmatpush.bf16.msra.mxu0 %v7671
    %8310 = vmatpush.bf16.msra.mxu0 %v7655
    %8311 = vmatpush.bf16.msra.mxu0 %v7639
    %8312 = vmatpush.bf16.msra.mxu0 %v7623
    %8313 = vmatmul.bf16.gmra.mxu0 %v5190
    %v8314 = vpop.f32.mrf.mxu0
    %v8315 = vadd.f32 %v8301, %v8314
    %v8316 = vpop.f32.mrf.mxu0
    %v8317 = vadd.f32 %v8303, %v8316
    %8318 = vdwg.mxu0
    %8319 = vmatpush.bf16.msra.mxu0 %v7352
    %8320 = vmatpush.bf16.msra.mxu0 %v7336
    %8321 = vmatpush.bf16.msra.mxu0 %v7320
    %8322 = vmatpush.bf16.msra.mxu0 %v7304
    %8323 = vmatpush.bf16.msra.mxu0 %v7288
    %8324 = vmatpush.bf16.msra.mxu0 %v7272
    %8325 = vmatpush.bf16.msra.mxu0 %v7256
    %8326 = vmatpush.bf16.msra.mxu0 %v7240
    %8327 = vmatmul.bf16.gmra.mxu0 %v5187
    %v8328 = vpop.f32.mrf.mxu0
    %v8329 = vadd.f32 0.0, %v8328
    %v8330 = vpop.f32.mrf.mxu0
    %v8331 = vadd.f32 0.0, %v8330
    %8332 = vdwg.mxu0
    %8333 = vmatpush.bf16.msra.mxu0 %v7480
    %8334 = vmatpush.bf16.msra.mxu0 %v7464
    %8335 = vmatpush.bf16.msra.mxu0 %v7448
    %8336 = vmatpush.bf16.msra.mxu0 %v7432
    %8337 = vmatpush.bf16.msra.mxu0 %v7416
    %8338 = vmatpush.bf16.msra.mxu0 %v7400
    %8339 = vmatpush.bf16.msra.mxu0 %v7384
    %8340 = vmatpush.bf16.msra.mxu0 %v7368
    %8341 = vmatmul.bf16.gmra.mxu0 %v5188
    %v8342 = vpop.f32.mrf.mxu0
    %v8343 = vadd.f32 %v8329, %v8342
    %v8344 = vpop.f32.mrf.mxu0
    %v8345 = vadd.f32 %v8331, %v8344
    %8346 = vdwg.mxu0
    %8347 = vmatpush.bf16.msra.mxu0 %v7608
    %8348 = vmatpush.bf16.msra.mxu0 %v7592
    %8349 = vmatpush.bf16.msra.mxu0 %v7576
    %8350 = vmatpush.bf16.msra.mxu0 %v7560
    %8351 = vmatpush.bf16.msra.mxu0 %v7544
    %8352 = vmatpush.bf16.msra.mxu0 %v7528
    %8353 = vmatpush.bf16.msra.mxu0 %v7512
    %8354 = vmatpush.bf16.msra.mxu0 %v7496
    %8355 = vmatmul.bf16.gmra.mxu0 %v5189
    %v8356 = vpop.f32.mrf.mxu0
    %v8357 = vadd.f32 %v8343, %v8356
    %v8358 = vpop.f32.mrf.mxu0
    %v8359 = vadd.f32 %v8345, %v8358
    %8360 = vdwg.mxu0
    %8361 = vmatpush.bf16.msra.mxu0 %v7736
    %8362 = vmatpush.bf16.msra.mxu0 %v7720
    %8363 = vmatpush.bf16.msra.mxu0 %v7704
    %8364 = vmatpush.bf16.msra.mxu0 %v7688
    %8365 = vmatpush.bf16.msra.mxu0 %v7672
    %8366 = vmatpush.bf16.msra.mxu0 %v7656
    %8367 = vmatpush.bf16.msra.mxu0 %v7640
    %8368 = vmatpush.bf16.msra.mxu0 %v7624
    %8369 = vmatmul.bf16.gmra.mxu0 %v5190
    %v8370 = vpop.f32.mrf.mxu0
    %v8371 = vadd.f32 %v8357, %v8370
    %v8372 = vpop.f32.mrf.mxu0
    %v8373 = vadd.f32 %v8359, %v8372
    %8374 = vdwg.mxu0
    %8375 = vmatpush.bf16.msra.mxu0 %v7353
    %8376 = vmatpush.bf16.msra.mxu0 %v7337
    %8377 = vmatpush.bf16.msra.mxu0 %v7321
    %8378 = vmatpush.bf16.msra.mxu0 %v7305
    %8379 = vmatpush.bf16.msra.mxu0 %v7289
    %8380 = vmatpush.bf16.msra.mxu0 %v7273
    %8381 = vmatpush.bf16.msra.mxu0 %v7257
    %8382 = vmatpush.bf16.msra.mxu0 %v7241
    %8383 = vmatmul.bf16.gmra.mxu0 %v5187
    %v8384 = vpop.f32.mrf.mxu0
    %v8385 = vadd.f32 0.0, %v8384
    %v8386 = vpop.f32.mrf.mxu0
    %v8387 = vadd.f32 0.0, %v8386
    %8388 = vdwg.mxu0
    %8389 = vmatpush.bf16.msra.mxu0 %v7481
    %8390 = vmatpush.bf16.msra.mxu0 %v7465
    %8391 = vmatpush.bf16.msra.mxu0 %v7449
    %8392 = vmatpush.bf16.msra.mxu0 %v7433
    %8393 = vmatpush.bf16.msra.mxu0 %v7417
    %8394 = vmatpush.bf16.msra.mxu0 %v7401
    %8395 = vmatpush.bf16.msra.mxu0 %v7385
    %8396 = vmatpush.bf16.msra.mxu0 %v7369
    %8397 = vmatmul.bf16.gmra.mxu0 %v5188
    %v8398 = vpop.f32.mrf.mxu0
    %v8399 = vadd.f32 %v8385, %v8398
    %v8400 = vpop.f32.mrf.mxu0
    %v8401 = vadd.f32 %v8387, %v8400
    %8402 = vdwg.mxu0
    %8403 = vmatpush.bf16.msra.mxu0 %v7609
    %8404 = vmatpush.bf16.msra.mxu0 %v7593
    %8405 = vmatpush.bf16.msra.mxu0 %v7577
    %8406 = vmatpush.bf16.msra.mxu0 %v7561
    %8407 = vmatpush.bf16.msra.mxu0 %v7545
    %8408 = vmatpush.bf16.msra.mxu0 %v7529
    %8409 = vmatpush.bf16.msra.mxu0 %v7513
    %8410 = vmatpush.bf16.msra.mxu0 %v7497
    %8411 = vmatmul.bf16.gmra.mxu0 %v5189
    %v8412 = vpop.f32.mrf.mxu0
    %v8413 = vadd.f32 %v8399, %v8412
    %v8414 = vpop.f32.mrf.mxu0
    %v8415 = vadd.f32 %v8401, %v8414
    %8416 = vdwg.mxu0
    %8417 = vmatpush.bf16.msra.mxu0 %v7737
    %8418 = vmatpush.bf16.msra.mxu0 %v7721
    %8419 = vmatpush.bf16.msra.mxu0 %v7705
    %8420 = vmatpush.bf16.msra.mxu0 %v7689
    %8421 = vmatpush.bf16.msra.mxu0 %v7673
    %8422 = vmatpush.bf16.msra.mxu0 %v7657
    %8423 = vmatpush.bf16.msra.mxu0 %v7641
    %8424 = vmatpush.bf16.msra.mxu0 %v7625
    %8425 = vmatmul.bf16.gmra.mxu0 %v5190
    %v8426 = vpop.f32.mrf.mxu0
    %v8427 = vadd.f32 %v8413, %v8426
    %v8428 = vpop.f32.mrf.mxu0
    %v8429 = vadd.f32 %v8415, %v8428
    %8430 = vdwg.mxu0
    %8431 = vmatpush.bf16.msra.mxu0 %v7354
    %8432 = vmatpush.bf16.msra.mxu0 %v7338
    %8433 = vmatpush.bf16.msra.mxu0 %v7322
    %8434 = vmatpush.bf16.msra.mxu0 %v7306
    %8435 = vmatpush.bf16.msra.mxu0 %v7290
    %8436 = vmatpush.bf16.msra.mxu0 %v7274
    %8437 = vmatpush.bf16.msra.mxu0 %v7258
    %8438 = vmatpush.bf16.msra.mxu0 %v7242
    %8439 = vmatmul.bf16.gmra.mxu0 %v5187
    %v8440 = vpop.f32.mrf.mxu0
    %v8441 = vadd.f32 0.0, %v8440
    %v8442 = vpop.f32.mrf.mxu0
    %v8443 = vadd.f32 0.0, %v8442
    %8444 = vdwg.mxu0
    %8445 = vmatpush.bf16.msra.mxu0 %v7482
    %8446 = vmatpush.bf16.msra.mxu0 %v7466
    %8447 = vmatpush.bf16.msra.mxu0 %v7450
    %8448 = vmatpush.bf16.msra.mxu0 %v7434
    %8449 = vmatpush.bf16.msra.mxu0 %v7418
    %8450 = vmatpush.bf16.msra.mxu0 %v7402
    %8451 = vmatpush.bf16.msra.mxu0 %v7386
    %8452 = vmatpush.bf16.msra.mxu0 %v7370
    %8453 = vmatmul.bf16.gmra.mxu0 %v5188
    %v8454 = vpop.f32.mrf.mxu0
    %v8455 = vadd.f32 %v8441, %v8454
    %v8456 = vpop.f32.mrf.mxu0
    %v8457 = vadd.f32 %v8443, %v8456
    %8458 = vdwg.mxu0
    %8459 = vmatpush.bf16.msra.mxu0 %v7610
    %8460 = vmatpush.bf16.msra.mxu0 %v7594
    %8461 = vmatpush.bf16.msra.mxu0 %v7578
    %8462 = vmatpush.bf16.msra.mxu0 %v7562
    %8463 = vmatpush.bf16.msra.mxu0 %v7546
    %8464 = vmatpush.bf16.msra.mxu0 %v7530
    %8465 = vmatpush.bf16.msra.mxu0 %v7514
    %8466 = vmatpush.bf16.msra.mxu0 %v7498
    %8467 = vmatmul.bf16.gmra.mxu0 %v5189
    %v8468 = vpop.f32.mrf.mxu0
    %v8469 = vadd.f32 %v8455, %v8468
    %v8470 = vpop.f32.mrf.mxu0
    %v8471 = vadd.f32 %v8457, %v8470
    %8472 = vdwg.mxu0
    %8473 = vmatpush.bf16.msra.mxu0 %v7738
    %8474 = vmatpush.bf16.msra.mxu0 %v7722
    %8475 = vmatpush.bf16.msra.mxu0 %v7706
    %8476 = vmatpush.bf16.msra.mxu0 %v7690
    %8477 = vmatpush.bf16.msra.mxu0 %v7674
    %8478 = vmatpush.bf16.msra.mxu0 %v7658
    %8479 = vmatpush.bf16.msra.mxu0 %v7642
    %8480 = vmatpush.bf16.msra.mxu0 %v7626
    %8481 = vmatmul.bf16.gmra.mxu0 %v5190
    %v8482 = vpop.f32.mrf.mxu0
    %v8483 = vadd.f32 %v8469, %v8482
    %v8484 = vpop.f32.mrf.mxu0
    %v8485 = vadd.f32 %v8471, %v8484
    %8486 = vdwg.mxu0
    %8487 = vmatpush.bf16.msra.mxu0 %v7355
    %8488 = vmatpush.bf16.msra.mxu0 %v7339
    %8489 = vmatpush.bf16.msra.mxu0 %v7323
    %8490 = vmatpush.bf16.msra.mxu0 %v7307
    %8491 = vmatpush.bf16.msra.mxu0 %v7291
    %8492 = vmatpush.bf16.msra.mxu0 %v7275
    %8493 = vmatpush.bf16.msra.mxu0 %v7259
    %8494 = vmatpush.bf16.msra.mxu0 %v7243
    %8495 = vmatmul.bf16.gmra.mxu0 %v5187
    %v8496 = vpop.f32.mrf.mxu0
    %v8497 = vadd.f32 0.0, %v8496
    %v8498 = vpop.f32.mrf.mxu0
    %v8499 = vadd.f32 0.0, %v8498
    %8500 = vdwg.mxu0
    %8501 = vmatpush.bf16.msra.mxu0 %v7483
    %8502 = vmatpush.bf16.msra.mxu0 %v7467
    %8503 = vmatpush.bf16.msra.mxu0 %v7451
    %8504 = vmatpush.bf16.msra.mxu0 %v7435
    %8505 = vmatpush.bf16.msra.mxu0 %v7419
    %8506 = vmatpush.bf16.msra.mxu0 %v7403
    %8507 = vmatpush.bf16.msra.mxu0 %v7387
    %8508 = vmatpush.bf16.msra.mxu0 %v7371
    %8509 = vmatmul.bf16.gmra.mxu0 %v5188
    %v8510 = vpop.f32.mrf.mxu0
    %v8511 = vadd.f32 %v8497, %v8510
    %v8512 = vpop.f32.mrf.mxu0
    %v8513 = vadd.f32 %v8499, %v8512
    %8514 = vdwg.mxu0
    %8515 = vmatpush.bf16.msra.mxu0 %v7611
    %8516 = vmatpush.bf16.msra.mxu0 %v7595
    %8517 = vmatpush.bf16.msra.mxu0 %v7579
    %8518 = vmatpush.bf16.msra.mxu0 %v7563
    %8519 = vmatpush.bf16.msra.mxu0 %v7547
    %8520 = vmatpush.bf16.msra.mxu0 %v7531
    %8521 = vmatpush.bf16.msra.mxu0 %v7515
    %8522 = vmatpush.bf16.msra.mxu0 %v7499
    %8523 = vmatmul.bf16.gmra.mxu0 %v5189
    %v8524 = vpop.f32.mrf.mxu0
    %v8525 = vadd.f32 %v8511, %v8524
    %v8526 = vpop.f32.mrf.mxu0
    %v8527 = vadd.f32 %v8513, %v8526
    %8528 = vdwg.mxu0
    %8529 = vmatpush.bf16.msra.mxu0 %v7739
    %8530 = vmatpush.bf16.msra.mxu0 %v7723
    %8531 = vmatpush.bf16.msra.mxu0 %v7707
    %8532 = vmatpush.bf16.msra.mxu0 %v7691
    %8533 = vmatpush.bf16.msra.mxu0 %v7675
    %8534 = vmatpush.bf16.msra.mxu0 %v7659
    %8535 = vmatpush.bf16.msra.mxu0 %v7643
    %8536 = vmatpush.bf16.msra.mxu0 %v7627
    %8537 = vmatmul.bf16.gmra.mxu0 %v5190
    %v8538 = vpop.f32.mrf.mxu0
    %v8539 = vadd.f32 %v8525, %v8538
    %v8540 = vpop.f32.mrf.mxu0
    %v8541 = vadd.f32 %v8527, %v8540
    %8542 = vdwg.mxu0
    %8543 = vmatpush.bf16.msra.mxu0 %v7356
    %8544 = vmatpush.bf16.msra.mxu0 %v7340
    %8545 = vmatpush.bf16.msra.mxu0 %v7324
    %8546 = vmatpush.bf16.msra.mxu0 %v7308
    %8547 = vmatpush.bf16.msra.mxu0 %v7292
    %8548 = vmatpush.bf16.msra.mxu0 %v7276
    %8549 = vmatpush.bf16.msra.mxu0 %v7260
    %8550 = vmatpush.bf16.msra.mxu0 %v7244
    %8551 = vmatmul.bf16.gmra.mxu0 %v5187
    %v8552 = vpop.f32.mrf.mxu0
    %v8553 = vadd.f32 0.0, %v8552
    %v8554 = vpop.f32.mrf.mxu0
    %v8555 = vadd.f32 0.0, %v8554
    %8556 = vdwg.mxu0
    %8557 = vmatpush.bf16.msra.mxu0 %v7484
    %8558 = vmatpush.bf16.msra.mxu0 %v7468
    %8559 = vmatpush.bf16.msra.mxu0 %v7452
    %8560 = vmatpush.bf16.msra.mxu0 %v7436
    %8561 = vmatpush.bf16.msra.mxu0 %v7420
    %8562 = vmatpush.bf16.msra.mxu0 %v7404
    %8563 = vmatpush.bf16.msra.mxu0 %v7388
    %8564 = vmatpush.bf16.msra.mxu0 %v7372
    %8565 = vmatmul.bf16.gmra.mxu0 %v5188
    %v8566 = vpop.f32.mrf.mxu0
    %v8567 = vadd.f32 %v8553, %v8566
    %v8568 = vpop.f32.mrf.mxu0
    %v8569 = vadd.f32 %v8555, %v8568
    %8570 = vdwg.mxu0
    %8571 = vmatpush.bf16.msra.mxu0 %v7612
    %8572 = vmatpush.bf16.msra.mxu0 %v7596
    %8573 = vmatpush.bf16.msra.mxu0 %v7580
    %8574 = vmatpush.bf16.msra.mxu0 %v7564
    %8575 = vmatpush.bf16.msra.mxu0 %v7548
    %8576 = vmatpush.bf16.msra.mxu0 %v7532
    %8577 = vmatpush.bf16.msra.mxu0 %v7516
    %8578 = vmatpush.bf16.msra.mxu0 %v7500
    %8579 = vmatmul.bf16.gmra.mxu0 %v5189
    %v8580 = vpop.f32.mrf.mxu0
    %v8581 = vadd.f32 %v8567, %v8580
    %v8582 = vpop.f32.mrf.mxu0
    %v8583 = vadd.f32 %v8569, %v8582
    %8584 = vdwg.mxu0
    %8585 = vmatpush.bf16.msra.mxu0 %v7740
    %8586 = vmatpush.bf16.msra.mxu0 %v7724
    %8587 = vmatpush.bf16.msra.mxu0 %v7708
    %8588 = vmatpush.bf16.msra.mxu0 %v7692
    %8589 = vmatpush.bf16.msra.mxu0 %v7676
    %8590 = vmatpush.bf16.msra.mxu0 %v7660
    %8591 = vmatpush.bf16.msra.mxu0 %v7644
    %8592 = vmatpush.bf16.msra.mxu0 %v7628
    %8593 = vmatmul.bf16.gmra.mxu0 %v5190
    %v8594 = vpop.f32.mrf.mxu0
    %v8595 = vadd.f32 %v8581, %v8594
    %v8596 = vpop.f32.mrf.mxu0
    %v8597 = vadd.f32 %v8583, %v8596
    %8598 = vdwg.mxu0
    %8599 = vmatpush.bf16.msra.mxu0 %v7357
    %8600 = vmatpush.bf16.msra.mxu0 %v7341
    %8601 = vmatpush.bf16.msra.mxu0 %v7325
    %8602 = vmatpush.bf16.msra.mxu0 %v7309
    %8603 = vmatpush.bf16.msra.mxu0 %v7293
    %8604 = vmatpush.bf16.msra.mxu0 %v7277
    %8605 = vmatpush.bf16.msra.mxu0 %v7261
    %8606 = vmatpush.bf16.msra.mxu0 %v7245
    %8607 = vmatmul.bf16.gmra.mxu0 %v5187
    %v8608 = vpop.f32.mrf.mxu0
    %v8609 = vadd.f32 0.0, %v8608
    %v8610 = vpop.f32.mrf.mxu0
    %v8611 = vadd.f32 0.0, %v8610
    %8612 = vdwg.mxu0
    %8613 = vmatpush.bf16.msra.mxu0 %v7485
    %8614 = vmatpush.bf16.msra.mxu0 %v7469
    %8615 = vmatpush.bf16.msra.mxu0 %v7453
    %8616 = vmatpush.bf16.msra.mxu0 %v7437
    %8617 = vmatpush.bf16.msra.mxu0 %v7421
    %8618 = vmatpush.bf16.msra.mxu0 %v7405
    %8619 = vmatpush.bf16.msra.mxu0 %v7389
    %8620 = vmatpush.bf16.msra.mxu0 %v7373
    %8621 = vmatmul.bf16.gmra.mxu0 %v5188
    %v8622 = vpop.f32.mrf.mxu0
    %v8623 = vadd.f32 %v8609, %v8622
    %v8624 = vpop.f32.mrf.mxu0
    %v8625 = vadd.f32 %v8611, %v8624
    %8626 = vdwg.mxu0
    %8627 = vmatpush.bf16.msra.mxu0 %v7613
    %8628 = vmatpush.bf16.msra.mxu0 %v7597
    %8629 = vmatpush.bf16.msra.mxu0 %v7581
    %8630 = vmatpush.bf16.msra.mxu0 %v7565
    %8631 = vmatpush.bf16.msra.mxu0 %v7549
    %8632 = vmatpush.bf16.msra.mxu0 %v7533
    %8633 = vmatpush.bf16.msra.mxu0 %v7517
    %8634 = vmatpush.bf16.msra.mxu0 %v7501
    %8635 = vmatmul.bf16.gmra.mxu0 %v5189
    %v8636 = vpop.f32.mrf.mxu0
    %v8637 = vadd.f32 %v8623, %v8636
    %v8638 = vpop.f32.mrf.mxu0
    %v8639 = vadd.f32 %v8625, %v8638
    %8640 = vdwg.mxu0
    %8641 = vmatpush.bf16.msra.mxu0 %v7741
    %8642 = vmatpush.bf16.msra.mxu0 %v7725
    %8643 = vmatpush.bf16.msra.mxu0 %v7709
    %8644 = vmatpush.bf16.msra.mxu0 %v7693
    %8645 = vmatpush.bf16.msra.mxu0 %v7677
    %8646 = vmatpush.bf16.msra.mxu0 %v7661
    %8647 = vmatpush.bf16.msra.mxu0 %v7645
    %8648 = vmatpush.bf16.msra.mxu0 %v7629
    %8649 = vmatmul.bf16.gmra.mxu0 %v5190
    %v8650 = vpop.f32.mrf.mxu0
    %v8651 = vadd.f32 %v8637, %v8650
    %v8652 = vpop.f32.mrf.mxu0
    %v8653 = vadd.f32 %v8639, %v8652
    %8654 = vdwg.mxu0
    %8655 = vmatpush.bf16.msra.mxu0 %v7358
    %8656 = vmatpush.bf16.msra.mxu0 %v7342
    %8657 = vmatpush.bf16.msra.mxu0 %v7326
    %8658 = vmatpush.bf16.msra.mxu0 %v7310
    %8659 = vmatpush.bf16.msra.mxu0 %v7294
    %8660 = vmatpush.bf16.msra.mxu0 %v7278
    %8661 = vmatpush.bf16.msra.mxu0 %v7262
    %8662 = vmatpush.bf16.msra.mxu0 %v7246
    %8663 = vmatmul.bf16.gmra.mxu0 %v5187
    %v8664 = vpop.f32.mrf.mxu0
    %v8665 = vadd.f32 0.0, %v8664
    %v8666 = vpop.f32.mrf.mxu0
    %v8667 = vadd.f32 0.0, %v8666
    %8668 = vdwg.mxu0
    %8669 = vmatpush.bf16.msra.mxu0 %v7486
    %8670 = vmatpush.bf16.msra.mxu0 %v7470
    %8671 = vmatpush.bf16.msra.mxu0 %v7454
    %8672 = vmatpush.bf16.msra.mxu0 %v7438
    %8673 = vmatpush.bf16.msra.mxu0 %v7422
    %8674 = vmatpush.bf16.msra.mxu0 %v7406
    %8675 = vmatpush.bf16.msra.mxu0 %v7390
    %8676 = vmatpush.bf16.msra.mxu0 %v7374
    %8677 = vmatmul.bf16.gmra.mxu0 %v5188
    %v8678 = vpop.f32.mrf.mxu0
    %v8679 = vadd.f32 %v8665, %v8678
    %v8680 = vpop.f32.mrf.mxu0
    %v8681 = vadd.f32 %v8667, %v8680
    %8682 = vdwg.mxu0
    %8683 = vmatpush.bf16.msra.mxu0 %v7614
    %8684 = vmatpush.bf16.msra.mxu0 %v7598
    %8685 = vmatpush.bf16.msra.mxu0 %v7582
    %8686 = vmatpush.bf16.msra.mxu0 %v7566
    %8687 = vmatpush.bf16.msra.mxu0 %v7550
    %8688 = vmatpush.bf16.msra.mxu0 %v7534
    %8689 = vmatpush.bf16.msra.mxu0 %v7518
    %8690 = vmatpush.bf16.msra.mxu0 %v7502
    %8691 = vmatmul.bf16.gmra.mxu0 %v5189
    %v8692 = vpop.f32.mrf.mxu0
    %v8693 = vadd.f32 %v8679, %v8692
    %v8694 = vpop.f32.mrf.mxu0
    %v8695 = vadd.f32 %v8681, %v8694
    %8696 = vdwg.mxu0
    %8697 = vmatpush.bf16.msra.mxu0 %v7742
    %8698 = vmatpush.bf16.msra.mxu0 %v7726
    %8699 = vmatpush.bf16.msra.mxu0 %v7710
    %8700 = vmatpush.bf16.msra.mxu0 %v7694
    %8701 = vmatpush.bf16.msra.mxu0 %v7678
    %8702 = vmatpush.bf16.msra.mxu0 %v7662
    %8703 = vmatpush.bf16.msra.mxu0 %v7646
    %8704 = vmatpush.bf16.msra.mxu0 %v7630
    %8705 = vmatmul.bf16.gmra.mxu0 %v5190
    %v8706 = vpop.f32.mrf.mxu0
    %v8707 = vadd.f32 %v8693, %v8706
    %v8708 = vpop.f32.mrf.mxu0
    %v8709 = vadd.f32 %v8695, %v8708
    %8710 = vdwg.mxu0
    %8711 = vmatpush.bf16.msra.mxu0 %v7359
    %8712 = vmatpush.bf16.msra.mxu0 %v7343
    %8713 = vmatpush.bf16.msra.mxu0 %v7327
    %8714 = vmatpush.bf16.msra.mxu0 %v7311
    %8715 = vmatpush.bf16.msra.mxu0 %v7295
    %8716 = vmatpush.bf16.msra.mxu0 %v7279
    %8717 = vmatpush.bf16.msra.mxu0 %v7263
    %8718 = vmatpush.bf16.msra.mxu0 %v7247
    %8719 = vmatmul.bf16.gmra.mxu0 %v5187
    %v8720 = vpop.f32.mrf.mxu0
    %v8721 = vadd.f32 0.0, %v8720
    %v8722 = vpop.f32.mrf.mxu0
    %v8723 = vadd.f32 0.0, %v8722
    %8724 = vdwg.mxu0
    %8725 = vmatpush.bf16.msra.mxu0 %v7487
    %8726 = vmatpush.bf16.msra.mxu0 %v7471
    %8727 = vmatpush.bf16.msra.mxu0 %v7455
    %8728 = vmatpush.bf16.msra.mxu0 %v7439
    %8729 = vmatpush.bf16.msra.mxu0 %v7423
    %8730 = vmatpush.bf16.msra.mxu0 %v7407
    %8731 = vmatpush.bf16.msra.mxu0 %v7391
    %8732 = vmatpush.bf16.msra.mxu0 %v7375
    %8733 = vmatmul.bf16.gmra.mxu0 %v5188
    %v8734 = vpop.f32.mrf.mxu0
    %v8735 = vadd.f32 %v8721, %v8734
    %v8736 = vpop.f32.mrf.mxu0
    %v8737 = vadd.f32 %v8723, %v8736
    %8738 = vdwg.mxu0
    %8739 = vmatpush.bf16.msra.mxu0 %v7615
    %8740 = vmatpush.bf16.msra.mxu0 %v7599
    %8741 = vmatpush.bf16.msra.mxu0 %v7583
    %8742 = vmatpush.bf16.msra.mxu0 %v7567
    %8743 = vmatpush.bf16.msra.mxu0 %v7551
    %8744 = vmatpush.bf16.msra.mxu0 %v7535
    %8745 = vmatpush.bf16.msra.mxu0 %v7519
    %8746 = vmatpush.bf16.msra.mxu0 %v7503
    %8747 = vmatmul.bf16.gmra.mxu0 %v5189
    %v8748 = vpop.f32.mrf.mxu0
    %v8749 = vadd.f32 %v8735, %v8748
    %v8750 = vpop.f32.mrf.mxu0
    %v8751 = vadd.f32 %v8737, %v8750
    %8752 = vdwg.mxu0
    %8753 = vmatpush.bf16.msra.mxu0 %v7743
    %8754 = vmatpush.bf16.msra.mxu0 %v7727
    %8755 = vmatpush.bf16.msra.mxu0 %v7711
    %8756 = vmatpush.bf16.msra.mxu0 %v7695
    %8757 = vmatpush.bf16.msra.mxu0 %v7679
    %8758 = vmatpush.bf16.msra.mxu0 %v7663
    %8759 = vmatpush.bf16.msra.mxu0 %v7647
    %8760 = vmatpush.bf16.msra.mxu0 %v7631
    %8761 = vmatmul.bf16.gmra.mxu0 %v5190
    %v8762 = vpop.f32.mrf.mxu0
    %v8763 = vadd.f32 %v8749, %v8762
    %v8764 = vpop.f32.mrf.mxu0
    %v8765 = vadd.f32 %v8751, %v8764
    %8766 = vdwg.mxu0
    %8767 = vmatpush.bf16.msra.mxu0 %v7360
    %8768 = vmatpush.bf16.msra.mxu0 %v7344
    %8769 = vmatpush.bf16.msra.mxu0 %v7328
    %8770 = vmatpush.bf16.msra.mxu0 %v7312
    %8771 = vmatpush.bf16.msra.mxu0 %v7296
    %8772 = vmatpush.bf16.msra.mxu0 %v7280
    %8773 = vmatpush.bf16.msra.mxu0 %v7264
    %8774 = vmatpush.bf16.msra.mxu0 %v7248
    %8775 = vmatmul.bf16.gmra.mxu0 %v5187
    %v8776 = vpop.f32.mrf.mxu0
    %v8777 = vadd.f32 0.0, %v8776
    %v8778 = vpop.f32.mrf.mxu0
    %v8779 = vadd.f32 0.0, %v8778
    %8780 = vdwg.mxu0
    %8781 = vmatpush.bf16.msra.mxu0 %v7488
    %8782 = vmatpush.bf16.msra.mxu0 %v7472
    %8783 = vmatpush.bf16.msra.mxu0 %v7456
    %8784 = vmatpush.bf16.msra.mxu0 %v7440
    %8785 = vmatpush.bf16.msra.mxu0 %v7424
    %8786 = vmatpush.bf16.msra.mxu0 %v7408
    %8787 = vmatpush.bf16.msra.mxu0 %v7392
    %8788 = vmatpush.bf16.msra.mxu0 %v7376
    %8789 = vmatmul.bf16.gmra.mxu0 %v5188
    %v8790 = vpop.f32.mrf.mxu0
    %v8791 = vadd.f32 %v8777, %v8790
    %v8792 = vpop.f32.mrf.mxu0
    %v8793 = vadd.f32 %v8779, %v8792
    %8794 = vdwg.mxu0
    %8795 = vmatpush.bf16.msra.mxu0 %v7616
    %8796 = vmatpush.bf16.msra.mxu0 %v7600
    %8797 = vmatpush.bf16.msra.mxu0 %v7584
    %8798 = vmatpush.bf16.msra.mxu0 %v7568
    %8799 = vmatpush.bf16.msra.mxu0 %v7552
    %8800 = vmatpush.bf16.msra.mxu0 %v7536
    %8801 = vmatpush.bf16.msra.mxu0 %v7520
    %8802 = vmatpush.bf16.msra.mxu0 %v7504
    %8803 = vmatmul.bf16.gmra.mxu0 %v5189
    %v8804 = vpop.f32.mrf.mxu0
    %v8805 = vadd.f32 %v8791, %v8804
    %v8806 = vpop.f32.mrf.mxu0
    %v8807 = vadd.f32 %v8793, %v8806
    %8808 = vdwg.mxu0
    %8809 = vmatpush.bf16.msra.mxu0 %v7744
    %8810 = vmatpush.bf16.msra.mxu0 %v7728
    %8811 = vmatpush.bf16.msra.mxu0 %v7712
    %8812 = vmatpush.bf16.msra.mxu0 %v7696
    %8813 = vmatpush.bf16.msra.mxu0 %v7680
    %8814 = vmatpush.bf16.msra.mxu0 %v7664
    %8815 = vmatpush.bf16.msra.mxu0 %v7648
    %8816 = vmatpush.bf16.msra.mxu0 %v7632
    %8817 = vmatmul.bf16.gmra.mxu0 %v5190
    %v8818 = vpop.f32.mrf.mxu0
    %v8819 = vadd.f32 %v8805, %v8818
    %v8820 = vpop.f32.mrf.mxu0
    %v8821 = vadd.f32 %v8807, %v8820
    %8822 = vdwg.mxu0
    %8823 = vmatpush.bf16.msra.mxu0 %v7361
    %8824 = vmatpush.bf16.msra.mxu0 %v7345
    %8825 = vmatpush.bf16.msra.mxu0 %v7329
    %8826 = vmatpush.bf16.msra.mxu0 %v7313
    %8827 = vmatpush.bf16.msra.mxu0 %v7297
    %8828 = vmatpush.bf16.msra.mxu0 %v7281
    %8829 = vmatpush.bf16.msra.mxu0 %v7265
    %8830 = vmatpush.bf16.msra.mxu0 %v7249
    %8831 = vmatmul.bf16.gmra.mxu0 %v5187
    %v8832 = vpop.f32.mrf.mxu0
    %v8833 = vadd.f32 0.0, %v8832
    %v8834 = vpop.f32.mrf.mxu0
    %v8835 = vadd.f32 0.0, %v8834
    %8836 = vdwg.mxu0
    %8837 = vmatpush.bf16.msra.mxu0 %v7489
    %8838 = vmatpush.bf16.msra.mxu0 %v7473
    %8839 = vmatpush.bf16.msra.mxu0 %v7457
    %8840 = vmatpush.bf16.msra.mxu0 %v7441
    %8841 = vmatpush.bf16.msra.mxu0 %v7425
    %8842 = vmatpush.bf16.msra.mxu0 %v7409
    %8843 = vmatpush.bf16.msra.mxu0 %v7393
    %8844 = vmatpush.bf16.msra.mxu0 %v7377
    %8845 = vmatmul.bf16.gmra.mxu0 %v5188
    %v8846 = vpop.f32.mrf.mxu0
    %v8847 = vadd.f32 %v8833, %v8846
    %v8848 = vpop.f32.mrf.mxu0
    %v8849 = vadd.f32 %v8835, %v8848
    %8850 = vdwg.mxu0
    %8851 = vmatpush.bf16.msra.mxu0 %v7617
    %8852 = vmatpush.bf16.msra.mxu0 %v7601
    %8853 = vmatpush.bf16.msra.mxu0 %v7585
    %8854 = vmatpush.bf16.msra.mxu0 %v7569
    %8855 = vmatpush.bf16.msra.mxu0 %v7553
    %8856 = vmatpush.bf16.msra.mxu0 %v7537
    %8857 = vmatpush.bf16.msra.mxu0 %v7521
    %8858 = vmatpush.bf16.msra.mxu0 %v7505
    %8859 = vmatmul.bf16.gmra.mxu0 %v5189
    %v8860 = vpop.f32.mrf.mxu0
    %v8861 = vadd.f32 %v8847, %v8860
    %v8862 = vpop.f32.mrf.mxu0
    %v8863 = vadd.f32 %v8849, %v8862
    %8864 = vdwg.mxu0
    %8865 = vmatpush.bf16.msra.mxu0 %v7745
    %8866 = vmatpush.bf16.msra.mxu0 %v7729
    %8867 = vmatpush.bf16.msra.mxu0 %v7713
    %8868 = vmatpush.bf16.msra.mxu0 %v7697
    %8869 = vmatpush.bf16.msra.mxu0 %v7681
    %8870 = vmatpush.bf16.msra.mxu0 %v7665
    %8871 = vmatpush.bf16.msra.mxu0 %v7649
    %8872 = vmatpush.bf16.msra.mxu0 %v7633
    %8873 = vmatmul.bf16.gmra.mxu0 %v5190
    %v8874 = vpop.f32.mrf.mxu0
    %v8875 = vadd.f32 %v8861, %v8874
    %v8876 = vpop.f32.mrf.mxu0
    %v8877 = vadd.f32 %v8863, %v8876
    %8878 = vdwg.mxu0
    %8879 = vmatpush.bf16.msra.mxu0 %v7362
    %8880 = vmatpush.bf16.msra.mxu0 %v7346
    %8881 = vmatpush.bf16.msra.mxu0 %v7330
    %8882 = vmatpush.bf16.msra.mxu0 %v7314
    %8883 = vmatpush.bf16.msra.mxu0 %v7298
    %8884 = vmatpush.bf16.msra.mxu0 %v7282
    %8885 = vmatpush.bf16.msra.mxu0 %v7266
    %8886 = vmatpush.bf16.msra.mxu0 %v7250
    %8887 = vmatmul.bf16.gmra.mxu0 %v5187
    %v8888 = vpop.f32.mrf.mxu0
    %v8889 = vadd.f32 0.0, %v8888
    %v8890 = vpop.f32.mrf.mxu0
    %v8891 = vadd.f32 0.0, %v8890
    %8892 = vdwg.mxu0
    %8893 = vmatpush.bf16.msra.mxu0 %v7490
    %8894 = vmatpush.bf16.msra.mxu0 %v7474
    %8895 = vmatpush.bf16.msra.mxu0 %v7458
    %8896 = vmatpush.bf16.msra.mxu0 %v7442
    %8897 = vmatpush.bf16.msra.mxu0 %v7426
    %8898 = vmatpush.bf16.msra.mxu0 %v7410
    %8899 = vmatpush.bf16.msra.mxu0 %v7394
    %8900 = vmatpush.bf16.msra.mxu0 %v7378
    %8901 = vmatmul.bf16.gmra.mxu0 %v5188
    %v8902 = vpop.f32.mrf.mxu0
    %v8903 = vadd.f32 %v8889, %v8902
    %v8904 = vpop.f32.mrf.mxu0
    %v8905 = vadd.f32 %v8891, %v8904
    %8906 = vdwg.mxu0
    %8907 = vmatpush.bf16.msra.mxu0 %v7618
    %8908 = vmatpush.bf16.msra.mxu0 %v7602
    %8909 = vmatpush.bf16.msra.mxu0 %v7586
    %8910 = vmatpush.bf16.msra.mxu0 %v7570
    %8911 = vmatpush.bf16.msra.mxu0 %v7554
    %8912 = vmatpush.bf16.msra.mxu0 %v7538
    %8913 = vmatpush.bf16.msra.mxu0 %v7522
    %8914 = vmatpush.bf16.msra.mxu0 %v7506
    %8915 = vmatmul.bf16.gmra.mxu0 %v5189
    %v8916 = vpop.f32.mrf.mxu0
    %v8917 = vadd.f32 %v8903, %v8916
    %v8918 = vpop.f32.mrf.mxu0
    %v8919 = vadd.f32 %v8905, %v8918
    %8920 = vdwg.mxu0
    %8921 = vmatpush.bf16.msra.mxu0 %v7746
    %8922 = vmatpush.bf16.msra.mxu0 %v7730
    %8923 = vmatpush.bf16.msra.mxu0 %v7714
    %8924 = vmatpush.bf16.msra.mxu0 %v7698
    %8925 = vmatpush.bf16.msra.mxu0 %v7682
    %8926 = vmatpush.bf16.msra.mxu0 %v7666
    %8927 = vmatpush.bf16.msra.mxu0 %v7650
    %8928 = vmatpush.bf16.msra.mxu0 %v7634
    %8929 = vmatmul.bf16.gmra.mxu0 %v5190
    %v8930 = vpop.f32.mrf.mxu0
    %v8931 = vadd.f32 %v8917, %v8930
    %v8932 = vpop.f32.mrf.mxu0
    %v8933 = vadd.f32 %v8919, %v8932
    %8934 = vdwg.mxu0
    %8935 = vmatpush.bf16.msra.mxu0 %v7363
    %8936 = vmatpush.bf16.msra.mxu0 %v7347
    %8937 = vmatpush.bf16.msra.mxu0 %v7331
    %8938 = vmatpush.bf16.msra.mxu0 %v7315
    %8939 = vmatpush.bf16.msra.mxu0 %v7299
    %8940 = vmatpush.bf16.msra.mxu0 %v7283
    %8941 = vmatpush.bf16.msra.mxu0 %v7267
    %8942 = vmatpush.bf16.msra.mxu0 %v7251
    %8943 = vmatmul.bf16.gmra.mxu0 %v5187
    %v8944 = vpop.f32.mrf.mxu0
    %v8945 = vadd.f32 0.0, %v8944
    %v8946 = vpop.f32.mrf.mxu0
    %v8947 = vadd.f32 0.0, %v8946
    %8948 = vdwg.mxu0
    %8949 = vmatpush.bf16.msra.mxu0 %v7491
    %8950 = vmatpush.bf16.msra.mxu0 %v7475
    %8951 = vmatpush.bf16.msra.mxu0 %v7459
    %8952 = vmatpush.bf16.msra.mxu0 %v7443
    %8953 = vmatpush.bf16.msra.mxu0 %v7427
    %8954 = vmatpush.bf16.msra.mxu0 %v7411
    %8955 = vmatpush.bf16.msra.mxu0 %v7395
    %8956 = vmatpush.bf16.msra.mxu0 %v7379
    %8957 = vmatmul.bf16.gmra.mxu0 %v5188
    %v8958 = vpop.f32.mrf.mxu0
    %v8959 = vadd.f32 %v8945, %v8958
    %v8960 = vpop.f32.mrf.mxu0
    %v8961 = vadd.f32 %v8947, %v8960
    %8962 = vdwg.mxu0
    %8963 = vmatpush.bf16.msra.mxu0 %v7619
    %8964 = vmatpush.bf16.msra.mxu0 %v7603
    %8965 = vmatpush.bf16.msra.mxu0 %v7587
    %8966 = vmatpush.bf16.msra.mxu0 %v7571
    %8967 = vmatpush.bf16.msra.mxu0 %v7555
    %8968 = vmatpush.bf16.msra.mxu0 %v7539
    %8969 = vmatpush.bf16.msra.mxu0 %v7523
    %8970 = vmatpush.bf16.msra.mxu0 %v7507
    %8971 = vmatmul.bf16.gmra.mxu0 %v5189
    %v8972 = vpop.f32.mrf.mxu0
    %v8973 = vadd.f32 %v8959, %v8972
    %v8974 = vpop.f32.mrf.mxu0
    %v8975 = vadd.f32 %v8961, %v8974
    %8976 = vdwg.mxu0
    %8977 = vmatpush.bf16.msra.mxu0 %v7747
    %8978 = vmatpush.bf16.msra.mxu0 %v7731
    %8979 = vmatpush.bf16.msra.mxu0 %v7715
    %8980 = vmatpush.bf16.msra.mxu0 %v7699
    %8981 = vmatpush.bf16.msra.mxu0 %v7683
    %8982 = vmatpush.bf16.msra.mxu0 %v7667
    %8983 = vmatpush.bf16.msra.mxu0 %v7651
    %8984 = vmatpush.bf16.msra.mxu0 %v7635
    %8985 = vmatmul.bf16.gmra.mxu0 %v5190
    %v8986 = vpop.f32.mrf.mxu0
    %v8987 = vadd.f32 %v8973, %v8986
    %v8988 = vpop.f32.mrf.mxu0
    %v8989 = vadd.f32 %v8975, %v8988
    %8990 = vdwg.mxu0
    %8991 = vmatpush.bf16.msra.mxu0 %v7364
    %8992 = vmatpush.bf16.msra.mxu0 %v7348
    %8993 = vmatpush.bf16.msra.mxu0 %v7332
    %8994 = vmatpush.bf16.msra.mxu0 %v7316
    %8995 = vmatpush.bf16.msra.mxu0 %v7300
    %8996 = vmatpush.bf16.msra.mxu0 %v7284
    %8997 = vmatpush.bf16.msra.mxu0 %v7268
    %8998 = vmatpush.bf16.msra.mxu0 %v7252
    %8999 = vmatmul.bf16.gmra.mxu0 %v5187
    %v9000 = vpop.f32.mrf.mxu0
    %v9001 = vadd.f32 0.0, %v9000
    %v9002 = vpop.f32.mrf.mxu0
    %v9003 = vadd.f32 0.0, %v9002
    %9004 = vdwg.mxu0
    %9005 = vmatpush.bf16.msra.mxu0 %v7492
    %9006 = vmatpush.bf16.msra.mxu0 %v7476
    %9007 = vmatpush.bf16.msra.mxu0 %v7460
    %9008 = vmatpush.bf16.msra.mxu0 %v7444
    %9009 = vmatpush.bf16.msra.mxu0 %v7428
    %9010 = vmatpush.bf16.msra.mxu0 %v7412
    %9011 = vmatpush.bf16.msra.mxu0 %v7396
    %9012 = vmatpush.bf16.msra.mxu0 %v7380
    %9013 = vmatmul.bf16.gmra.mxu0 %v5188
    %v9014 = vpop.f32.mrf.mxu0
    %v9015 = vadd.f32 %v9001, %v9014
    %v9016 = vpop.f32.mrf.mxu0
    %v9017 = vadd.f32 %v9003, %v9016
    %9018 = vdwg.mxu0
    %9019 = vmatpush.bf16.msra.mxu0 %v7620
    %9020 = vmatpush.bf16.msra.mxu0 %v7604
    %9021 = vmatpush.bf16.msra.mxu0 %v7588
    %9022 = vmatpush.bf16.msra.mxu0 %v7572
    %9023 = vmatpush.bf16.msra.mxu0 %v7556
    %9024 = vmatpush.bf16.msra.mxu0 %v7540
    %9025 = vmatpush.bf16.msra.mxu0 %v7524
    %9026 = vmatpush.bf16.msra.mxu0 %v7508
    %9027 = vmatmul.bf16.gmra.mxu0 %v5189
    %v9028 = vpop.f32.mrf.mxu0
    %v9029 = vadd.f32 %v9015, %v9028
    %v9030 = vpop.f32.mrf.mxu0
    %v9031 = vadd.f32 %v9017, %v9030
    %9032 = vdwg.mxu0
    %9033 = vmatpush.bf16.msra.mxu0 %v7748
    %9034 = vmatpush.bf16.msra.mxu0 %v7732
    %9035 = vmatpush.bf16.msra.mxu0 %v7716
    %9036 = vmatpush.bf16.msra.mxu0 %v7700
    %9037 = vmatpush.bf16.msra.mxu0 %v7684
    %9038 = vmatpush.bf16.msra.mxu0 %v7668
    %9039 = vmatpush.bf16.msra.mxu0 %v7652
    %9040 = vmatpush.bf16.msra.mxu0 %v7636
    %9041 = vmatmul.bf16.gmra.mxu0 %v5190
    %v9042 = vpop.f32.mrf.mxu0
    %v9043 = vadd.f32 %v9029, %v9042
    %v9044 = vpop.f32.mrf.mxu0
    %v9045 = vadd.f32 %v9031, %v9044
    %9046 = vdwg.mxu0
    %9047 = vmatpush.bf16.msra.mxu0 %v7365
    %9048 = vmatpush.bf16.msra.mxu0 %v7349
    %9049 = vmatpush.bf16.msra.mxu0 %v7333
    %9050 = vmatpush.bf16.msra.mxu0 %v7317
    %9051 = vmatpush.bf16.msra.mxu0 %v7301
    %9052 = vmatpush.bf16.msra.mxu0 %v7285
    %9053 = vmatpush.bf16.msra.mxu0 %v7269
    %9054 = vmatpush.bf16.msra.mxu0 %v7253
    %9055 = vmatmul.bf16.gmra.mxu0 %v5187
    %v9056 = vpop.f32.mrf.mxu0
    %v9057 = vadd.f32 0.0, %v9056
    %v9058 = vpop.f32.mrf.mxu0
    %v9059 = vadd.f32 0.0, %v9058
    %9060 = vdwg.mxu0
    %9061 = vmatpush.bf16.msra.mxu0 %v7493
    %9062 = vmatpush.bf16.msra.mxu0 %v7477
    %9063 = vmatpush.bf16.msra.mxu0 %v7461
    %9064 = vmatpush.bf16.msra.mxu0 %v7445
    %9065 = vmatpush.bf16.msra.mxu0 %v7429
    %9066 = vmatpush.bf16.msra.mxu0 %v7413
    %9067 = vmatpush.bf16.msra.mxu0 %v7397
    %9068 = vmatpush.bf16.msra.mxu0 %v7381
    %9069 = vmatmul.bf16.gmra.mxu0 %v5188
    %v9070 = vpop.f32.mrf.mxu0
    %v9071 = vadd.f32 %v9057, %v9070
    %v9072 = vpop.f32.mrf.mxu0
    %v9073 = vadd.f32 %v9059, %v9072
    %9074 = vdwg.mxu0
    %9075 = vmatpush.bf16.msra.mxu0 %v7621
    %9076 = vmatpush.bf16.msra.mxu0 %v7605
    %9077 = vmatpush.bf16.msra.mxu0 %v7589
    %9078 = vmatpush.bf16.msra.mxu0 %v7573
    %9079 = vmatpush.bf16.msra.mxu0 %v7557
    %9080 = vmatpush.bf16.msra.mxu0 %v7541
    %9081 = vmatpush.bf16.msra.mxu0 %v7525
    %9082 = vmatpush.bf16.msra.mxu0 %v7509
    %9083 = vmatmul.bf16.gmra.mxu0 %v5189
    %v9084 = vpop.f32.mrf.mxu0
    %v9085 = vadd.f32 %v9071, %v9084
    %v9086 = vpop.f32.mrf.mxu0
    %v9087 = vadd.f32 %v9073, %v9086
    %9088 = vdwg.mxu0
    %9089 = vmatpush.bf16.msra.mxu0 %v7749
    %9090 = vmatpush.bf16.msra.mxu0 %v7733
    %9091 = vmatpush.bf16.msra.mxu0 %v7717
    %9092 = vmatpush.bf16.msra.mxu0 %v7701
    %9093 = vmatpush.bf16.msra.mxu0 %v7685
    %9094 = vmatpush.bf16.msra.mxu0 %v7669
    %9095 = vmatpush.bf16.msra.mxu0 %v7653
    %9096 = vmatpush.bf16.msra.mxu0 %v7637
    %9097 = vmatmul.bf16.gmra.mxu0 %v5190
    %v9098 = vpop.f32.mrf.mxu0
    %v9099 = vadd.f32 %v9085, %v9098
    %v9100 = vpop.f32.mrf.mxu0
    %v9101 = vadd.f32 %v9087, %v9100
    %9102 = vdwg.mxu0
    %9103 = vmatpush.bf16.msra.mxu0 %v7366
    %9104 = vmatpush.bf16.msra.mxu0 %v7350
    %9105 = vmatpush.bf16.msra.mxu0 %v7334
    %9106 = vmatpush.bf16.msra.mxu0 %v7318
    %9107 = vmatpush.bf16.msra.mxu0 %v7302
    %9108 = vmatpush.bf16.msra.mxu0 %v7286
    %9109 = vmatpush.bf16.msra.mxu0 %v7270
    %9110 = vmatpush.bf16.msra.mxu0 %v7254
    %9111 = vmatmul.bf16.gmra.mxu0 %v5187
    %v9112 = vpop.f32.mrf.mxu0
    %v9113 = vadd.f32 0.0, %v9112
    %v9114 = vpop.f32.mrf.mxu0
    %v9115 = vadd.f32 0.0, %v9114
    %9116 = vdwg.mxu0
    %9117 = vmatpush.bf16.msra.mxu0 %v7494
    %9118 = vmatpush.bf16.msra.mxu0 %v7478
    %9119 = vmatpush.bf16.msra.mxu0 %v7462
    %9120 = vmatpush.bf16.msra.mxu0 %v7446
    %9121 = vmatpush.bf16.msra.mxu0 %v7430
    %9122 = vmatpush.bf16.msra.mxu0 %v7414
    %9123 = vmatpush.bf16.msra.mxu0 %v7398
    %9124 = vmatpush.bf16.msra.mxu0 %v7382
    %9125 = vmatmul.bf16.gmra.mxu0 %v5188
    %v9126 = vpop.f32.mrf.mxu0
    %v9127 = vadd.f32 %v9113, %v9126
    %v9128 = vpop.f32.mrf.mxu0
    %v9129 = vadd.f32 %v9115, %v9128
    %9130 = vdwg.mxu0
    %9131 = vmatpush.bf16.msra.mxu0 %v7622
    %9132 = vmatpush.bf16.msra.mxu0 %v7606
    %9133 = vmatpush.bf16.msra.mxu0 %v7590
    %9134 = vmatpush.bf16.msra.mxu0 %v7574
    %9135 = vmatpush.bf16.msra.mxu0 %v7558
    %9136 = vmatpush.bf16.msra.mxu0 %v7542
    %9137 = vmatpush.bf16.msra.mxu0 %v7526
    %9138 = vmatpush.bf16.msra.mxu0 %v7510
    %9139 = vmatmul.bf16.gmra.mxu0 %v5189
    %v9140 = vpop.f32.mrf.mxu0
    %v9141 = vadd.f32 %v9127, %v9140
    %v9142 = vpop.f32.mrf.mxu0
    %v9143 = vadd.f32 %v9129, %v9142
    %9144 = vdwg.mxu0
    %9145 = vmatpush.bf16.msra.mxu0 %v7750
    %9146 = vmatpush.bf16.msra.mxu0 %v7734
    %9147 = vmatpush.bf16.msra.mxu0 %v7718
    %9148 = vmatpush.bf16.msra.mxu0 %v7702
    %9149 = vmatpush.bf16.msra.mxu0 %v7686
    %9150 = vmatpush.bf16.msra.mxu0 %v7670
    %9151 = vmatpush.bf16.msra.mxu0 %v7654
    %9152 = vmatpush.bf16.msra.mxu0 %v7638
    %9153 = vmatmul.bf16.gmra.mxu0 %v5190
    %v9154 = vpop.f32.mrf.mxu0
    %v9155 = vadd.f32 %v9141, %v9154
    %v9156 = vpop.f32.mrf.mxu0
    %v9157 = vadd.f32 %v9143, %v9156
    %9158 = vdwg.mxu0
    %v9159 = vmax.f32 %v8315, 0.0
    %v9160 = vmax.f32 %v8371, 0.0
    %v9161 = vmax.f32 %v8427, 0.0
    %v9162 = vmax.f32 %v8483, 0.0
    %v9163 = vmax.f32 %v8539, 0.0
    %v9164 = vmax.f32 %v8595, 0.0
    %v9165 = vmax.f32 %v8651, 0.0
    %v9166 = vmax.f32 %v8707, 0.0
    %v9167 = vmax.f32 %v8763, 0.0
    %v9168 = vmax.f32 %v8819, 0.0
    %v9169 = vmax.f32 %v8875, 0.0
    %v9170 = vmax.f32 %v8931, 0.0
    %v9171 = vmax.f32 %v8987, 0.0
    %v9172 = vmax.f32 %v9043, 0.0
    %v9173 = vmax.f32 %v9099, 0.0
    %v9174 = vmax.f32 %v9155, 0.0
    %v9175 = vmax.f32 %v8317, 0.0
    %v9176 = vmax.f32 %v8373, 0.0
    %v9177 = vmax.f32 %v8429, 0.0
    %v9178 = vmax.f32 %v8485, 0.0
    %v9179 = vmax.f32 %v8541, 0.0
    %v9180 = vmax.f32 %v8597, 0.0
    %v9181 = vmax.f32 %v8653, 0.0
    %v9182 = vmax.f32 %v8709, 0.0
    %v9183 = vmax.f32 %v8765, 0.0
    %v9184 = vmax.f32 %v8821, 0.0
    %v9185 = vmax.f32 %v8877, 0.0
    %v9186 = vmax.f32 %v8933, 0.0
    %v9187 = vmax.f32 %v8989, 0.0
    %v9188 = vmax.f32 %v9045, 0.0
    %v9189 = vmax.f32 %v9101, 0.0
    %v9190 = vmax.f32 %v9157, 0.0
    %v9191 = vpack.c.bf16 %v9175, %v9159
    %v9192 = vpack.c.bf16 %v9176, %v9160
    %v9193 = vpack.c.bf16 %v9177, %v9161
    %v9194 = vpack.c.bf16 %v9178, %v9162
    %v9195 = vpack.c.bf16 %v9179, %v9163
    %v9196 = vpack.c.bf16 %v9180, %v9164
    %v9197 = vpack.c.bf16 %v9181, %v9165
    %v9198 = vpack.c.bf16 %v9182, %v9166
    %v9199 = vpack.c.bf16 %v9183, %v9167
    %v9200 = vpack.c.bf16 %v9184, %v9168
    %v9201 = vpack.c.bf16 %v9185, %v9169
    %v9202 = vpack.c.bf16 %v9186, %v9170
    %v9203 = vpack.c.bf16 %v9187, %v9171
    %v9204 = vpack.c.bf16 %v9188, %v9172
    %v9205 = vpack.c.bf16 %v9189, %v9173
    %v9206 = vpack.c.bf16 %v9190, %v9174
    %v9207 = vld [vmem:[#allocation11] sm:$0xff]
    %v9208 = vld [vmem:[#allocation11 + $0x8] sm:$0xff]
    %v9209 = vld [vmem:[#allocation11 + $0x10] sm:$0xff]
    %v9210 = vld [vmem:[#allocation11 + $0x18] sm:$0xff]
    %v9211 = vld [vmem:[#allocation11 + $0x20] sm:$0xff]
    %v9212 = vld [vmem:[#allocation11 + $0x28] sm:$0xff]
    %v9213 = vld [vmem:[#allocation11 + $0x30] sm:$0xff]
    %v9214 = vld [vmem:[#allocation11 + $0x38] sm:$0xff]
    %v9215 = vld [vmem:[#allocation11 + $0x40] sm:$0xff]
    %v9216 = vld [vmem:[#allocation11 + $0x48] sm:$0xff]
    %v9217 = vld [vmem:[#allocation11 + $0x50] sm:$0xff]
    %v9218 = vld [vmem:[#allocation11 + $0x58] sm:$0xff]
    %v9219 = vld [vmem:[#allocation11 + $0x60] sm:$0xff]
    %v9220 = vld [vmem:[#allocation11 + $0x68] sm:$0xff]
    %v9221 = vld [vmem:[#allocation11 + $0x70] sm:$0xff]
    %v9222 = vld [vmem:[#allocation11 + $0x78] sm:$0xff]
    %v9223 = vld [vmem:[#allocation11 + $0x80] sm:$0xff]
    %v9224 = vld [vmem:[#allocation11 + $0x88] sm:$0xff]
    %v9225 = vld [vmem:[#allocation11 + $0x90] sm:$0xff]
    %v9226 = vld [vmem:[#allocation11 + $0x98] sm:$0xff]
    %v9227 = vld [vmem:[#allocation11 + $0xa0] sm:$0xff]
    %v9228 = vld [vmem:[#allocation11 + $0xa8] sm:$0xff]
    %v9229 = vld [vmem:[#allocation11 + $0xb0] sm:$0xff]
    %v9230 = vld [vmem:[#allocation11 + $0xb8] sm:$0xff]
    %v9231 = vld [vmem:[#allocation11 + $0xc0] sm:$0xff]
    %v9232 = vld [vmem:[#allocation11 + $0xc8] sm:$0xff]
    %v9233 = vld [vmem:[#allocation11 + $0xd0] sm:$0xff]
    %v9234 = vld [vmem:[#allocation11 + $0xd8] sm:$0xff]
    %v9235 = vld [vmem:[#allocation11 + $0xe0] sm:$0xff]
    %v9236 = vld [vmem:[#allocation11 + $0xe8] sm:$0xff]
    %v9237 = vld [vmem:[#allocation11 + $0xf0] sm:$0xff]
    %v9238 = vld [vmem:[#allocation11 + $0xf8] sm:$0xff]
    %v9239 = vld [vmem:[#allocation11 + $0x100] sm:$0xff]
    %v9240 = vld [vmem:[#allocation11 + $0x108] sm:$0xff]
    %v9241 = vld [vmem:[#allocation11 + $0x110] sm:$0xff]
    %v9242 = vld [vmem:[#allocation11 + $0x118] sm:$0xff]
    %v9243 = vld [vmem:[#allocation11 + $0x120] sm:$0xff]
    %v9244 = vld [vmem:[#allocation11 + $0x128] sm:$0xff]
    %v9245 = vld [vmem:[#allocation11 + $0x130] sm:$0xff]
    %v9246 = vld [vmem:[#allocation11 + $0x138] sm:$0xff]
    %v9247 = vld [vmem:[#allocation11 + $0x140] sm:$0xff]
    %v9248 = vld [vmem:[#allocation11 + $0x148] sm:$0xff]
    %v9249 = vld [vmem:[#allocation11 + $0x150] sm:$0xff]
    %v9250 = vld [vmem:[#allocation11 + $0x158] sm:$0xff]
    %v9251 = vld [vmem:[#allocation11 + $0x160] sm:$0xff]
    %v9252 = vld [vmem:[#allocation11 + $0x168] sm:$0xff]
    %v9253 = vld [vmem:[#allocation11 + $0x170] sm:$0xff]
    %v9254 = vld [vmem:[#allocation11 + $0x178] sm:$0xff]
    %v9255 = vld [vmem:[#allocation11 + $0x180] sm:$0xff]
    %v9256 = vld [vmem:[#allocation11 + $0x188] sm:$0xff]
    %v9257 = vld [vmem:[#allocation11 + $0x190] sm:$0xff]
    %v9258 = vld [vmem:[#allocation11 + $0x198] sm:$0xff]
    %v9259 = vld [vmem:[#allocation11 + $0x1a0] sm:$0xff]
    %v9260 = vld [vmem:[#allocation11 + $0x1a8] sm:$0xff]
    %v9261 = vld [vmem:[#allocation11 + $0x1b0] sm:$0xff]
    %v9262 = vld [vmem:[#allocation11 + $0x1b8] sm:$0xff]
    %v9263 = vld [vmem:[#allocation11 + $0x1c0] sm:$0xff]
    %v9264 = vld [vmem:[#allocation11 + $0x1c8] sm:$0xff]
    %v9265 = vld [vmem:[#allocation11 + $0x1d0] sm:$0xff]
    %v9266 = vld [vmem:[#allocation11 + $0x1d8] sm:$0xff]
    %v9267 = vld [vmem:[#allocation11 + $0x1e0] sm:$0xff]
    %v9268 = vld [vmem:[#allocation11 + $0x1e8] sm:$0xff]
    %v9269 = vld [vmem:[#allocation11 + $0x1f0] sm:$0xff]
    %v9270 = vld [vmem:[#allocation11 + $0x1f8] sm:$0xff]
    %v9271 = vld [vmem:[#allocation11 + $0x200] sm:$0xff]
    %v9272 = vld [vmem:[#allocation11 + $0x208] sm:$0xff]
    %v9273 = vld [vmem:[#allocation11 + $0x210] sm:$0xff]
    %v9274 = vld [vmem:[#allocation11 + $0x218] sm:$0xff]
    %v9275 = vld [vmem:[#allocation11 + $0x220] sm:$0xff]
    %v9276 = vld [vmem:[#allocation11 + $0x228] sm:$0xff]
    %v9277 = vld [vmem:[#allocation11 + $0x230] sm:$0xff]
    %v9278 = vld [vmem:[#allocation11 + $0x238] sm:$0xff]
    %v9279 = vld [vmem:[#allocation11 + $0x240] sm:$0xff]
    %v9280 = vld [vmem:[#allocation11 + $0x248] sm:$0xff]
    %v9281 = vld [vmem:[#allocation11 + $0x250] sm:$0xff]
    %v9282 = vld [vmem:[#allocation11 + $0x258] sm:$0xff]
    %v9283 = vld [vmem:[#allocation11 + $0x260] sm:$0xff]
    %v9284 = vld [vmem:[#allocation11 + $0x268] sm:$0xff]
    %v9285 = vld [vmem:[#allocation11 + $0x270] sm:$0xff]
    %v9286 = vld [vmem:[#allocation11 + $0x278] sm:$0xff]
    %v9287 = vld [vmem:[#allocation11 + $0x280] sm:$0xff]
    %v9288 = vld [vmem:[#allocation11 + $0x288] sm:$0xff]
    %v9289 = vld [vmem:[#allocation11 + $0x290] sm:$0xff]
    %v9290 = vld [vmem:[#allocation11 + $0x298] sm:$0xff]
    %v9291 = vld [vmem:[#allocation11 + $0x2a0] sm:$0xff]
    %v9292 = vld [vmem:[#allocation11 + $0x2a8] sm:$0xff]
    %v9293 = vld [vmem:[#allocation11 + $0x2b0] sm:$0xff]
    %v9294 = vld [vmem:[#allocation11 + $0x2b8] sm:$0xff]
    %v9295 = vld [vmem:[#allocation11 + $0x2c0] sm:$0xff]
    %v9296 = vld [vmem:[#allocation11 + $0x2c8] sm:$0xff]
    %v9297 = vld [vmem:[#allocation11 + $0x2d0] sm:$0xff]
    %v9298 = vld [vmem:[#allocation11 + $0x2d8] sm:$0xff]
    %v9299 = vld [vmem:[#allocation11 + $0x2e0] sm:$0xff]
    %v9300 = vld [vmem:[#allocation11 + $0x2e8] sm:$0xff]
    %v9301 = vld [vmem:[#allocation11 + $0x2f0] sm:$0xff]
    %v9302 = vld [vmem:[#allocation11 + $0x2f8] sm:$0xff]
    %v9303 = vld [vmem:[#allocation11 + $0x300] sm:$0xff]
    %v9304 = vld [vmem:[#allocation11 + $0x308] sm:$0xff]
    %v9305 = vld [vmem:[#allocation11 + $0x310] sm:$0xff]
    %v9306 = vld [vmem:[#allocation11 + $0x318] sm:$0xff]
    %v9307 = vld [vmem:[#allocation11 + $0x320] sm:$0xff]
    %v9308 = vld [vmem:[#allocation11 + $0x328] sm:$0xff]
    %v9309 = vld [vmem:[#allocation11 + $0x330] sm:$0xff]
    %v9310 = vld [vmem:[#allocation11 + $0x338] sm:$0xff]
    %v9311 = vld [vmem:[#allocation11 + $0x340] sm:$0xff]
    %v9312 = vld [vmem:[#allocation11 + $0x348] sm:$0xff]
    %v9313 = vld [vmem:[#allocation11 + $0x350] sm:$0xff]
    %v9314 = vld [vmem:[#allocation11 + $0x358] sm:$0xff]
    %v9315 = vld [vmem:[#allocation11 + $0x360] sm:$0xff]
    %v9316 = vld [vmem:[#allocation11 + $0x368] sm:$0xff]
    %v9317 = vld [vmem:[#allocation11 + $0x370] sm:$0xff]
    %v9318 = vld [vmem:[#allocation11 + $0x378] sm:$0xff]
    %v9319 = vld [vmem:[#allocation11 + $0x380] sm:$0xff]
    %v9320 = vld [vmem:[#allocation11 + $0x388] sm:$0xff]
    %v9321 = vld [vmem:[#allocation11 + $0x390] sm:$0xff]
    %v9322 = vld [vmem:[#allocation11 + $0x398] sm:$0xff]
    %v9323 = vld [vmem:[#allocation11 + $0x3a0] sm:$0xff]
    %v9324 = vld [vmem:[#allocation11 + $0x3a8] sm:$0xff]
    %v9325 = vld [vmem:[#allocation11 + $0x3b0] sm:$0xff]
    %v9326 = vld [vmem:[#allocation11 + $0x3b8] sm:$0xff]
    %v9327 = vld [vmem:[#allocation11 + $0x3c0] sm:$0xff]
    %v9328 = vld [vmem:[#allocation11 + $0x3c8] sm:$0xff]
    %v9329 = vld [vmem:[#allocation11 + $0x3d0] sm:$0xff]
    %v9330 = vld [vmem:[#allocation11 + $0x3d8] sm:$0xff]
    %v9331 = vld [vmem:[#allocation11 + $0x3e0] sm:$0xff]
    %v9332 = vld [vmem:[#allocation11 + $0x3e8] sm:$0xff]
    %v9333 = vld [vmem:[#allocation11 + $0x3f0] sm:$0xff]
    %v9334 = vld [vmem:[#allocation11 + $0x3f8] sm:$0xff]
    %v9335 = vld [vmem:[#allocation11 + $0x400] sm:$0xff]
    %v9336 = vld [vmem:[#allocation11 + $0x408] sm:$0xff]
    %v9337 = vld [vmem:[#allocation11 + $0x410] sm:$0xff]
    %v9338 = vld [vmem:[#allocation11 + $0x418] sm:$0xff]
    %v9339 = vld [vmem:[#allocation11 + $0x420] sm:$0xff]
    %v9340 = vld [vmem:[#allocation11 + $0x428] sm:$0xff]
    %v9341 = vld [vmem:[#allocation11 + $0x430] sm:$0xff]
    %v9342 = vld [vmem:[#allocation11 + $0x438] sm:$0xff]
    %v9343 = vld [vmem:[#allocation11 + $0x440] sm:$0xff]
    %v9344 = vld [vmem:[#allocation11 + $0x448] sm:$0xff]
    %v9345 = vld [vmem:[#allocation11 + $0x450] sm:$0xff]
    %v9346 = vld [vmem:[#allocation11 + $0x458] sm:$0xff]
    %v9347 = vld [vmem:[#allocation11 + $0x460] sm:$0xff]
    %v9348 = vld [vmem:[#allocation11 + $0x468] sm:$0xff]
    %v9349 = vld [vmem:[#allocation11 + $0x470] sm:$0xff]
    %v9350 = vld [vmem:[#allocation11 + $0x478] sm:$0xff]
    %v9351 = vld [vmem:[#allocation11 + $0x480] sm:$0xff]
    %v9352 = vld [vmem:[#allocation11 + $0x488] sm:$0xff]
    %v9353 = vld [vmem:[#allocation11 + $0x490] sm:$0xff]
    %v9354 = vld [vmem:[#allocation11 + $0x498] sm:$0xff]
    %v9355 = vld [vmem:[#allocation11 + $0x4a0] sm:$0xff]
    %v9356 = vld [vmem:[#allocation11 + $0x4a8] sm:$0xff]
    %v9357 = vld [vmem:[#allocation11 + $0x4b0] sm:$0xff]
    %v9358 = vld [vmem:[#allocation11 + $0x4b8] sm:$0xff]
    %v9359 = vld [vmem:[#allocation11 + $0x4c0] sm:$0xff]
    %v9360 = vld [vmem:[#allocation11 + $0x4c8] sm:$0xff]
    %v9361 = vld [vmem:[#allocation11 + $0x4d0] sm:$0xff]
    %v9362 = vld [vmem:[#allocation11 + $0x4d8] sm:$0xff]
    %v9363 = vld [vmem:[#allocation11 + $0x4e0] sm:$0xff]
    %v9364 = vld [vmem:[#allocation11 + $0x4e8] sm:$0xff]
    %v9365 = vld [vmem:[#allocation11 + $0x4f0] sm:$0xff]
    %v9366 = vld [vmem:[#allocation11 + $0x4f8] sm:$0xff]
    %v9367 = vld [vmem:[#allocation11 + $0x500] sm:$0xff]
    %v9368 = vld [vmem:[#allocation11 + $0x508] sm:$0xff]
    %v9369 = vld [vmem:[#allocation11 + $0x510] sm:$0xff]
    %v9370 = vld [vmem:[#allocation11 + $0x518] sm:$0xff]
    %v9371 = vld [vmem:[#allocation11 + $0x520] sm:$0xff]
    %v9372 = vld [vmem:[#allocation11 + $0x528] sm:$0xff]
    %v9373 = vld [vmem:[#allocation11 + $0x530] sm:$0xff]
    %v9374 = vld [vmem:[#allocation11 + $0x538] sm:$0xff]
    %v9375 = vld [vmem:[#allocation11 + $0x540] sm:$0xff]
    %v9376 = vld [vmem:[#allocation11 + $0x548] sm:$0xff]
    %v9377 = vld [vmem:[#allocation11 + $0x550] sm:$0xff]
    %v9378 = vld [vmem:[#allocation11 + $0x558] sm:$0xff]
    %v9379 = vld [vmem:[#allocation11 + $0x560] sm:$0xff]
    %v9380 = vld [vmem:[#allocation11 + $0x568] sm:$0xff]
    %v9381 = vld [vmem:[#allocation11 + $0x570] sm:$0xff]
    %v9382 = vld [vmem:[#allocation11 + $0x578] sm:$0xff]
    %v9383 = vld [vmem:[#allocation11 + $0x580] sm:$0xff]
    %v9384 = vld [vmem:[#allocation11 + $0x588] sm:$0xff]
    %v9385 = vld [vmem:[#allocation11 + $0x590] sm:$0xff]
    %v9386 = vld [vmem:[#allocation11 + $0x598] sm:$0xff]
    %v9387 = vld [vmem:[#allocation11 + $0x5a0] sm:$0xff]
    %v9388 = vld [vmem:[#allocation11 + $0x5a8] sm:$0xff]
    %v9389 = vld [vmem:[#allocation11 + $0x5b0] sm:$0xff]
    %v9390 = vld [vmem:[#allocation11 + $0x5b8] sm:$0xff]
    %v9391 = vld [vmem:[#allocation11 + $0x5c0] sm:$0xff]
    %v9392 = vld [vmem:[#allocation11 + $0x5c8] sm:$0xff]
    %v9393 = vld [vmem:[#allocation11 + $0x5d0] sm:$0xff]
    %v9394 = vld [vmem:[#allocation11 + $0x5d8] sm:$0xff]
    %v9395 = vld [vmem:[#allocation11 + $0x5e0] sm:$0xff]
    %v9396 = vld [vmem:[#allocation11 + $0x5e8] sm:$0xff]
    %v9397 = vld [vmem:[#allocation11 + $0x5f0] sm:$0xff]
    %v9398 = vld [vmem:[#allocation11 + $0x5f8] sm:$0xff]
    %v9399 = vld [vmem:[#allocation11 + $0x600] sm:$0xff]
    %v9400 = vld [vmem:[#allocation11 + $0x608] sm:$0xff]
    %v9401 = vld [vmem:[#allocation11 + $0x610] sm:$0xff]
    %v9402 = vld [vmem:[#allocation11 + $0x618] sm:$0xff]
    %v9403 = vld [vmem:[#allocation11 + $0x620] sm:$0xff]
    %v9404 = vld [vmem:[#allocation11 + $0x628] sm:$0xff]
    %v9405 = vld [vmem:[#allocation11 + $0x630] sm:$0xff]
    %v9406 = vld [vmem:[#allocation11 + $0x638] sm:$0xff]
    %v9407 = vld [vmem:[#allocation11 + $0x640] sm:$0xff]
    %v9408 = vld [vmem:[#allocation11 + $0x648] sm:$0xff]
    %v9409 = vld [vmem:[#allocation11 + $0x650] sm:$0xff]
    %v9410 = vld [vmem:[#allocation11 + $0x658] sm:$0xff]
    %v9411 = vld [vmem:[#allocation11 + $0x660] sm:$0xff]
    %v9412 = vld [vmem:[#allocation11 + $0x668] sm:$0xff]
    %v9413 = vld [vmem:[#allocation11 + $0x670] sm:$0xff]
    %v9414 = vld [vmem:[#allocation11 + $0x678] sm:$0xff]
    %v9415 = vld [vmem:[#allocation11 + $0x680] sm:$0xff]
    %v9416 = vld [vmem:[#allocation11 + $0x688] sm:$0xff]
    %v9417 = vld [vmem:[#allocation11 + $0x690] sm:$0xff]
    %v9418 = vld [vmem:[#allocation11 + $0x698] sm:$0xff]
    %v9419 = vld [vmem:[#allocation11 + $0x6a0] sm:$0xff]
    %v9420 = vld [vmem:[#allocation11 + $0x6a8] sm:$0xff]
    %v9421 = vld [vmem:[#allocation11 + $0x6b0] sm:$0xff]
    %v9422 = vld [vmem:[#allocation11 + $0x6b8] sm:$0xff]
    %v9423 = vld [vmem:[#allocation11 + $0x6c0] sm:$0xff]
    %v9424 = vld [vmem:[#allocation11 + $0x6c8] sm:$0xff]
    %v9425 = vld [vmem:[#allocation11 + $0x6d0] sm:$0xff]
    %v9426 = vld [vmem:[#allocation11 + $0x6d8] sm:$0xff]
    %v9427 = vld [vmem:[#allocation11 + $0x6e0] sm:$0xff]
    %v9428 = vld [vmem:[#allocation11 + $0x6e8] sm:$0xff]
    %v9429 = vld [vmem:[#allocation11 + $0x6f0] sm:$0xff]
    %v9430 = vld [vmem:[#allocation11 + $0x6f8] sm:$0xff]
    %v9431 = vld [vmem:[#allocation11 + $0x700] sm:$0xff]
    %v9432 = vld [vmem:[#allocation11 + $0x708] sm:$0xff]
    %v9433 = vld [vmem:[#allocation11 + $0x710] sm:$0xff]
    %v9434 = vld [vmem:[#allocation11 + $0x718] sm:$0xff]
    %v9435 = vld [vmem:[#allocation11 + $0x720] sm:$0xff]
    %v9436 = vld [vmem:[#allocation11 + $0x728] sm:$0xff]
    %v9437 = vld [vmem:[#allocation11 + $0x730] sm:$0xff]
    %v9438 = vld [vmem:[#allocation11 + $0x738] sm:$0xff]
    %v9439 = vld [vmem:[#allocation11 + $0x740] sm:$0xff]
    %v9440 = vld [vmem:[#allocation11 + $0x748] sm:$0xff]
    %v9441 = vld [vmem:[#allocation11 + $0x750] sm:$0xff]
    %v9442 = vld [vmem:[#allocation11 + $0x758] sm:$0xff]
    %v9443 = vld [vmem:[#allocation11 + $0x760] sm:$0xff]
    %v9444 = vld [vmem:[#allocation11 + $0x768] sm:$0xff]
    %v9445 = vld [vmem:[#allocation11 + $0x770] sm:$0xff]
    %v9446 = vld [vmem:[#allocation11 + $0x778] sm:$0xff]
    %v9447 = vld [vmem:[#allocation11 + $0x780] sm:$0xff]
    %v9448 = vld [vmem:[#allocation11 + $0x788] sm:$0xff]
    %v9449 = vld [vmem:[#allocation11 + $0x790] sm:$0xff]
    %v9450 = vld [vmem:[#allocation11 + $0x798] sm:$0xff]
    %v9451 = vld [vmem:[#allocation11 + $0x7a0] sm:$0xff]
    %v9452 = vld [vmem:[#allocation11 + $0x7a8] sm:$0xff]
    %v9453 = vld [vmem:[#allocation11 + $0x7b0] sm:$0xff]
    %v9454 = vld [vmem:[#allocation11 + $0x7b8] sm:$0xff]
    %v9455 = vld [vmem:[#allocation11 + $0x7c0] sm:$0xff]
    %v9456 = vld [vmem:[#allocation11 + $0x7c8] sm:$0xff]
    %v9457 = vld [vmem:[#allocation11 + $0x7d0] sm:$0xff]
    %v9458 = vld [vmem:[#allocation11 + $0x7d8] sm:$0xff]
    %v9459 = vld [vmem:[#allocation11 + $0x7e0] sm:$0xff]
    %v9460 = vld [vmem:[#allocation11 + $0x7e8] sm:$0xff]
    %v9461 = vld [vmem:[#allocation11 + $0x7f0] sm:$0xff]
    %v9462 = vld [vmem:[#allocation11 + $0x7f8] sm:$0xff]
    %v9463 = vld [vmem:[#allocation11 + $0x800] sm:$0xff]
    %v9464 = vld [vmem:[#allocation11 + $0x808] sm:$0xff]
    %v9465 = vld [vmem:[#allocation11 + $0x810] sm:$0xff]
    %v9466 = vld [vmem:[#allocation11 + $0x818] sm:$0xff]
    %v9467 = vld [vmem:[#allocation11 + $0x820] sm:$0xff]
    %v9468 = vld [vmem:[#allocation11 + $0x828] sm:$0xff]
    %v9469 = vld [vmem:[#allocation11 + $0x830] sm:$0xff]
    %v9470 = vld [vmem:[#allocation11 + $0x838] sm:$0xff]
    %v9471 = vld [vmem:[#allocation11 + $0x840] sm:$0xff]
    %v9472 = vld [vmem:[#allocation11 + $0x848] sm:$0xff]
    %v9473 = vld [vmem:[#allocation11 + $0x850] sm:$0xff]
    %v9474 = vld [vmem:[#allocation11 + $0x858] sm:$0xff]
    %v9475 = vld [vmem:[#allocation11 + $0x860] sm:$0xff]
    %v9476 = vld [vmem:[#allocation11 + $0x868] sm:$0xff]
    %v9477 = vld [vmem:[#allocation11 + $0x870] sm:$0xff]
    %v9478 = vld [vmem:[#allocation11 + $0x878] sm:$0xff]
    %v9479 = vld [vmem:[#allocation11 + $0x880] sm:$0xff]
    %v9480 = vld [vmem:[#allocation11 + $0x888] sm:$0xff]
    %v9481 = vld [vmem:[#allocation11 + $0x890] sm:$0xff]
    %v9482 = vld [vmem:[#allocation11 + $0x898] sm:$0xff]
    %v9483 = vld [vmem:[#allocation11 + $0x8a0] sm:$0xff]
    %v9484 = vld [vmem:[#allocation11 + $0x8a8] sm:$0xff]
    %v9485 = vld [vmem:[#allocation11 + $0x8b0] sm:$0xff]
    %v9486 = vld [vmem:[#allocation11 + $0x8b8] sm:$0xff]
    %v9487 = vld [vmem:[#allocation11 + $0x8c0] sm:$0xff]
    %v9488 = vld [vmem:[#allocation11 + $0x8c8] sm:$0xff]
    %v9489 = vld [vmem:[#allocation11 + $0x8d0] sm:$0xff]
    %v9490 = vld [vmem:[#allocation11 + $0x8d8] sm:$0xff]
    %v9491 = vld [vmem:[#allocation11 + $0x8e0] sm:$0xff]
    %v9492 = vld [vmem:[#allocation11 + $0x8e8] sm:$0xff]
    %v9493 = vld [vmem:[#allocation11 + $0x8f0] sm:$0xff]
    %v9494 = vld [vmem:[#allocation11 + $0x8f8] sm:$0xff]
    %v9495 = vld [vmem:[#allocation11 + $0x900] sm:$0xff]
    %v9496 = vld [vmem:[#allocation11 + $0x908] sm:$0xff]
    %v9497 = vld [vmem:[#allocation11 + $0x910] sm:$0xff]
    %v9498 = vld [vmem:[#allocation11 + $0x918] sm:$0xff]
    %v9499 = vld [vmem:[#allocation11 + $0x920] sm:$0xff]
    %v9500 = vld [vmem:[#allocation11 + $0x928] sm:$0xff]
    %v9501 = vld [vmem:[#allocation11 + $0x930] sm:$0xff]
    %v9502 = vld [vmem:[#allocation11 + $0x938] sm:$0xff]
    %v9503 = vld [vmem:[#allocation11 + $0x940] sm:$0xff]
    %v9504 = vld [vmem:[#allocation11 + $0x948] sm:$0xff]
    %v9505 = vld [vmem:[#allocation11 + $0x950] sm:$0xff]
    %v9506 = vld [vmem:[#allocation11 + $0x958] sm:$0xff]
    %v9507 = vld [vmem:[#allocation11 + $0x960] sm:$0xff]
    %v9508 = vld [vmem:[#allocation11 + $0x968] sm:$0xff]
    %v9509 = vld [vmem:[#allocation11 + $0x970] sm:$0xff]
    %v9510 = vld [vmem:[#allocation11 + $0x978] sm:$0xff]
    %v9511 = vld [vmem:[#allocation11 + $0x980] sm:$0xff]
    %v9512 = vld [vmem:[#allocation11 + $0x988] sm:$0xff]
    %v9513 = vld [vmem:[#allocation11 + $0x990] sm:$0xff]
    %v9514 = vld [vmem:[#allocation11 + $0x998] sm:$0xff]
    %v9515 = vld [vmem:[#allocation11 + $0x9a0] sm:$0xff]
    %v9516 = vld [vmem:[#allocation11 + $0x9a8] sm:$0xff]
    %v9517 = vld [vmem:[#allocation11 + $0x9b0] sm:$0xff]
    %v9518 = vld [vmem:[#allocation11 + $0x9b8] sm:$0xff]
    %v9519 = vld [vmem:[#allocation11 + $0x9c0] sm:$0xff]
    %v9520 = vld [vmem:[#allocation11 + $0x9c8] sm:$0xff]
    %v9521 = vld [vmem:[#allocation11 + $0x9d0] sm:$0xff]
    %v9522 = vld [vmem:[#allocation11 + $0x9d8] sm:$0xff]
    %v9523 = vld [vmem:[#allocation11 + $0x9e0] sm:$0xff]
    %v9524 = vld [vmem:[#allocation11 + $0x9e8] sm:$0xff]
    %v9525 = vld [vmem:[#allocation11 + $0x9f0] sm:$0xff]
    %v9526 = vld [vmem:[#allocation11 + $0x9f8] sm:$0xff]
    %v9527 = vld [vmem:[#allocation11 + $0xa00] sm:$0xff]
    %v9528 = vld [vmem:[#allocation11 + $0xa08] sm:$0xff]
    %v9529 = vld [vmem:[#allocation11 + $0xa10] sm:$0xff]
    %v9530 = vld [vmem:[#allocation11 + $0xa18] sm:$0xff]
    %v9531 = vld [vmem:[#allocation11 + $0xa20] sm:$0xff]
    %v9532 = vld [vmem:[#allocation11 + $0xa28] sm:$0xff]
    %v9533 = vld [vmem:[#allocation11 + $0xa30] sm:$0xff]
    %v9534 = vld [vmem:[#allocation11 + $0xa38] sm:$0xff]
    %v9535 = vld [vmem:[#allocation11 + $0xa40] sm:$0xff]
    %v9536 = vld [vmem:[#allocation11 + $0xa48] sm:$0xff]
    %v9537 = vld [vmem:[#allocation11 + $0xa50] sm:$0xff]
    %v9538 = vld [vmem:[#allocation11 + $0xa58] sm:$0xff]
    %v9539 = vld [vmem:[#allocation11 + $0xa60] sm:$0xff]
    %v9540 = vld [vmem:[#allocation11 + $0xa68] sm:$0xff]
    %v9541 = vld [vmem:[#allocation11 + $0xa70] sm:$0xff]
    %v9542 = vld [vmem:[#allocation11 + $0xa78] sm:$0xff]
    %v9543 = vld [vmem:[#allocation11 + $0xa80] sm:$0xff]
    %v9544 = vld [vmem:[#allocation11 + $0xa88] sm:$0xff]
    %v9545 = vld [vmem:[#allocation11 + $0xa90] sm:$0xff]
    %v9546 = vld [vmem:[#allocation11 + $0xa98] sm:$0xff]
    %v9547 = vld [vmem:[#allocation11 + $0xaa0] sm:$0xff]
    %v9548 = vld [vmem:[#allocation11 + $0xaa8] sm:$0xff]
    %v9549 = vld [vmem:[#allocation11 + $0xab0] sm:$0xff]
    %v9550 = vld [vmem:[#allocation11 + $0xab8] sm:$0xff]
    %v9551 = vld [vmem:[#allocation11 + $0xac0] sm:$0xff]
    %v9552 = vld [vmem:[#allocation11 + $0xac8] sm:$0xff]
    %v9553 = vld [vmem:[#allocation11 + $0xad0] sm:$0xff]
    %v9554 = vld [vmem:[#allocation11 + $0xad8] sm:$0xff]
    %v9555 = vld [vmem:[#allocation11 + $0xae0] sm:$0xff]
    %v9556 = vld [vmem:[#allocation11 + $0xae8] sm:$0xff]
    %v9557 = vld [vmem:[#allocation11 + $0xaf0] sm:$0xff]
    %v9558 = vld [vmem:[#allocation11 + $0xaf8] sm:$0xff]
    %v9559 = vld [vmem:[#allocation11 + $0xb00] sm:$0xff]
    %v9560 = vld [vmem:[#allocation11 + $0xb08] sm:$0xff]
    %v9561 = vld [vmem:[#allocation11 + $0xb10] sm:$0xff]
    %v9562 = vld [vmem:[#allocation11 + $0xb18] sm:$0xff]
    %v9563 = vld [vmem:[#allocation11 + $0xb20] sm:$0xff]
    %v9564 = vld [vmem:[#allocation11 + $0xb28] sm:$0xff]
    %v9565 = vld [vmem:[#allocation11 + $0xb30] sm:$0xff]
    %v9566 = vld [vmem:[#allocation11 + $0xb38] sm:$0xff]
    %v9567 = vld [vmem:[#allocation11 + $0xb40] sm:$0xff]
    %v9568 = vld [vmem:[#allocation11 + $0xb48] sm:$0xff]
    %v9569 = vld [vmem:[#allocation11 + $0xb50] sm:$0xff]
    %v9570 = vld [vmem:[#allocation11 + $0xb58] sm:$0xff]
    %v9571 = vld [vmem:[#allocation11 + $0xb60] sm:$0xff]
    %v9572 = vld [vmem:[#allocation11 + $0xb68] sm:$0xff]
    %v9573 = vld [vmem:[#allocation11 + $0xb70] sm:$0xff]
    %v9574 = vld [vmem:[#allocation11 + $0xb78] sm:$0xff]
    %v9575 = vld [vmem:[#allocation11 + $0xb80] sm:$0xff]
    %v9576 = vld [vmem:[#allocation11 + $0xb88] sm:$0xff]
    %v9577 = vld [vmem:[#allocation11 + $0xb90] sm:$0xff]
    %v9578 = vld [vmem:[#allocation11 + $0xb98] sm:$0xff]
    %v9579 = vld [vmem:[#allocation11 + $0xba0] sm:$0xff]
    %v9580 = vld [vmem:[#allocation11 + $0xba8] sm:$0xff]
    %v9581 = vld [vmem:[#allocation11 + $0xbb0] sm:$0xff]
    %v9582 = vld [vmem:[#allocation11 + $0xbb8] sm:$0xff]
    %v9583 = vld [vmem:[#allocation11 + $0xbc0] sm:$0xff]
    %v9584 = vld [vmem:[#allocation11 + $0xbc8] sm:$0xff]
    %v9585 = vld [vmem:[#allocation11 + $0xbd0] sm:$0xff]
    %v9586 = vld [vmem:[#allocation11 + $0xbd8] sm:$0xff]
    %v9587 = vld [vmem:[#allocation11 + $0xbe0] sm:$0xff]
    %v9588 = vld [vmem:[#allocation11 + $0xbe8] sm:$0xff]
    %v9589 = vld [vmem:[#allocation11 + $0xbf0] sm:$0xff]
    %v9590 = vld [vmem:[#allocation11 + $0xbf8] sm:$0xff]
    %v9591 = vld [vmem:[#allocation11 + $0xc00] sm:$0xff]
    %v9592 = vld [vmem:[#allocation11 + $0xc08] sm:$0xff]
    %v9593 = vld [vmem:[#allocation11 + $0xc10] sm:$0xff]
    %v9594 = vld [vmem:[#allocation11 + $0xc18] sm:$0xff]
    %v9595 = vld [vmem:[#allocation11 + $0xc20] sm:$0xff]
    %v9596 = vld [vmem:[#allocation11 + $0xc28] sm:$0xff]
    %v9597 = vld [vmem:[#allocation11 + $0xc30] sm:$0xff]
    %v9598 = vld [vmem:[#allocation11 + $0xc38] sm:$0xff]
    %v9599 = vld [vmem:[#allocation11 + $0xc40] sm:$0xff]
    %v9600 = vld [vmem:[#allocation11 + $0xc48] sm:$0xff]
    %v9601 = vld [vmem:[#allocation11 + $0xc50] sm:$0xff]
    %v9602 = vld [vmem:[#allocation11 + $0xc58] sm:$0xff]
    %v9603 = vld [vmem:[#allocation11 + $0xc60] sm:$0xff]
    %v9604 = vld [vmem:[#allocation11 + $0xc68] sm:$0xff]
    %v9605 = vld [vmem:[#allocation11 + $0xc70] sm:$0xff]
    %v9606 = vld [vmem:[#allocation11 + $0xc78] sm:$0xff]
    %v9607 = vld [vmem:[#allocation11 + $0xc80] sm:$0xff]
    %v9608 = vld [vmem:[#allocation11 + $0xc88] sm:$0xff]
    %v9609 = vld [vmem:[#allocation11 + $0xc90] sm:$0xff]
    %v9610 = vld [vmem:[#allocation11 + $0xc98] sm:$0xff]
    %v9611 = vld [vmem:[#allocation11 + $0xca0] sm:$0xff]
    %v9612 = vld [vmem:[#allocation11 + $0xca8] sm:$0xff]
    %v9613 = vld [vmem:[#allocation11 + $0xcb0] sm:$0xff]
    %v9614 = vld [vmem:[#allocation11 + $0xcb8] sm:$0xff]
    %v9615 = vld [vmem:[#allocation11 + $0xcc0] sm:$0xff]
    %v9616 = vld [vmem:[#allocation11 + $0xcc8] sm:$0xff]
    %v9617 = vld [vmem:[#allocation11 + $0xcd0] sm:$0xff]
    %v9618 = vld [vmem:[#allocation11 + $0xcd8] sm:$0xff]
    %v9619 = vld [vmem:[#allocation11 + $0xce0] sm:$0xff]
    %v9620 = vld [vmem:[#allocation11 + $0xce8] sm:$0xff]
    %v9621 = vld [vmem:[#allocation11 + $0xcf0] sm:$0xff]
    %v9622 = vld [vmem:[#allocation11 + $0xcf8] sm:$0xff]
    %v9623 = vld [vmem:[#allocation11 + $0xd00] sm:$0xff]
    %v9624 = vld [vmem:[#allocation11 + $0xd08] sm:$0xff]
    %v9625 = vld [vmem:[#allocation11 + $0xd10] sm:$0xff]
    %v9626 = vld [vmem:[#allocation11 + $0xd18] sm:$0xff]
    %v9627 = vld [vmem:[#allocation11 + $0xd20] sm:$0xff]
    %v9628 = vld [vmem:[#allocation11 + $0xd28] sm:$0xff]
    %v9629 = vld [vmem:[#allocation11 + $0xd30] sm:$0xff]
    %v9630 = vld [vmem:[#allocation11 + $0xd38] sm:$0xff]
    %v9631 = vld [vmem:[#allocation11 + $0xd40] sm:$0xff]
    %v9632 = vld [vmem:[#allocation11 + $0xd48] sm:$0xff]
    %v9633 = vld [vmem:[#allocation11 + $0xd50] sm:$0xff]
    %v9634 = vld [vmem:[#allocation11 + $0xd58] sm:$0xff]
    %v9635 = vld [vmem:[#allocation11 + $0xd60] sm:$0xff]
    %v9636 = vld [vmem:[#allocation11 + $0xd68] sm:$0xff]
    %v9637 = vld [vmem:[#allocation11 + $0xd70] sm:$0xff]
    %v9638 = vld [vmem:[#allocation11 + $0xd78] sm:$0xff]
    %v9639 = vld [vmem:[#allocation11 + $0xd80] sm:$0xff]
    %v9640 = vld [vmem:[#allocation11 + $0xd88] sm:$0xff]
    %v9641 = vld [vmem:[#allocation11 + $0xd90] sm:$0xff]
    %v9642 = vld [vmem:[#allocation11 + $0xd98] sm:$0xff]
    %v9643 = vld [vmem:[#allocation11 + $0xda0] sm:$0xff]
    %v9644 = vld [vmem:[#allocation11 + $0xda8] sm:$0xff]
    %v9645 = vld [vmem:[#allocation11 + $0xdb0] sm:$0xff]
    %v9646 = vld [vmem:[#allocation11 + $0xdb8] sm:$0xff]
    %v9647 = vld [vmem:[#allocation11 + $0xdc0] sm:$0xff]
    %v9648 = vld [vmem:[#allocation11 + $0xdc8] sm:$0xff]
    %v9649 = vld [vmem:[#allocation11 + $0xdd0] sm:$0xff]
    %v9650 = vld [vmem:[#allocation11 + $0xdd8] sm:$0xff]
    %v9651 = vld [vmem:[#allocation11 + $0xde0] sm:$0xff]
    %v9652 = vld [vmem:[#allocation11 + $0xde8] sm:$0xff]
    %v9653 = vld [vmem:[#allocation11 + $0xdf0] sm:$0xff]
    %v9654 = vld [vmem:[#allocation11 + $0xdf8] sm:$0xff]
    %v9655 = vld [vmem:[#allocation11 + $0xe00] sm:$0xff]
    %v9656 = vld [vmem:[#allocation11 + $0xe08] sm:$0xff]
    %v9657 = vld [vmem:[#allocation11 + $0xe10] sm:$0xff]
    %v9658 = vld [vmem:[#allocation11 + $0xe18] sm:$0xff]
    %v9659 = vld [vmem:[#allocation11 + $0xe20] sm:$0xff]
    %v9660 = vld [vmem:[#allocation11 + $0xe28] sm:$0xff]
    %v9661 = vld [vmem:[#allocation11 + $0xe30] sm:$0xff]
    %v9662 = vld [vmem:[#allocation11 + $0xe38] sm:$0xff]
    %v9663 = vld [vmem:[#allocation11 + $0xe40] sm:$0xff]
    %v9664 = vld [vmem:[#allocation11 + $0xe48] sm:$0xff]
    %v9665 = vld [vmem:[#allocation11 + $0xe50] sm:$0xff]
    %v9666 = vld [vmem:[#allocation11 + $0xe58] sm:$0xff]
    %v9667 = vld [vmem:[#allocation11 + $0xe60] sm:$0xff]
    %v9668 = vld [vmem:[#allocation11 + $0xe68] sm:$0xff]
    %v9669 = vld [vmem:[#allocation11 + $0xe70] sm:$0xff]
    %v9670 = vld [vmem:[#allocation11 + $0xe78] sm:$0xff]
    %v9671 = vld [vmem:[#allocation11 + $0xe80] sm:$0xff]
    %v9672 = vld [vmem:[#allocation11 + $0xe88] sm:$0xff]
    %v9673 = vld [vmem:[#allocation11 + $0xe90] sm:$0xff]
    %v9674 = vld [vmem:[#allocation11 + $0xe98] sm:$0xff]
    %v9675 = vld [vmem:[#allocation11 + $0xea0] sm:$0xff]
    %v9676 = vld [vmem:[#allocation11 + $0xea8] sm:$0xff]
    %v9677 = vld [vmem:[#allocation11 + $0xeb0] sm:$0xff]
    %v9678 = vld [vmem:[#allocation11 + $0xeb8] sm:$0xff]
    %v9679 = vld [vmem:[#allocation11 + $0xec0] sm:$0xff]
    %v9680 = vld [vmem:[#allocation11 + $0xec8] sm:$0xff]
    %v9681 = vld [vmem:[#allocation11 + $0xed0] sm:$0xff]
    %v9682 = vld [vmem:[#allocation11 + $0xed8] sm:$0xff]
    %v9683 = vld [vmem:[#allocation11 + $0xee0] sm:$0xff]
    %v9684 = vld [vmem:[#allocation11 + $0xee8] sm:$0xff]
    %v9685 = vld [vmem:[#allocation11 + $0xef0] sm:$0xff]
    %v9686 = vld [vmem:[#allocation11 + $0xef8] sm:$0xff]
    %v9687 = vld [vmem:[#allocation11 + $0xf00] sm:$0xff]
    %v9688 = vld [vmem:[#allocation11 + $0xf08] sm:$0xff]
    %v9689 = vld [vmem:[#allocation11 + $0xf10] sm:$0xff]
    %v9690 = vld [vmem:[#allocation11 + $0xf18] sm:$0xff]
    %v9691 = vld [vmem:[#allocation11 + $0xf20] sm:$0xff]
    %v9692 = vld [vmem:[#allocation11 + $0xf28] sm:$0xff]
    %v9693 = vld [vmem:[#allocation11 + $0xf30] sm:$0xff]
    %v9694 = vld [vmem:[#allocation11 + $0xf38] sm:$0xff]
    %v9695 = vld [vmem:[#allocation11 + $0xf40] sm:$0xff]
    %v9696 = vld [vmem:[#allocation11 + $0xf48] sm:$0xff]
    %v9697 = vld [vmem:[#allocation11 + $0xf50] sm:$0xff]
    %v9698 = vld [vmem:[#allocation11 + $0xf58] sm:$0xff]
    %v9699 = vld [vmem:[#allocation11 + $0xf60] sm:$0xff]
    %v9700 = vld [vmem:[#allocation11 + $0xf68] sm:$0xff]
    %v9701 = vld [vmem:[#allocation11 + $0xf70] sm:$0xff]
    %v9702 = vld [vmem:[#allocation11 + $0xf78] sm:$0xff]
    %v9703 = vld [vmem:[#allocation11 + $0xf80] sm:$0xff]
    %v9704 = vld [vmem:[#allocation11 + $0xf88] sm:$0xff]
    %v9705 = vld [vmem:[#allocation11 + $0xf90] sm:$0xff]
    %v9706 = vld [vmem:[#allocation11 + $0xf98] sm:$0xff]
    %v9707 = vld [vmem:[#allocation11 + $0xfa0] sm:$0xff]
    %v9708 = vld [vmem:[#allocation11 + $0xfa8] sm:$0xff]
    %v9709 = vld [vmem:[#allocation11 + $0xfb0] sm:$0xff]
    %v9710 = vld [vmem:[#allocation11 + $0xfb8] sm:$0xff]
    %v9711 = vld [vmem:[#allocation11 + $0xfc0] sm:$0xff]
    %v9712 = vld [vmem:[#allocation11 + $0xfc8] sm:$0xff]
    %v9713 = vld [vmem:[#allocation11 + $0xfd0] sm:$0xff]
    %v9714 = vld [vmem:[#allocation11 + $0xfd8] sm:$0xff]
    %v9715 = vld [vmem:[#allocation11 + $0xfe0] sm:$0xff]
    %v9716 = vld [vmem:[#allocation11 + $0xfe8] sm:$0xff]
    %v9717 = vld [vmem:[#allocation11 + $0xff0] sm:$0xff]
    %v9718 = vld [vmem:[#allocation11 + $0xff8] sm:$0xff]
    %v10231 = vunpack.c.l.b16 %v9207
    %v10232 = vunpack.c.h.b16 %v9207
    %v10233 = vunpack.c.l.b16 %v9208
    %v10234 = vunpack.c.h.b16 %v9208
    %v10235 = vunpack.c.l.b16 %v9209
    %v10236 = vunpack.c.h.b16 %v9209
    %v10237 = vunpack.c.l.b16 %v9210
    %v10238 = vunpack.c.h.b16 %v9210
    %v10239 = vunpack.c.l.b16 %v9211
    %v10240 = vunpack.c.h.b16 %v9211
    %v10241 = vunpack.c.l.b16 %v9212
    %v10242 = vunpack.c.h.b16 %v9212
    %v10243 = vunpack.c.l.b16 %v9213
    %v10244 = vunpack.c.h.b16 %v9213
    %v10245 = vunpack.c.l.b16 %v9214
    %v10246 = vunpack.c.h.b16 %v9214
    %v10247 = vunpack.c.l.b16 %v9215
    %v10248 = vunpack.c.h.b16 %v9215
    %v10249 = vunpack.c.l.b16 %v9216
    %v10250 = vunpack.c.h.b16 %v9216
    %v10251 = vunpack.c.l.b16 %v9217
    %v10252 = vunpack.c.h.b16 %v9217
    %v10253 = vunpack.c.l.b16 %v9218
    %v10254 = vunpack.c.h.b16 %v9218
    %v10255 = vunpack.c.l.b16 %v9219
    %v10256 = vunpack.c.h.b16 %v9219
    %v10257 = vunpack.c.l.b16 %v9220
    %v10258 = vunpack.c.h.b16 %v9220
    %v10259 = vunpack.c.l.b16 %v9221
    %v10260 = vunpack.c.h.b16 %v9221
    %v10261 = vunpack.c.l.b16 %v9222
    %v10262 = vunpack.c.h.b16 %v9222
    %v10263 = vunpack.c.l.b16 %v9223
    %v10264 = vunpack.c.h.b16 %v9223
    %v10265 = vunpack.c.l.b16 %v9224
    %v10266 = vunpack.c.h.b16 %v9224
    %v10267 = vunpack.c.l.b16 %v9225
    %v10268 = vunpack.c.h.b16 %v9225
    %v10269 = vunpack.c.l.b16 %v9226
    %v10270 = vunpack.c.h.b16 %v9226
    %v10271 = vunpack.c.l.b16 %v9227
    %v10272 = vunpack.c.h.b16 %v9227
    %v10273 = vunpack.c.l.b16 %v9228
    %v10274 = vunpack.c.h.b16 %v9228
    %v10275 = vunpack.c.l.b16 %v9229
    %v10276 = vunpack.c.h.b16 %v9229
    %v10277 = vunpack.c.l.b16 %v9230
    %v10278 = vunpack.c.h.b16 %v9230
    %v10279 = vunpack.c.l.b16 %v9231
    %v10280 = vunpack.c.h.b16 %v9231
    %v10281 = vunpack.c.l.b16 %v9232
    %v10282 = vunpack.c.h.b16 %v9232
    %v10283 = vunpack.c.l.b16 %v9233
    %v10284 = vunpack.c.h.b16 %v9233
    %v10285 = vunpack.c.l.b16 %v9234
    %v10286 = vunpack.c.h.b16 %v9234
    %v10287 = vunpack.c.l.b16 %v9235
    %v10288 = vunpack.c.h.b16 %v9235
    %v10289 = vunpack.c.l.b16 %v9236
    %v10290 = vunpack.c.h.b16 %v9236
    %v10291 = vunpack.c.l.b16 %v9237
    %v10292 = vunpack.c.h.b16 %v9237
    %v10293 = vunpack.c.l.b16 %v9238
    %v10294 = vunpack.c.h.b16 %v9238
    %v10295 = vunpack.c.l.b16 %v9239
    %v10296 = vunpack.c.h.b16 %v9239
    %v10297 = vunpack.c.l.b16 %v9240
    %v10298 = vunpack.c.h.b16 %v9240
    %v10299 = vunpack.c.l.b16 %v9241
    %v10300 = vunpack.c.h.b16 %v9241
    %v10301 = vunpack.c.l.b16 %v9242
    %v10302 = vunpack.c.h.b16 %v9242
    %v10303 = vunpack.c.l.b16 %v9243
    %v10304 = vunpack.c.h.b16 %v9243
    %v10305 = vunpack.c.l.b16 %v9244
    %v10306 = vunpack.c.h.b16 %v9244
    %v10307 = vunpack.c.l.b16 %v9245
    %v10308 = vunpack.c.h.b16 %v9245
    %v10309 = vunpack.c.l.b16 %v9246
    %v10310 = vunpack.c.h.b16 %v9246
    %v10311 = vunpack.c.l.b16 %v9247
    %v10312 = vunpack.c.h.b16 %v9247
    %v10313 = vunpack.c.l.b16 %v9248
    %v10314 = vunpack.c.h.b16 %v9248
    %v10315 = vunpack.c.l.b16 %v9249
    %v10316 = vunpack.c.h.b16 %v9249
    %v10317 = vunpack.c.l.b16 %v9250
    %v10318 = vunpack.c.h.b16 %v9250
    %v10319 = vunpack.c.l.b16 %v9251
    %v10320 = vunpack.c.h.b16 %v9251
    %v10321 = vunpack.c.l.b16 %v9252
    %v10322 = vunpack.c.h.b16 %v9252
    %v10323 = vunpack.c.l.b16 %v9253
    %v10324 = vunpack.c.h.b16 %v9253
    %v10325 = vunpack.c.l.b16 %v9254
    %v10326 = vunpack.c.h.b16 %v9254
    %v10327 = vunpack.c.l.b16 %v9255
    %v10328 = vunpack.c.h.b16 %v9255
    %v10329 = vunpack.c.l.b16 %v9256
    %v10330 = vunpack.c.h.b16 %v9256
    %v10331 = vunpack.c.l.b16 %v9257
    %v10332 = vunpack.c.h.b16 %v9257
    %v10333 = vunpack.c.l.b16 %v9258
    %v10334 = vunpack.c.h.b16 %v9258
    %v10335 = vunpack.c.l.b16 %v9259
    %v10336 = vunpack.c.h.b16 %v9259
    %v10337 = vunpack.c.l.b16 %v9260
    %v10338 = vunpack.c.h.b16 %v9260
    %v10339 = vunpack.c.l.b16 %v9261
    %v10340 = vunpack.c.h.b16 %v9261
    %v10341 = vunpack.c.l.b16 %v9262
    %v10342 = vunpack.c.h.b16 %v9262
    %v10343 = vunpack.c.l.b16 %v9263
    %v10344 = vunpack.c.h.b16 %v9263
    %v10345 = vunpack.c.l.b16 %v9264
    %v10346 = vunpack.c.h.b16 %v9264
    %v10347 = vunpack.c.l.b16 %v9265
    %v10348 = vunpack.c.h.b16 %v9265
    %v10349 = vunpack.c.l.b16 %v9266
    %v10350 = vunpack.c.h.b16 %v9266
    %v10351 = vunpack.c.l.b16 %v9267
    %v10352 = vunpack.c.h.b16 %v9267
    %v10353 = vunpack.c.l.b16 %v9268
    %v10354 = vunpack.c.h.b16 %v9268
    %v10355 = vunpack.c.l.b16 %v9269
    %v10356 = vunpack.c.h.b16 %v9269
    %v10357 = vunpack.c.l.b16 %v9270
    %v10358 = vunpack.c.h.b16 %v9270
    %v10359 = vunpack.c.l.b16 %v9271
    %v10360 = vunpack.c.h.b16 %v9271
    %v10361 = vunpack.c.l.b16 %v9272
    %v10362 = vunpack.c.h.b16 %v9272
    %v10363 = vunpack.c.l.b16 %v9273
    %v10364 = vunpack.c.h.b16 %v9273
    %v10365 = vunpack.c.l.b16 %v9274
    %v10366 = vunpack.c.h.b16 %v9274
    %v10367 = vunpack.c.l.b16 %v9275
    %v10368 = vunpack.c.h.b16 %v9275
    %v10369 = vunpack.c.l.b16 %v9276
    %v10370 = vunpack.c.h.b16 %v9276
    %v10371 = vunpack.c.l.b16 %v9277
    %v10372 = vunpack.c.h.b16 %v9277
    %v10373 = vunpack.c.l.b16 %v9278
    %v10374 = vunpack.c.h.b16 %v9278
    %v10375 = vunpack.c.l.b16 %v9279
    %v10376 = vunpack.c.h.b16 %v9279
    %v10377 = vunpack.c.l.b16 %v9280
    %v10378 = vunpack.c.h.b16 %v9280
    %v10379 = vunpack.c.l.b16 %v9281
    %v10380 = vunpack.c.h.b16 %v9281
    %v10381 = vunpack.c.l.b16 %v9282
    %v10382 = vunpack.c.h.b16 %v9282
    %v10383 = vunpack.c.l.b16 %v9283
    %v10384 = vunpack.c.h.b16 %v9283
    %v10385 = vunpack.c.l.b16 %v9284
    %v10386 = vunpack.c.h.b16 %v9284
    %v10387 = vunpack.c.l.b16 %v9285
    %v10388 = vunpack.c.h.b16 %v9285
    %v10389 = vunpack.c.l.b16 %v9286
    %v10390 = vunpack.c.h.b16 %v9286
    %v10391 = vunpack.c.l.b16 %v9287
    %v10392 = vunpack.c.h.b16 %v9287
    %v10393 = vunpack.c.l.b16 %v9288
    %v10394 = vunpack.c.h.b16 %v9288
    %v10395 = vunpack.c.l.b16 %v9289
    %v10396 = vunpack.c.h.b16 %v9289
    %v10397 = vunpack.c.l.b16 %v9290
    %v10398 = vunpack.c.h.b16 %v9290
    %v10399 = vunpack.c.l.b16 %v9291
    %v10400 = vunpack.c.h.b16 %v9291
    %v10401 = vunpack.c.l.b16 %v9292
    %v10402 = vunpack.c.h.b16 %v9292
    %v10403 = vunpack.c.l.b16 %v9293
    %v10404 = vunpack.c.h.b16 %v9293
    %v10405 = vunpack.c.l.b16 %v9294
    %v10406 = vunpack.c.h.b16 %v9294
    %v10407 = vunpack.c.l.b16 %v9295
    %v10408 = vunpack.c.h.b16 %v9295
    %v10409 = vunpack.c.l.b16 %v9296
    %v10410 = vunpack.c.h.b16 %v9296
    %v10411 = vunpack.c.l.b16 %v9297
    %v10412 = vunpack.c.h.b16 %v9297
    %v10413 = vunpack.c.l.b16 %v9298
    %v10414 = vunpack.c.h.b16 %v9298
    %v10415 = vunpack.c.l.b16 %v9299
    %v10416 = vunpack.c.h.b16 %v9299
    %v10417 = vunpack.c.l.b16 %v9300
    %v10418 = vunpack.c.h.b16 %v9300
    %v10419 = vunpack.c.l.b16 %v9301
    %v10420 = vunpack.c.h.b16 %v9301
    %v10421 = vunpack.c.l.b16 %v9302
    %v10422 = vunpack.c.h.b16 %v9302
    %v10423 = vunpack.c.l.b16 %v9303
    %v10424 = vunpack.c.h.b16 %v9303
    %v10425 = vunpack.c.l.b16 %v9304
    %v10426 = vunpack.c.h.b16 %v9304
    %v10427 = vunpack.c.l.b16 %v9305
    %v10428 = vunpack.c.h.b16 %v9305
    %v10429 = vunpack.c.l.b16 %v9306
    %v10430 = vunpack.c.h.b16 %v9306
    %v10431 = vunpack.c.l.b16 %v9307
    %v10432 = vunpack.c.h.b16 %v9307
    %v10433 = vunpack.c.l.b16 %v9308
    %v10434 = vunpack.c.h.b16 %v9308
    %v10435 = vunpack.c.l.b16 %v9309
    %v10436 = vunpack.c.h.b16 %v9309
    %v10437 = vunpack.c.l.b16 %v9310
    %v10438 = vunpack.c.h.b16 %v9310
    %v10439 = vunpack.c.l.b16 %v9311
    %v10440 = vunpack.c.h.b16 %v9311
    %v10441 = vunpack.c.l.b16 %v9312
    %v10442 = vunpack.c.h.b16 %v9312
    %v10443 = vunpack.c.l.b16 %v9313
    %v10444 = vunpack.c.h.b16 %v9313
    %v10445 = vunpack.c.l.b16 %v9314
    %v10446 = vunpack.c.h.b16 %v9314
    %v10447 = vunpack.c.l.b16 %v9315
    %v10448 = vunpack.c.h.b16 %v9315
    %v10449 = vunpack.c.l.b16 %v9316
    %v10450 = vunpack.c.h.b16 %v9316
    %v10451 = vunpack.c.l.b16 %v9317
    %v10452 = vunpack.c.h.b16 %v9317
    %v10453 = vunpack.c.l.b16 %v9318
    %v10454 = vunpack.c.h.b16 %v9318
    %v10455 = vunpack.c.l.b16 %v9319
    %v10456 = vunpack.c.h.b16 %v9319
    %v10457 = vunpack.c.l.b16 %v9320
    %v10458 = vunpack.c.h.b16 %v9320
    %v10459 = vunpack.c.l.b16 %v9321
    %v10460 = vunpack.c.h.b16 %v9321
    %v10461 = vunpack.c.l.b16 %v9322
    %v10462 = vunpack.c.h.b16 %v9322
    %v10463 = vunpack.c.l.b16 %v9323
    %v10464 = vunpack.c.h.b16 %v9323
    %v10465 = vunpack.c.l.b16 %v9324
    %v10466 = vunpack.c.h.b16 %v9324
    %v10467 = vunpack.c.l.b16 %v9325
    %v10468 = vunpack.c.h.b16 %v9325
    %v10469 = vunpack.c.l.b16 %v9326
    %v10470 = vunpack.c.h.b16 %v9326
    %v10471 = vunpack.c.l.b16 %v9327
    %v10472 = vunpack.c.h.b16 %v9327
    %v10473 = vunpack.c.l.b16 %v9328
    %v10474 = vunpack.c.h.b16 %v9328
    %v10475 = vunpack.c.l.b16 %v9329
    %v10476 = vunpack.c.h.b16 %v9329
    %v10477 = vunpack.c.l.b16 %v9330
    %v10478 = vunpack.c.h.b16 %v9330
    %v10479 = vunpack.c.l.b16 %v9331
    %v10480 = vunpack.c.h.b16 %v9331
    %v10481 = vunpack.c.l.b16 %v9332
    %v10482 = vunpack.c.h.b16 %v9332
    %v10483 = vunpack.c.l.b16 %v9333
    %v10484 = vunpack.c.h.b16 %v9333
    %v10485 = vunpack.c.l.b16 %v9334
    %v10486 = vunpack.c.h.b16 %v9334
    %v10487 = vunpack.c.l.b16 %v9335
    %v10488 = vunpack.c.h.b16 %v9335
    %v10489 = vunpack.c.l.b16 %v9336
    %v10490 = vunpack.c.h.b16 %v9336
    %v10491 = vunpack.c.l.b16 %v9337
    %v10492 = vunpack.c.h.b16 %v9337
    %v10493 = vunpack.c.l.b16 %v9338
    %v10494 = vunpack.c.h.b16 %v9338
    %v10495 = vunpack.c.l.b16 %v9339
    %v10496 = vunpack.c.h.b16 %v9339
    %v10497 = vunpack.c.l.b16 %v9340
    %v10498 = vunpack.c.h.b16 %v9340
    %v10499 = vunpack.c.l.b16 %v9341
    %v10500 = vunpack.c.h.b16 %v9341
    %v10501 = vunpack.c.l.b16 %v9342
    %v10502 = vunpack.c.h.b16 %v9342
    %v10503 = vunpack.c.l.b16 %v9343
    %v10504 = vunpack.c.h.b16 %v9343
    %v10505 = vunpack.c.l.b16 %v9344
    %v10506 = vunpack.c.h.b16 %v9344
    %v10507 = vunpack.c.l.b16 %v9345
    %v10508 = vunpack.c.h.b16 %v9345
    %v10509 = vunpack.c.l.b16 %v9346
    %v10510 = vunpack.c.h.b16 %v9346
    %v10511 = vunpack.c.l.b16 %v9347
    %v10512 = vunpack.c.h.b16 %v9347
    %v10513 = vunpack.c.l.b16 %v9348
    %v10514 = vunpack.c.h.b16 %v9348
    %v10515 = vunpack.c.l.b16 %v9349
    %v10516 = vunpack.c.h.b16 %v9349
    %v10517 = vunpack.c.l.b16 %v9350
    %v10518 = vunpack.c.h.b16 %v9350
    %v10519 = vunpack.c.l.b16 %v9351
    %v10520 = vunpack.c.h.b16 %v9351
    %v10521 = vunpack.c.l.b16 %v9352
    %v10522 = vunpack.c.h.b16 %v9352
    %v10523 = vunpack.c.l.b16 %v9353
    %v10524 = vunpack.c.h.b16 %v9353
    %v10525 = vunpack.c.l.b16 %v9354
    %v10526 = vunpack.c.h.b16 %v9354
    %v10527 = vunpack.c.l.b16 %v9355
    %v10528 = vunpack.c.h.b16 %v9355
    %v10529 = vunpack.c.l.b16 %v9356
    %v10530 = vunpack.c.h.b16 %v9356
    %v10531 = vunpack.c.l.b16 %v9357
    %v10532 = vunpack.c.h.b16 %v9357
    %v10533 = vunpack.c.l.b16 %v9358
    %v10534 = vunpack.c.h.b16 %v9358
    %v10535 = vunpack.c.l.b16 %v9359
    %v10536 = vunpack.c.h.b16 %v9359
    %v10537 = vunpack.c.l.b16 %v9360
    %v10538 = vunpack.c.h.b16 %v9360
    %v10539 = vunpack.c.l.b16 %v9361
    %v10540 = vunpack.c.h.b16 %v9361
    %v10541 = vunpack.c.l.b16 %v9362
    %v10542 = vunpack.c.h.b16 %v9362
    %v10543 = vunpack.c.l.b16 %v9363
    %v10544 = vunpack.c.h.b16 %v9363
    %v10545 = vunpack.c.l.b16 %v9364
    %v10546 = vunpack.c.h.b16 %v9364
    %v10547 = vunpack.c.l.b16 %v9365
    %v10548 = vunpack.c.h.b16 %v9365
    %v10549 = vunpack.c.l.b16 %v9366
    %v10550 = vunpack.c.h.b16 %v9366
    %v10551 = vunpack.c.l.b16 %v9367
    %v10552 = vunpack.c.h.b16 %v9367
    %v10553 = vunpack.c.l.b16 %v9368
    %v10554 = vunpack.c.h.b16 %v9368
    %v10555 = vunpack.c.l.b16 %v9369
    %v10556 = vunpack.c.h.b16 %v9369
    %v10557 = vunpack.c.l.b16 %v9370
    %v10558 = vunpack.c.h.b16 %v9370
    %v10559 = vunpack.c.l.b16 %v9371
    %v10560 = vunpack.c.h.b16 %v9371
    %v10561 = vunpack.c.l.b16 %v9372
    %v10562 = vunpack.c.h.b16 %v9372
    %v10563 = vunpack.c.l.b16 %v9373
    %v10564 = vunpack.c.h.b16 %v9373
    %v10565 = vunpack.c.l.b16 %v9374
    %v10566 = vunpack.c.h.b16 %v9374
    %v10567 = vunpack.c.l.b16 %v9375
    %v10568 = vunpack.c.h.b16 %v9375
    %v10569 = vunpack.c.l.b16 %v9376
    %v10570 = vunpack.c.h.b16 %v9376
    %v10571 = vunpack.c.l.b16 %v9377
    %v10572 = vunpack.c.h.b16 %v9377
    %v10573 = vunpack.c.l.b16 %v9378
    %v10574 = vunpack.c.h.b16 %v9378
    %v10575 = vunpack.c.l.b16 %v9379
    %v10576 = vunpack.c.h.b16 %v9379
    %v10577 = vunpack.c.l.b16 %v9380
    %v10578 = vunpack.c.h.b16 %v9380
    %v10579 = vunpack.c.l.b16 %v9381
    %v10580 = vunpack.c.h.b16 %v9381
    %v10581 = vunpack.c.l.b16 %v9382
    %v10582 = vunpack.c.h.b16 %v9382
    %v10583 = vunpack.c.l.b16 %v9383
    %v10584 = vunpack.c.h.b16 %v9383
    %v10585 = vunpack.c.l.b16 %v9384
    %v10586 = vunpack.c.h.b16 %v9384
    %v10587 = vunpack.c.l.b16 %v9385
    %v10588 = vunpack.c.h.b16 %v9385
    %v10589 = vunpack.c.l.b16 %v9386
    %v10590 = vunpack.c.h.b16 %v9386
    %v10591 = vunpack.c.l.b16 %v9387
    %v10592 = vunpack.c.h.b16 %v9387
    %v10593 = vunpack.c.l.b16 %v9388
    %v10594 = vunpack.c.h.b16 %v9388
    %v10595 = vunpack.c.l.b16 %v9389
    %v10596 = vunpack.c.h.b16 %v9389
    %v10597 = vunpack.c.l.b16 %v9390
    %v10598 = vunpack.c.h.b16 %v9390
    %v10599 = vunpack.c.l.b16 %v9391
    %v10600 = vunpack.c.h.b16 %v9391
    %v10601 = vunpack.c.l.b16 %v9392
    %v10602 = vunpack.c.h.b16 %v9392
    %v10603 = vunpack.c.l.b16 %v9393
    %v10604 = vunpack.c.h.b16 %v9393
    %v10605 = vunpack.c.l.b16 %v9394
    %v10606 = vunpack.c.h.b16 %v9394
    %v10607 = vunpack.c.l.b16 %v9395
    %v10608 = vunpack.c.h.b16 %v9395
    %v10609 = vunpack.c.l.b16 %v9396
    %v10610 = vunpack.c.h.b16 %v9396
    %v10611 = vunpack.c.l.b16 %v9397
    %v10612 = vunpack.c.h.b16 %v9397
    %v10613 = vunpack.c.l.b16 %v9398
    %v10614 = vunpack.c.h.b16 %v9398
    %v10615 = vunpack.c.l.b16 %v9399
    %v10616 = vunpack.c.h.b16 %v9399
    %v10617 = vunpack.c.l.b16 %v9400
    %v10618 = vunpack.c.h.b16 %v9400
    %v10619 = vunpack.c.l.b16 %v9401
    %v10620 = vunpack.c.h.b16 %v9401
    %v10621 = vunpack.c.l.b16 %v9402
    %v10622 = vunpack.c.h.b16 %v9402
    %v10623 = vunpack.c.l.b16 %v9403
    %v10624 = vunpack.c.h.b16 %v9403
    %v10625 = vunpack.c.l.b16 %v9404
    %v10626 = vunpack.c.h.b16 %v9404
    %v10627 = vunpack.c.l.b16 %v9405
    %v10628 = vunpack.c.h.b16 %v9405
    %v10629 = vunpack.c.l.b16 %v9406
    %v10630 = vunpack.c.h.b16 %v9406
    %v10631 = vunpack.c.l.b16 %v9407
    %v10632 = vunpack.c.h.b16 %v9407
    %v10633 = vunpack.c.l.b16 %v9408
    %v10634 = vunpack.c.h.b16 %v9408
    %v10635 = vunpack.c.l.b16 %v9409
    %v10636 = vunpack.c.h.b16 %v9409
    %v10637 = vunpack.c.l.b16 %v9410
    %v10638 = vunpack.c.h.b16 %v9410
    %v10639 = vunpack.c.l.b16 %v9411
    %v10640 = vunpack.c.h.b16 %v9411
    %v10641 = vunpack.c.l.b16 %v9412
    %v10642 = vunpack.c.h.b16 %v9412
    %v10643 = vunpack.c.l.b16 %v9413
    %v10644 = vunpack.c.h.b16 %v9413
    %v10645 = vunpack.c.l.b16 %v9414
    %v10646 = vunpack.c.h.b16 %v9414
    %v10647 = vunpack.c.l.b16 %v9415
    %v10648 = vunpack.c.h.b16 %v9415
    %v10649 = vunpack.c.l.b16 %v9416
    %v10650 = vunpack.c.h.b16 %v9416
    %v10651 = vunpack.c.l.b16 %v9417
    %v10652 = vunpack.c.h.b16 %v9417
    %v10653 = vunpack.c.l.b16 %v9418
    %v10654 = vunpack.c.h.b16 %v9418
    %v10655 = vunpack.c.l.b16 %v9419
    %v10656 = vunpack.c.h.b16 %v9419
    %v10657 = vunpack.c.l.b16 %v9420
    %v10658 = vunpack.c.h.b16 %v9420
    %v10659 = vunpack.c.l.b16 %v9421
    %v10660 = vunpack.c.h.b16 %v9421
    %v10661 = vunpack.c.l.b16 %v9422
    %v10662 = vunpack.c.h.b16 %v9422
    %v10663 = vunpack.c.l.b16 %v9423
    %v10664 = vunpack.c.h.b16 %v9423
    %v10665 = vunpack.c.l.b16 %v9424
    %v10666 = vunpack.c.h.b16 %v9424
    %v10667 = vunpack.c.l.b16 %v9425
    %v10668 = vunpack.c.h.b16 %v9425
    %v10669 = vunpack.c.l.b16 %v9426
    %v10670 = vunpack.c.h.b16 %v9426
    %v10671 = vunpack.c.l.b16 %v9427
    %v10672 = vunpack.c.h.b16 %v9427
    %v10673 = vunpack.c.l.b16 %v9428
    %v10674 = vunpack.c.h.b16 %v9428
    %v10675 = vunpack.c.l.b16 %v9429
    %v10676 = vunpack.c.h.b16 %v9429
    %v10677 = vunpack.c.l.b16 %v9430
    %v10678 = vunpack.c.h.b16 %v9430
    %v10679 = vunpack.c.l.b16 %v9431
    %v10680 = vunpack.c.h.b16 %v9431
    %v10681 = vunpack.c.l.b16 %v9432
    %v10682 = vunpack.c.h.b16 %v9432
    %v10683 = vunpack.c.l.b16 %v9433
    %v10684 = vunpack.c.h.b16 %v9433
    %v10685 = vunpack.c.l.b16 %v9434
    %v10686 = vunpack.c.h.b16 %v9434
    %v10687 = vunpack.c.l.b16 %v9435
    %v10688 = vunpack.c.h.b16 %v9435
    %v10689 = vunpack.c.l.b16 %v9436
    %v10690 = vunpack.c.h.b16 %v9436
    %v10691 = vunpack.c.l.b16 %v9437
    %v10692 = vunpack.c.h.b16 %v9437
    %v10693 = vunpack.c.l.b16 %v9438
    %v10694 = vunpack.c.h.b16 %v9438
    %v10695 = vunpack.c.l.b16 %v9439
    %v10696 = vunpack.c.h.b16 %v9439
    %v10697 = vunpack.c.l.b16 %v9440
    %v10698 = vunpack.c.h.b16 %v9440
    %v10699 = vunpack.c.l.b16 %v9441
    %v10700 = vunpack.c.h.b16 %v9441
    %v10701 = vunpack.c.l.b16 %v9442
    %v10702 = vunpack.c.h.b16 %v9442
    %v10703 = vunpack.c.l.b16 %v9443
    %v10704 = vunpack.c.h.b16 %v9443
    %v10705 = vunpack.c.l.b16 %v9444
    %v10706 = vunpack.c.h.b16 %v9444
    %v10707 = vunpack.c.l.b16 %v9445
    %v10708 = vunpack.c.h.b16 %v9445
    %v10709 = vunpack.c.l.b16 %v9446
    %v10710 = vunpack.c.h.b16 %v9446
    %v10711 = vunpack.c.l.b16 %v9447
    %v10712 = vunpack.c.h.b16 %v9447
    %v10713 = vunpack.c.l.b16 %v9448
    %v10714 = vunpack.c.h.b16 %v9448
    %v10715 = vunpack.c.l.b16 %v9449
    %v10716 = vunpack.c.h.b16 %v9449
    %v10717 = vunpack.c.l.b16 %v9450
    %v10718 = vunpack.c.h.b16 %v9450
    %v10719 = vunpack.c.l.b16 %v9451
    %v10720 = vunpack.c.h.b16 %v9451
    %v10721 = vunpack.c.l.b16 %v9452
    %v10722 = vunpack.c.h.b16 %v9452
    %v10723 = vunpack.c.l.b16 %v9453
    %v10724 = vunpack.c.h.b16 %v9453
    %v10725 = vunpack.c.l.b16 %v9454
    %v10726 = vunpack.c.h.b16 %v9454
    %v10727 = vunpack.c.l.b16 %v9455
    %v10728 = vunpack.c.h.b16 %v9455
    %v10729 = vunpack.c.l.b16 %v9456
    %v10730 = vunpack.c.h.b16 %v9456
    %v10731 = vunpack.c.l.b16 %v9457
    %v10732 = vunpack.c.h.b16 %v9457
    %v10733 = vunpack.c.l.b16 %v9458
    %v10734 = vunpack.c.h.b16 %v9458
    %v10735 = vunpack.c.l.b16 %v9459
    %v10736 = vunpack.c.h.b16 %v9459
    %v10737 = vunpack.c.l.b16 %v9460
    %v10738 = vunpack.c.h.b16 %v9460
    %v10739 = vunpack.c.l.b16 %v9461
    %v10740 = vunpack.c.h.b16 %v9461
    %v10741 = vunpack.c.l.b16 %v9462
    %v10742 = vunpack.c.h.b16 %v9462
    %v10743 = vunpack.c.l.b16 %v9463
    %v10744 = vunpack.c.h.b16 %v9463
    %v10745 = vunpack.c.l.b16 %v9464
    %v10746 = vunpack.c.h.b16 %v9464
    %v10747 = vunpack.c.l.b16 %v9465
    %v10748 = vunpack.c.h.b16 %v9465
    %v10749 = vunpack.c.l.b16 %v9466
    %v10750 = vunpack.c.h.b16 %v9466
    %v10751 = vunpack.c.l.b16 %v9467
    %v10752 = vunpack.c.h.b16 %v9467
    %v10753 = vunpack.c.l.b16 %v9468
    %v10754 = vunpack.c.h.b16 %v9468
    %v10755 = vunpack.c.l.b16 %v9469
    %v10756 = vunpack.c.h.b16 %v9469
    %v10757 = vunpack.c.l.b16 %v9470
    %v10758 = vunpack.c.h.b16 %v9470
    %v10759 = vunpack.c.l.b16 %v9471
    %v10760 = vunpack.c.h.b16 %v9471
    %v10761 = vunpack.c.l.b16 %v9472
    %v10762 = vunpack.c.h.b16 %v9472
    %v10763 = vunpack.c.l.b16 %v9473
    %v10764 = vunpack.c.h.b16 %v9473
    %v10765 = vunpack.c.l.b16 %v9474
    %v10766 = vunpack.c.h.b16 %v9474
    %v10767 = vunpack.c.l.b16 %v9475
    %v10768 = vunpack.c.h.b16 %v9475
    %v10769 = vunpack.c.l.b16 %v9476
    %v10770 = vunpack.c.h.b16 %v9476
    %v10771 = vunpack.c.l.b16 %v9477
    %v10772 = vunpack.c.h.b16 %v9477
    %v10773 = vunpack.c.l.b16 %v9478
    %v10774 = vunpack.c.h.b16 %v9478
    %v10775 = vunpack.c.l.b16 %v9479
    %v10776 = vunpack.c.h.b16 %v9479
    %v10777 = vunpack.c.l.b16 %v9480
    %v10778 = vunpack.c.h.b16 %v9480
    %v10779 = vunpack.c.l.b16 %v9481
    %v10780 = vunpack.c.h.b16 %v9481
    %v10781 = vunpack.c.l.b16 %v9482
    %v10782 = vunpack.c.h.b16 %v9482
    %v10783 = vunpack.c.l.b16 %v9483
    %v10784 = vunpack.c.h.b16 %v9483
    %v10785 = vunpack.c.l.b16 %v9484
    %v10786 = vunpack.c.h.b16 %v9484
    %v10787 = vunpack.c.l.b16 %v9485
    %v10788 = vunpack.c.h.b16 %v9485
    %v10789 = vunpack.c.l.b16 %v9486
    %v10790 = vunpack.c.h.b16 %v9486
    %v10791 = vunpack.c.l.b16 %v9487
    %v10792 = vunpack.c.h.b16 %v9487
    %v10793 = vunpack.c.l.b16 %v9488
    %v10794 = vunpack.c.h.b16 %v9488
    %v10795 = vunpack.c.l.b16 %v9489
    %v10796 = vunpack.c.h.b16 %v9489
    %v10797 = vunpack.c.l.b16 %v9490
    %v10798 = vunpack.c.h.b16 %v9490
    %v10799 = vunpack.c.l.b16 %v9491
    %v10800 = vunpack.c.h.b16 %v9491
    %v10801 = vunpack.c.l.b16 %v9492
    %v10802 = vunpack.c.h.b16 %v9492
    %v10803 = vunpack.c.l.b16 %v9493
    %v10804 = vunpack.c.h.b16 %v9493
    %v10805 = vunpack.c.l.b16 %v9494
    %v10806 = vunpack.c.h.b16 %v9494
    %v10807 = vunpack.c.l.b16 %v9495
    %v10808 = vunpack.c.h.b16 %v9495
    %v10809 = vunpack.c.l.b16 %v9496
    %v10810 = vunpack.c.h.b16 %v9496
    %v10811 = vunpack.c.l.b16 %v9497
    %v10812 = vunpack.c.h.b16 %v9497
    %v10813 = vunpack.c.l.b16 %v9498
    %v10814 = vunpack.c.h.b16 %v9498
    %v10815 = vunpack.c.l.b16 %v9499
    %v10816 = vunpack.c.h.b16 %v9499
    %v10817 = vunpack.c.l.b16 %v9500
    %v10818 = vunpack.c.h.b16 %v9500
    %v10819 = vunpack.c.l.b16 %v9501
    %v10820 = vunpack.c.h.b16 %v9501
    %v10821 = vunpack.c.l.b16 %v9502
    %v10822 = vunpack.c.h.b16 %v9502
    %v10823 = vunpack.c.l.b16 %v9503
    %v10824 = vunpack.c.h.b16 %v9503
    %v10825 = vunpack.c.l.b16 %v9504
    %v10826 = vunpack.c.h.b16 %v9504
    %v10827 = vunpack.c.l.b16 %v9505
    %v10828 = vunpack.c.h.b16 %v9505
    %v10829 = vunpack.c.l.b16 %v9506
    %v10830 = vunpack.c.h.b16 %v9506
    %v10831 = vunpack.c.l.b16 %v9507
    %v10832 = vunpack.c.h.b16 %v9507
    %v10833 = vunpack.c.l.b16 %v9508
    %v10834 = vunpack.c.h.b16 %v9508
    %v10835 = vunpack.c.l.b16 %v9509
    %v10836 = vunpack.c.h.b16 %v9509
    %v10837 = vunpack.c.l.b16 %v9510
    %v10838 = vunpack.c.h.b16 %v9510
    %v10839 = vunpack.c.l.b16 %v9511
    %v10840 = vunpack.c.h.b16 %v9511
    %v10841 = vunpack.c.l.b16 %v9512
    %v10842 = vunpack.c.h.b16 %v9512
    %v10843 = vunpack.c.l.b16 %v9513
    %v10844 = vunpack.c.h.b16 %v9513
    %v10845 = vunpack.c.l.b16 %v9514
    %v10846 = vunpack.c.h.b16 %v9514
    %v10847 = vunpack.c.l.b16 %v9515
    %v10848 = vunpack.c.h.b16 %v9515
    %v10849 = vunpack.c.l.b16 %v9516
    %v10850 = vunpack.c.h.b16 %v9516
    %v10851 = vunpack.c.l.b16 %v9517
    %v10852 = vunpack.c.h.b16 %v9517
    %v10853 = vunpack.c.l.b16 %v9518
    %v10854 = vunpack.c.h.b16 %v9518
    %v10855 = vunpack.c.l.b16 %v9519
    %v10856 = vunpack.c.h.b16 %v9519
    %v10857 = vunpack.c.l.b16 %v9520
    %v10858 = vunpack.c.h.b16 %v9520
    %v10859 = vunpack.c.l.b16 %v9521
    %v10860 = vunpack.c.h.b16 %v9521
    %v10861 = vunpack.c.l.b16 %v9522
    %v10862 = vunpack.c.h.b16 %v9522
    %v10863 = vunpack.c.l.b16 %v9523
    %v10864 = vunpack.c.h.b16 %v9523
    %v10865 = vunpack.c.l.b16 %v9524
    %v10866 = vunpack.c.h.b16 %v9524
    %v10867 = vunpack.c.l.b16 %v9525
    %v10868 = vunpack.c.h.b16 %v9525
    %v10869 = vunpack.c.l.b16 %v9526
    %v10870 = vunpack.c.h.b16 %v9526
    %v10871 = vunpack.c.l.b16 %v9527
    %v10872 = vunpack.c.h.b16 %v9527
    %v10873 = vunpack.c.l.b16 %v9528
    %v10874 = vunpack.c.h.b16 %v9528
    %v10875 = vunpack.c.l.b16 %v9529
    %v10876 = vunpack.c.h.b16 %v9529
    %v10877 = vunpack.c.l.b16 %v9530
    %v10878 = vunpack.c.h.b16 %v9530
    %v10879 = vunpack.c.l.b16 %v9531
    %v10880 = vunpack.c.h.b16 %v9531
    %v10881 = vunpack.c.l.b16 %v9532
    %v10882 = vunpack.c.h.b16 %v9532
    %v10883 = vunpack.c.l.b16 %v9533
    %v10884 = vunpack.c.h.b16 %v9533
    %v10885 = vunpack.c.l.b16 %v9534
    %v10886 = vunpack.c.h.b16 %v9534
    %v10887 = vunpack.c.l.b16 %v9535
    %v10888 = vunpack.c.h.b16 %v9535
    %v10889 = vunpack.c.l.b16 %v9536
    %v10890 = vunpack.c.h.b16 %v9536
    %v10891 = vunpack.c.l.b16 %v9537
    %v10892 = vunpack.c.h.b16 %v9537
    %v10893 = vunpack.c.l.b16 %v9538
    %v10894 = vunpack.c.h.b16 %v9538
    %v10895 = vunpack.c.l.b16 %v9539
    %v10896 = vunpack.c.h.b16 %v9539
    %v10897 = vunpack.c.l.b16 %v9540
    %v10898 = vunpack.c.h.b16 %v9540
    %v10899 = vunpack.c.l.b16 %v9541
    %v10900 = vunpack.c.h.b16 %v9541
    %v10901 = vunpack.c.l.b16 %v9542
    %v10902 = vunpack.c.h.b16 %v9542
    %v10903 = vunpack.c.l.b16 %v9543
    %v10904 = vunpack.c.h.b16 %v9543
    %v10905 = vunpack.c.l.b16 %v9544
    %v10906 = vunpack.c.h.b16 %v9544
    %v10907 = vunpack.c.l.b16 %v9545
    %v10908 = vunpack.c.h.b16 %v9545
    %v10909 = vunpack.c.l.b16 %v9546
    %v10910 = vunpack.c.h.b16 %v9546
    %v10911 = vunpack.c.l.b16 %v9547
    %v10912 = vunpack.c.h.b16 %v9547
    %v10913 = vunpack.c.l.b16 %v9548
    %v10914 = vunpack.c.h.b16 %v9548
    %v10915 = vunpack.c.l.b16 %v9549
    %v10916 = vunpack.c.h.b16 %v9549
    %v10917 = vunpack.c.l.b16 %v9550
    %v10918 = vunpack.c.h.b16 %v9550
    %v10919 = vunpack.c.l.b16 %v9551
    %v10920 = vunpack.c.h.b16 %v9551
    %v10921 = vunpack.c.l.b16 %v9552
    %v10922 = vunpack.c.h.b16 %v9552
    %v10923 = vunpack.c.l.b16 %v9553
    %v10924 = vunpack.c.h.b16 %v9553
    %v10925 = vunpack.c.l.b16 %v9554
    %v10926 = vunpack.c.h.b16 %v9554
    %v10927 = vunpack.c.l.b16 %v9555
    %v10928 = vunpack.c.h.b16 %v9555
    %v10929 = vunpack.c.l.b16 %v9556
    %v10930 = vunpack.c.h.b16 %v9556
    %v10931 = vunpack.c.l.b16 %v9557
    %v10932 = vunpack.c.h.b16 %v9557
    %v10933 = vunpack.c.l.b16 %v9558
    %v10934 = vunpack.c.h.b16 %v9558
    %v10935 = vunpack.c.l.b16 %v9559
    %v10936 = vunpack.c.h.b16 %v9559
    %v10937 = vunpack.c.l.b16 %v9560
    %v10938 = vunpack.c.h.b16 %v9560
    %v10939 = vunpack.c.l.b16 %v9561
    %v10940 = vunpack.c.h.b16 %v9561
    %v10941 = vunpack.c.l.b16 %v9562
    %v10942 = vunpack.c.h.b16 %v9562
    %v10943 = vunpack.c.l.b16 %v9563
    %v10944 = vunpack.c.h.b16 %v9563
    %v10945 = vunpack.c.l.b16 %v9564
    %v10946 = vunpack.c.h.b16 %v9564
    %v10947 = vunpack.c.l.b16 %v9565
    %v10948 = vunpack.c.h.b16 %v9565
    %v10949 = vunpack.c.l.b16 %v9566
    %v10950 = vunpack.c.h.b16 %v9566
    %v10951 = vunpack.c.l.b16 %v9567
    %v10952 = vunpack.c.h.b16 %v9567
    %v10953 = vunpack.c.l.b16 %v9568
    %v10954 = vunpack.c.h.b16 %v9568
    %v10955 = vunpack.c.l.b16 %v9569
    %v10956 = vunpack.c.h.b16 %v9569
    %v10957 = vunpack.c.l.b16 %v9570
    %v10958 = vunpack.c.h.b16 %v9570
    %v10959 = vunpack.c.l.b16 %v9571
    %v10960 = vunpack.c.h.b16 %v9571
    %v10961 = vunpack.c.l.b16 %v9572
    %v10962 = vunpack.c.h.b16 %v9572
    %v10963 = vunpack.c.l.b16 %v9573
    %v10964 = vunpack.c.h.b16 %v9573
    %v10965 = vunpack.c.l.b16 %v9574
    %v10966 = vunpack.c.h.b16 %v9574
    %v10967 = vunpack.c.l.b16 %v9575
    %v10968 = vunpack.c.h.b16 %v9575
    %v10969 = vunpack.c.l.b16 %v9576
    %v10970 = vunpack.c.h.b16 %v9576
    %v10971 = vunpack.c.l.b16 %v9577
    %v10972 = vunpack.c.h.b16 %v9577
    %v10973 = vunpack.c.l.b16 %v9578
    %v10974 = vunpack.c.h.b16 %v9578
    %v10975 = vunpack.c.l.b16 %v9579
    %v10976 = vunpack.c.h.b16 %v9579
    %v10977 = vunpack.c.l.b16 %v9580
    %v10978 = vunpack.c.h.b16 %v9580
    %v10979 = vunpack.c.l.b16 %v9581
    %v10980 = vunpack.c.h.b16 %v9581
    %v10981 = vunpack.c.l.b16 %v9582
    %v10982 = vunpack.c.h.b16 %v9582
    %v10983 = vunpack.c.l.b16 %v9583
    %v10984 = vunpack.c.h.b16 %v9583
    %v10985 = vunpack.c.l.b16 %v9584
    %v10986 = vunpack.c.h.b16 %v9584
    %v10987 = vunpack.c.l.b16 %v9585
    %v10988 = vunpack.c.h.b16 %v9585
    %v10989 = vunpack.c.l.b16 %v9586
    %v10990 = vunpack.c.h.b16 %v9586
    %v10991 = vunpack.c.l.b16 %v9587
    %v10992 = vunpack.c.h.b16 %v9587
    %v10993 = vunpack.c.l.b16 %v9588
    %v10994 = vunpack.c.h.b16 %v9588
    %v10995 = vunpack.c.l.b16 %v9589
    %v10996 = vunpack.c.h.b16 %v9589
    %v10997 = vunpack.c.l.b16 %v9590
    %v10998 = vunpack.c.h.b16 %v9590
    %v10999 = vunpack.c.l.b16 %v9591
    %v11000 = vunpack.c.h.b16 %v9591
    %v11001 = vunpack.c.l.b16 %v9592
    %v11002 = vunpack.c.h.b16 %v9592
    %v11003 = vunpack.c.l.b16 %v9593
    %v11004 = vunpack.c.h.b16 %v9593
    %v11005 = vunpack.c.l.b16 %v9594
    %v11006 = vunpack.c.h.b16 %v9594
    %v11007 = vunpack.c.l.b16 %v9595
    %v11008 = vunpack.c.h.b16 %v9595
    %v11009 = vunpack.c.l.b16 %v9596
    %v11010 = vunpack.c.h.b16 %v9596
    %v11011 = vunpack.c.l.b16 %v9597
    %v11012 = vunpack.c.h.b16 %v9597
    %v11013 = vunpack.c.l.b16 %v9598
    %v11014 = vunpack.c.h.b16 %v9598
    %v11015 = vunpack.c.l.b16 %v9599
    %v11016 = vunpack.c.h.b16 %v9599
    %v11017 = vunpack.c.l.b16 %v9600
    %v11018 = vunpack.c.h.b16 %v9600
    %v11019 = vunpack.c.l.b16 %v9601
    %v11020 = vunpack.c.h.b16 %v9601
    %v11021 = vunpack.c.l.b16 %v9602
    %v11022 = vunpack.c.h.b16 %v9602
    %v11023 = vunpack.c.l.b16 %v9603
    %v11024 = vunpack.c.h.b16 %v9603
    %v11025 = vunpack.c.l.b16 %v9604
    %v11026 = vunpack.c.h.b16 %v9604
    %v11027 = vunpack.c.l.b16 %v9605
    %v11028 = vunpack.c.h.b16 %v9605
    %v11029 = vunpack.c.l.b16 %v9606
    %v11030 = vunpack.c.h.b16 %v9606
    %v11031 = vunpack.c.l.b16 %v9607
    %v11032 = vunpack.c.h.b16 %v9607
    %v11033 = vunpack.c.l.b16 %v9608
    %v11034 = vunpack.c.h.b16 %v9608
    %v11035 = vunpack.c.l.b16 %v9609
    %v11036 = vunpack.c.h.b16 %v9609
    %v11037 = vunpack.c.l.b16 %v9610
    %v11038 = vunpack.c.h.b16 %v9610
    %v11039 = vunpack.c.l.b16 %v9611
    %v11040 = vunpack.c.h.b16 %v9611
    %v11041 = vunpack.c.l.b16 %v9612
    %v11042 = vunpack.c.h.b16 %v9612
    %v11043 = vunpack.c.l.b16 %v9613
    %v11044 = vunpack.c.h.b16 %v9613
    %v11045 = vunpack.c.l.b16 %v9614
    %v11046 = vunpack.c.h.b16 %v9614
    %v11047 = vunpack.c.l.b16 %v9615
    %v11048 = vunpack.c.h.b16 %v9615
    %v11049 = vunpack.c.l.b16 %v9616
    %v11050 = vunpack.c.h.b16 %v9616
    %v11051 = vunpack.c.l.b16 %v9617
    %v11052 = vunpack.c.h.b16 %v9617
    %v11053 = vunpack.c.l.b16 %v9618
    %v11054 = vunpack.c.h.b16 %v9618
    %v11055 = vunpack.c.l.b16 %v9619
    %v11056 = vunpack.c.h.b16 %v9619
    %v11057 = vunpack.c.l.b16 %v9620
    %v11058 = vunpack.c.h.b16 %v9620
    %v11059 = vunpack.c.l.b16 %v9621
    %v11060 = vunpack.c.h.b16 %v9621
    %v11061 = vunpack.c.l.b16 %v9622
    %v11062 = vunpack.c.h.b16 %v9622
    %v11063 = vunpack.c.l.b16 %v9623
    %v11064 = vunpack.c.h.b16 %v9623
    %v11065 = vunpack.c.l.b16 %v9624
    %v11066 = vunpack.c.h.b16 %v9624
    %v11067 = vunpack.c.l.b16 %v9625
    %v11068 = vunpack.c.h.b16 %v9625
    %v11069 = vunpack.c.l.b16 %v9626
    %v11070 = vunpack.c.h.b16 %v9626
    %v11071 = vunpack.c.l.b16 %v9627
    %v11072 = vunpack.c.h.b16 %v9627
    %v11073 = vunpack.c.l.b16 %v9628
    %v11074 = vunpack.c.h.b16 %v9628
    %v11075 = vunpack.c.l.b16 %v9629
    %v11076 = vunpack.c.h.b16 %v9629
    %v11077 = vunpack.c.l.b16 %v9630
    %v11078 = vunpack.c.h.b16 %v9630
    %v11079 = vunpack.c.l.b16 %v9631
    %v11080 = vunpack.c.h.b16 %v9631
    %v11081 = vunpack.c.l.b16 %v9632
    %v11082 = vunpack.c.h.b16 %v9632
    %v11083 = vunpack.c.l.b16 %v9633
    %v11084 = vunpack.c.h.b16 %v9633
    %v11085 = vunpack.c.l.b16 %v9634
    %v11086 = vunpack.c.h.b16 %v9634
    %v11087 = vunpack.c.l.b16 %v9635
    %v11088 = vunpack.c.h.b16 %v9635
    %v11089 = vunpack.c.l.b16 %v9636
    %v11090 = vunpack.c.h.b16 %v9636
    %v11091 = vunpack.c.l.b16 %v9637
    %v11092 = vunpack.c.h.b16 %v9637
    %v11093 = vunpack.c.l.b16 %v9638
    %v11094 = vunpack.c.h.b16 %v9638
    %v11095 = vunpack.c.l.b16 %v9639
    %v11096 = vunpack.c.h.b16 %v9639
    %v11097 = vunpack.c.l.b16 %v9640
    %v11098 = vunpack.c.h.b16 %v9640
    %v11099 = vunpack.c.l.b16 %v9641
    %v11100 = vunpack.c.h.b16 %v9641
    %v11101 = vunpack.c.l.b16 %v9642
    %v11102 = vunpack.c.h.b16 %v9642
    %v11103 = vunpack.c.l.b16 %v9643
    %v11104 = vunpack.c.h.b16 %v9643
    %v11105 = vunpack.c.l.b16 %v9644
    %v11106 = vunpack.c.h.b16 %v9644
    %v11107 = vunpack.c.l.b16 %v9645
    %v11108 = vunpack.c.h.b16 %v9645
    %v11109 = vunpack.c.l.b16 %v9646
    %v11110 = vunpack.c.h.b16 %v9646
    %v11111 = vunpack.c.l.b16 %v9647
    %v11112 = vunpack.c.h.b16 %v9647
    %v11113 = vunpack.c.l.b16 %v9648
    %v11114 = vunpack.c.h.b16 %v9648
    %v11115 = vunpack.c.l.b16 %v9649
    %v11116 = vunpack.c.h.b16 %v9649
    %v11117 = vunpack.c.l.b16 %v9650
    %v11118 = vunpack.c.h.b16 %v9650
    %v11119 = vunpack.c.l.b16 %v9651
    %v11120 = vunpack.c.h.b16 %v9651
    %v11121 = vunpack.c.l.b16 %v9652
    %v11122 = vunpack.c.h.b16 %v9652
    %v11123 = vunpack.c.l.b16 %v9653
    %v11124 = vunpack.c.h.b16 %v9653
    %v11125 = vunpack.c.l.b16 %v9654
    %v11126 = vunpack.c.h.b16 %v9654
    %v11127 = vunpack.c.l.b16 %v9655
    %v11128 = vunpack.c.h.b16 %v9655
    %v11129 = vunpack.c.l.b16 %v9656
    %v11130 = vunpack.c.h.b16 %v9656
    %v11131 = vunpack.c.l.b16 %v9657
    %v11132 = vunpack.c.h.b16 %v9657
    %v11133 = vunpack.c.l.b16 %v9658
    %v11134 = vunpack.c.h.b16 %v9658
    %v11135 = vunpack.c.l.b16 %v9659
    %v11136 = vunpack.c.h.b16 %v9659
    %v11137 = vunpack.c.l.b16 %v9660
    %v11138 = vunpack.c.h.b16 %v9660
    %v11139 = vunpack.c.l.b16 %v9661
    %v11140 = vunpack.c.h.b16 %v9661
    %v11141 = vunpack.c.l.b16 %v9662
    %v11142 = vunpack.c.h.b16 %v9662
    %v11143 = vunpack.c.l.b16 %v9663
    %v11144 = vunpack.c.h.b16 %v9663
    %v11145 = vunpack.c.l.b16 %v9664
    %v11146 = vunpack.c.h.b16 %v9664
    %v11147 = vunpack.c.l.b16 %v9665
    %v11148 = vunpack.c.h.b16 %v9665
    %v11149 = vunpack.c.l.b16 %v9666
    %v11150 = vunpack.c.h.b16 %v9666
    %v11151 = vunpack.c.l.b16 %v9667
    %v11152 = vunpack.c.h.b16 %v9667
    %v11153 = vunpack.c.l.b16 %v9668
    %v11154 = vunpack.c.h.b16 %v9668
    %v11155 = vunpack.c.l.b16 %v9669
    %v11156 = vunpack.c.h.b16 %v9669
    %v11157 = vunpack.c.l.b16 %v9670
    %v11158 = vunpack.c.h.b16 %v9670
    %v11159 = vunpack.c.l.b16 %v9671
    %v11160 = vunpack.c.h.b16 %v9671
    %v11161 = vunpack.c.l.b16 %v9672
    %v11162 = vunpack.c.h.b16 %v9672
    %v11163 = vunpack.c.l.b16 %v9673
    %v11164 = vunpack.c.h.b16 %v9673
    %v11165 = vunpack.c.l.b16 %v9674
    %v11166 = vunpack.c.h.b16 %v9674
    %v11167 = vunpack.c.l.b16 %v9675
    %v11168 = vunpack.c.h.b16 %v9675
    %v11169 = vunpack.c.l.b16 %v9676
    %v11170 = vunpack.c.h.b16 %v9676
    %v11171 = vunpack.c.l.b16 %v9677
    %v11172 = vunpack.c.h.b16 %v9677
    %v11173 = vunpack.c.l.b16 %v9678
    %v11174 = vunpack.c.h.b16 %v9678
    %v11175 = vunpack.c.l.b16 %v9679
    %v11176 = vunpack.c.h.b16 %v9679
    %v11177 = vunpack.c.l.b16 %v9680
    %v11178 = vunpack.c.h.b16 %v9680
    %v11179 = vunpack.c.l.b16 %v9681
    %v11180 = vunpack.c.h.b16 %v9681
    %v11181 = vunpack.c.l.b16 %v9682
    %v11182 = vunpack.c.h.b16 %v9682
    %v11183 = vunpack.c.l.b16 %v9683
    %v11184 = vunpack.c.h.b16 %v9683
    %v11185 = vunpack.c.l.b16 %v9684
    %v11186 = vunpack.c.h.b16 %v9684
    %v11187 = vunpack.c.l.b16 %v9685
    %v11188 = vunpack.c.h.b16 %v9685
    %v11189 = vunpack.c.l.b16 %v9686
    %v11190 = vunpack.c.h.b16 %v9686
    %v11191 = vunpack.c.l.b16 %v9687
    %v11192 = vunpack.c.h.b16 %v9687
    %v11193 = vunpack.c.l.b16 %v9688
    %v11194 = vunpack.c.h.b16 %v9688
    %v11195 = vunpack.c.l.b16 %v9689
    %v11196 = vunpack.c.h.b16 %v9689
    %v11197 = vunpack.c.l.b16 %v9690
    %v11198 = vunpack.c.h.b16 %v9690
    %v11199 = vunpack.c.l.b16 %v9691
    %v11200 = vunpack.c.h.b16 %v9691
    %v11201 = vunpack.c.l.b16 %v9692
    %v11202 = vunpack.c.h.b16 %v9692
    %v11203 = vunpack.c.l.b16 %v9693
    %v11204 = vunpack.c.h.b16 %v9693
    %v11205 = vunpack.c.l.b16 %v9694
    %v11206 = vunpack.c.h.b16 %v9694
    %v11207 = vunpack.c.l.b16 %v9695
    %v11208 = vunpack.c.h.b16 %v9695
    %v11209 = vunpack.c.l.b16 %v9696
    %v11210 = vunpack.c.h.b16 %v9696
    %v11211 = vunpack.c.l.b16 %v9697
    %v11212 = vunpack.c.h.b16 %v9697
    %v11213 = vunpack.c.l.b16 %v9698
    %v11214 = vunpack.c.h.b16 %v9698
    %v11215 = vunpack.c.l.b16 %v9699
    %v11216 = vunpack.c.h.b16 %v9699
    %v11217 = vunpack.c.l.b16 %v9700
    %v11218 = vunpack.c.h.b16 %v9700
    %v11219 = vunpack.c.l.b16 %v9701
    %v11220 = vunpack.c.h.b16 %v9701
    %v11221 = vunpack.c.l.b16 %v9702
    %v11222 = vunpack.c.h.b16 %v9702
    %v11223 = vunpack.c.l.b16 %v9703
    %v11224 = vunpack.c.h.b16 %v9703
    %v11225 = vunpack.c.l.b16 %v9704
    %v11226 = vunpack.c.h.b16 %v9704
    %v11227 = vunpack.c.l.b16 %v9705
    %v11228 = vunpack.c.h.b16 %v9705
    %v11229 = vunpack.c.l.b16 %v9706
    %v11230 = vunpack.c.h.b16 %v9706
    %v11231 = vunpack.c.l.b16 %v9707
    %v11232 = vunpack.c.h.b16 %v9707
    %v11233 = vunpack.c.l.b16 %v9708
    %v11234 = vunpack.c.h.b16 %v9708
    %v11235 = vunpack.c.l.b16 %v9709
    %v11236 = vunpack.c.h.b16 %v9709
    %v11237 = vunpack.c.l.b16 %v9710
    %v11238 = vunpack.c.h.b16 %v9710
    %v11239 = vunpack.c.l.b16 %v9711
    %v11240 = vunpack.c.h.b16 %v9711
    %v11241 = vunpack.c.l.b16 %v9712
    %v11242 = vunpack.c.h.b16 %v9712
    %v11243 = vunpack.c.l.b16 %v9713
    %v11244 = vunpack.c.h.b16 %v9713
    %v11245 = vunpack.c.l.b16 %v9714
    %v11246 = vunpack.c.h.b16 %v9714
    %v11247 = vunpack.c.l.b16 %v9715
    %v11248 = vunpack.c.h.b16 %v9715
    %v11249 = vunpack.c.l.b16 %v9716
    %v11250 = vunpack.c.h.b16 %v9716
    %v11251 = vunpack.c.l.b16 %v9717
    %v11252 = vunpack.c.h.b16 %v9717
    %v11253 = vunpack.c.l.b16 %v9718
    %v11254 = vunpack.c.h.b16 %v9718
    %v11255 = vpack.c.b16 %v10235, %v10231
    %v11256 = vpack.c.b16 %v10236, %v10232
    %v11257 = vpack.c.b16 %v10237, %v10233
    %v11258 = vpack.c.b16 %v10238, %v10234
    %v11259 = vpack.c.b16 %v10243, %v10239
    %v11260 = vpack.c.b16 %v10244, %v10240
    %v11261 = vpack.c.b16 %v10245, %v10241
    %v11262 = vpack.c.b16 %v10246, %v10242
    %v11263 = vpack.c.b16 %v10251, %v10247
    %v11264 = vpack.c.b16 %v10252, %v10248
    %v11265 = vpack.c.b16 %v10253, %v10249
    %v11266 = vpack.c.b16 %v10254, %v10250
    %v11267 = vpack.c.b16 %v10259, %v10255
    %v11268 = vpack.c.b16 %v10260, %v10256
    %v11269 = vpack.c.b16 %v10261, %v10257
    %v11270 = vpack.c.b16 %v10262, %v10258
    %v11271 = vpack.c.b16 %v10267, %v10263
    %v11272 = vpack.c.b16 %v10268, %v10264
    %v11273 = vpack.c.b16 %v10269, %v10265
    %v11274 = vpack.c.b16 %v10270, %v10266
    %v11275 = vpack.c.b16 %v10275, %v10271
    %v11276 = vpack.c.b16 %v10276, %v10272
    %v11277 = vpack.c.b16 %v10277, %v10273
    %v11278 = vpack.c.b16 %v10278, %v10274
    %v11279 = vpack.c.b16 %v10283, %v10279
    %v11280 = vpack.c.b16 %v10284, %v10280
    %v11281 = vpack.c.b16 %v10285, %v10281
    %v11282 = vpack.c.b16 %v10286, %v10282
    %v11283 = vpack.c.b16 %v10291, %v10287
    %v11284 = vpack.c.b16 %v10292, %v10288
    %v11285 = vpack.c.b16 %v10293, %v10289
    %v11286 = vpack.c.b16 %v10294, %v10290
    %v11287 = vpack.c.b16 %v10299, %v10295
    %v11288 = vpack.c.b16 %v10300, %v10296
    %v11289 = vpack.c.b16 %v10301, %v10297
    %v11290 = vpack.c.b16 %v10302, %v10298
    %v11291 = vpack.c.b16 %v10307, %v10303
    %v11292 = vpack.c.b16 %v10308, %v10304
    %v11293 = vpack.c.b16 %v10309, %v10305
    %v11294 = vpack.c.b16 %v10310, %v10306
    %v11295 = vpack.c.b16 %v10315, %v10311
    %v11296 = vpack.c.b16 %v10316, %v10312
    %v11297 = vpack.c.b16 %v10317, %v10313
    %v11298 = vpack.c.b16 %v10318, %v10314
    %v11299 = vpack.c.b16 %v10323, %v10319
    %v11300 = vpack.c.b16 %v10324, %v10320
    %v11301 = vpack.c.b16 %v10325, %v10321
    %v11302 = vpack.c.b16 %v10326, %v10322
    %v11303 = vpack.c.b16 %v10331, %v10327
    %v11304 = vpack.c.b16 %v10332, %v10328
    %v11305 = vpack.c.b16 %v10333, %v10329
    %v11306 = vpack.c.b16 %v10334, %v10330
    %v11307 = vpack.c.b16 %v10339, %v10335
    %v11308 = vpack.c.b16 %v10340, %v10336
    %v11309 = vpack.c.b16 %v10341, %v10337
    %v11310 = vpack.c.b16 %v10342, %v10338
    %v11311 = vpack.c.b16 %v10347, %v10343
    %v11312 = vpack.c.b16 %v10348, %v10344
    %v11313 = vpack.c.b16 %v10349, %v10345
    %v11314 = vpack.c.b16 %v10350, %v10346
    %v11315 = vpack.c.b16 %v10355, %v10351
    %v11316 = vpack.c.b16 %v10356, %v10352
    %v11317 = vpack.c.b16 %v10357, %v10353
    %v11318 = vpack.c.b16 %v10358, %v10354
    %v11319 = vpack.c.b16 %v10363, %v10359
    %v11320 = vpack.c.b16 %v10364, %v10360
    %v11321 = vpack.c.b16 %v10365, %v10361
    %v11322 = vpack.c.b16 %v10366, %v10362
    %v11323 = vpack.c.b16 %v10371, %v10367
    %v11324 = vpack.c.b16 %v10372, %v10368
    %v11325 = vpack.c.b16 %v10373, %v10369
    %v11326 = vpack.c.b16 %v10374, %v10370
    %v11327 = vpack.c.b16 %v10379, %v10375
    %v11328 = vpack.c.b16 %v10380, %v10376
    %v11329 = vpack.c.b16 %v10381, %v10377
    %v11330 = vpack.c.b16 %v10382, %v10378
    %v11331 = vpack.c.b16 %v10387, %v10383
    %v11332 = vpack.c.b16 %v10388, %v10384
    %v11333 = vpack.c.b16 %v10389, %v10385
    %v11334 = vpack.c.b16 %v10390, %v10386
    %v11335 = vpack.c.b16 %v10395, %v10391
    %v11336 = vpack.c.b16 %v10396, %v10392
    %v11337 = vpack.c.b16 %v10397, %v10393
    %v11338 = vpack.c.b16 %v10398, %v10394
    %v11339 = vpack.c.b16 %v10403, %v10399
    %v11340 = vpack.c.b16 %v10404, %v10400
    %v11341 = vpack.c.b16 %v10405, %v10401
    %v11342 = vpack.c.b16 %v10406, %v10402
    %v11343 = vpack.c.b16 %v10411, %v10407
    %v11344 = vpack.c.b16 %v10412, %v10408
    %v11345 = vpack.c.b16 %v10413, %v10409
    %v11346 = vpack.c.b16 %v10414, %v10410
    %v11347 = vpack.c.b16 %v10419, %v10415
    %v11348 = vpack.c.b16 %v10420, %v10416
    %v11349 = vpack.c.b16 %v10421, %v10417
    %v11350 = vpack.c.b16 %v10422, %v10418
    %v11351 = vpack.c.b16 %v10427, %v10423
    %v11352 = vpack.c.b16 %v10428, %v10424
    %v11353 = vpack.c.b16 %v10429, %v10425
    %v11354 = vpack.c.b16 %v10430, %v10426
    %v11355 = vpack.c.b16 %v10435, %v10431
    %v11356 = vpack.c.b16 %v10436, %v10432
    %v11357 = vpack.c.b16 %v10437, %v10433
    %v11358 = vpack.c.b16 %v10438, %v10434
    %v11359 = vpack.c.b16 %v10443, %v10439
    %v11360 = vpack.c.b16 %v10444, %v10440
    %v11361 = vpack.c.b16 %v10445, %v10441
    %v11362 = vpack.c.b16 %v10446, %v10442
    %v11363 = vpack.c.b16 %v10451, %v10447
    %v11364 = vpack.c.b16 %v10452, %v10448
    %v11365 = vpack.c.b16 %v10453, %v10449
    %v11366 = vpack.c.b16 %v10454, %v10450
    %v11367 = vpack.c.b16 %v10459, %v10455
    %v11368 = vpack.c.b16 %v10460, %v10456
    %v11369 = vpack.c.b16 %v10461, %v10457
    %v11370 = vpack.c.b16 %v10462, %v10458
    %v11371 = vpack.c.b16 %v10467, %v10463
    %v11372 = vpack.c.b16 %v10468, %v10464
    %v11373 = vpack.c.b16 %v10469, %v10465
    %v11374 = vpack.c.b16 %v10470, %v10466
    %v11375 = vpack.c.b16 %v10475, %v10471
    %v11376 = vpack.c.b16 %v10476, %v10472
    %v11377 = vpack.c.b16 %v10477, %v10473
    %v11378 = vpack.c.b16 %v10478, %v10474
    %v11379 = vpack.c.b16 %v10483, %v10479
    %v11380 = vpack.c.b16 %v10484, %v10480
    %v11381 = vpack.c.b16 %v10485, %v10481
    %v11382 = vpack.c.b16 %v10486, %v10482
    %v11383 = vpack.c.b16 %v10491, %v10487
    %v11384 = vpack.c.b16 %v10492, %v10488
    %v11385 = vpack.c.b16 %v10493, %v10489
    %v11386 = vpack.c.b16 %v10494, %v10490
    %v11387 = vpack.c.b16 %v10499, %v10495
    %v11388 = vpack.c.b16 %v10500, %v10496
    %v11389 = vpack.c.b16 %v10501, %v10497
    %v11390 = vpack.c.b16 %v10502, %v10498
    %v11391 = vpack.c.b16 %v10507, %v10503
    %v11392 = vpack.c.b16 %v10508, %v10504
    %v11393 = vpack.c.b16 %v10509, %v10505
    %v11394 = vpack.c.b16 %v10510, %v10506
    %v11395 = vpack.c.b16 %v10515, %v10511
    %v11396 = vpack.c.b16 %v10516, %v10512
    %v11397 = vpack.c.b16 %v10517, %v10513
    %v11398 = vpack.c.b16 %v10518, %v10514
    %v11399 = vpack.c.b16 %v10523, %v10519
    %v11400 = vpack.c.b16 %v10524, %v10520
    %v11401 = vpack.c.b16 %v10525, %v10521
    %v11402 = vpack.c.b16 %v10526, %v10522
    %v11403 = vpack.c.b16 %v10531, %v10527
    %v11404 = vpack.c.b16 %v10532, %v10528
    %v11405 = vpack.c.b16 %v10533, %v10529
    %v11406 = vpack.c.b16 %v10534, %v10530
    %v11407 = vpack.c.b16 %v10539, %v10535
    %v11408 = vpack.c.b16 %v10540, %v10536
    %v11409 = vpack.c.b16 %v10541, %v10537
    %v11410 = vpack.c.b16 %v10542, %v10538
    %v11411 = vpack.c.b16 %v10547, %v10543
    %v11412 = vpack.c.b16 %v10548, %v10544
    %v11413 = vpack.c.b16 %v10549, %v10545
    %v11414 = vpack.c.b16 %v10550, %v10546
    %v11415 = vpack.c.b16 %v10555, %v10551
    %v11416 = vpack.c.b16 %v10556, %v10552
    %v11417 = vpack.c.b16 %v10557, %v10553
    %v11418 = vpack.c.b16 %v10558, %v10554
    %v11419 = vpack.c.b16 %v10563, %v10559
    %v11420 = vpack.c.b16 %v10564, %v10560
    %v11421 = vpack.c.b16 %v10565, %v10561
    %v11422 = vpack.c.b16 %v10566, %v10562
    %v11423 = vpack.c.b16 %v10571, %v10567
    %v11424 = vpack.c.b16 %v10572, %v10568
    %v11425 = vpack.c.b16 %v10573, %v10569
    %v11426 = vpack.c.b16 %v10574, %v10570
    %v11427 = vpack.c.b16 %v10579, %v10575
    %v11428 = vpack.c.b16 %v10580, %v10576
    %v11429 = vpack.c.b16 %v10581, %v10577
    %v11430 = vpack.c.b16 %v10582, %v10578
    %v11431 = vpack.c.b16 %v10587, %v10583
    %v11432 = vpack.c.b16 %v10588, %v10584
    %v11433 = vpack.c.b16 %v10589, %v10585
    %v11434 = vpack.c.b16 %v10590, %v10586
    %v11435 = vpack.c.b16 %v10595, %v10591
    %v11436 = vpack.c.b16 %v10596, %v10592
    %v11437 = vpack.c.b16 %v10597, %v10593
    %v11438 = vpack.c.b16 %v10598, %v10594
    %v11439 = vpack.c.b16 %v10603, %v10599
    %v11440 = vpack.c.b16 %v10604, %v10600
    %v11441 = vpack.c.b16 %v10605, %v10601
    %v11442 = vpack.c.b16 %v10606, %v10602
    %v11443 = vpack.c.b16 %v10611, %v10607
    %v11444 = vpack.c.b16 %v10612, %v10608
    %v11445 = vpack.c.b16 %v10613, %v10609
    %v11446 = vpack.c.b16 %v10614, %v10610
    %v11447 = vpack.c.b16 %v10619, %v10615
    %v11448 = vpack.c.b16 %v10620, %v10616
    %v11449 = vpack.c.b16 %v10621, %v10617
    %v11450 = vpack.c.b16 %v10622, %v10618
    %v11451 = vpack.c.b16 %v10627, %v10623
    %v11452 = vpack.c.b16 %v10628, %v10624
    %v11453 = vpack.c.b16 %v10629, %v10625
    %v11454 = vpack.c.b16 %v10630, %v10626
    %v11455 = vpack.c.b16 %v10635, %v10631
    %v11456 = vpack.c.b16 %v10636, %v10632
    %v11457 = vpack.c.b16 %v10637, %v10633
    %v11458 = vpack.c.b16 %v10638, %v10634
    %v11459 = vpack.c.b16 %v10643, %v10639
    %v11460 = vpack.c.b16 %v10644, %v10640
    %v11461 = vpack.c.b16 %v10645, %v10641
    %v11462 = vpack.c.b16 %v10646, %v10642
    %v11463 = vpack.c.b16 %v10651, %v10647
    %v11464 = vpack.c.b16 %v10652, %v10648
    %v11465 = vpack.c.b16 %v10653, %v10649
    %v11466 = vpack.c.b16 %v10654, %v10650
    %v11467 = vpack.c.b16 %v10659, %v10655
    %v11468 = vpack.c.b16 %v10660, %v10656
    %v11469 = vpack.c.b16 %v10661, %v10657
    %v11470 = vpack.c.b16 %v10662, %v10658
    %v11471 = vpack.c.b16 %v10667, %v10663
    %v11472 = vpack.c.b16 %v10668, %v10664
    %v11473 = vpack.c.b16 %v10669, %v10665
    %v11474 = vpack.c.b16 %v10670, %v10666
    %v11475 = vpack.c.b16 %v10675, %v10671
    %v11476 = vpack.c.b16 %v10676, %v10672
    %v11477 = vpack.c.b16 %v10677, %v10673
    %v11478 = vpack.c.b16 %v10678, %v10674
    %v11479 = vpack.c.b16 %v10683, %v10679
    %v11480 = vpack.c.b16 %v10684, %v10680
    %v11481 = vpack.c.b16 %v10685, %v10681
    %v11482 = vpack.c.b16 %v10686, %v10682
    %v11483 = vpack.c.b16 %v10691, %v10687
    %v11484 = vpack.c.b16 %v10692, %v10688
    %v11485 = vpack.c.b16 %v10693, %v10689
    %v11486 = vpack.c.b16 %v10694, %v10690
    %v11487 = vpack.c.b16 %v10699, %v10695
    %v11488 = vpack.c.b16 %v10700, %v10696
    %v11489 = vpack.c.b16 %v10701, %v10697
    %v11490 = vpack.c.b16 %v10702, %v10698
    %v11491 = vpack.c.b16 %v10707, %v10703
    %v11492 = vpack.c.b16 %v10708, %v10704
    %v11493 = vpack.c.b16 %v10709, %v10705
    %v11494 = vpack.c.b16 %v10710, %v10706
    %v11495 = vpack.c.b16 %v10715, %v10711
    %v11496 = vpack.c.b16 %v10716, %v10712
    %v11497 = vpack.c.b16 %v10717, %v10713
    %v11498 = vpack.c.b16 %v10718, %v10714
    %v11499 = vpack.c.b16 %v10723, %v10719
    %v11500 = vpack.c.b16 %v10724, %v10720
    %v11501 = vpack.c.b16 %v10725, %v10721
    %v11502 = vpack.c.b16 %v10726, %v10722
    %v11503 = vpack.c.b16 %v10731, %v10727
    %v11504 = vpack.c.b16 %v10732, %v10728
    %v11505 = vpack.c.b16 %v10733, %v10729
    %v11506 = vpack.c.b16 %v10734, %v10730
    %v11507 = vpack.c.b16 %v10739, %v10735
    %v11508 = vpack.c.b16 %v10740, %v10736
    %v11509 = vpack.c.b16 %v10741, %v10737
    %v11510 = vpack.c.b16 %v10742, %v10738
    %v11511 = vpack.c.b16 %v10747, %v10743
    %v11512 = vpack.c.b16 %v10748, %v10744
    %v11513 = vpack.c.b16 %v10749, %v10745
    %v11514 = vpack.c.b16 %v10750, %v10746
    %v11515 = vpack.c.b16 %v10755, %v10751
    %v11516 = vpack.c.b16 %v10756, %v10752
    %v11517 = vpack.c.b16 %v10757, %v10753
    %v11518 = vpack.c.b16 %v10758, %v10754
    %v11519 = vpack.c.b16 %v10763, %v10759
    %v11520 = vpack.c.b16 %v10764, %v10760
    %v11521 = vpack.c.b16 %v10765, %v10761
    %v11522 = vpack.c.b16 %v10766, %v10762
    %v11523 = vpack.c.b16 %v10771, %v10767
    %v11524 = vpack.c.b16 %v10772, %v10768
    %v11525 = vpack.c.b16 %v10773, %v10769
    %v11526 = vpack.c.b16 %v10774, %v10770
    %v11527 = vpack.c.b16 %v10779, %v10775
    %v11528 = vpack.c.b16 %v10780, %v10776
    %v11529 = vpack.c.b16 %v10781, %v10777
    %v11530 = vpack.c.b16 %v10782, %v10778
    %v11531 = vpack.c.b16 %v10787, %v10783
    %v11532 = vpack.c.b16 %v10788, %v10784
    %v11533 = vpack.c.b16 %v10789, %v10785
    %v11534 = vpack.c.b16 %v10790, %v10786
    %v11535 = vpack.c.b16 %v10795, %v10791
    %v11536 = vpack.c.b16 %v10796, %v10792
    %v11537 = vpack.c.b16 %v10797, %v10793
    %v11538 = vpack.c.b16 %v10798, %v10794
    %v11539 = vpack.c.b16 %v10803, %v10799
    %v11540 = vpack.c.b16 %v10804, %v10800
    %v11541 = vpack.c.b16 %v10805, %v10801
    %v11542 = vpack.c.b16 %v10806, %v10802
    %v11543 = vpack.c.b16 %v10811, %v10807
    %v11544 = vpack.c.b16 %v10812, %v10808
    %v11545 = vpack.c.b16 %v10813, %v10809
    %v11546 = vpack.c.b16 %v10814, %v10810
    %v11547 = vpack.c.b16 %v10819, %v10815
    %v11548 = vpack.c.b16 %v10820, %v10816
    %v11549 = vpack.c.b16 %v10821, %v10817
    %v11550 = vpack.c.b16 %v10822, %v10818
    %v11551 = vpack.c.b16 %v10827, %v10823
    %v11552 = vpack.c.b16 %v10828, %v10824
    %v11553 = vpack.c.b16 %v10829, %v10825
    %v11554 = vpack.c.b16 %v10830, %v10826
    %v11555 = vpack.c.b16 %v10835, %v10831
    %v11556 = vpack.c.b16 %v10836, %v10832
    %v11557 = vpack.c.b16 %v10837, %v10833
    %v11558 = vpack.c.b16 %v10838, %v10834
    %v11559 = vpack.c.b16 %v10843, %v10839
    %v11560 = vpack.c.b16 %v10844, %v10840
    %v11561 = vpack.c.b16 %v10845, %v10841
    %v11562 = vpack.c.b16 %v10846, %v10842
    %v11563 = vpack.c.b16 %v10851, %v10847
    %v11564 = vpack.c.b16 %v10852, %v10848
    %v11565 = vpack.c.b16 %v10853, %v10849
    %v11566 = vpack.c.b16 %v10854, %v10850
    %v11567 = vpack.c.b16 %v10859, %v10855
    %v11568 = vpack.c.b16 %v10860, %v10856
    %v11569 = vpack.c.b16 %v10861, %v10857
    %v11570 = vpack.c.b16 %v10862, %v10858
    %v11571 = vpack.c.b16 %v10867, %v10863
    %v11572 = vpack.c.b16 %v10868, %v10864
    %v11573 = vpack.c.b16 %v10869, %v10865
    %v11574 = vpack.c.b16 %v10870, %v10866
    %v11575 = vpack.c.b16 %v10875, %v10871
    %v11576 = vpack.c.b16 %v10876, %v10872
    %v11577 = vpack.c.b16 %v10877, %v10873
    %v11578 = vpack.c.b16 %v10878, %v10874
    %v11579 = vpack.c.b16 %v10883, %v10879
    %v11580 = vpack.c.b16 %v10884, %v10880
    %v11581 = vpack.c.b16 %v10885, %v10881
    %v11582 = vpack.c.b16 %v10886, %v10882
    %v11583 = vpack.c.b16 %v10891, %v10887
    %v11584 = vpack.c.b16 %v10892, %v10888
    %v11585 = vpack.c.b16 %v10893, %v10889
    %v11586 = vpack.c.b16 %v10894, %v10890
    %v11587 = vpack.c.b16 %v10899, %v10895
    %v11588 = vpack.c.b16 %v10900, %v10896
    %v11589 = vpack.c.b16 %v10901, %v10897
    %v11590 = vpack.c.b16 %v10902, %v10898
    %v11591 = vpack.c.b16 %v10907, %v10903
    %v11592 = vpack.c.b16 %v10908, %v10904
    %v11593 = vpack.c.b16 %v10909, %v10905
    %v11594 = vpack.c.b16 %v10910, %v10906
    %v11595 = vpack.c.b16 %v10915, %v10911
    %v11596 = vpack.c.b16 %v10916, %v10912
    %v11597 = vpack.c.b16 %v10917, %v10913
    %v11598 = vpack.c.b16 %v10918, %v10914
    %v11599 = vpack.c.b16 %v10923, %v10919
    %v11600 = vpack.c.b16 %v10924, %v10920
    %v11601 = vpack.c.b16 %v10925, %v10921
    %v11602 = vpack.c.b16 %v10926, %v10922
    %v11603 = vpack.c.b16 %v10931, %v10927
    %v11604 = vpack.c.b16 %v10932, %v10928
    %v11605 = vpack.c.b16 %v10933, %v10929
    %v11606 = vpack.c.b16 %v10934, %v10930
    %v11607 = vpack.c.b16 %v10939, %v10935
    %v11608 = vpack.c.b16 %v10940, %v10936
    %v11609 = vpack.c.b16 %v10941, %v10937
    %v11610 = vpack.c.b16 %v10942, %v10938
    %v11611 = vpack.c.b16 %v10947, %v10943
    %v11612 = vpack.c.b16 %v10948, %v10944
    %v11613 = vpack.c.b16 %v10949, %v10945
    %v11614 = vpack.c.b16 %v10950, %v10946
    %v11615 = vpack.c.b16 %v10955, %v10951
    %v11616 = vpack.c.b16 %v10956, %v10952
    %v11617 = vpack.c.b16 %v10957, %v10953
    %v11618 = vpack.c.b16 %v10958, %v10954
    %v11619 = vpack.c.b16 %v10963, %v10959
    %v11620 = vpack.c.b16 %v10964, %v10960
    %v11621 = vpack.c.b16 %v10965, %v10961
    %v11622 = vpack.c.b16 %v10966, %v10962
    %v11623 = vpack.c.b16 %v10971, %v10967
    %v11624 = vpack.c.b16 %v10972, %v10968
    %v11625 = vpack.c.b16 %v10973, %v10969
    %v11626 = vpack.c.b16 %v10974, %v10970
    %v11627 = vpack.c.b16 %v10979, %v10975
    %v11628 = vpack.c.b16 %v10980, %v10976
    %v11629 = vpack.c.b16 %v10981, %v10977
    %v11630 = vpack.c.b16 %v10982, %v10978
    %v11631 = vpack.c.b16 %v10987, %v10983
    %v11632 = vpack.c.b16 %v10988, %v10984
    %v11633 = vpack.c.b16 %v10989, %v10985
    %v11634 = vpack.c.b16 %v10990, %v10986
    %v11635 = vpack.c.b16 %v10995, %v10991
    %v11636 = vpack.c.b16 %v10996, %v10992
    %v11637 = vpack.c.b16 %v10997, %v10993
    %v11638 = vpack.c.b16 %v10998, %v10994
    %v11639 = vpack.c.b16 %v11003, %v10999
    %v11640 = vpack.c.b16 %v11004, %v11000
    %v11641 = vpack.c.b16 %v11005, %v11001
    %v11642 = vpack.c.b16 %v11006, %v11002
    %v11643 = vpack.c.b16 %v11011, %v11007
    %v11644 = vpack.c.b16 %v11012, %v11008
    %v11645 = vpack.c.b16 %v11013, %v11009
    %v11646 = vpack.c.b16 %v11014, %v11010
    %v11647 = vpack.c.b16 %v11019, %v11015
    %v11648 = vpack.c.b16 %v11020, %v11016
    %v11649 = vpack.c.b16 %v11021, %v11017
    %v11650 = vpack.c.b16 %v11022, %v11018
    %v11651 = vpack.c.b16 %v11027, %v11023
    %v11652 = vpack.c.b16 %v11028, %v11024
    %v11653 = vpack.c.b16 %v11029, %v11025
    %v11654 = vpack.c.b16 %v11030, %v11026
    %v11655 = vpack.c.b16 %v11035, %v11031
    %v11656 = vpack.c.b16 %v11036, %v11032
    %v11657 = vpack.c.b16 %v11037, %v11033
    %v11658 = vpack.c.b16 %v11038, %v11034
    %v11659 = vpack.c.b16 %v11043, %v11039
    %v11660 = vpack.c.b16 %v11044, %v11040
    %v11661 = vpack.c.b16 %v11045, %v11041
    %v11662 = vpack.c.b16 %v11046, %v11042
    %v11663 = vpack.c.b16 %v11051, %v11047
    %v11664 = vpack.c.b16 %v11052, %v11048
    %v11665 = vpack.c.b16 %v11053, %v11049
    %v11666 = vpack.c.b16 %v11054, %v11050
    %v11667 = vpack.c.b16 %v11059, %v11055
    %v11668 = vpack.c.b16 %v11060, %v11056
    %v11669 = vpack.c.b16 %v11061, %v11057
    %v11670 = vpack.c.b16 %v11062, %v11058
    %v11671 = vpack.c.b16 %v11067, %v11063
    %v11672 = vpack.c.b16 %v11068, %v11064
    %v11673 = vpack.c.b16 %v11069, %v11065
    %v11674 = vpack.c.b16 %v11070, %v11066
    %v11675 = vpack.c.b16 %v11075, %v11071
    %v11676 = vpack.c.b16 %v11076, %v11072
    %v11677 = vpack.c.b16 %v11077, %v11073
    %v11678 = vpack.c.b16 %v11078, %v11074
    %v11679 = vpack.c.b16 %v11083, %v11079
    %v11680 = vpack.c.b16 %v11084, %v11080
    %v11681 = vpack.c.b16 %v11085, %v11081
    %v11682 = vpack.c.b16 %v11086, %v11082
    %v11683 = vpack.c.b16 %v11091, %v11087
    %v11684 = vpack.c.b16 %v11092, %v11088
    %v11685 = vpack.c.b16 %v11093, %v11089
    %v11686 = vpack.c.b16 %v11094, %v11090
    %v11687 = vpack.c.b16 %v11099, %v11095
    %v11688 = vpack.c.b16 %v11100, %v11096
    %v11689 = vpack.c.b16 %v11101, %v11097
    %v11690 = vpack.c.b16 %v11102, %v11098
    %v11691 = vpack.c.b16 %v11107, %v11103
    %v11692 = vpack.c.b16 %v11108, %v11104
    %v11693 = vpack.c.b16 %v11109, %v11105
    %v11694 = vpack.c.b16 %v11110, %v11106
    %v11695 = vpack.c.b16 %v11115, %v11111
    %v11696 = vpack.c.b16 %v11116, %v11112
    %v11697 = vpack.c.b16 %v11117, %v11113
    %v11698 = vpack.c.b16 %v11118, %v11114
    %v11699 = vpack.c.b16 %v11123, %v11119
    %v11700 = vpack.c.b16 %v11124, %v11120
    %v11701 = vpack.c.b16 %v11125, %v11121
    %v11702 = vpack.c.b16 %v11126, %v11122
    %v11703 = vpack.c.b16 %v11131, %v11127
    %v11704 = vpack.c.b16 %v11132, %v11128
    %v11705 = vpack.c.b16 %v11133, %v11129
    %v11706 = vpack.c.b16 %v11134, %v11130
    %v11707 = vpack.c.b16 %v11139, %v11135
    %v11708 = vpack.c.b16 %v11140, %v11136
    %v11709 = vpack.c.b16 %v11141, %v11137
    %v11710 = vpack.c.b16 %v11142, %v11138
    %v11711 = vpack.c.b16 %v11147, %v11143
    %v11712 = vpack.c.b16 %v11148, %v11144
    %v11713 = vpack.c.b16 %v11149, %v11145
    %v11714 = vpack.c.b16 %v11150, %v11146
    %v11715 = vpack.c.b16 %v11155, %v11151
    %v11716 = vpack.c.b16 %v11156, %v11152
    %v11717 = vpack.c.b16 %v11157, %v11153
    %v11718 = vpack.c.b16 %v11158, %v11154
    %v11719 = vpack.c.b16 %v11163, %v11159
    %v11720 = vpack.c.b16 %v11164, %v11160
    %v11721 = vpack.c.b16 %v11165, %v11161
    %v11722 = vpack.c.b16 %v11166, %v11162
    %v11723 = vpack.c.b16 %v11171, %v11167
    %v11724 = vpack.c.b16 %v11172, %v11168
    %v11725 = vpack.c.b16 %v11173, %v11169
    %v11726 = vpack.c.b16 %v11174, %v11170
    %v11727 = vpack.c.b16 %v11179, %v11175
    %v11728 = vpack.c.b16 %v11180, %v11176
    %v11729 = vpack.c.b16 %v11181, %v11177
    %v11730 = vpack.c.b16 %v11182, %v11178
    %v11731 = vpack.c.b16 %v11187, %v11183
    %v11732 = vpack.c.b16 %v11188, %v11184
    %v11733 = vpack.c.b16 %v11189, %v11185
    %v11734 = vpack.c.b16 %v11190, %v11186
    %v11735 = vpack.c.b16 %v11195, %v11191
    %v11736 = vpack.c.b16 %v11196, %v11192
    %v11737 = vpack.c.b16 %v11197, %v11193
    %v11738 = vpack.c.b16 %v11198, %v11194
    %v11739 = vpack.c.b16 %v11203, %v11199
    %v11740 = vpack.c.b16 %v11204, %v11200
    %v11741 = vpack.c.b16 %v11205, %v11201
    %v11742 = vpack.c.b16 %v11206, %v11202
    %v11743 = vpack.c.b16 %v11211, %v11207
    %v11744 = vpack.c.b16 %v11212, %v11208
    %v11745 = vpack.c.b16 %v11213, %v11209
    %v11746 = vpack.c.b16 %v11214, %v11210
    %v11747 = vpack.c.b16 %v11219, %v11215
    %v11748 = vpack.c.b16 %v11220, %v11216
    %v11749 = vpack.c.b16 %v11221, %v11217
    %v11750 = vpack.c.b16 %v11222, %v11218
    %v11751 = vpack.c.b16 %v11227, %v11223
    %v11752 = vpack.c.b16 %v11228, %v11224
    %v11753 = vpack.c.b16 %v11229, %v11225
    %v11754 = vpack.c.b16 %v11230, %v11226
    %v11755 = vpack.c.b16 %v11235, %v11231
    %v11756 = vpack.c.b16 %v11236, %v11232
    %v11757 = vpack.c.b16 %v11237, %v11233
    %v11758 = vpack.c.b16 %v11238, %v11234
    %v11759 = vpack.c.b16 %v11243, %v11239
    %v11760 = vpack.c.b16 %v11244, %v11240
    %v11761 = vpack.c.b16 %v11245, %v11241
    %v11762 = vpack.c.b16 %v11246, %v11242
    %v11763 = vpack.c.b16 %v11251, %v11247
    %v11764 = vpack.c.b16 %v11252, %v11248
    %v11765 = vpack.c.b16 %v11253, %v11249
    %v11766 = vpack.c.b16 %v11254, %v11250
    %12279 = vmatpush.bf16.msra.mxu0 %v11283
    %12280 = vmatpush.bf16.msra.mxu0 %v11279
    %12281 = vmatpush.bf16.msra.mxu0 %v11275
    %12282 = vmatpush.bf16.msra.mxu0 %v11271
    %12283 = vmatpush.bf16.msra.mxu0 %v11267
    %12284 = vmatpush.bf16.msra.mxu0 %v11263
    %12285 = vmatpush.bf16.msra.mxu0 %v11259
    %12286 = vmatpush.bf16.msra.mxu0 %v11255
    %12287 = vmatmul.bf16.gmra.mxu0 %v9191
    %v12288 = vpop.f32.mrf.mxu0
    %v12289 = vadd.f32 %v5179, %v12288
    %v12290 = vpop.f32.mrf.mxu0
    %v12291 = vadd.f32 %v5183, %v12290
    %12292 = vdwg.mxu0
    %12293 = vmatpush.bf16.msra.mxu0 %v11315
    %12294 = vmatpush.bf16.msra.mxu0 %v11311
    %12295 = vmatpush.bf16.msra.mxu0 %v11307
    %12296 = vmatpush.bf16.msra.mxu0 %v11303
    %12297 = vmatpush.bf16.msra.mxu0 %v11299
    %12298 = vmatpush.bf16.msra.mxu0 %v11295
    %12299 = vmatpush.bf16.msra.mxu0 %v11291
    %12300 = vmatpush.bf16.msra.mxu0 %v11287
    %12301 = vmatmul.bf16.gmra.mxu0 %v9192
    %v12302 = vpop.f32.mrf.mxu0
    %v12303 = vadd.f32 %v12289, %v12302
    %v12304 = vpop.f32.mrf.mxu0
    %v12305 = vadd.f32 %v12291, %v12304
    %12306 = vdwg.mxu0
    %12307 = vmatpush.bf16.msra.mxu0 %v11347
    %12308 = vmatpush.bf16.msra.mxu0 %v11343
    %12309 = vmatpush.bf16.msra.mxu0 %v11339
    %12310 = vmatpush.bf16.msra.mxu0 %v11335
    %12311 = vmatpush.bf16.msra.mxu0 %v11331
    %12312 = vmatpush.bf16.msra.mxu0 %v11327
    %12313 = vmatpush.bf16.msra.mxu0 %v11323
    %12314 = vmatpush.bf16.msra.mxu0 %v11319
    %12315 = vmatmul.bf16.gmra.mxu0 %v9193
    %v12316 = vpop.f32.mrf.mxu0
    %v12317 = vadd.f32 %v12303, %v12316
    %v12318 = vpop.f32.mrf.mxu0
    %v12319 = vadd.f32 %v12305, %v12318
    %12320 = vdwg.mxu0
    %12321 = vmatpush.bf16.msra.mxu0 %v11379
    %12322 = vmatpush.bf16.msra.mxu0 %v11375
    %12323 = vmatpush.bf16.msra.mxu0 %v11371
    %12324 = vmatpush.bf16.msra.mxu0 %v11367
    %12325 = vmatpush.bf16.msra.mxu0 %v11363
    %12326 = vmatpush.bf16.msra.mxu0 %v11359
    %12327 = vmatpush.bf16.msra.mxu0 %v11355
    %12328 = vmatpush.bf16.msra.mxu0 %v11351
    %12329 = vmatmul.bf16.gmra.mxu0 %v9194
    %v12330 = vpop.f32.mrf.mxu0
    %v12331 = vadd.f32 %v12317, %v12330
    %v12332 = vpop.f32.mrf.mxu0
    %v12333 = vadd.f32 %v12319, %v12332
    %12334 = vdwg.mxu0
    %12335 = vmatpush.bf16.msra.mxu0 %v11411
    %12336 = vmatpush.bf16.msra.mxu0 %v11407
    %12337 = vmatpush.bf16.msra.mxu0 %v11403
    %12338 = vmatpush.bf16.msra.mxu0 %v11399
    %12339 = vmatpush.bf16.msra.mxu0 %v11395
    %12340 = vmatpush.bf16.msra.mxu0 %v11391
    %12341 = vmatpush.bf16.msra.mxu0 %v11387
    %12342 = vmatpush.bf16.msra.mxu0 %v11383
    %12343 = vmatmul.bf16.gmra.mxu0 %v9195
    %v12344 = vpop.f32.mrf.mxu0
    %v12345 = vadd.f32 %v12331, %v12344
    %v12346 = vpop.f32.mrf.mxu0
    %v12347 = vadd.f32 %v12333, %v12346
    %12348 = vdwg.mxu0
    %12349 = vmatpush.bf16.msra.mxu0 %v11443
    %12350 = vmatpush.bf16.msra.mxu0 %v11439
    %12351 = vmatpush.bf16.msra.mxu0 %v11435
    %12352 = vmatpush.bf16.msra.mxu0 %v11431
    %12353 = vmatpush.bf16.msra.mxu0 %v11427
    %12354 = vmatpush.bf16.msra.mxu0 %v11423
    %12355 = vmatpush.bf16.msra.mxu0 %v11419
    %12356 = vmatpush.bf16.msra.mxu0 %v11415
    %12357 = vmatmul.bf16.gmra.mxu0 %v9196
    %v12358 = vpop.f32.mrf.mxu0
    %v12359 = vadd.f32 %v12345, %v12358
    %v12360 = vpop.f32.mrf.mxu0
    %v12361 = vadd.f32 %v12347, %v12360
    %12362 = vdwg.mxu0
    %12363 = vmatpush.bf16.msra.mxu0 %v11475
    %12364 = vmatpush.bf16.msra.mxu0 %v11471
    %12365 = vmatpush.bf16.msra.mxu0 %v11467
    %12366 = vmatpush.bf16.msra.mxu0 %v11463
    %12367 = vmatpush.bf16.msra.mxu0 %v11459
    %12368 = vmatpush.bf16.msra.mxu0 %v11455
    %12369 = vmatpush.bf16.msra.mxu0 %v11451
    %12370 = vmatpush.bf16.msra.mxu0 %v11447
    %12371 = vmatmul.bf16.gmra.mxu0 %v9197
    %v12372 = vpop.f32.mrf.mxu0
    %v12373 = vadd.f32 %v12359, %v12372
    %v12374 = vpop.f32.mrf.mxu0
    %v12375 = vadd.f32 %v12361, %v12374
    %12376 = vdwg.mxu0
    %12377 = vmatpush.bf16.msra.mxu0 %v11507
    %12378 = vmatpush.bf16.msra.mxu0 %v11503
    %12379 = vmatpush.bf16.msra.mxu0 %v11499
    %12380 = vmatpush.bf16.msra.mxu0 %v11495
    %12381 = vmatpush.bf16.msra.mxu0 %v11491
    %12382 = vmatpush.bf16.msra.mxu0 %v11487
    %12383 = vmatpush.bf16.msra.mxu0 %v11483
    %12384 = vmatpush.bf16.msra.mxu0 %v11479
    %12385 = vmatmul.bf16.gmra.mxu0 %v9198
    %v12386 = vpop.f32.mrf.mxu0
    %v12387 = vadd.f32 %v12373, %v12386
    %v12388 = vpop.f32.mrf.mxu0
    %v12389 = vadd.f32 %v12375, %v12388
    %12390 = vdwg.mxu0
    %12391 = vmatpush.bf16.msra.mxu0 %v11539
    %12392 = vmatpush.bf16.msra.mxu0 %v11535
    %12393 = vmatpush.bf16.msra.mxu0 %v11531
    %12394 = vmatpush.bf16.msra.mxu0 %v11527
    %12395 = vmatpush.bf16.msra.mxu0 %v11523
    %12396 = vmatpush.bf16.msra.mxu0 %v11519
    %12397 = vmatpush.bf16.msra.mxu0 %v11515
    %12398 = vmatpush.bf16.msra.mxu0 %v11511
    %12399 = vmatmul.bf16.gmra.mxu0 %v9199
    %v12400 = vpop.f32.mrf.mxu0
    %v12401 = vadd.f32 %v12387, %v12400
    %v12402 = vpop.f32.mrf.mxu0
    %v12403 = vadd.f32 %v12389, %v12402
    %12404 = vdwg.mxu0
    %12405 = vmatpush.bf16.msra.mxu0 %v11571
    %12406 = vmatpush.bf16.msra.mxu0 %v11567
    %12407 = vmatpush.bf16.msra.mxu0 %v11563
    %12408 = vmatpush.bf16.msra.mxu0 %v11559
    %12409 = vmatpush.bf16.msra.mxu0 %v11555
    %12410 = vmatpush.bf16.msra.mxu0 %v11551
    %12411 = vmatpush.bf16.msra.mxu0 %v11547
    %12412 = vmatpush.bf16.msra.mxu0 %v11543
    %12413 = vmatmul.bf16.gmra.mxu0 %v9200
    %v12414 = vpop.f32.mrf.mxu0
    %v12415 = vadd.f32 %v12401, %v12414
    %v12416 = vpop.f32.mrf.mxu0
    %v12417 = vadd.f32 %v12403, %v12416
    %12418 = vdwg.mxu0
    %12419 = vmatpush.bf16.msra.mxu0 %v11603
    %12420 = vmatpush.bf16.msra.mxu0 %v11599
    %12421 = vmatpush.bf16.msra.mxu0 %v11595
    %12422 = vmatpush.bf16.msra.mxu0 %v11591
    %12423 = vmatpush.bf16.msra.mxu0 %v11587
    %12424 = vmatpush.bf16.msra.mxu0 %v11583
    %12425 = vmatpush.bf16.msra.mxu0 %v11579
    %12426 = vmatpush.bf16.msra.mxu0 %v11575
    %12427 = vmatmul.bf16.gmra.mxu0 %v9201
    %v12428 = vpop.f32.mrf.mxu0
    %v12429 = vadd.f32 %v12415, %v12428
    %v12430 = vpop.f32.mrf.mxu0
    %v12431 = vadd.f32 %v12417, %v12430
    %12432 = vdwg.mxu0
    %12433 = vmatpush.bf16.msra.mxu0 %v11635
    %12434 = vmatpush.bf16.msra.mxu0 %v11631
    %12435 = vmatpush.bf16.msra.mxu0 %v11627
    %12436 = vmatpush.bf16.msra.mxu0 %v11623
    %12437 = vmatpush.bf16.msra.mxu0 %v11619
    %12438 = vmatpush.bf16.msra.mxu0 %v11615
    %12439 = vmatpush.bf16.msra.mxu0 %v11611
    %12440 = vmatpush.bf16.msra.mxu0 %v11607
    %12441 = vmatmul.bf16.gmra.mxu0 %v9202
    %v12442 = vpop.f32.mrf.mxu0
    %v12443 = vadd.f32 %v12429, %v12442
    %v12444 = vpop.f32.mrf.mxu0
    %v12445 = vadd.f32 %v12431, %v12444
    %12446 = vdwg.mxu0
    %12447 = vmatpush.bf16.msra.mxu0 %v11667
    %12448 = vmatpush.bf16.msra.mxu0 %v11663
    %12449 = vmatpush.bf16.msra.mxu0 %v11659
    %12450 = vmatpush.bf16.msra.mxu0 %v11655
    %12451 = vmatpush.bf16.msra.mxu0 %v11651
    %12452 = vmatpush.bf16.msra.mxu0 %v11647
    %12453 = vmatpush.bf16.msra.mxu0 %v11643
    %12454 = vmatpush.bf16.msra.mxu0 %v11639
    %12455 = vmatmul.bf16.gmra.mxu0 %v9203
    %v12456 = vpop.f32.mrf.mxu0
    %v12457 = vadd.f32 %v12443, %v12456
    %v12458 = vpop.f32.mrf.mxu0
    %v12459 = vadd.f32 %v12445, %v12458
    %12460 = vdwg.mxu0
    %12461 = vmatpush.bf16.msra.mxu0 %v11699
    %12462 = vmatpush.bf16.msra.mxu0 %v11695
    %12463 = vmatpush.bf16.msra.mxu0 %v11691
    %12464 = vmatpush.bf16.msra.mxu0 %v11687
    %12465 = vmatpush.bf16.msra.mxu0 %v11683
    %12466 = vmatpush.bf16.msra.mxu0 %v11679
    %12467 = vmatpush.bf16.msra.mxu0 %v11675
    %12468 = vmatpush.bf16.msra.mxu0 %v11671
    %12469 = vmatmul.bf16.gmra.mxu0 %v9204
    %v12470 = vpop.f32.mrf.mxu0
    %v12471 = vadd.f32 %v12457, %v12470
    %v12472 = vpop.f32.mrf.mxu0
    %v12473 = vadd.f32 %v12459, %v12472
    %12474 = vdwg.mxu0
    %12475 = vmatpush.bf16.msra.mxu0 %v11731
    %12476 = vmatpush.bf16.msra.mxu0 %v11727
    %12477 = vmatpush.bf16.msra.mxu0 %v11723
    %12478 = vmatpush.bf16.msra.mxu0 %v11719
    %12479 = vmatpush.bf16.msra.mxu0 %v11715
    %12480 = vmatpush.bf16.msra.mxu0 %v11711
    %12481 = vmatpush.bf16.msra.mxu0 %v11707
    %12482 = vmatpush.bf16.msra.mxu0 %v11703
    %12483 = vmatmul.bf16.gmra.mxu0 %v9205
    %v12484 = vpop.f32.mrf.mxu0
    %v12485 = vadd.f32 %v12471, %v12484
    %v12486 = vpop.f32.mrf.mxu0
    %v12487 = vadd.f32 %v12473, %v12486
    %12488 = vdwg.mxu0
    %12489 = vmatpush.bf16.msra.mxu0 %v11763
    %12490 = vmatpush.bf16.msra.mxu0 %v11759
    %12491 = vmatpush.bf16.msra.mxu0 %v11755
    %12492 = vmatpush.bf16.msra.mxu0 %v11751
    %12493 = vmatpush.bf16.msra.mxu0 %v11747
    %12494 = vmatpush.bf16.msra.mxu0 %v11743
    %12495 = vmatpush.bf16.msra.mxu0 %v11739
    %12496 = vmatpush.bf16.msra.mxu0 %v11735
    %12497 = vmatmul.bf16.gmra.mxu0 %v9206
    %v12498 = vpop.f32.mrf.mxu0
    %v12499 = vadd.f32 %v12485, %v12498
    %v12500 = vpop.f32.mrf.mxu0
    %v12501 = vadd.f32 %v12487, %v12500
    %12502 = vdwg.mxu0
    %12503 = vmatpush.bf16.msra.mxu0 %v11284
    %12504 = vmatpush.bf16.msra.mxu0 %v11280
    %12505 = vmatpush.bf16.msra.mxu0 %v11276
    %12506 = vmatpush.bf16.msra.mxu0 %v11272
    %12507 = vmatpush.bf16.msra.mxu0 %v11268
    %12508 = vmatpush.bf16.msra.mxu0 %v11264
    %12509 = vmatpush.bf16.msra.mxu0 %v11260
    %12510 = vmatpush.bf16.msra.mxu0 %v11256
    %12511 = vmatmul.bf16.gmra.mxu0 %v9191
    %v12512 = vpop.f32.mrf.mxu0
    %v12513 = vadd.f32 %v5180, %v12512
    %v12514 = vpop.f32.mrf.mxu0
    %v12515 = vadd.f32 %v5184, %v12514
    %12516 = vdwg.mxu0
    %12517 = vmatpush.bf16.msra.mxu0 %v11316
    %12518 = vmatpush.bf16.msra.mxu0 %v11312
    %12519 = vmatpush.bf16.msra.mxu0 %v11308
    %12520 = vmatpush.bf16.msra.mxu0 %v11304
    %12521 = vmatpush.bf16.msra.mxu0 %v11300
    %12522 = vmatpush.bf16.msra.mxu0 %v11296
    %12523 = vmatpush.bf16.msra.mxu0 %v11292
    %12524 = vmatpush.bf16.msra.mxu0 %v11288
    %12525 = vmatmul.bf16.gmra.mxu0 %v9192
    %v12526 = vpop.f32.mrf.mxu0
    %v12527 = vadd.f32 %v12513, %v12526
    %v12528 = vpop.f32.mrf.mxu0
    %v12529 = vadd.f32 %v12515, %v12528
    %12530 = vdwg.mxu0
    %12531 = vmatpush.bf16.msra.mxu0 %v11348
    %12532 = vmatpush.bf16.msra.mxu0 %v11344
    %12533 = vmatpush.bf16.msra.mxu0 %v11340
    %12534 = vmatpush.bf16.msra.mxu0 %v11336
    %12535 = vmatpush.bf16.msra.mxu0 %v11332
    %12536 = vmatpush.bf16.msra.mxu0 %v11328
    %12537 = vmatpush.bf16.msra.mxu0 %v11324
    %12538 = vmatpush.bf16.msra.mxu0 %v11320
    %12539 = vmatmul.bf16.gmra.mxu0 %v9193
    %v12540 = vpop.f32.mrf.mxu0
    %v12541 = vadd.f32 %v12527, %v12540
    %v12542 = vpop.f32.mrf.mxu0
    %v12543 = vadd.f32 %v12529, %v12542
    %12544 = vdwg.mxu0
    %12545 = vmatpush.bf16.msra.mxu0 %v11380
    %12546 = vmatpush.bf16.msra.mxu0 %v11376
    %12547 = vmatpush.bf16.msra.mxu0 %v11372
    %12548 = vmatpush.bf16.msra.mxu0 %v11368
    %12549 = vmatpush.bf16.msra.mxu0 %v11364
    %12550 = vmatpush.bf16.msra.mxu0 %v11360
    %12551 = vmatpush.bf16.msra.mxu0 %v11356
    %12552 = vmatpush.bf16.msra.mxu0 %v11352
    %12553 = vmatmul.bf16.gmra.mxu0 %v9194
    %v12554 = vpop.f32.mrf.mxu0
    %v12555 = vadd.f32 %v12541, %v12554
    %v12556 = vpop.f32.mrf.mxu0
    %v12557 = vadd.f32 %v12543, %v12556
    %12558 = vdwg.mxu0
    %12559 = vmatpush.bf16.msra.mxu0 %v11412
    %12560 = vmatpush.bf16.msra.mxu0 %v11408
    %12561 = vmatpush.bf16.msra.mxu0 %v11404
    %12562 = vmatpush.bf16.msra.mxu0 %v11400
    %12563 = vmatpush.bf16.msra.mxu0 %v11396
    %12564 = vmatpush.bf16.msra.mxu0 %v11392
    %12565 = vmatpush.bf16.msra.mxu0 %v11388
    %12566 = vmatpush.bf16.msra.mxu0 %v11384
    %12567 = vmatmul.bf16.gmra.mxu0 %v9195
    %v12568 = vpop.f32.mrf.mxu0
    %v12569 = vadd.f32 %v12555, %v12568
    %v12570 = vpop.f32.mrf.mxu0
    %v12571 = vadd.f32 %v12557, %v12570
    %12572 = vdwg.mxu0
    %12573 = vmatpush.bf16.msra.mxu0 %v11444
    %12574 = vmatpush.bf16.msra.mxu0 %v11440
    %12575 = vmatpush.bf16.msra.mxu0 %v11436
    %12576 = vmatpush.bf16.msra.mxu0 %v11432
    %12577 = vmatpush.bf16.msra.mxu0 %v11428
    %12578 = vmatpush.bf16.msra.mxu0 %v11424
    %12579 = vmatpush.bf16.msra.mxu0 %v11420
    %12580 = vmatpush.bf16.msra.mxu0 %v11416
    %12581 = vmatmul.bf16.gmra.mxu0 %v9196
    %v12582 = vpop.f32.mrf.mxu0
    %v12583 = vadd.f32 %v12569, %v12582
    %v12584 = vpop.f32.mrf.mxu0
    %v12585 = vadd.f32 %v12571, %v12584
    %12586 = vdwg.mxu0
    %12587 = vmatpush.bf16.msra.mxu0 %v11476
    %12588 = vmatpush.bf16.msra.mxu0 %v11472
    %12589 = vmatpush.bf16.msra.mxu0 %v11468
    %12590 = vmatpush.bf16.msra.mxu0 %v11464
    %12591 = vmatpush.bf16.msra.mxu0 %v11460
    %12592 = vmatpush.bf16.msra.mxu0 %v11456
    %12593 = vmatpush.bf16.msra.mxu0 %v11452
    %12594 = vmatpush.bf16.msra.mxu0 %v11448
    %12595 = vmatmul.bf16.gmra.mxu0 %v9197
    %v12596 = vpop.f32.mrf.mxu0
    %v12597 = vadd.f32 %v12583, %v12596
    %v12598 = vpop.f32.mrf.mxu0
    %v12599 = vadd.f32 %v12585, %v12598
    %12600 = vdwg.mxu0
    %12601 = vmatpush.bf16.msra.mxu0 %v11508
    %12602 = vmatpush.bf16.msra.mxu0 %v11504
    %12603 = vmatpush.bf16.msra.mxu0 %v11500
    %12604 = vmatpush.bf16.msra.mxu0 %v11496
    %12605 = vmatpush.bf16.msra.mxu0 %v11492
    %12606 = vmatpush.bf16.msra.mxu0 %v11488
    %12607 = vmatpush.bf16.msra.mxu0 %v11484
    %12608 = vmatpush.bf16.msra.mxu0 %v11480
    %12609 = vmatmul.bf16.gmra.mxu0 %v9198
    %v12610 = vpop.f32.mrf.mxu0
    %v12611 = vadd.f32 %v12597, %v12610
    %v12612 = vpop.f32.mrf.mxu0
    %v12613 = vadd.f32 %v12599, %v12612
    %12614 = vdwg.mxu0
    %12615 = vmatpush.bf16.msra.mxu0 %v11540
    %12616 = vmatpush.bf16.msra.mxu0 %v11536
    %12617 = vmatpush.bf16.msra.mxu0 %v11532
    %12618 = vmatpush.bf16.msra.mxu0 %v11528
    %12619 = vmatpush.bf16.msra.mxu0 %v11524
    %12620 = vmatpush.bf16.msra.mxu0 %v11520
    %12621 = vmatpush.bf16.msra.mxu0 %v11516
    %12622 = vmatpush.bf16.msra.mxu0 %v11512
    %12623 = vmatmul.bf16.gmra.mxu0 %v9199
    %v12624 = vpop.f32.mrf.mxu0
    %v12625 = vadd.f32 %v12611, %v12624
    %v12626 = vpop.f32.mrf.mxu0
    %v12627 = vadd.f32 %v12613, %v12626
    %12628 = vdwg.mxu0
    %12629 = vmatpush.bf16.msra.mxu0 %v11572
    %12630 = vmatpush.bf16.msra.mxu0 %v11568
    %12631 = vmatpush.bf16.msra.mxu0 %v11564
    %12632 = vmatpush.bf16.msra.mxu0 %v11560
    %12633 = vmatpush.bf16.msra.mxu0 %v11556
    %12634 = vmatpush.bf16.msra.mxu0 %v11552
    %12635 = vmatpush.bf16.msra.mxu0 %v11548
    %12636 = vmatpush.bf16.msra.mxu0 %v11544
    %12637 = vmatmul.bf16.gmra.mxu0 %v9200
    %v12638 = vpop.f32.mrf.mxu0
    %v12639 = vadd.f32 %v12625, %v12638
    %v12640 = vpop.f32.mrf.mxu0
    %v12641 = vadd.f32 %v12627, %v12640
    %12642 = vdwg.mxu0
    %12643 = vmatpush.bf16.msra.mxu0 %v11604
    %12644 = vmatpush.bf16.msra.mxu0 %v11600
    %12645 = vmatpush.bf16.msra.mxu0 %v11596
    %12646 = vmatpush.bf16.msra.mxu0 %v11592
    %12647 = vmatpush.bf16.msra.mxu0 %v11588
    %12648 = vmatpush.bf16.msra.mxu0 %v11584
    %12649 = vmatpush.bf16.msra.mxu0 %v11580
    %12650 = vmatpush.bf16.msra.mxu0 %v11576
    %12651 = vmatmul.bf16.gmra.mxu0 %v9201
    %v12652 = vpop.f32.mrf.mxu0
    %v12653 = vadd.f32 %v12639, %v12652
    %v12654 = vpop.f32.mrf.mxu0
    %v12655 = vadd.f32 %v12641, %v12654
    %12656 = vdwg.mxu0
    %12657 = vmatpush.bf16.msra.mxu0 %v11636
    %12658 = vmatpush.bf16.msra.mxu0 %v11632
    %12659 = vmatpush.bf16.msra.mxu0 %v11628
    %12660 = vmatpush.bf16.msra.mxu0 %v11624
    %12661 = vmatpush.bf16.msra.mxu0 %v11620
    %12662 = vmatpush.bf16.msra.mxu0 %v11616
    %12663 = vmatpush.bf16.msra.mxu0 %v11612
    %12664 = vmatpush.bf16.msra.mxu0 %v11608
    %12665 = vmatmul.bf16.gmra.mxu0 %v9202
    %v12666 = vpop.f32.mrf.mxu0
    %v12667 = vadd.f32 %v12653, %v12666
    %v12668 = vpop.f32.mrf.mxu0
    %v12669 = vadd.f32 %v12655, %v12668
    %12670 = vdwg.mxu0
    %12671 = vmatpush.bf16.msra.mxu0 %v11668
    %12672 = vmatpush.bf16.msra.mxu0 %v11664
    %12673 = vmatpush.bf16.msra.mxu0 %v11660
    %12674 = vmatpush.bf16.msra.mxu0 %v11656
    %12675 = vmatpush.bf16.msra.mxu0 %v11652
    %12676 = vmatpush.bf16.msra.mxu0 %v11648
    %12677 = vmatpush.bf16.msra.mxu0 %v11644
    %12678 = vmatpush.bf16.msra.mxu0 %v11640
    %12679 = vmatmul.bf16.gmra.mxu0 %v9203
    %v12680 = vpop.f32.mrf.mxu0
    %v12681 = vadd.f32 %v12667, %v12680
    %v12682 = vpop.f32.mrf.mxu0
    %v12683 = vadd.f32 %v12669, %v12682
    %12684 = vdwg.mxu0
    %12685 = vmatpush.bf16.msra.mxu0 %v11700
    %12686 = vmatpush.bf16.msra.mxu0 %v11696
    %12687 = vmatpush.bf16.msra.mxu0 %v11692
    %12688 = vmatpush.bf16.msra.mxu0 %v11688
    %12689 = vmatpush.bf16.msra.mxu0 %v11684
    %12690 = vmatpush.bf16.msra.mxu0 %v11680
    %12691 = vmatpush.bf16.msra.mxu0 %v11676
    %12692 = vmatpush.bf16.msra.mxu0 %v11672
    %12693 = vmatmul.bf16.gmra.mxu0 %v9204
    %v12694 = vpop.f32.mrf.mxu0
    %v12695 = vadd.f32 %v12681, %v12694
    %v12696 = vpop.f32.mrf.mxu0
    %v12697 = vadd.f32 %v12683, %v12696
    %12698 = vdwg.mxu0
    %12699 = vmatpush.bf16.msra.mxu0 %v11732
    %12700 = vmatpush.bf16.msra.mxu0 %v11728
    %12701 = vmatpush.bf16.msra.mxu0 %v11724
    %12702 = vmatpush.bf16.msra.mxu0 %v11720
    %12703 = vmatpush.bf16.msra.mxu0 %v11716
    %12704 = vmatpush.bf16.msra.mxu0 %v11712
    %12705 = vmatpush.bf16.msra.mxu0 %v11708
    %12706 = vmatpush.bf16.msra.mxu0 %v11704
    %12707 = vmatmul.bf16.gmra.mxu0 %v9205
    %v12708 = vpop.f32.mrf.mxu0
    %v12709 = vadd.f32 %v12695, %v12708
    %v12710 = vpop.f32.mrf.mxu0
    %v12711 = vadd.f32 %v12697, %v12710
    %12712 = vdwg.mxu0
    %12713 = vmatpush.bf16.msra.mxu0 %v11764
    %12714 = vmatpush.bf16.msra.mxu0 %v11760
    %12715 = vmatpush.bf16.msra.mxu0 %v11756
    %12716 = vmatpush.bf16.msra.mxu0 %v11752
    %12717 = vmatpush.bf16.msra.mxu0 %v11748
    %12718 = vmatpush.bf16.msra.mxu0 %v11744
    %12719 = vmatpush.bf16.msra.mxu0 %v11740
    %12720 = vmatpush.bf16.msra.mxu0 %v11736
    %12721 = vmatmul.bf16.gmra.mxu0 %v9206
    %v12722 = vpop.f32.mrf.mxu0
    %v12723 = vadd.f32 %v12709, %v12722
    %v12724 = vpop.f32.mrf.mxu0
    %v12725 = vadd.f32 %v12711, %v12724
    %12726 = vdwg.mxu0
    %12727 = vmatpush.bf16.msra.mxu0 %v11285
    %12728 = vmatpush.bf16.msra.mxu0 %v11281
    %12729 = vmatpush.bf16.msra.mxu0 %v11277
    %12730 = vmatpush.bf16.msra.mxu0 %v11273
    %12731 = vmatpush.bf16.msra.mxu0 %v11269
    %12732 = vmatpush.bf16.msra.mxu0 %v11265
    %12733 = vmatpush.bf16.msra.mxu0 %v11261
    %12734 = vmatpush.bf16.msra.mxu0 %v11257
    %12735 = vmatmul.bf16.gmra.mxu0 %v9191
    %v12736 = vpop.f32.mrf.mxu0
    %v12737 = vadd.f32 %v5181, %v12736
    %v12738 = vpop.f32.mrf.mxu0
    %v12739 = vadd.f32 %v5185, %v12738
    %12740 = vdwg.mxu0
    %12741 = vmatpush.bf16.msra.mxu0 %v11317
    %12742 = vmatpush.bf16.msra.mxu0 %v11313
    %12743 = vmatpush.bf16.msra.mxu0 %v11309
    %12744 = vmatpush.bf16.msra.mxu0 %v11305
    %12745 = vmatpush.bf16.msra.mxu0 %v11301
    %12746 = vmatpush.bf16.msra.mxu0 %v11297
    %12747 = vmatpush.bf16.msra.mxu0 %v11293
    %12748 = vmatpush.bf16.msra.mxu0 %v11289
    %12749 = vmatmul.bf16.gmra.mxu0 %v9192
    %v12750 = vpop.f32.mrf.mxu0
    %v12751 = vadd.f32 %v12737, %v12750
    %v12752 = vpop.f32.mrf.mxu0
    %v12753 = vadd.f32 %v12739, %v12752
    %12754 = vdwg.mxu0
    %12755 = vmatpush.bf16.msra.mxu0 %v11349
    %12756 = vmatpush.bf16.msra.mxu0 %v11345
    %12757 = vmatpush.bf16.msra.mxu0 %v11341
    %12758 = vmatpush.bf16.msra.mxu0 %v11337
    %12759 = vmatpush.bf16.msra.mxu0 %v11333
    %12760 = vmatpush.bf16.msra.mxu0 %v11329
    %12761 = vmatpush.bf16.msra.mxu0 %v11325
    %12762 = vmatpush.bf16.msra.mxu0 %v11321
    %12763 = vmatmul.bf16.gmra.mxu0 %v9193
    %v12764 = vpop.f32.mrf.mxu0
    %v12765 = vadd.f32 %v12751, %v12764
    %v12766 = vpop.f32.mrf.mxu0
    %v12767 = vadd.f32 %v12753, %v12766
    %12768 = vdwg.mxu0
    %12769 = vmatpush.bf16.msra.mxu0 %v11381
    %12770 = vmatpush.bf16.msra.mxu0 %v11377
    %12771 = vmatpush.bf16.msra.mxu0 %v11373
    %12772 = vmatpush.bf16.msra.mxu0 %v11369
    %12773 = vmatpush.bf16.msra.mxu0 %v11365
    %12774 = vmatpush.bf16.msra.mxu0 %v11361
    %12775 = vmatpush.bf16.msra.mxu0 %v11357
    %12776 = vmatpush.bf16.msra.mxu0 %v11353
    %12777 = vmatmul.bf16.gmra.mxu0 %v9194
    %v12778 = vpop.f32.mrf.mxu0
    %v12779 = vadd.f32 %v12765, %v12778
    %v12780 = vpop.f32.mrf.mxu0
    %v12781 = vadd.f32 %v12767, %v12780
    %12782 = vdwg.mxu0
    %12783 = vmatpush.bf16.msra.mxu0 %v11413
    %12784 = vmatpush.bf16.msra.mxu0 %v11409
    %12785 = vmatpush.bf16.msra.mxu0 %v11405
    %12786 = vmatpush.bf16.msra.mxu0 %v11401
    %12787 = vmatpush.bf16.msra.mxu0 %v11397
    %12788 = vmatpush.bf16.msra.mxu0 %v11393
    %12789 = vmatpush.bf16.msra.mxu0 %v11389
    %12790 = vmatpush.bf16.msra.mxu0 %v11385
    %12791 = vmatmul.bf16.gmra.mxu0 %v9195
    %v12792 = vpop.f32.mrf.mxu0
    %v12793 = vadd.f32 %v12779, %v12792
    %v12794 = vpop.f32.mrf.mxu0
    %v12795 = vadd.f32 %v12781, %v12794
    %12796 = vdwg.mxu0
    %12797 = vmatpush.bf16.msra.mxu0 %v11445
    %12798 = vmatpush.bf16.msra.mxu0 %v11441
    %12799 = vmatpush.bf16.msra.mxu0 %v11437
    %12800 = vmatpush.bf16.msra.mxu0 %v11433
    %12801 = vmatpush.bf16.msra.mxu0 %v11429
    %12802 = vmatpush.bf16.msra.mxu0 %v11425
    %12803 = vmatpush.bf16.msra.mxu0 %v11421
    %12804 = vmatpush.bf16.msra.mxu0 %v11417
    %12805 = vmatmul.bf16.gmra.mxu0 %v9196
    %v12806 = vpop.f32.mrf.mxu0
    %v12807 = vadd.f32 %v12793, %v12806
    %v12808 = vpop.f32.mrf.mxu0
    %v12809 = vadd.f32 %v12795, %v12808
    %12810 = vdwg.mxu0
    %12811 = vmatpush.bf16.msra.mxu0 %v11477
    %12812 = vmatpush.bf16.msra.mxu0 %v11473
    %12813 = vmatpush.bf16.msra.mxu0 %v11469
    %12814 = vmatpush.bf16.msra.mxu0 %v11465
    %12815 = vmatpush.bf16.msra.mxu0 %v11461
    %12816 = vmatpush.bf16.msra.mxu0 %v11457
    %12817 = vmatpush.bf16.msra.mxu0 %v11453
    %12818 = vmatpush.bf16.msra.mxu0 %v11449
    %12819 = vmatmul.bf16.gmra.mxu0 %v9197
    %v12820 = vpop.f32.mrf.mxu0
    %v12821 = vadd.f32 %v12807, %v12820
    %v12822 = vpop.f32.mrf.mxu0
    %v12823 = vadd.f32 %v12809, %v12822
    %12824 = vdwg.mxu0
    %12825 = vmatpush.bf16.msra.mxu0 %v11509
    %12826 = vmatpush.bf16.msra.mxu0 %v11505
    %12827 = vmatpush.bf16.msra.mxu0 %v11501
    %12828 = vmatpush.bf16.msra.mxu0 %v11497
    %12829 = vmatpush.bf16.msra.mxu0 %v11493
    %12830 = vmatpush.bf16.msra.mxu0 %v11489
    %12831 = vmatpush.bf16.msra.mxu0 %v11485
    %12832 = vmatpush.bf16.msra.mxu0 %v11481
    %12833 = vmatmul.bf16.gmra.mxu0 %v9198
    %v12834 = vpop.f32.mrf.mxu0
    %v12835 = vadd.f32 %v12821, %v12834
    %v12836 = vpop.f32.mrf.mxu0
    %v12837 = vadd.f32 %v12823, %v12836
    %12838 = vdwg.mxu0
    %12839 = vmatpush.bf16.msra.mxu0 %v11541
    %12840 = vmatpush.bf16.msra.mxu0 %v11537
    %12841 = vmatpush.bf16.msra.mxu0 %v11533
    %12842 = vmatpush.bf16.msra.mxu0 %v11529
    %12843 = vmatpush.bf16.msra.mxu0 %v11525
    %12844 = vmatpush.bf16.msra.mxu0 %v11521
    %12845 = vmatpush.bf16.msra.mxu0 %v11517
    %12846 = vmatpush.bf16.msra.mxu0 %v11513
    %12847 = vmatmul.bf16.gmra.mxu0 %v9199
    %v12848 = vpop.f32.mrf.mxu0
    %v12849 = vadd.f32 %v12835, %v12848
    %v12850 = vpop.f32.mrf.mxu0
    %v12851 = vadd.f32 %v12837, %v12850
    %12852 = vdwg.mxu0
    %12853 = vmatpush.bf16.msra.mxu0 %v11573
    %12854 = vmatpush.bf16.msra.mxu0 %v11569
    %12855 = vmatpush.bf16.msra.mxu0 %v11565
    %12856 = vmatpush.bf16.msra.mxu0 %v11561
    %12857 = vmatpush.bf16.msra.mxu0 %v11557
    %12858 = vmatpush.bf16.msra.mxu0 %v11553
    %12859 = vmatpush.bf16.msra.mxu0 %v11549
    %12860 = vmatpush.bf16.msra.mxu0 %v11545
    %12861 = vmatmul.bf16.gmra.mxu0 %v9200
    %v12862 = vpop.f32.mrf.mxu0
    %v12863 = vadd.f32 %v12849, %v12862
    %v12864 = vpop.f32.mrf.mxu0
    %v12865 = vadd.f32 %v12851, %v12864
    %12866 = vdwg.mxu0
    %12867 = vmatpush.bf16.msra.mxu0 %v11605
    %12868 = vmatpush.bf16.msra.mxu0 %v11601
    %12869 = vmatpush.bf16.msra.mxu0 %v11597
    %12870 = vmatpush.bf16.msra.mxu0 %v11593
    %12871 = vmatpush.bf16.msra.mxu0 %v11589
    %12872 = vmatpush.bf16.msra.mxu0 %v11585
    %12873 = vmatpush.bf16.msra.mxu0 %v11581
    %12874 = vmatpush.bf16.msra.mxu0 %v11577
    %12875 = vmatmul.bf16.gmra.mxu0 %v9201
    %v12876 = vpop.f32.mrf.mxu0
    %v12877 = vadd.f32 %v12863, %v12876
    %v12878 = vpop.f32.mrf.mxu0
    %v12879 = vadd.f32 %v12865, %v12878
    %12880 = vdwg.mxu0
    %12881 = vmatpush.bf16.msra.mxu0 %v11637
    %12882 = vmatpush.bf16.msra.mxu0 %v11633
    %12883 = vmatpush.bf16.msra.mxu0 %v11629
    %12884 = vmatpush.bf16.msra.mxu0 %v11625
    %12885 = vmatpush.bf16.msra.mxu0 %v11621
    %12886 = vmatpush.bf16.msra.mxu0 %v11617
    %12887 = vmatpush.bf16.msra.mxu0 %v11613
    %12888 = vmatpush.bf16.msra.mxu0 %v11609
    %12889 = vmatmul.bf16.gmra.mxu0 %v9202
    %v12890 = vpop.f32.mrf.mxu0
    %v12891 = vadd.f32 %v12877, %v12890
    %v12892 = vpop.f32.mrf.mxu0
    %v12893 = vadd.f32 %v12879, %v12892
    %12894 = vdwg.mxu0
    %12895 = vmatpush.bf16.msra.mxu0 %v11669
    %12896 = vmatpush.bf16.msra.mxu0 %v11665
    %12897 = vmatpush.bf16.msra.mxu0 %v11661
    %12898 = vmatpush.bf16.msra.mxu0 %v11657
    %12899 = vmatpush.bf16.msra.mxu0 %v11653
    %12900 = vmatpush.bf16.msra.mxu0 %v11649
    %12901 = vmatpush.bf16.msra.mxu0 %v11645
    %12902 = vmatpush.bf16.msra.mxu0 %v11641
    %12903 = vmatmul.bf16.gmra.mxu0 %v9203
    %v12904 = vpop.f32.mrf.mxu0
    %v12905 = vadd.f32 %v12891, %v12904
    %v12906 = vpop.f32.mrf.mxu0
    %v12907 = vadd.f32 %v12893, %v12906
    %12908 = vdwg.mxu0
    %12909 = vmatpush.bf16.msra.mxu0 %v11701
    %12910 = vmatpush.bf16.msra.mxu0 %v11697
    %12911 = vmatpush.bf16.msra.mxu0 %v11693
    %12912 = vmatpush.bf16.msra.mxu0 %v11689
    %12913 = vmatpush.bf16.msra.mxu0 %v11685
    %12914 = vmatpush.bf16.msra.mxu0 %v11681
    %12915 = vmatpush.bf16.msra.mxu0 %v11677
    %12916 = vmatpush.bf16.msra.mxu0 %v11673
    %12917 = vmatmul.bf16.gmra.mxu0 %v9204
    %v12918 = vpop.f32.mrf.mxu0
    %v12919 = vadd.f32 %v12905, %v12918
    %v12920 = vpop.f32.mrf.mxu0
    %v12921 = vadd.f32 %v12907, %v12920
    %12922 = vdwg.mxu0
    %12923 = vmatpush.bf16.msra.mxu0 %v11733
    %12924 = vmatpush.bf16.msra.mxu0 %v11729
    %12925 = vmatpush.bf16.msra.mxu0 %v11725
    %12926 = vmatpush.bf16.msra.mxu0 %v11721
    %12927 = vmatpush.bf16.msra.mxu0 %v11717
    %12928 = vmatpush.bf16.msra.mxu0 %v11713
    %12929 = vmatpush.bf16.msra.mxu0 %v11709
    %12930 = vmatpush.bf16.msra.mxu0 %v11705
    %12931 = vmatmul.bf16.gmra.mxu0 %v9205
    %v12932 = vpop.f32.mrf.mxu0
    %v12933 = vadd.f32 %v12919, %v12932
    %v12934 = vpop.f32.mrf.mxu0
    %v12935 = vadd.f32 %v12921, %v12934
    %12936 = vdwg.mxu0
    %12937 = vmatpush.bf16.msra.mxu0 %v11765
    %12938 = vmatpush.bf16.msra.mxu0 %v11761
    %12939 = vmatpush.bf16.msra.mxu0 %v11757
    %12940 = vmatpush.bf16.msra.mxu0 %v11753
    %12941 = vmatpush.bf16.msra.mxu0 %v11749
    %12942 = vmatpush.bf16.msra.mxu0 %v11745
    %12943 = vmatpush.bf16.msra.mxu0 %v11741
    %12944 = vmatpush.bf16.msra.mxu0 %v11737
    %12945 = vmatmul.bf16.gmra.mxu0 %v9206
    %v12946 = vpop.f32.mrf.mxu0
    %v12947 = vadd.f32 %v12933, %v12946
    %v12948 = vpop.f32.mrf.mxu0
    %v12949 = vadd.f32 %v12935, %v12948
    %12950 = vdwg.mxu0
    %12951 = vmatpush.bf16.msra.mxu0 %v11286
    %12952 = vmatpush.bf16.msra.mxu0 %v11282
    %12953 = vmatpush.bf16.msra.mxu0 %v11278
    %12954 = vmatpush.bf16.msra.mxu0 %v11274
    %12955 = vmatpush.bf16.msra.mxu0 %v11270
    %12956 = vmatpush.bf16.msra.mxu0 %v11266
    %12957 = vmatpush.bf16.msra.mxu0 %v11262
    %12958 = vmatpush.bf16.msra.mxu0 %v11258
    %12959 = vmatmul.bf16.gmra.mxu0 %v9191
    %v12960 = vpop.f32.mrf.mxu0
    %v12961 = vadd.f32 %v5182, %v12960
    %v12962 = vpop.f32.mrf.mxu0
    %v12963 = vadd.f32 %v5186, %v12962
    %12964 = vdwg.mxu0
    %12965 = vmatpush.bf16.msra.mxu0 %v11318
    %12966 = vmatpush.bf16.msra.mxu0 %v11314
    %12967 = vmatpush.bf16.msra.mxu0 %v11310
    %12968 = vmatpush.bf16.msra.mxu0 %v11306
    %12969 = vmatpush.bf16.msra.mxu0 %v11302
    %12970 = vmatpush.bf16.msra.mxu0 %v11298
    %12971 = vmatpush.bf16.msra.mxu0 %v11294
    %12972 = vmatpush.bf16.msra.mxu0 %v11290
    %12973 = vmatmul.bf16.gmra.mxu0 %v9192
    %v12974 = vpop.f32.mrf.mxu0
    %v12975 = vadd.f32 %v12961, %v12974
    %v12976 = vpop.f32.mrf.mxu0
    %v12977 = vadd.f32 %v12963, %v12976
    %12978 = vdwg.mxu0
    %12979 = vmatpush.bf16.msra.mxu0 %v11350
    %12980 = vmatpush.bf16.msra.mxu0 %v11346
    %12981 = vmatpush.bf16.msra.mxu0 %v11342
    %12982 = vmatpush.bf16.msra.mxu0 %v11338
    %12983 = vmatpush.bf16.msra.mxu0 %v11334
    %12984 = vmatpush.bf16.msra.mxu0 %v11330
    %12985 = vmatpush.bf16.msra.mxu0 %v11326
    %12986 = vmatpush.bf16.msra.mxu0 %v11322
    %12987 = vmatmul.bf16.gmra.mxu0 %v9193
    %v12988 = vpop.f32.mrf.mxu0
    %v12989 = vadd.f32 %v12975, %v12988
    %v12990 = vpop.f32.mrf.mxu0
    %v12991 = vadd.f32 %v12977, %v12990
    %12992 = vdwg.mxu0
    %12993 = vmatpush.bf16.msra.mxu0 %v11382
    %12994 = vmatpush.bf16.msra.mxu0 %v11378
    %12995 = vmatpush.bf16.msra.mxu0 %v11374
    %12996 = vmatpush.bf16.msra.mxu0 %v11370
    %12997 = vmatpush.bf16.msra.mxu0 %v11366
    %12998 = vmatpush.bf16.msra.mxu0 %v11362
    %12999 = vmatpush.bf16.msra.mxu0 %v11358
    %13000 = vmatpush.bf16.msra.mxu0 %v11354
    %13001 = vmatmul.bf16.gmra.mxu0 %v9194
    %v13002 = vpop.f32.mrf.mxu0
    %v13003 = vadd.f32 %v12989, %v13002
    %v13004 = vpop.f32.mrf.mxu0
    %v13005 = vadd.f32 %v12991, %v13004
    %13006 = vdwg.mxu0
    %13007 = vmatpush.bf16.msra.mxu0 %v11414
    %13008 = vmatpush.bf16.msra.mxu0 %v11410
    %13009 = vmatpush.bf16.msra.mxu0 %v11406
    %13010 = vmatpush.bf16.msra.mxu0 %v11402
    %13011 = vmatpush.bf16.msra.mxu0 %v11398
    %13012 = vmatpush.bf16.msra.mxu0 %v11394
    %13013 = vmatpush.bf16.msra.mxu0 %v11390
    %13014 = vmatpush.bf16.msra.mxu0 %v11386
    %13015 = vmatmul.bf16.gmra.mxu0 %v9195
    %v13016 = vpop.f32.mrf.mxu0
    %v13017 = vadd.f32 %v13003, %v13016
    %v13018 = vpop.f32.mrf.mxu0
    %v13019 = vadd.f32 %v13005, %v13018
    %13020 = vdwg.mxu0
    %13021 = vmatpush.bf16.msra.mxu0 %v11446
    %13022 = vmatpush.bf16.msra.mxu0 %v11442
    %13023 = vmatpush.bf16.msra.mxu0 %v11438
    %13024 = vmatpush.bf16.msra.mxu0 %v11434
    %13025 = vmatpush.bf16.msra.mxu0 %v11430
    %13026 = vmatpush.bf16.msra.mxu0 %v11426
    %13027 = vmatpush.bf16.msra.mxu0 %v11422
    %13028 = vmatpush.bf16.msra.mxu0 %v11418
    %13029 = vmatmul.bf16.gmra.mxu0 %v9196
    %v13030 = vpop.f32.mrf.mxu0
    %v13031 = vadd.f32 %v13017, %v13030
    %v13032 = vpop.f32.mrf.mxu0
    %v13033 = vadd.f32 %v13019, %v13032
    %13034 = vdwg.mxu0
    %13035 = vmatpush.bf16.msra.mxu0 %v11478
    %13036 = vmatpush.bf16.msra.mxu0 %v11474
    %13037 = vmatpush.bf16.msra.mxu0 %v11470
    %13038 = vmatpush.bf16.msra.mxu0 %v11466
    %13039 = vmatpush.bf16.msra.mxu0 %v11462
    %13040 = vmatpush.bf16.msra.mxu0 %v11458
    %13041 = vmatpush.bf16.msra.mxu0 %v11454
    %13042 = vmatpush.bf16.msra.mxu0 %v11450
    %13043 = vmatmul.bf16.gmra.mxu0 %v9197
    %v13044 = vpop.f32.mrf.mxu0
    %v13045 = vadd.f32 %v13031, %v13044
    %v13046 = vpop.f32.mrf.mxu0
    %v13047 = vadd.f32 %v13033, %v13046
    %13048 = vdwg.mxu0
    %13049 = vmatpush.bf16.msra.mxu0 %v11510
    %13050 = vmatpush.bf16.msra.mxu0 %v11506
    %13051 = vmatpush.bf16.msra.mxu0 %v11502
    %13052 = vmatpush.bf16.msra.mxu0 %v11498
    %13053 = vmatpush.bf16.msra.mxu0 %v11494
    %13054 = vmatpush.bf16.msra.mxu0 %v11490
    %13055 = vmatpush.bf16.msra.mxu0 %v11486
    %13056 = vmatpush.bf16.msra.mxu0 %v11482
    %13057 = vmatmul.bf16.gmra.mxu0 %v9198
    %v13058 = vpop.f32.mrf.mxu0
    %v13059 = vadd.f32 %v13045, %v13058
    %v13060 = vpop.f32.mrf.mxu0
    %v13061 = vadd.f32 %v13047, %v13060
    %13062 = vdwg.mxu0
    %13063 = vmatpush.bf16.msra.mxu0 %v11542
    %13064 = vmatpush.bf16.msra.mxu0 %v11538
    %13065 = vmatpush.bf16.msra.mxu0 %v11534
    %13066 = vmatpush.bf16.msra.mxu0 %v11530
    %13067 = vmatpush.bf16.msra.mxu0 %v11526
    %13068 = vmatpush.bf16.msra.mxu0 %v11522
    %13069 = vmatpush.bf16.msra.mxu0 %v11518
    %13070 = vmatpush.bf16.msra.mxu0 %v11514
    %13071 = vmatmul.bf16.gmra.mxu0 %v9199
    %v13072 = vpop.f32.mrf.mxu0
    %v13073 = vadd.f32 %v13059, %v13072
    %v13074 = vpop.f32.mrf.mxu0
    %v13075 = vadd.f32 %v13061, %v13074
    %13076 = vdwg.mxu0
    %13077 = vmatpush.bf16.msra.mxu0 %v11574
    %13078 = vmatpush.bf16.msra.mxu0 %v11570
    %13079 = vmatpush.bf16.msra.mxu0 %v11566
    %13080 = vmatpush.bf16.msra.mxu0 %v11562
    %13081 = vmatpush.bf16.msra.mxu0 %v11558
    %13082 = vmatpush.bf16.msra.mxu0 %v11554
    %13083 = vmatpush.bf16.msra.mxu0 %v11550
    %13084 = vmatpush.bf16.msra.mxu0 %v11546
    %13085 = vmatmul.bf16.gmra.mxu0 %v9200
    %v13086 = vpop.f32.mrf.mxu0
    %v13087 = vadd.f32 %v13073, %v13086
    %v13088 = vpop.f32.mrf.mxu0
    %v13089 = vadd.f32 %v13075, %v13088
    %13090 = vdwg.mxu0
    %13091 = vmatpush.bf16.msra.mxu0 %v11606
    %13092 = vmatpush.bf16.msra.mxu0 %v11602
    %13093 = vmatpush.bf16.msra.mxu0 %v11598
    %13094 = vmatpush.bf16.msra.mxu0 %v11594
    %13095 = vmatpush.bf16.msra.mxu0 %v11590
    %13096 = vmatpush.bf16.msra.mxu0 %v11586
    %13097 = vmatpush.bf16.msra.mxu0 %v11582
    %13098 = vmatpush.bf16.msra.mxu0 %v11578
    %13099 = vmatmul.bf16.gmra.mxu0 %v9201
    %v13100 = vpop.f32.mrf.mxu0
    %v13101 = vadd.f32 %v13087, %v13100
    %v13102 = vpop.f32.mrf.mxu0
    %v13103 = vadd.f32 %v13089, %v13102
    %13104 = vdwg.mxu0
    %13105 = vmatpush.bf16.msra.mxu0 %v11638
    %13106 = vmatpush.bf16.msra.mxu0 %v11634
    %13107 = vmatpush.bf16.msra.mxu0 %v11630
    %13108 = vmatpush.bf16.msra.mxu0 %v11626
    %13109 = vmatpush.bf16.msra.mxu0 %v11622
    %13110 = vmatpush.bf16.msra.mxu0 %v11618
    %13111 = vmatpush.bf16.msra.mxu0 %v11614
    %13112 = vmatpush.bf16.msra.mxu0 %v11610
    %13113 = vmatmul.bf16.gmra.mxu0 %v9202
    %v13114 = vpop.f32.mrf.mxu0
    %v13115 = vadd.f32 %v13101, %v13114
    %v13116 = vpop.f32.mrf.mxu0
    %v13117 = vadd.f32 %v13103, %v13116
    %13118 = vdwg.mxu0
    %13119 = vmatpush.bf16.msra.mxu0 %v11670
    %13120 = vmatpush.bf16.msra.mxu0 %v11666
    %13121 = vmatpush.bf16.msra.mxu0 %v11662
    %13122 = vmatpush.bf16.msra.mxu0 %v11658
    %13123 = vmatpush.bf16.msra.mxu0 %v11654
    %13124 = vmatpush.bf16.msra.mxu0 %v11650
    %13125 = vmatpush.bf16.msra.mxu0 %v11646
    %13126 = vmatpush.bf16.msra.mxu0 %v11642
    %13127 = vmatmul.bf16.gmra.mxu0 %v9203
    %v13128 = vpop.f32.mrf.mxu0
    %v13129 = vadd.f32 %v13115, %v13128
    %v13130 = vpop.f32.mrf.mxu0
    %v13131 = vadd.f32 %v13117, %v13130
    %13132 = vdwg.mxu0
    %13133 = vmatpush.bf16.msra.mxu0 %v11702
    %13134 = vmatpush.bf16.msra.mxu0 %v11698
    %13135 = vmatpush.bf16.msra.mxu0 %v11694
    %13136 = vmatpush.bf16.msra.mxu0 %v11690
    %13137 = vmatpush.bf16.msra.mxu0 %v11686
    %13138 = vmatpush.bf16.msra.mxu0 %v11682
    %13139 = vmatpush.bf16.msra.mxu0 %v11678
    %13140 = vmatpush.bf16.msra.mxu0 %v11674
    %13141 = vmatmul.bf16.gmra.mxu0 %v9204
    %v13142 = vpop.f32.mrf.mxu0
    %v13143 = vadd.f32 %v13129, %v13142
    %v13144 = vpop.f32.mrf.mxu0
    %v13145 = vadd.f32 %v13131, %v13144
    %13146 = vdwg.mxu0
    %13147 = vmatpush.bf16.msra.mxu0 %v11734
    %13148 = vmatpush.bf16.msra.mxu0 %v11730
    %13149 = vmatpush.bf16.msra.mxu0 %v11726
    %13150 = vmatpush.bf16.msra.mxu0 %v11722
    %13151 = vmatpush.bf16.msra.mxu0 %v11718
    %13152 = vmatpush.bf16.msra.mxu0 %v11714
    %13153 = vmatpush.bf16.msra.mxu0 %v11710
    %13154 = vmatpush.bf16.msra.mxu0 %v11706
    %13155 = vmatmul.bf16.gmra.mxu0 %v9205
    %v13156 = vpop.f32.mrf.mxu0
    %v13157 = vadd.f32 %v13143, %v13156
    %v13158 = vpop.f32.mrf.mxu0
    %v13159 = vadd.f32 %v13145, %v13158
    %13160 = vdwg.mxu0
    %13161 = vmatpush.bf16.msra.mxu0 %v11766
    %13162 = vmatpush.bf16.msra.mxu0 %v11762
    %13163 = vmatpush.bf16.msra.mxu0 %v11758
    %13164 = vmatpush.bf16.msra.mxu0 %v11754
    %13165 = vmatpush.bf16.msra.mxu0 %v11750
    %13166 = vmatpush.bf16.msra.mxu0 %v11746
    %13167 = vmatpush.bf16.msra.mxu0 %v11742
    %13168 = vmatpush.bf16.msra.mxu0 %v11738
    %13169 = vmatmul.bf16.gmra.mxu0 %v9206
    %v13170 = vpop.f32.mrf.mxu0
    %v13171 = vadd.f32 %v13157, %v13170
    %v13172 = vpop.f32.mrf.mxu0
    %v13173 = vadd.f32 %v13159, %v13172
    %13174 = vdwg.mxu0
    %v13175 = vadd.f32 %v12499, %v12723
    %v13176 = vadd.f32 %v13175, %v12947
    %v13177 = vadd.f32 %v13176, %v13171
    %13178 = vadd.xlane.f32.xlu0 %v13177
    %v13179 = vpop.xlane.xlu0 %13178
    %v13180 = vadd.f32 %v12501, %v12725
    %v13181 = vadd.f32 %v13180, %v12949
    %v13182 = vadd.f32 %v13181, %v13173
    %13183 = vadd.xlane.f32.xlu0 %v13182
    %v13184 = vpop.xlane.xlu0 %13183
    %v13185 = vmul.f32 %v13179, %v5126
    %v13186 = vmul.f32 %v13184, %v5126
    %v13187 = vsub.f32 %v12499, %v13185
    %v13188 = vsub.f32 %v12723, %v13185
    %v13189 = vsub.f32 %v12947, %v13185
    %v13190 = vsub.f32 %v13171, %v13185
    %v13191 = vsub.f32 %v12501, %v13186
    %v13192 = vsub.f32 %v12725, %v13186
    %v13193 = vsub.f32 %v12949, %v13186
    %v13194 = vsub.f32 %v13173, %v13186
    %v13195 = vmul.f32 %v13187, %v13187
    %v13196 = vmul.f32 %v13188, %v13188
    %v13197 = vmul.f32 %v13189, %v13189
    %v13198 = vmul.f32 %v13190, %v13190
    %v13199 = vmul.f32 %v13191, %v13191
    %v13200 = vmul.f32 %v13192, %v13192
    %v13201 = vmul.f32 %v13193, %v13193
    %v13202 = vmul.f32 %v13194, %v13194
    %v13203 = vadd.f32 %v13195, %v13196
    %v13204 = vadd.f32 %v13203, %v13197
    %v13205 = vadd.f32 %v13204, %v13198
    %13206 = vadd.xlane.f32.xlu0 %v13205
    %v13207 = vpop.xlane.xlu0 %13206
    %v13208 = vadd.f32 %v13199, %v13200
    %v13209 = vadd.f32 %v13208, %v13201
    %v13210 = vadd.f32 %v13209, %v13202
    %13211 = vadd.xlane.f32.xlu0 %v13210
    %v13212 = vpop.xlane.xlu0 %13211
    %v13213 = vmul.f32 %v13207, %v5126
    %v13214 = vmul.f32 %v13212, %v5126
    %v13215 = vadd.f32 %v13213, 1e-05
    %v13216 = vadd.f32 %v13214, 1e-05
    %v13217 = vrsqrt.pop %v13215
    %v13218 = vmul.f32 %v13217, %v13215
    %v13219 = vmul.f32 %v13218, %v13217
    %v13220 = vmul.f32 0.5, %v13219
    %v13221 = vsub.f32 1.5, %v13220
    %v13222 = vmul.f32 %v13217, %v13221
    %vm13223 = vweird.f32 %v13215
    %vm13224 = vweird.f32 %v13217
    %vm13225 = vmor %vm13223, %vm13224
    %v13226 = vsel %vm13225, %v13217, %v13222
    %v13227 = vrsqrt.pop %v13216
    %v13228 = vmul.f32 %v13227, %v13216
    %v13229 = vmul.f32 %v13228, %v13227
    %v13230 = vmul.f32 0.5, %v13229
    %v13231 = vsub.f32 1.5, %v13230
    %v13232 = vmul.f32 %v13227, %v13231
    %vm13233 = vweird.f32 %v13216
    %vm13234 = vweird.f32 %v13227
    %vm13235 = vmor %vm13233, %vm13234
    %v13236 = vsel %vm13235, %v13227, %v13232
    %v13237 = vmul.f32 %v13187, %v13226
    %v13238 = vmul.f32 %v13188, %v13226
    %v13239 = vmul.f32 %v13189, %v13226
    %v13240 = vmul.f32 %v13190, %v13226
    %v13241 = vmul.f32 %v13191, %v13236
    %v13242 = vmul.f32 %v13192, %v13236
    %v13243 = vmul.f32 %v13193, %v13236
    %v13244 = vmul.f32 %v13194, %v13236
    %13245 = vst [vmem:[#allocation13] sm:$0xff] %v13237
    %13246 = vst [vmem:[#allocation13 + $0x8] sm:$0xff] %v13238
    %13247 = vst [vmem:[#allocation13 + $0x10] sm:$0xff] %v13239
    %13248 = vst [vmem:[#allocation13 + $0x18] sm:$0xff] %v13240
    %13249 = vst [vmem:[#allocation13 + $0x20] sm:$0xff] %v13241
    %13250 = vst [vmem:[#allocation13 + $0x28] sm:$0xff] %v13242
    %13251 = vst [vmem:[#allocation13 + $0x30] sm:$0xff] %v13243
    %13252 = vst [vmem:[#allocation13 + $0x38] sm:$0xff] %v13244
    // Predicated region
    $region50: #{tpu_custom_call.1} parent=1 // pred_check
      _
    $region51: #{tpu_custom_call.1} parent=1 // pred_check_branch
      %13254 = sbr.rel (0) target = $region53
    $region52: #{tpu_custom_call.1} parent=1 // pred_region
      %13256 = vsyncadd [#allocation4], 0
      %s13257 = sshll.u32 [#allocation13], 4
      %s13258 = int_to_ptr.vmem [resolvable:$true] %s13257
      %s13259 = sshll.u32 %s6, 4
      %s13260 = int_to_ptr.hbm [resolvable:$true] %s13259
      %13265 = dma.vmem_to_hbm [thread:$0]  %s13258, 1024, %s13260, [#allocation4], 512, 512, 32
    $region53: #{tpu_custom_call.1} parent=1 // pred_fallthru
      _
    // Predicated region
    $region54: #{tpu_custom_call.1} parent=1 // pred_check
      _
    $region55: #{tpu_custom_call.1} parent=1 // pred_check_branch
      %13267 = sbr.rel (0) target = $region57
    $region56: #{tpu_custom_call.1} parent=1 // pred_region
      %13269 = vsyncadd [#allocation15], 0
      %s13270 = sshll.u32 [#allocation14], 4
      %s13271 = int_to_ptr.vmem [resolvable:$true] %s13270
      %s13272 = sshll.u32 %s7, 4
      %s13273 = int_to_ptr.hbm [resolvable:$true] %s13272
      %13278 = dma.vmem_to_hbm [thread:$0]  %s13271, 1024, %s13273, [#allocation15], 64, 64, 4
    $region57: #{tpu_custom_call.1} parent=1 // pred_fallthru
      _
    // Predicated region
    $region58: #{tpu_custom_call.1} parent=1 // pred_check
      _
    $region59: #{tpu_custom_call.1} parent=1 // pred_check_branch
      %13280 = sbr.rel (0) target = $region61
    $region60: #{tpu_custom_call.1} parent=1 // pred_region
      %13282 = dma.done [#allocation4], 1024
    $region61: #{tpu_custom_call.1} parent=1 // pred_fallthru
      _
    // Predicated region
    $region62: #{tpu_custom_call.1} parent=1 // pred_check
      _
    $region63: #{tpu_custom_call.1} parent=1 // pred_check_branch
      %13284 = sbr.rel (0) target = $region65
    $region64: #{tpu_custom_call.1} parent=1 // pred_region
      %13286 = dma.done [#allocation15], 1024
    $region65: #{tpu_custom_call.1} parent=1 // pred_fallthru
      _
    %13287 = vsyncpa [#allocation3], 1
    %13288 = vsyncpa [#allocation6], 1
    %13289 = vsyncpa [#allocation9], 1
    %13290 = vsyncpa [#allocation12], 1
    %13291 = vsyncpa [#allocation4], 1
    %13292 = vsyncpa [#allocation15], 1

</llo_original>
